<compile_context>
chip_gen: v7x
topology: tpu7x:2x2x1
jax: 0.10.0
libtpu: 0.0.40
codegen_flags: <defaults>
</compile_context>

<pallas_src>
import functools

import jax
import jax.numpy as jnp
from jax.experimental import pallas as pl
from jax.experimental.pallas import tpu as pltpu


_VMEM_BUDGET = 20 * 1024 * 1024      # conservative per-step working-set target (all gens)
_VMEM_LIMIT_CAP = 48 * 1024 * 1024   # stays under v7x's 64 MiB physical VMEM with headroom
_MODE_CACHE = {}                     # shape signature -> "fast" | "legacy"


def _round_up(x, m):
    return ((x + m - 1) // m) * m


def _infer_hw(seq):
    h = w = int(seq ** 0.5)
    if h * w != seq:
        h += 1
    assert h * w == seq, "seq length must factor as h*w (same requirement as einops rearrange)"
    return h, w


def _selector(F, C, d1, d2, dtype):
    # Column-permutation one-hot: output column j = c*(d1*d2) + p*d2 + q pulls input
    # feature (p*d2 + q)*C + c, i.e. S[f, j] = 1 iff f == (j % (d1*d2))*C + j//(d1*d2).
    j = jnp.arange(F)
    src = (j % (d1 * d2)) * C + (j // (d1 * d2))
    return (jnp.arange(F)[:, None] == src[None, :]).astype(dtype)


# ----------------------------------------------------------------------------------
# Fast path: lane-dense per-channel slabs, single wide-M matmul per grid step.
# ----------------------------------------------------------------------------------

def _fast_vmem_need(hb, w, F, C, d1, d2, itemsize):
    W = w * d2
    x_blk = hb * w * F * itemsize                                        # input block
    out_blk = C * hb * _round_up(d1, 8) * _round_up(W, 128) * itemsize   # padded out block
    sel = _round_up(F, 8) * _round_up(F, 128) * itemsize                 # resident selector
    y_tmp = _round_up(hb * w, 8) * _round_up(F, 128) * 4                 # f32 matmul result
    return 2 * x_blk + 2 * out_blk + 2 * sel + y_tmp                     # double-buffered


def _pick_hb_fast(B, h, w, F, C, d1, d2, itemsize):
    # hb must divide h; the flat x block (1, hb*w, F) needs hb*w % 8 == 0 unless it
    # spans the whole sequence (hb == h), which is always legal.
    legal = [hb for hb in range(1, h + 1)
             if h % hb == 0 and ((hb * w) % 8 == 0 or hb == h)]
    fit = [hb for hb in legal
           if _fast_vmem_need(hb, w, F, C, d1, d2, itemsize) <= _VMEM_BUDGET]
    if not fit:
        fit = [min(legal)]
    # Prefer >= 2 total grid steps so a v7x chip (2 TensorCores) is never half idle.
    multi = [hb for hb in fit if B * (h // hb) >= 2]
    return max(multi) if multi else max(fit)


def _make_fast_kernel(C, d1, d2, w, hb):
    D = d1 * d2
    W = w * d2

    def kernel(x_ref, s_ref, o_ref):
        # x_ref: (1, hb*w, F)        hb image rows' worth of tokens
        # s_ref: (F, F)              column-permutation selector, resident in VMEM
        # o_ref: (1, C, hb, d1, W)   lane-dense output slab (W = w*d2 in lanes)
        y = jnp.dot(x_ref[0], s_ref[...],
                    preferred_element_type=jnp.float32).astype(o_ref.dtype)
        # y columns are now in (c, p, q) order.
        for c in range(C):
            yc = y[:, c * D:(c + 1) * D]            # (hb*w, d1*d2)
            z = yc.reshape(hb, w, d1, d2)           # index (hr, wi, p, q)
            z = jnp.transpose(z, (0, 2, 1, 3))      # (hr, p, wi, q)  -- XLU relayout
            o_ref[0, c] = z.reshape(hb, d1, W)      # one dense store per channel

    return kernel


@functools.lru_cache(maxsize=None)
def _fast_call(B, seq, F, C, d1, d2, h, w, dtype_name):
    dtype = jnp.dtype(dtype_name)
    W = w * d2
    itemsize = dtype.itemsize
    hb = _pick_hb_fast(B, h, w, F, C, d1, d2, itemsize)
    need = _fast_vmem_need(hb, w, F, C, d1, d2, itemsize)
    vmem_limit = int(min(_VMEM_LIMIT_CAP, max(16 * 1024 * 1024, 2 * need)))

    return pl.pallas_call(
        _make_fast_kernel(C, d1, d2, w, hb),
        out_shape=jax.ShapeDtypeStruct((B, C, h, d1, W), dtype),
        grid_spec=pltpu.PrefetchScalarGridSpec(
            num_scalar_prefetch=0,
            grid=(B, h // hb),
            in_specs=[
                # hb*w tokens (all features) per (b, hi)
                pl.BlockSpec((1, hb * w, F), lambda b, hi: (b, hi, 0)),
                # full selector, constant block index -> fetched once, stays resident
                pl.BlockSpec((F, F), lambda b, hi: (0, 0)),
            ],
            out_specs=pl.BlockSpec((1, C, hb, d1, W),
                                   lambda b, hi: (b, 0, hi, 0, 0)),
        ),
        compiler_params=pltpu.CompilerParams(
            dimension_semantics=("parallel", "parallel"),
            vmem_limit_bytes=vmem_limit),
        # Pure data movement from XLA's point of view: schedule it as memory-bound.
        cost_estimate=pl.CostEstimate(
            flops=0, transcendentals=0,
            bytes_accessed=2 * B * seq * F * itemsize),
    )


# ----------------------------------------------------------------------------------
# Legacy path (= rev 2, validated on hardware): kept as an automatic fallback in case
# the fast path's reshape/transpose relayout does not lower on this toolchain.
# ----------------------------------------------------------------------------------

def _pick_hb_legacy(h, w, C, d1):
    best = 1
    for cand in range(1, h + 1):
        if h % cand:
            continue
        if cand * w <= 256 and C * d1 * cand <= 128:
            best = cand
    return best


def _make_legacy_kernel(C, d1, d2, w, hb):
    def kernel(x_ref, s_ref, o_ref):
        # x_ref: (1, hb, w, F); s_ref: (F, F); o_ref: (1, C, hb*d1, w, d2)
        s = s_ref[...]
        for hr in range(hb):
            x = x_ref[0, hr]                                                 # (w, F)
            y = jnp.dot(x, s, preferred_element_type=jnp.float32).astype(o_ref.dtype)
            for c in range(C):
                for p in range(d1):
                    col = (c * d1 + p) * d2
                    o_ref[0, c, hr * d1 + p] = y[:, col:col + d2]            # (w, d2)
    return kernel


@functools.lru_cache(maxsize=None)
def _legacy_call(B, seq, F, C, d1, d2, h, w, dtype_name):
    dtype = jnp.dtype(dtype_name)
    H = h * d1
    hb = _pick_hb_legacy(h, w, C, d1)
    return pl.pallas_call(
        _make_legacy_kernel(C, d1, d2, w, hb),
        out_shape=jax.ShapeDtypeStruct((B, C, H, w, d2), dtype),
        grid_spec=pltpu.PrefetchScalarGridSpec(
            num_scalar_prefetch=0,
            grid=(B, h // hb),
            in_specs=[
                pl.BlockSpec((1, hb, w, F), lambda b, hi: (b, hi, 0, 0)),
                pl.BlockSpec((F, F), lambda b, hi: (0, 0)),
            ],
            out_specs=pl.BlockSpec((1, C, hb * d1, w, d2),
                                   lambda b, hi: (b, 0, hi, 0, 0)),
        ),
        compiler_params=pltpu.CompilerParams(
            dimension_semantics=("parallel", "parallel")),
    )


# ----------------------------------------------------------------------------------
# Public wrapper + reference.
# ----------------------------------------------------------------------------------

def _reference_to_image(x, out_channels, d1, d2):
    """Pure-JAX reference matching the einops rearrange."""
    B, seq, _ = x.shape
    h, w = _infer_hw(seq)
    x6 = x.reshape(B, h, w, d1, d2, out_channels)
    y = jnp.transpose(x6, (0, 5, 1, 3, 2, 4))          # (B, C, h, d1, w, d2)
    return y.reshape(B, out_channels, h * d1, w * d2)


def to_image(x, out_channels, d1, d2):
    """Pallas implementation of ToImage.forward: (B, h*w, d1*d2*C) -> (B, C, h*d1, w*d2)."""
    B, seq, feat = x.shape
    C = out_channels
    F = d1 * d2 * C
    assert feat == F, "feature dim must equal d1*d2*out_channels"
    h, w = _infer_hw(seq)
    H, W = h * d1, w * d2

    S = _selector(F, C, d1, d2, x.dtype)
    dtype_name = jnp.dtype(x.dtype).name
    key = (B, seq, F, C, d1, d2, dtype_name)
    mode = _MODE_CACHE.get(key, "fast")

    if mode == "fast":
        try:
            call = _fast_call(B, seq, F, C, d1, d2, h, w, dtype_name)
            out6 = jax.block_until_ready(call(x, S))
            out = out6.reshape(B, C, H, W)            # (h, d1) -> H merge: metadata only
            if key not in _MODE_CACHE:
                # One-time guard per shape: the fast path leans on Mosaic
                # reshape/transpose lowering; verify it numerically once.
                if not bool(jnp.allclose(out, _reference_to_image(x, C, d1, d2))):
                    raise RuntimeError("fast ToImage relayout mismatch")
            _MODE_CACHE[key] = "fast"
            return out
        except Exception:
            _MODE_CACHE[key] = "legacy"               # lowering unavailable -> rev-2 path

    call = _legacy_call(B, seq, F, C, d1, d2, h, w, dtype_name)
    out5 = call(x.reshape(B, h, w, F), S)
    return out5.reshape(B, C, H, W)                   # trailing (w, d2) -> W: metadata only


def _run_case(key, B, h, w, d1, d2, C):
    seq, F = h * w, d1 * d2 * C
    x = jax.random.normal(key, (B, seq, F), dtype=jnp.float32)
    out = jax.block_until_ready(to_image(x, C, d1, d2))
    ref = _reference_to_image(x, C, d1, d2)
    assert out.shape == (B, C, h * d1, w * d2), out.shape
    assert jnp.allclose(out, ref), "Pallas ToImage kernel does not match reference rearrange"


if __name__ == "__main__":
    key = jax.random.PRNGKey(0)
    k1, k2 = jax.random.split(key)
    # Toy ViT head shape.
    _run_case(k1, B=2, h=8, w=8, d1=2, d2=2, C=4)
    # w not a multiple of 8 (exercises the full-seq block / hb == h path).
    _run_case(k2, B=1, h=6, w=6, d1=2, d2=2, C=3)
    print("KERNEL_OK")
</pallas_src>

<mosaic_0001>
module attributes {stable_mosaic.version = 11 : i64} {
  func.func @kernel(%arg0: i32, %arg1: i32, %arg2: memref<1x64x16xf32, #tpu.memory_space<vmem>>, %arg3: memref<16x16xf32, #tpu.memory_space<vmem>>, %arg4: memref<1x4x8x2x16xf32, #tpu.memory_space<vmem>>) attributes {dimension_semantics = [#tpu.dimension_semantics<parallel>, #tpu.dimension_semantics<parallel>], iteration_bounds = array<i64: 2, 1>, scalar_prefetch = 0 : i64, scratch_operands = 0 : i64, tpu.core_type = #tpu.core_type<tc>, window_params = [{transform_indices = @transform_0, window_bounds = array<i64: 1, 64, 16>}, {pipeline_mode = #tpu.pipeline_mode<synchronous>, transform_indices = @transform_1, window_bounds = array<i64: 16, 16>}, {transform_indices = @transform_2, window_bounds = array<i64: 1, 4, 8, 2, 16>}]} {
    %c0 = arith.constant 0 : index
    %c0_0 = arith.constant 0 : index
    %c0_1 = arith.constant 0 : index
    %0 = vector.load %arg2[%c0, %c0_0, %c0_1] : memref<1x64x16xf32, #tpu.memory_space<vmem>>, vector<1x64x16xf32>
    %1 = vector.shape_cast %0 : vector<1x64x16xf32> to vector<64x16xf32>
    %c0_2 = arith.constant 0 : index
    %c0_3 = arith.constant 0 : index
    %2 = vector.load %arg3[%c0_2, %c0_3] : memref<16x16xf32, #tpu.memory_space<vmem>>, vector<16x16xf32>
    %cst = arith.constant dense<0.000000e+00> : vector<64x16xf32>
    %3 = tpu.matmul %1, %2, %cst {dimension_numbers = #tpu.dot_dimension_numbers<[1], [0], [0], [1], [0, 0, 1, 1], [], []>} : vector<64x16xf32>, vector<16x16xf32>, vector<64x16xf32> -> vector<64x16xf32>
    %4 = vector.extract_strided_slice %3 {offsets = [0, 0], sizes = [64, 4], strides = [1, 1]} : vector<64x16xf32> to vector<64x4xf32>
    %5 = vector.shape_cast %4 : vector<64x4xf32> to vector<8x8x2x2xf32>
    %6 = tpu.transpose %5, [0, 2, 1, 3] : vector<8x8x2x2xf32> -> vector<8x2x8x2xf32>
    %7 = vector.shape_cast %6 : vector<8x2x8x2xf32> to vector<8x2x16xf32>
    %c0_4 = arith.constant 0 : index
    %c0_5 = arith.constant 0 : index
    %c0_6 = arith.constant 0 : index
    %c0_7 = arith.constant 0 : index
    %c0_8 = arith.constant 0 : index
    %8 = vector.load %arg4[%c0_4, %c0_5, %c0_6, %c0_7, %c0_8] : memref<1x4x8x2x16xf32, #tpu.memory_space<vmem>>, vector<1x1x8x2x16xf32>
    %9 = vector.shape_cast %8 : vector<1x1x8x2x16xf32> to vector<8x2x16xf32>
    %10 = vector.shape_cast %7 : vector<8x2x16xf32> to vector<1x1x8x2x16xf32>
    tpu.vector_store %arg4[%c0_4, %c0_5, %c0_6, %c0_7, %c0_8], %10 {strides = array<i32>} : memref<1x4x8x2x16xf32, #tpu.memory_space<vmem>>, vector<1x1x8x2x16xf32>,
    %11 = vector.extract_strided_slice %3 {offsets = [0, 4], sizes = [64, 4], strides = [1, 1]} : vector<64x16xf32> to vector<64x4xf32>
    %12 = vector.shape_cast %11 : vector<64x4xf32> to vector<8x8x2x2xf32>
    %13 = tpu.transpose %12, [0, 2, 1, 3] : vector<8x8x2x2xf32> -> vector<8x2x8x2xf32>
    %14 = vector.shape_cast %13 : vector<8x2x8x2xf32> to vector<8x2x16xf32>
    %c0_9 = arith.constant 0 : index
    %c1 = arith.constant 1 : index
    %c0_10 = arith.constant 0 : index
    %c0_11 = arith.constant 0 : index
    %c0_12 = arith.constant 0 : index
    %15 = vector.load %arg4[%c0_9, %c1, %c0_10, %c0_11, %c0_12] : memref<1x4x8x2x16xf32, #tpu.memory_space<vmem>>, vector<1x1x8x2x16xf32>
    %16 = vector.shape_cast %15 : vector<1x1x8x2x16xf32> to vector<8x2x16xf32>
    %17 = vector.shape_cast %14 : vector<8x2x16xf32> to vector<1x1x8x2x16xf32>
    tpu.vector_store %arg4[%c0_9, %c1, %c0_10, %c0_11, %c0_12], %17 {strides = array<i32>} : memref<1x4x8x2x16xf32, #tpu.memory_space<vmem>>, vector<1x1x8x2x16xf32>,
    %18 = vector.extract_strided_slice %3 {offsets = [0, 8], sizes = [64, 4], strides = [1, 1]} : vector<64x16xf32> to vector<64x4xf32>
    %19 = vector.shape_cast %18 : vector<64x4xf32> to vector<8x8x2x2xf32>
    %20 = tpu.transpose %19, [0, 2, 1, 3] : vector<8x8x2x2xf32> -> vector<8x2x8x2xf32>
    %21 = vector.shape_cast %20 : vector<8x2x8x2xf32> to vector<8x2x16xf32>
    %c0_13 = arith.constant 0 : index
    %c2 = arith.constant 2 : index
    %c0_14 = arith.constant 0 : index
    %c0_15 = arith.constant 0 : index
    %c0_16 = arith.constant 0 : index
    %22 = vector.load %arg4[%c0_13, %c2, %c0_14, %c0_15, %c0_16] : memref<1x4x8x2x16xf32, #tpu.memory_space<vmem>>, vector<1x1x8x2x16xf32>
    %23 = vector.shape_cast %22 : vector<1x1x8x2x16xf32> to vector<8x2x16xf32>
    %24 = vector.shape_cast %21 : vector<8x2x16xf32> to vector<1x1x8x2x16xf32>
    tpu.vector_store %arg4[%c0_13, %c2, %c0_14, %c0_15, %c0_16], %24 {strides = array<i32>} : memref<1x4x8x2x16xf32, #tpu.memory_space<vmem>>, vector<1x1x8x2x16xf32>,
    %25 = vector.extract_strided_slice %3 {offsets = [0, 12], sizes = [64, 4], strides = [1, 1]} : vector<64x16xf32> to vector<64x4xf32>
    %26 = vector.shape_cast %25 : vector<64x4xf32> to vector<8x8x2x2xf32>
    %27 = tpu.transpose %26, [0, 2, 1, 3] : vector<8x8x2x2xf32> -> vector<8x2x8x2xf32>
    %28 = vector.shape_cast %27 : vector<8x2x8x2xf32> to vector<8x2x16xf32>
    %c0_17 = arith.constant 0 : index
    %c3 = arith.constant 3 : index
    %c0_18 = arith.constant 0 : index
    %c0_19 = arith.constant 0 : index
    %c0_20 = arith.constant 0 : index
    %29 = vector.load %arg4[%c0_17, %c3, %c0_18, %c0_19, %c0_20] : memref<1x4x8x2x16xf32, #tpu.memory_space<vmem>>, vector<1x1x8x2x16xf32>
    %30 = vector.shape_cast %29 : vector<1x1x8x2x16xf32> to vector<8x2x16xf32>
    %31 = vector.shape_cast %28 : vector<8x2x16xf32> to vector<1x1x8x2x16xf32>
    tpu.vector_store %arg4[%c0_17, %c3, %c0_18, %c0_19, %c0_20], %31 {strides = array<i32>} : memref<1x4x8x2x16xf32, #tpu.memory_space<vmem>>, vector<1x1x8x2x16xf32>,
    return
  }
  func.func @transform_0(%arg0: i32, %arg1: i32) -> (i32, i32, i32) {
    %c0_i32 = arith.constant 0 : i32
    %c0_i32_0 = arith.constant 0 : i32
    return %arg0, %arg1, %c0_i32 : i32, i32, i32
  }
  func.func @transform_1(%arg0: i32, %arg1: i32) -> (i32, i32) {
    %c0_i32 = arith.constant 0 : i32
    %c0_i32_0 = arith.constant 0 : i32
    %c0_i32_1 = arith.constant 0 : i32
    return %c0_i32, %c0_i32_0 : i32, i32
  }
  func.func @transform_2(%arg0: i32, %arg1: i32) -> (i32, i32, i32, i32, i32) {
    %c0_i32 = arith.constant 0 : i32
    %c0_i32_0 = arith.constant 0 : i32
    %c0_i32_1 = arith.constant 0 : i32
    %c0_i32_2 = arith.constant 0 : i32
    return %arg0, %c0_i32, %arg1, %c0_i32_0, %c0_i32_1 : i32, i32, i32, i32, i32
  }
}

module attributes {stable_mosaic.version = 11 : i64} {
  func.func @kernel(%arg0: i32, %arg1: i32, %arg2: memref<1x8x8x16xf32, #tpu.memory_space<vmem>>, %arg3: memref<16x16xf32, #tpu.memory_space<vmem>>, %arg4: memref<1x4x16x8x2xf32, #tpu.memory_space<vmem>>) attributes {dimension_semantics = [#tpu.dimension_semantics<parallel>, #tpu.dimension_semantics<parallel>], iteration_bounds = array<i64: 2, 1>, scalar_prefetch = 0 : i64, scratch_operands = 0 : i64, tpu.core_type = #tpu.core_type<tc>, window_params = [{transform_indices = @transform_0, window_bounds = array<i64: 1, 8, 8, 16>}, {pipeline_mode = #tpu.pipeline_mode<synchronous>, transform_indices = @transform_1, window_bounds = array<i64: 16, 16>}, {transform_indices = @transform_2, window_bounds = array<i64: 1, 4, 16, 8, 2>}]} {
    %c0 = arith.constant 0 : index
    %c0_0 = arith.constant 0 : index
    %0 = vector.load %arg3[%c0, %c0_0] : memref<16x16xf32, #tpu.memory_space<vmem>>, vector<16x16xf32>
    %c0_1 = arith.constant 0 : index
    %c0_2 = arith.constant 0 : index
    %c0_3 = arith.constant 0 : index
    %c0_4 = arith.constant 0 : index
    %1 = vector.load %arg2[%c0_1, %c0_2, %c0_3, %c0_4] : memref<1x8x8x16xf32, #tpu.memory_space<vmem>>, vector<1x1x8x16xf32>
    %2 = vector.shape_cast %1 : vector<1x1x8x16xf32> to vector<8x16xf32>
    %cst = arith.constant dense<0.000000e+00> : vector<8x16xf32>
    %3 = tpu.matmul %2, %0, %cst {dimension_numbers = #tpu.dot_dimension_numbers<[1], [0], [0], [1], [0, 0, 1, 1], [], []>} : vector<8x16xf32>, vector<16x16xf32>, vector<8x16xf32> -> vector<8x16xf32>
    %4 = vector.extract_strided_slice %3 {offsets = [0, 0], sizes = [8, 2], strides = [1, 1]} : vector<8x16xf32> to vector<8x2xf32>
    %c0_5 = arith.constant 0 : index
    %c0_6 = arith.constant 0 : index
    %c0_7 = arith.constant 0 : index
    %c0_8 = arith.constant 0 : index
    %c0_9 = arith.constant 0 : index
    %5 = vector.load %arg4[%c0_5, %c0_6, %c0_7, %c0_8, %c0_9] : memref<1x4x16x8x2xf32, #tpu.memory_space<vmem>>, vector<1x1x1x8x2xf32>
    %6 = vector.shape_cast %5 : vector<1x1x1x8x2xf32> to vector<8x2xf32>
    %7 = vector.shape_cast %4 : vector<8x2xf32> to vector<1x1x1x8x2xf32>
    tpu.vector_store %arg4[%c0_5, %c0_6, %c0_7, %c0_8, %c0_9], %7 {strides = array<i32>} : memref<1x4x16x8x2xf32, #tpu.memory_space<vmem>>, vector<1x1x1x8x2xf32>,
    %8 = vector.extract_strided_slice %3 {offsets = [0, 2], sizes = [8, 2], strides = [1, 1]} : vector<8x16xf32> to vector<8x2xf32>
    %c0_10 = arith.constant 0 : index
    %c0_11 = arith.constant 0 : index
    %c1 = arith.constant 1 : index
    %c0_12 = arith.constant 0 : index
    %c0_13 = arith.constant 0 : index
    %9 = vector.load %arg4[%c0_10, %c0_11, %c1, %c0_12, %c0_13] : memref<1x4x16x8x2xf32, #tpu.memory_space<vmem>>, vector<1x1x1x8x2xf32>
    %10 = vector.shape_cast %9 : vector<1x1x1x8x2xf32> to vector<8x2xf32>
    %11 = vector.shape_cast %8 : vector<8x2xf32> to vector<1x1x1x8x2xf32>
    tpu.vector_store %arg4[%c0_10, %c0_11, %c1, %c0_12, %c0_13], %11 {strides = array<i32>} : memref<1x4x16x8x2xf32, #tpu.memory_space<vmem>>, vector<1x1x1x8x2xf32>,
    %12 = vector.extract_strided_slice %3 {offsets = [0, 4], sizes = [8, 2], strides = [1, 1]} : vector<8x16xf32> to vector<8x2xf32>
    %c0_14 = arith.constant 0 : index
    %c1_15 = arith.constant 1 : index
    %c0_16 = arith.constant 0 : index
    %c0_17 = arith.constant 0 : index
    %c0_18 = arith.constant 0 : index
    %13 = vector.load %arg4[%c0_14, %c1_15, %c0_16, %c0_17, %c0_18] : memref<1x4x16x8x2xf32, #tpu.memory_space<vmem>>, vector<1x1x1x8x2xf32>
    %14 = vector.shape_cast %13 : vector<1x1x1x8x2xf32> to vector<8x2xf32>
    %15 = vector.shape_cast %12 : vector<8x2xf32> to vector<1x1x1x8x2xf32>
    tpu.vector_store %arg4[%c0_14, %c1_15, %c0_16, %c0_17, %c0_18], %15 {strides = array<i32>} : memref<1x4x16x8x2xf32, #tpu.memory_space<vmem>>, vector<1x1x1x8x2xf32>,
    %16 = vector.extract_strided_slice %3 {offsets = [0, 6], sizes = [8, 2], strides = [1, 1]} : vector<8x16xf32> to vector<8x2xf32>
    %c0_19 = arith.constant 0 : index
    %c1_20 = arith.constant 1 : index
    %c1_21 = arith.constant 1 : index
    %c0_22 = arith.constant 0 : index
    %c0_23 = arith.constant 0 : index
    %17 = vector.load %arg4[%c0_19, %c1_20, %c1_21, %c0_22, %c0_23] : memref<1x4x16x8x2xf32, #tpu.memory_space<vmem>>, vector<1x1x1x8x2xf32>
    %18 = vector.shape_cast %17 : vector<1x1x1x8x2xf32> to vector<8x2xf32>
    %19 = vector.shape_cast %16 : vector<8x2xf32> to vector<1x1x1x8x2xf32>
    tpu.vector_store %arg4[%c0_19, %c1_20, %c1_21, %c0_22, %c0_23], %19 {strides = array<i32>} : memref<1x4x16x8x2xf32, #tpu.memory_space<vmem>>, vector<1x1x1x8x2xf32>,
    %20 = vector.extract_strided_slice %3 {offsets = [0, 8], sizes = [8, 2], strides = [1, 1]} : vector<8x16xf32> to vector<8x2xf32>
    %c0_24 = arith.constant 0 : index
    %c2 = arith.constant 2 : index
    %c0_25 = arith.constant 0 : index
    %c0_26 = arith.constant 0 : index
    %c0_27 = arith.constant 0 : index
    %21 = vector.load %arg4[%c0_24, %c2, %c0_25, %c0_26, %c0_27] : memref<1x4x16x8x2xf32, #tpu.memory_space<vmem>>, vector<1x1x1x8x2xf32>
    %22 = vector.shape_cast %21 : vector<1x1x1x8x2xf32> to vector<8x2xf32>
    %23 = vector.shape_cast %20 : vector<8x2xf32> to vector<1x1x1x8x2xf32>
    tpu.vector_store %arg4[%c0_24, %c2, %c0_25, %c0_26, %c0_27], %23 {strides = array<i32>} : memref<1x4x16x8x2xf32, #tpu.memory_space<vmem>>, vector<1x1x1x8x2xf32>,
    %24 = vector.extract_strided_slice %3 {offsets = [0, 10], sizes = [8, 2], strides = [1, 1]} : vector<8x16xf32> to vector<8x2xf32>
    %c0_28 = arith.constant 0 : index
    %c2_29 = arith.constant 2 : index
    %c1_30 = arith.constant 1 : index
    %c0_31 = arith.constant 0 : index
    %c0_32 = arith.constant 0 : index
    %25 = vector.load %arg4[%c0_28, %c2_29, %c1_30, %c0_31, %c0_32] : memref<1x4x16x8x2xf32, #tpu.memory_space<vmem>>, vector<1x1x1x8x2xf32>
    %26 = vector.shape_cast %25 : vector<1x1x1x8x2xf32> to vector<8x2xf32>
    %27 = vector.shape_cast %24 : vector<8x2xf32> to vector<1x1x1x8x2xf32>
    tpu.vector_store %arg4[%c0_28, %c2_29, %c1_30, %c0_31, %c0_32], %27 {strides = array<i32>} : memref<1x4x16x8x2xf32, #tpu.memory_space<vmem>>, vector<1x1x1x8x2xf32>,
    %28 = vector.extract_strided_slice %3 {offsets = [0, 12], sizes = [8, 2], strides = [1, 1]} : vector<8x16xf32> to vector<8x2xf32>
    %c0_33 = arith.constant 0 : index
    %c3 = arith.constant 3 : index
    %c0_34 = arith.constant 0 : index
    %c0_35 = arith.constant 0 : index
    %c0_36 = arith.constant 0 : index
    %29 = vector.load %arg4[%c0_33, %c3, %c0_34, %c0_35, %c0_36] : memref<1x4x16x8x2xf32, #tpu.memory_space<vmem>>, vector<1x1x1x8x2xf32>
    %30 = vector.shape_cast %29 : vector<1x1x1x8x2xf32> to vector<8x2xf32>
    %31 = vector.shape_cast %28 : vector<8x2xf32> to vector<1x1x1x8x2xf32>
    tpu.vector_store %arg4[%c0_33, %c3, %c0_34, %c0_35, %c0_36], %31 {strides = array<i32>} : memref<1x4x16x8x2xf32, #tpu.memory_space<vmem>>, vector<1x1x1x8x2xf32>,
    %32 = vector.extract_strided_slice %3 {offsets = [0, 14], sizes = [8, 2], strides = [1, 1]} : vector<8x16xf32> to vector<8x2xf32>
    %c0_37 = arith.constant 0 : index
    %c3_38 = arith.constant 3 : index
    %c1_39 = arith.constant 1 : index
    %c0_40 = arith.constant 0 : index
    %c0_41 = arith.constant 0 : index
    %33 = vector.load %arg4[%c0_37, %c3_38, %c1_39, %c0_40, %c0_41] : memref<1x4x16x8x2xf32, #tpu.memory_space<vmem>>, vector<1x1x1x8x2xf32>
    %34 = vector.shape_cast %33 : vector<1x1x1x8x2xf32> to vector<8x2xf32>
    %35 = vector.shape_cast %32 : vector<8x2xf32> to vector<1x1x1x8x2xf32>
    tpu.vector_store %arg4[%c0_37, %c3_38, %c1_39, %c0_40, %c0_41], %35 {strides = array<i32>} : memref<1x4x16x8x2xf32, #tpu.memory_space<vmem>>, vector<1x1x1x8x2xf32>,
    %c0_42 = arith.constant 0 : index
    %c1_43 = arith.constant 1 : index
    %c0_44 = arith.constant 0 : index
    %c0_45 = arith.constant 0 : index
    %36 = vector.load %arg2[%c0_42, %c1_43, %c0_44, %c0_45] : memref<1x8x8x16xf32, #tpu.memory_space<vmem>>, vector<1x1x8x16xf32>
    %37 = vector.shape_cast %36 : vector<1x1x8x16xf32> to vector<8x16xf32>
    %cst_46 = arith.constant dense<0.000000e+00> : vector<8x16xf32>
    %38 = tpu.matmul %37, %0, %cst_46 {dimension_numbers = #tpu.dot_dimension_numbers<[1], [0], [0], [1], [0, 0, 1, 1], [], []>} : vector<8x16xf32>, vector<16x16xf32>, vector<8x16xf32> -> vector<8x16xf32>
    %39 = vector.extract_strided_slice %38 {offsets = [0, 0], sizes = [8, 2], strides = [1, 1]} : vector<8x16xf32> to vector<8x2xf32>
    %c0_47 = arith.constant 0 : index
    %c0_48 = arith.constant 0 : index
    %c2_49 = arith.constant 2 : index
    %c0_50 = arith.constant 0 : index
    %c0_51 = arith.constant 0 : index
    %40 = vector.load %arg4[%c0_47, %c0_48, %c2_49, %c0_50, %c0_51] : memref<1x4x16x8x2xf32, #tpu.memory_space<vmem>>, vector<1x1x1x8x2xf32>
    %41 = vector.shape_cast %40 : vector<1x1x1x8x2xf32> to vector<8x2xf32>
    %42 = vector.shape_cast %39 : vector<8x2xf32> to vector<1x1x1x8x2xf32>
    tpu.vector_store %arg4[%c0_47, %c0_48, %c2_49, %c0_50, %c0_51], %42 {strides = array<i32>} : memref<1x4x16x8x2xf32, #tpu.memory_space<vmem>>, vector<1x1x1x8x2xf32>,
    %43 = vector.extract_strided_slice %38 {offsets = [0, 2], sizes = [8, 2], strides = [1, 1]} : vector<8x16xf32> to vector<8x2xf32>
    %c0_52 = arith.constant 0 : index
    %c0_53 = arith.constant 0 : index
    %c3_54 = arith.constant 3 : index
    %c0_55 = arith.constant 0 : index
    %c0_56 = arith.constant 0 : index
    %44 = vector.load %arg4[%c0_52, %c0_53, %c3_54, %c0_55, %c0_56] : memref<1x4x16x8x2xf32, #tpu.memory_space<vmem>>, vector<1x1x1x8x2xf32>
    %45 = vector.shape_cast %44 : vector<1x1x1x8x2xf32> to vector<8x2xf32>
    %46 = vector.shape_cast %43 : vector<8x2xf32> to vector<1x1x1x8x2xf32>
    tpu.vector_store %arg4[%c0_52, %c0_53, %c3_54, %c0_55, %c0_56], %46 {strides = array<i32>} : memref<1x4x16x8x2xf32, #tpu.memory_space<vmem>>, vector<1x1x1x8x2xf32>,
    %47 = vector.extract_strided_slice %38 {offsets = [0, 4], sizes = [8, 2], strides = [1, 1]} : vector<8x16xf32> to vector<8x2xf32>
    %c0_57 = arith.constant 0 : index
    %c1_58 = arith.constant 1 : index
    %c2_59 = arith.constant 2 : index
    %c0_60 = arith.constant 0 : index
    %c0_61 = arith.constant 0 : index
    %48 = vector.load %arg4[%c0_57, %c1_58, %c2_59, %c0_60, %c0_61] : memref<1x4x16x8x2xf32, #tpu.memory_space<vmem>>, vector<1x1x1x8x2xf32>
    %49 = vector.shape_cast %48 : vector<1x1x1x8x2xf32> to vector<8x2xf32>
    %50 = vector.shape_cast %47 : vector<8x2xf32> to vector<1x1x1x8x2xf32>
    tpu.vector_store %arg4[%c0_57, %c1_58, %c2_59, %c0_60, %c0_61], %50 {strides = array<i32>} : memref<1x4x16x8x2xf32, #tpu.memory_space<vmem>>, vector<1x1x1x8x2xf32>,
    %51 = vector.extract_strided_slice %38 {offsets = [0, 6], sizes = [8, 2], strides = [1, 1]} : vector<8x16xf32> to vector<8x2xf32>
    %c0_62 = arith.constant 0 : index
    %c1_63 = arith.constant 1 : index
    %c3_64 = arith.constant 3 : index
    %c0_65 = arith.constant 0 : index
    %c0_66 = arith.constant 0 : index
    %52 = vector.load %arg4[%c0_62, %c1_63, %c3_64, %c0_65, %c0_66] : memref<1x4x16x8x2xf32, #tpu.memory_space<vmem>>, vector<1x1x1x8x2xf32>
    %53 = vector.shape_cast %52 : vector<1x1x1x8x2xf32> to vector<8x2xf32>
    %54 = vector.shape_cast %51 : vector<8x2xf32> to vector<1x1x1x8x2xf32>
    tpu.vector_store %arg4[%c0_62, %c1_63, %c3_64, %c0_65, %c0_66], %54 {strides = array<i32>} : memref<1x4x16x8x2xf32, #tpu.memory_space<vmem>>, vector<1x1x1x8x2xf32>,
    %55 = vector.extract_strided_slice %38 {offsets = [0, 8], sizes = [8, 2], strides = [1, 1]} : vector<8x16xf32> to vector<8x2xf32>
    %c0_67 = arith.constant 0 : index
    %c2_68 = arith.constant 2 : index
    %c2_69 = arith.constant 2 : index
    %c0_70 = arith.constant 0 : index
    %c0_71 = arith.constant 0 : index
    %56 = vector.load %arg4[%c0_67, %c2_68, %c2_69, %c0_70, %c0_71] : memref<1x4x16x8x2xf32, #tpu.memory_space<vmem>>, vector<1x1x1x8x2xf32>
    %57 = vector.shape_cast %56 : vector<1x1x1x8x2xf32> to vector<8x2xf32>
    %58 = vector.shape_cast %55 : vector<8x2xf32> to vector<1x1x1x8x2xf32>
    tpu.vector_store %arg4[%c0_67, %c2_68, %c2_69, %c0_70, %c0_71], %58 {strides = array<i32>} : memref<1x4x16x8x2xf32, #tpu.memory_space<vmem>>, vector<1x1x1x8x2xf32>,
    %59 = vector.extract_strided_slice %38 {offsets = [0, 10], sizes = [8, 2], strides = [1, 1]} : vector<8x16xf32> to vector<8x2xf32>
    %c0_72 = arith.constant 0 : index
    %c2_73 = arith.constant 2 : index
    %c3_74 = arith.constant 3 : index
    %c0_75 = arith.constant 0 : index
    %c0_76 = arith.constant 0 : index
    %60 = vector.load %arg4[%c0_72, %c2_73, %c3_74, %c0_75, %c0_76] : memref<1x4x16x8x2xf32, #tpu.memory_space<vmem>>, vector<1x1x1x8x2xf32>
    %61 = vector.shape_cast %60 : vector<1x1x1x8x2xf32> to vector<8x2xf32>
    %62 = vector.shape_cast %59 : vector<8x2xf32> to vector<1x1x1x8x2xf32>
    tpu.vector_store %arg4[%c0_72, %c2_73, %c3_74, %c0_75, %c0_76], %62 {strides = array<i32>} : memref<1x4x16x8x2xf32, #tpu.memory_space<vmem>>, vector<1x1x1x8x2xf32>,
    %63 = vector.extract_strided_slice %38 {offsets = [0, 12], sizes = [8, 2], strides = [1, 1]} : vector<8x16xf32> to vector<8x2xf32>
    %c0_77 = arith.constant 0 : index
    %c3_78 = arith.constant 3 : index
    %c2_79 = arith.constant 2 : index
    %c0_80 = arith.constant 0 : index
    %c0_81 = arith.constant 0 : index
    %64 = vector.load %arg4[%c0_77, %c3_78, %c2_79, %c0_80, %c0_81] : memref<1x4x16x8x2xf32, #tpu.memory_space<vmem>>, vector<1x1x1x8x2xf32>
    %65 = vector.shape_cast %64 : vector<1x1x1x8x2xf32> to vector<8x2xf32>
    %66 = vector.shape_cast %63 : vector<8x2xf32> to vector<1x1x1x8x2xf32>
    tpu.vector_store %arg4[%c0_77, %c3_78, %c2_79, %c0_80, %c0_81], %66 {strides = array<i32>} : memref<1x4x16x8x2xf32, #tpu.memory_space<vmem>>, vector<1x1x1x8x2xf32>,
    %67 = vector.extract_strided_slice %38 {offsets = [0, 14], sizes = [8, 2], strides = [1, 1]} : vector<8x16xf32> to vector<8x2xf32>
    %c0_82 = arith.constant 0 : index
    %c3_83 = arith.constant 3 : index
    %c3_84 = arith.constant 3 : index
    %c0_85 = arith.constant 0 : index
    %c0_86 = arith.constant 0 : index
    %68 = vector.load %arg4[%c0_82, %c3_83, %c3_84, %c0_85, %c0_86] : memref<1x4x16x8x2xf32, #tpu.memory_space<vmem>>, vector<1x1x1x8x2xf32>
    %69 = vector.shape_cast %68 : vector<1x1x1x8x2xf32> to vector<8x2xf32>
    %70 = vector.shape_cast %67 : vector<8x2xf32> to vector<1x1x1x8x2xf32>
    tpu.vector_store %arg4[%c0_82, %c3_83, %c3_84, %c0_85, %c0_86], %70 {strides = array<i32>} : memref<1x4x16x8x2xf32, #tpu.memory_space<vmem>>, vector<1x1x1x8x2xf32>,
    %c0_87 = arith.constant 0 : index
    %c2_88 = arith.constant 2 : index
    %c0_89 = arith.constant 0 : index
    %c0_90 = arith.constant 0 : index
    %71 = vector.load %arg2[%c0_87, %c2_88, %c0_89, %c0_90] : memref<1x8x8x16xf32, #tpu.memory_space<vmem>>, vector<1x1x8x16xf32>
    %72 = vector.shape_cast %71 : vector<1x1x8x16xf32> to vector<8x16xf32>
    %cst_91 = arith.constant dense<0.000000e+00> : vector<8x16xf32>
    %73 = tpu.matmul %72, %0, %cst_91 {dimension_numbers = #tpu.dot_dimension_numbers<[1], [0], [0], [1], [0, 0, 1, 1], [], []>} : vector<8x16xf32>, vector<16x16xf32>, vector<8x16xf32> -> vector<8x16xf32>
    %74 = vector.extract_strided_slice %73 {offsets = [0, 0], sizes = [8, 2], strides = [1, 1]} : vector<8x16xf32> to vector<8x2xf32>
    %c0_92 = arith.constant 0 : index
    %c0_93 = arith.constant 0 : index
    %c4 = arith.constant 4 : index
    %c0_94 = arith.constant 0 : index
    %c0_95 = arith.constant 0 : index
    %75 = vector.load %arg4[%c0_92, %c0_93, %c4, %c0_94, %c0_95] : memref<1x4x16x8x2xf32, #tpu.memory_space<vmem>>, vector<1x1x1x8x2xf32>
    %76 = vector.shape_cast %75 : vector<1x1x1x8x2xf32> to vector<8x2xf32>
    %77 = vector.shape_cast %74 : vector<8x2xf32> to vector<1x1x1x8x2xf32>
    tpu.vector_store %arg4[%c0_92, %c0_93, %c4, %c0_94, %c0_95], %77 {strides = array<i32>} : memref<1x4x16x8x2xf32, #tpu.memory_space<vmem>>, vector<1x1x1x8x2xf32>,
    %78 = vector.extract_strided_slice %73 {offsets = [0, 2], sizes = [8, 2], strides = [1, 1]} : vector<8x16xf32> to vector<8x2xf32>
    %c0_96 = arith.constant 0 : index
    %c0_97 = arith.constant 0 : index
    %c5 = arith.constant 5 : index
    %c0_98 = arith.constant 0 : index
    %c0_99 = arith.constant 0 : index
    %79 = vector.load %arg4[%c0_96, %c0_97, %c5, %c0_98, %c0_99] : memref<1x4x16x8x2xf32, #tpu.memory_space<vmem>>, vector<1x1x1x8x2xf32>
    %80 = vector.shape_cast %79 : vector<1x1x1x8x2xf32> to vector<8x2xf32>
    %81 = vector.shape_cast %78 : vector<8x2xf32> to vector<1x1x1x8x2xf32>
    tpu.vector_store %arg4[%c0_96, %c0_97, %c5, %c0_98, %c0_99], %81 {strides = array<i32>} : memref<1x4x16x8x2xf32, #tpu.memory_space<vmem>>, vector<1x1x1x8x2xf32>,
    %82 = vector.extract_strided_slice %73 {offsets = [0, 4], sizes = [8, 2], strides = [1, 1]} : vector<8x16xf32> to vector<8x2xf32>
    %c0_100 = arith.constant 0 : index
    %c1_101 = arith.constant 1 : index
    %c4_102 = arith.constant 4 : index
    %c0_103 = arith.constant 0 : index
    %c0_104 = arith.constant 0 : index
    %83 = vector.load %arg4[%c0_100, %c1_101, %c4_102, %c0_103, %c0_104] : memref<1x4x16x8x2xf32, #tpu.memory_space<vmem>>, vector<1x1x1x8x2xf32>
    %84 = vector.shape_cast %83 : vector<1x1x1x8x2xf32> to vector<8x2xf32>
    %85 = vector.shape_cast %82 : vector<8x2xf32> to vector<1x1x1x8x2xf32>
    tpu.vector_store %arg4[%c0_100, %c1_101, %c4_102, %c0_103, %c0_104], %85 {strides = array<i32>} : memref<1x4x16x8x2xf32, #tpu.memory_space<vmem>>, vector<1x1x1x8x2xf32>,
    %86 = vector.extract_strided_slice %73 {offsets = [0, 6], sizes = [8, 2], strides = [1, 1]} : vector<8x16xf32> to vector<8x2xf32>
    %c0_105 = arith.constant 0 : index
    %c1_106 = arith.constant 1 : index
    %c5_107 = arith.constant 5 : index
    %c0_108 = arith.constant 0 : index
    %c0_109 = arith.constant 0 : index
    %87 = vector.load %arg4[%c0_105, %c1_106, %c5_107, %c0_108, %c0_109] : memref<1x4x16x8x2xf32, #tpu.memory_space<vmem>>, vector<1x1x1x8x2xf32>
    %88 = vector.shape_cast %87 : vector<1x1x1x8x2xf32> to vector<8x2xf32>
    %89 = vector.shape_cast %86 : vector<8x2xf32> to vector<1x1x1x8x2xf32>
    tpu.vector_store %arg4[%c0_105, %c1_106, %c5_107, %c0_108, %c0_109], %89 {strides = array<i32>} : memref<1x4x16x8x2xf32, #tpu.memory_space<vmem>>, vector<1x1x1x8x2xf32>,
    %90 = vector.extract_strided_slice %73 {offsets = [0, 8], sizes = [8, 2], strides = [1, 1]} : vector<8x16xf32> to vector<8x2xf32>
    %c0_110 = arith.constant 0 : index
    %c2_111 = arith.constant 2 : index
    %c4_112 = arith.constant 4 : index
    %c0_113 = arith.constant 0 : index
    %c0_114 = arith.constant 0 : index
    %91 = vector.load %arg4[%c0_110, %c2_111, %c4_112, %c0_113, %c0_114] : memref<1x4x16x8x2xf32, #tpu.memory_space<vmem>>, vector<1x1x1x8x2xf32>
    %92 = vector.shape_cast %91 : vector<1x1x1x8x2xf32> to vector<8x2xf32>
    %93 = vector.shape_cast %90 : vector<8x2xf32> to vector<1x1x1x8x2xf32>
    tpu.vector_store %arg4[%c0_110, %c2_111, %c4_112, %c0_113, %c0_114], %93 {strides = array<i32>} : memref<1x4x16x8x2xf32, #tpu.memory_space<vmem>>, vector<1x1x1x8x2xf32>,
    %94 = vector.extract_strided_slice %73 {offsets = [0, 10], sizes = [8, 2], strides = [1, 1]} : vector<8x16xf32> to vector<8x2xf32>
    %c0_115 = arith.constant 0 : index
    %c2_116 = arith.constant 2 : index
    %c5_117 = arith.constant 5 : index
    %c0_118 = arith.constant 0 : index
    %c0_119 = arith.constant 0 : index
    %95 = vector.load %arg4[%c0_115, %c2_116, %c5_117, %c0_118, %c0_119] : memref<1x4x16x8x2xf32, #tpu.memory_space<vmem>>, vector<1x1x1x8x2xf32>
    %96 = vector.shape_cast %95 : vector<1x1x1x8x2xf32> to vector<8x2xf32>
    %97 = vector.shape_cast %94 : vector<8x2xf32> to vector<1x1x1x8x2xf32>
    tpu.vector_store %arg4[%c0_115, %c2_116, %c5_117, %c0_118, %c0_119], %97 {strides = array<i32>} : memref<1x4x16x8x2xf32, #tpu.memory_space<vmem>>, vector<1x1x1x8x2xf32>,
    %98 = vector.extract_strided_slice %73 {offsets = [0, 12], sizes = [8, 2], strides = [1, 1]} : vector<8x16xf32> to vector<8x2xf32>
    %c0_120 = arith.constant 0 : index
    %c3_121 = arith.constant 3 : index
    %c4_122 = arith.constant 4 : index
    %c0_123 = arith.constant 0 : index
    %c0_124 = arith.constant 0 : index
    %99 = vector.load %arg4[%c0_120, %c3_121, %c4_122, %c0_123, %c0_124] : memref<1x4x16x8x2xf32, #tpu.memory_space<vmem>>, vector<1x1x1x8x2xf32>
    %100 = vector.shape_cast %99 : vector<1x1x1x8x2xf32> to vector<8x2xf32>
    %101 = vector.shape_cast %98 : vector<8x2xf32> to vector<1x1x1x8x2xf32>
    tpu.vector_store %arg4[%c0_120, %c3_121, %c4_122, %c0_123, %c0_124], %101 {strides = array<i32>} : memref<1x4x16x8x2xf32, #tpu.memory_space<vmem>>, vector<1x1x1x8x2xf32>,
    %102 = vector.extract_strided_slice %73 {offsets = [0, 14], sizes = [8, 2], strides = [1, 1]} : vector<8x16xf32> to vector<8x2xf32>
    %c0_125 = arith.constant 0 : index
    %c3_126 = arith.constant 3 : index
    %c5_127 = arith.constant 5 : index
    %c0_128 = arith.constant 0 : index
    %c0_129 = arith.constant 0 : index
    %103 = vector.load %arg4[%c0_125, %c3_126, %c5_127, %c0_128, %c0_129] : memref<1x4x16x8x2xf32, #tpu.memory_space<vmem>>, vector<1x1x1x8x2xf32>
    %104 = vector.shape_cast %103 : vector<1x1x1x8x2xf32> to vector<8x2xf32>
    %105 = vector.shape_cast %102 : vector<8x2xf32> to vector<1x1x1x8x2xf32>
    tpu.vector_store %arg4[%c0_125, %c3_126, %c5_127, %c0_128, %c0_129], %105 {strides = array<i32>} : memref<1x4x16x8x2xf32, #tpu.memory_space<vmem>>, vector<1x1x1x8x2xf32>,
    %c0_130 = arith.constant 0 : index
    %c3_131 = arith.constant 3 : index
    %c0_132 = arith.constant 0 : index
    %c0_133 = arith.constant 0 : index
    %106 = vector.load %arg2[%c0_130, %c3_131, %c0_132, %c0_133] : memref<1x8x8x16xf32, #tpu.memory_space<vmem>>, vector<1x1x8x16xf32>
    %107 = vector.shape_cast %106 : vector<1x1x8x16xf32> to vector<8x16xf32>
    %cst_134 = arith.constant dense<0.000000e+00> : vector<8x16xf32>
    %108 = tpu.matmul %107, %0, %cst_134 {dimension_numbers = #tpu.dot_dimension_numbers<[1], [0], [0], [1], [0, 0, 1, 1], [], []>} : vector<8x16xf32>, vector<16x16xf32>, vector<8x16xf32> -> vector<8x16xf32>
    %109 = vector.extract_strided_slice %108 {offsets = [0, 0], sizes = [8, 2], strides = [1, 1]} : vector<8x16xf32> to vector<8x2xf32>
    %c0_135 = arith.constant 0 : index
    %c0_136 = arith.constant 0 : index
    %c6 = arith.constant 6 : index
    %c0_137 = arith.constant 0 : index
    %c0_138 = arith.constant 0 : index
    %110 = vector.load %arg4[%c0_135, %c0_136, %c6, %c0_137, %c0_138] : memref<1x4x16x8x2xf32, #tpu.memory_space<vmem>>, vector<1x1x1x8x2xf32>
    %111 = vector.shape_cast %110 : vector<1x1x1x8x2xf32> to vector<8x2xf32>
    %112 = vector.shape_cast %109 : vector<8x2xf32> to vector<1x1x1x8x2xf32>
    tpu.vector_store %arg4[%c0_135, %c0_136, %c6, %c0_137, %c0_138], %112 {strides = array<i32>} : memref<1x4x16x8x2xf32, #tpu.memory_space<vmem>>, vector<1x1x1x8x2xf32>,
    %113 = vector.extract_strided_slice %108 {offsets = [0, 2], sizes = [8, 2], strides = [1, 1]} : vector<8x16xf32> to vector<8x2xf32>
    %c0_139 = arith.constant 0 : index
    %c0_140 = arith.constant 0 : index
    %c7 = arith.constant 7 : index
    %c0_141 = arith.constant 0 : index
    %c0_142 = arith.constant 0 : index
    %114 = vector.load %arg4[%c0_139, %c0_140, %c7, %c0_141, %c0_142] : memref<1x4x16x8x2xf32, #tpu.memory_space<vmem>>, vector<1x1x1x8x2xf32>
    %115 = vector.shape_cast %114 : vector<1x1x1x8x2xf32> to vector<8x2xf32>
    %116 = vector.shape_cast %113 : vector<8x2xf32> to vector<1x1x1x8x2xf32>
    tpu.vector_store %arg4[%c0_139, %c0_140, %c7, %c0_141, %c0_142], %116 {strides = array<i32>} : memref<1x4x16x8x2xf32, #tpu.memory_space<vmem>>, vector<1x1x1x8x2xf32>,
    %117 = vector.extract_strided_slice %108 {offsets = [0, 4], sizes = [8, 2], strides = [1, 1]} : vector<8x16xf32> to vector<8x2xf32>
    %c0_143 = arith.constant 0 : index
    %c1_144 = arith.constant 1 : index
    %c6_145 = arith.constant 6 : index
    %c0_146 = arith.constant 0 : index
    %c0_147 = arith.constant 0 : index
    %118 = vector.load %arg4[%c0_143, %c1_144, %c6_145, %c0_146, %c0_147] : memref<1x4x16x8x2xf32, #tpu.memory_space<vmem>>, vector<1x1x1x8x2xf32>
    %119 = vector.shape_cast %118 : vector<1x1x1x8x2xf32> to vector<8x2xf32>
    %120 = vector.shape_cast %117 : vector<8x2xf32> to vector<1x1x1x8x2xf32>
    tpu.vector_store %arg4[%c0_143, %c1_144, %c6_145, %c0_146, %c0_147], %120 {strides = array<i32>} : memref<1x4x16x8x2xf32, #tpu.memory_space<vmem>>, vector<1x1x1x8x2xf32>,
    %121 = vector.extract_strided_slice %108 {offsets = [0, 6], sizes = [8, 2], strides = [1, 1]} : vector<8x16xf32> to vector<8x2xf32>
    %c0_148 = arith.constant 0 : index
    %c1_149 = arith.constant 1 : index
    %c7_150 = arith.constant 7 : index
    %c0_151 = arith.constant 0 : index
    %c0_152 = arith.constant 0 : index
    %122 = vector.load %arg4[%c0_148, %c1_149, %c7_150, %c0_151, %c0_152] : memref<1x4x16x8x2xf32, #tpu.memory_space<vmem>>, vector<1x1x1x8x2xf32>
    %123 = vector.shape_cast %122 : vector<1x1x1x8x2xf32> to vector<8x2xf32>
    %124 = vector.shape_cast %121 : vector<8x2xf32> to vector<1x1x1x8x2xf32>
    tpu.vector_store %arg4[%c0_148, %c1_149, %c7_150, %c0_151, %c0_152], %124 {strides = array<i32>} : memref<1x4x16x8x2xf32, #tpu.memory_space<vmem>>, vector<1x1x1x8x2xf32>,
    %125 = vector.extract_strided_slice %108 {offsets = [0, 8], sizes = [8, 2], strides = [1, 1]} : vector<8x16xf32> to vector<8x2xf32>
    %c0_153 = arith.constant 0 : index
    %c2_154 = arith.constant 2 : index
    %c6_155 = arith.constant 6 : index
    %c0_156 = arith.constant 0 : index
    %c0_157 = arith.constant 0 : index
    %126 = vector.load %arg4[%c0_153, %c2_154, %c6_155, %c0_156, %c0_157] : memref<1x4x16x8x2xf32, #tpu.memory_space<vmem>>, vector<1x1x1x8x2xf32>
    %127 = vector.shape_cast %126 : vector<1x1x1x8x2xf32> to vector<8x2xf32>
    %128 = vector.shape_cast %125 : vector<8x2xf32> to vector<1x1x1x8x2xf32>
    tpu.vector_store %arg4[%c0_153, %c2_154, %c6_155, %c0_156, %c0_157], %128 {strides = array<i32>} : memref<1x4x16x8x2xf32, #tpu.memory_space<vmem>>, vector<1x1x1x8x2xf32>,
    %129 = vector.extract_strided_slice %108 {offsets = [0, 10], sizes = [8, 2], strides = [1, 1]} : vector<8x16xf32> to vector<8x2xf32>
    %c0_158 = arith.constant 0 : index
    %c2_159 = arith.constant 2 : index
    %c7_160 = arith.constant 7 : index
    %c0_161 = arith.constant 0 : index
    %c0_162 = arith.constant 0 : index
    %130 = vector.load %arg4[%c0_158, %c2_159, %c7_160, %c0_161, %c0_162] : memref<1x4x16x8x2xf32, #tpu.memory_space<vmem>>, vector<1x1x1x8x2xf32>
    %131 = vector.shape_cast %130 : vector<1x1x1x8x2xf32> to vector<8x2xf32>
    %132 = vector.shape_cast %129 : vector<8x2xf32> to vector<1x1x1x8x2xf32>
    tpu.vector_store %arg4[%c0_158, %c2_159, %c7_160, %c0_161, %c0_162], %132 {strides = array<i32>} : memref<1x4x16x8x2xf32, #tpu.memory_space<vmem>>, vector<1x1x1x8x2xf32>,
    %133 = vector.extract_strided_slice %108 {offsets = [0, 12], sizes = [8, 2], strides = [1, 1]} : vector<8x16xf32> to vector<8x2xf32>
    %c0_163 = arith.constant 0 : index
    %c3_164 = arith.constant 3 : index
    %c6_165 = arith.constant 6 : index
    %c0_166 = arith.constant 0 : index
    %c0_167 = arith.constant 0 : index
    %134 = vector.load %arg4[%c0_163, %c3_164, %c6_165, %c0_166, %c0_167] : memref<1x4x16x8x2xf32, #tpu.memory_space<vmem>>, vector<1x1x1x8x2xf32>
    %135 = vector.shape_cast %134 : vector<1x1x1x8x2xf32> to vector<8x2xf32>
    %136 = vector.shape_cast %133 : vector<8x2xf32> to vector<1x1x1x8x2xf32>
    tpu.vector_store %arg4[%c0_163, %c3_164, %c6_165, %c0_166, %c0_167], %136 {strides = array<i32>} : memref<1x4x16x8x2xf32, #tpu.memory_space<vmem>>, vector<1x1x1x8x2xf32>,
    %137 = vector.extract_strided_slice %108 {offsets = [0, 14], sizes = [8, 2], strides = [1, 1]} : vector<8x16xf32> to vector<8x2xf32>
    %c0_168 = arith.constant 0 : index
    %c3_169 = arith.constant 3 : index
    %c7_170 = arith.constant 7 : index
    %c0_171 = arith.constant 0 : index
    %c0_172 = arith.constant 0 : index
    %138 = vector.load %arg4[%c0_168, %c3_169, %c7_170, %c0_171, %c0_172] : memref<1x4x16x8x2xf32, #tpu.memory_space<vmem>>, vector<1x1x1x8x2xf32>
    %139 = vector.shape_cast %138 : vector<1x1x1x8x2xf32> to vector<8x2xf32>
    %140 = vector.shape_cast %137 : vector<8x2xf32> to vector<1x1x1x8x2xf32>
    tpu.vector_store %arg4[%c0_168, %c3_169, %c7_170, %c0_171, %c0_172], %140 {strides = array<i32>} : memref<1x4x16x8x2xf32, #tpu.memory_space<vmem>>, vector<1x1x1x8x2xf32>,
    %c0_173 = arith.constant 0 : index
    %c4_174 = arith.constant 4 : index
    %c0_175 = arith.constant 0 : index
    %c0_176 = arith.constant 0 : index
    %141 = vector.load %arg2[%c0_173, %c4_174, %c0_175, %c0_176] : memref<1x8x8x16xf32, #tpu.memory_space<vmem>>, vector<1x1x8x16xf32>
    %142 = vector.shape_cast %141 : vector<1x1x8x16xf32> to vector<8x16xf32>
    %cst_177 = arith.constant dense<0.000000e+00> : vector<8x16xf32>
    %143 = tpu.matmul %142, %0, %cst_177 {dimension_numbers = #tpu.dot_dimension_numbers<[1], [0], [0], [1], [0, 0, 1, 1], [], []>} : vector<8x16xf32>, vector<16x16xf32>, vector<8x16xf32> -> vector<8x16xf32>
    %144 = vector.extract_strided_slice %143 {offsets = [0, 0], sizes = [8, 2], strides = [1, 1]} : vector<8x16xf32> to vector<8x2xf32>
    %c0_178 = arith.constant 0 : index
    %c0_179 = arith.constant 0 : index
    %c8 = arith.constant 8 : index
    %c0_180 = arith.constant 0 : index
    %c0_181 = arith.constant 0 : index
    %145 = vector.load %arg4[%c0_178, %c0_179, %c8, %c0_180, %c0_181] : memref<1x4x16x8x2xf32, #tpu.memory_space<vmem>>, vector<1x1x1x8x2xf32>
    %146 = vector.shape_cast %145 : vector<1x1x1x8x2xf32> to vector<8x2xf32>
    %147 = vector.shape_cast %144 : vector<8x2xf32> to vector<1x1x1x8x2xf32>
    tpu.vector_store %arg4[%c0_178, %c0_179, %c8, %c0_180, %c0_181], %147 {strides = array<i32>} : memref<1x4x16x8x2xf32, #tpu.memory_space<vmem>>, vector<1x1x1x8x2xf32>,
    %148 = vector.extract_strided_slice %143 {offsets = [0, 2], sizes = [8, 2], strides = [1, 1]} : vector<8x16xf32> to vector<8x2xf32>
    %c0_182 = arith.constant 0 : index
    %c0_183 = arith.constant 0 : index
    %c9 = arith.constant 9 : index
    %c0_184 = arith.constant 0 : index
    %c0_185 = arith.constant 0 : index
    %149 = vector.load %arg4[%c0_182, %c0_183, %c9, %c0_184, %c0_185] : memref<1x4x16x8x2xf32, #tpu.memory_space<vmem>>, vector<1x1x1x8x2xf32>
    %150 = vector.shape_cast %149 : vector<1x1x1x8x2xf32> to vector<8x2xf32>
    %151 = vector.shape_cast %148 : vector<8x2xf32> to vector<1x1x1x8x2xf32>
    tpu.vector_store %arg4[%c0_182, %c0_183, %c9, %c0_184, %c0_185], %151 {strides = array<i32>} : memref<1x4x16x8x2xf32, #tpu.memory_space<vmem>>, vector<1x1x1x8x2xf32>,
    %152 = vector.extract_strided_slice %143 {offsets = [0, 4], sizes = [8, 2], strides = [1, 1]} : vector<8x16xf32> to vector<8x2xf32>
    %c0_186 = arith.constant 0 : index
    %c1_187 = arith.constant 1 : index
    %c8_188 = arith.constant 8 : index
    %c0_189 = arith.constant 0 : index
    %c0_190 = arith.constant 0 : index
    %153 = vector.load %arg4[%c0_186, %c1_187, %c8_188, %c0_189, %c0_190] : memref<1x4x16x8x2xf32, #tpu.memory_space<vmem>>, vector<1x1x1x8x2xf32>
    %154 = vector.shape_cast %153 : vector<1x1x1x8x2xf32> to vector<8x2xf32>
    %155 = vector.shape_cast %152 : vector<8x2xf32> to vector<1x1x1x8x2xf32>
    tpu.vector_store %arg4[%c0_186, %c1_187, %c8_188, %c0_189, %c0_190], %155 {strides = array<i32>} : memref<1x4x16x8x2xf32, #tpu.memory_space<vmem>>, vector<1x1x1x8x2xf32>,
    %156 = vector.extract_strided_slice %143 {offsets = [0, 6], sizes = [8, 2], strides = [1, 1]} : vector<8x16xf32> to vector<8x2xf32>
    %c0_191 = arith.constant 0 : index
    %c1_192 = arith.constant 1 : index
    %c9_193 = arith.constant 9 : index
    %c0_194 = arith.constant 0 : index
    %c0_195 = arith.constant 0 : index
    %157 = vector.load %arg4[%c0_191, %c1_192, %c9_193, %c0_194, %c0_195] : memref<1x4x16x8x2xf32, #tpu.memory_space<vmem>>, vector<1x1x1x8x2xf32>
    %158 = vector.shape_cast %157 : vector<1x1x1x8x2xf32> to vector<8x2xf32>
    %159 = vector.shape_cast %156 : vector<8x2xf32> to vector<1x1x1x8x2xf32>
    tpu.vector_store %arg4[%c0_191, %c1_192, %c9_193, %c0_194, %c0_195], %159 {strides = array<i32>} : memref<1x4x16x8x2xf32, #tpu.memory_space<vmem>>, vector<1x1x1x8x2xf32>,
    %160 = vector.extract_strided_slice %143 {offsets = [0, 8], sizes = [8, 2], strides = [1, 1]} : vector<8x16xf32> to vector<8x2xf32>
    %c0_196 = arith.constant 0 : index
    %c2_197 = arith.constant 2 : index
    %c8_198 = arith.constant 8 : index
    %c0_199 = arith.constant 0 : index
    %c0_200 = arith.constant 0 : index
    %161 = vector.load %arg4[%c0_196, %c2_197, %c8_198, %c0_199, %c0_200] : memref<1x4x16x8x2xf32, #tpu.memory_space<vmem>>, vector<1x1x1x8x2xf32>
    %162 = vector.shape_cast %161 : vector<1x1x1x8x2xf32> to vector<8x2xf32>
    %163 = vector.shape_cast %160 : vector<8x2xf32> to vector<1x1x1x8x2xf32>
    tpu.vector_store %arg4[%c0_196, %c2_197, %c8_198, %c0_199, %c0_200], %163 {strides = array<i32>} : memref<1x4x16x8x2xf32, #tpu.memory_space<vmem>>, vector<1x1x1x8x2xf32>,
    %164 = vector.extract_strided_slice %143 {offsets = [0, 10], sizes = [8, 2], strides = [1, 1]} : vector<8x16xf32> to vector<8x2xf32>
    %c0_201 = arith.constant 0 : index
    %c2_202 = arith.constant 2 : index
    %c9_203 = arith.constant 9 : index
    %c0_204 = arith.constant 0 : index
    %c0_205 = arith.constant 0 : index
    %165 = vector.load %arg4[%c0_201, %c2_202, %c9_203, %c0_204, %c0_205] : memref<1x4x16x8x2xf32, #tpu.memory_space<vmem>>, vector<1x1x1x8x2xf32>
    %166 = vector.shape_cast %165 : vector<1x1x1x8x2xf32> to vector<8x2xf32>
    %167 = vector.shape_cast %164 : vector<8x2xf32> to vector<1x1x1x8x2xf32>
    tpu.vector_store %arg4[%c0_201, %c2_202, %c9_203, %c0_204, %c0_205], %167 {strides = array<i32>} : memref<1x4x16x8x2xf32, #tpu.memory_space<vmem>>, vector<1x1x1x8x2xf32>,
    %168 = vector.extract_strided_slice %143 {offsets = [0, 12], sizes = [8, 2], strides = [1, 1]} : vector<8x16xf32> to vector<8x2xf32>
    %c0_206 = arith.constant 0 : index
    %c3_207 = arith.constant 3 : index
    %c8_208 = arith.constant 8 : index
    %c0_209 = arith.constant 0 : index
    %c0_210 = arith.constant 0 : index
    %169 = vector.load %arg4[%c0_206, %c3_207, %c8_208, %c0_209, %c0_210] : memref<1x4x16x8x2xf32, #tpu.memory_space<vmem>>, vector<1x1x1x8x2xf32>
    %170 = vector.shape_cast %169 : vector<1x1x1x8x2xf32> to vector<8x2xf32>
    %171 = vector.shape_cast %168 : vector<8x2xf32> to vector<1x1x1x8x2xf32>
    tpu.vector_store %arg4[%c0_206, %c3_207, %c8_208, %c0_209, %c0_210], %171 {strides = array<i32>} : memref<1x4x16x8x2xf32, #tpu.memory_space<vmem>>, vector<1x1x1x8x2xf32>,
    %172 = vector.extract_strided_slice %143 {offsets = [0, 14], sizes = [8, 2], strides = [1, 1]} : vector<8x16xf32> to vector<8x2xf32>
    %c0_211 = arith.constant 0 : index
    %c3_212 = arith.constant 3 : index
    %c9_213 = arith.constant 9 : index
    %c0_214 = arith.constant 0 : index
    %c0_215 = arith.constant 0 : index
    %173 = vector.load %arg4[%c0_211, %c3_212, %c9_213, %c0_214, %c0_215] : memref<1x4x16x8x2xf32, #tpu.memory_space<vmem>>, vector<1x1x1x8x2xf32>
    %174 = vector.shape_cast %173 : vector<1x1x1x8x2xf32> to vector<8x2xf32>
    %175 = vector.shape_cast %172 : vector<8x2xf32> to vector<1x1x1x8x2xf32>
    tpu.vector_store %arg4[%c0_211, %c3_212, %c9_213, %c0_214, %c0_215], %175 {strides = array<i32>} : memref<1x4x16x8x2xf32, #tpu.memory_space<vmem>>, vector<1x1x1x8x2xf32>,
    %c0_216 = arith.constant 0 : index
    %c5_217 = arith.constant 5 : index
    %c0_218 = arith.constant 0 : index
    %c0_219 = arith.constant 0 : index
    %176 = vector.load %arg2[%c0_216, %c5_217, %c0_218, %c0_219] : memref<1x8x8x16xf32, #tpu.memory_space<vmem>>, vector<1x1x8x16xf32>
    %177 = vector.shape_cast %176 : vector<1x1x8x16xf32> to vector<8x16xf32>
    %cst_220 = arith.constant dense<0.000000e+00> : vector<8x16xf32>
    %178 = tpu.matmul %177, %0, %cst_220 {dimension_numbers = #tpu.dot_dimension_numbers<[1], [0], [0], [1], [0, 0, 1, 1], [], []>} : vector<8x16xf32>, vector<16x16xf32>, vector<8x16xf32> -> vector<8x16xf32>
    %179 = vector.extract_strided_slice %178 {offsets = [0, 0], sizes = [8, 2], strides = [1, 1]} : vector<8x16xf32> to vector<8x2xf32>
    %c0_221 = arith.constant 0 : index
    %c0_222 = arith.constant 0 : index
    %c10 = arith.constant 10 : index
    %c0_223 = arith.constant 0 : index
    %c0_224 = arith.constant 0 : index
    %180 = vector.load %arg4[%c0_221, %c0_222, %c10, %c0_223, %c0_224] : memref<1x4x16x8x2xf32, #tpu.memory_space<vmem>>, vector<1x1x1x8x2xf32>
    %181 = vector.shape_cast %180 : vector<1x1x1x8x2xf32> to vector<8x2xf32>
    %182 = vector.shape_cast %179 : vector<8x2xf32> to vector<1x1x1x8x2xf32>
    tpu.vector_store %arg4[%c0_221, %c0_222, %c10, %c0_223, %c0_224], %182 {strides = array<i32>} : memref<1x4x16x8x2xf32, #tpu.memory_space<vmem>>, vector<1x1x1x8x2xf32>,
    %183 = vector.extract_strided_slice %178 {offsets = [0, 2], sizes = [8, 2], strides = [1, 1]} : vector<8x16xf32> to vector<8x2xf32>
    %c0_225 = arith.constant 0 : index
    %c0_226 = arith.constant 0 : index
    %c11 = arith.constant 11 : index
    %c0_227 = arith.constant 0 : index
    %c0_228 = arith.constant 0 : index
    %184 = vector.load %arg4[%c0_225, %c0_226, %c11, %c0_227, %c0_228] : memref<1x4x16x8x2xf32, #tpu.memory_space<vmem>>, vector<1x1x1x8x2xf32>
    %185 = vector.shape_cast %184 : vector<1x1x1x8x2xf32> to vector<8x2xf32>
    %186 = vector.shape_cast %183 : vector<8x2xf32> to vector<1x1x1x8x2xf32>
    tpu.vector_store %arg4[%c0_225, %c0_226, %c11, %c0_227, %c0_228], %186 {strides = array<i32>} : memref<1x4x16x8x2xf32, #tpu.memory_space<vmem>>, vector<1x1x1x8x2xf32>,
    %187 = vector.extract_strided_slice %178 {offsets = [0, 4], sizes = [8, 2], strides = [1, 1]} : vector<8x16xf32> to vector<8x2xf32>
    %c0_229 = arith.constant 0 : index
    %c1_230 = arith.constant 1 : index
    %c10_231 = arith.constant 10 : index
    %c0_232 = arith.constant 0 : index
    %c0_233 = arith.constant 0 : index
    %188 = vector.load %arg4[%c0_229, %c1_230, %c10_231, %c0_232, %c0_233] : memref<1x4x16x8x2xf32, #tpu.memory_space<vmem>>, vector<1x1x1x8x2xf32>
    %189 = vector.shape_cast %188 : vector<1x1x1x8x2xf32> to vector<8x2xf32>
    %190 = vector.shape_cast %187 : vector<8x2xf32> to vector<1x1x1x8x2xf32>
    tpu.vector_store %arg4[%c0_229, %c1_230, %c10_231, %c0_232, %c0_233], %190 {strides = array<i32>} : memref<1x4x16x8x2xf32, #tpu.memory_space<vmem>>, vector<1x1x1x8x2xf32>,
    %191 = vector.extract_strided_slice %178 {offsets = [0, 6], sizes = [8, 2], strides = [1, 1]} : vector<8x16xf32> to vector<8x2xf32>
    %c0_234 = arith.constant 0 : index
    %c1_235 = arith.constant 1 : index
    %c11_236 = arith.constant 11 : index
    %c0_237 = arith.constant 0 : index
    %c0_238 = arith.constant 0 : index
    %192 = vector.load %arg4[%c0_234, %c1_235, %c11_236, %c0_237, %c0_238] : memref<1x4x16x8x2xf32, #tpu.memory_space<vmem>>, vector<1x1x1x8x2xf32>
    %193 = vector.shape_cast %192 : vector<1x1x1x8x2xf32> to vector<8x2xf32>
    %194 = vector.shape_cast %191 : vector<8x2xf32> to vector<1x1x1x8x2xf32>
    tpu.vector_store %arg4[%c0_234, %c1_235, %c11_236, %c0_237, %c0_238], %194 {strides = array<i32>} : memref<1x4x16x8x2xf32, #tpu.memory_space<vmem>>, vector<1x1x1x8x2xf32>,
    %195 = vector.extract_strided_slice %178 {offsets = [0, 8], sizes = [8, 2], strides = [1, 1]} : vector<8x16xf32> to vector<8x2xf32>
    %c0_239 = arith.constant 0 : index
    %c2_240 = arith.constant 2 : index
    %c10_241 = arith.constant 10 : index
    %c0_242 = arith.constant 0 : index
    %c0_243 = arith.constant 0 : index
    %196 = vector.load %arg4[%c0_239, %c2_240, %c10_241, %c0_242, %c0_243] : memref<1x4x16x8x2xf32, #tpu.memory_space<vmem>>, vector<1x1x1x8x2xf32>
    %197 = vector.shape_cast %196 : vector<1x1x1x8x2xf32> to vector<8x2xf32>
    %198 = vector.shape_cast %195 : vector<8x2xf32> to vector<1x1x1x8x2xf32>
    tpu.vector_store %arg4[%c0_239, %c2_240, %c10_241, %c0_242, %c0_243], %198 {strides = array<i32>} : memref<1x4x16x8x2xf32, #tpu.memory_space<vmem>>, vector<1x1x1x8x2xf32>,
    %199 = vector.extract_strided_slice %178 {offsets = [0, 10], sizes = [8, 2], strides = [1, 1]} : vector<8x16xf32> to vector<8x2xf32>
    %c0_244 = arith.constant 0 : index
    %c2_245 = arith.constant 2 : index
    %c11_246 = arith.constant 11 : index
    %c0_247 = arith.constant 0 : index
    %c0_248 = arith.constant 0 : index
    %200 = vector.load %arg4[%c0_244, %c2_245, %c11_246, %c0_247, %c0_248] : memref<1x4x16x8x2xf32, #tpu.memory_space<vmem>>, vector<1x1x1x8x2xf32>
    %201 = vector.shape_cast %200 : vector<1x1x1x8x2xf32> to vector<8x2xf32>
    %202 = vector.shape_cast %199 : vector<8x2xf32> to vector<1x1x1x8x2xf32>
    tpu.vector_store %arg4[%c0_244, %c2_245, %c11_246, %c0_247, %c0_248], %202 {strides = array<i32>} : memref<1x4x16x8x2xf32, #tpu.memory_space<vmem>>, vector<1x1x1x8x2xf32>,
    %203 = vector.extract_strided_slice %178 {offsets = [0, 12], sizes = [8, 2], strides = [1, 1]} : vector<8x16xf32> to vector<8x2xf32>
    %c0_249 = arith.constant 0 : index
    %c3_250 = arith.constant 3 : index
    %c10_251 = arith.constant 10 : index
    %c0_252 = arith.constant 0 : index
    %c0_253 = arith.constant 0 : index
    %204 = vector.load %arg4[%c0_249, %c3_250, %c10_251, %c0_252, %c0_253] : memref<1x4x16x8x2xf32, #tpu.memory_space<vmem>>, vector<1x1x1x8x2xf32>
    %205 = vector.shape_cast %204 : vector<1x1x1x8x2xf32> to vector<8x2xf32>
    %206 = vector.shape_cast %203 : vector<8x2xf32> to vector<1x1x1x8x2xf32>
    tpu.vector_store %arg4[%c0_249, %c3_250, %c10_251, %c0_252, %c0_253], %206 {strides = array<i32>} : memref<1x4x16x8x2xf32, #tpu.memory_space<vmem>>, vector<1x1x1x8x2xf32>,
    %207 = vector.extract_strided_slice %178 {offsets = [0, 14], sizes = [8, 2], strides = [1, 1]} : vector<8x16xf32> to vector<8x2xf32>
    %c0_254 = arith.constant 0 : index
    %c3_255 = arith.constant 3 : index
    %c11_256 = arith.constant 11 : index
    %c0_257 = arith.constant 0 : index
    %c0_258 = arith.constant 0 : index
    %208 = vector.load %arg4[%c0_254, %c3_255, %c11_256, %c0_257, %c0_258] : memref<1x4x16x8x2xf32, #tpu.memory_space<vmem>>, vector<1x1x1x8x2xf32>
    %209 = vector.shape_cast %208 : vector<1x1x1x8x2xf32> to vector<8x2xf32>
    %210 = vector.shape_cast %207 : vector<8x2xf32> to vector<1x1x1x8x2xf32>
    tpu.vector_store %arg4[%c0_254, %c3_255, %c11_256, %c0_257, %c0_258], %210 {strides = array<i32>} : memref<1x4x16x8x2xf32, #tpu.memory_space<vmem>>, vector<1x1x1x8x2xf32>,
    %c0_259 = arith.constant 0 : index
    %c6_260 = arith.constant 6 : index
    %c0_261 = arith.constant 0 : index
    %c0_262 = arith.constant 0 : index
    %211 = vector.load %arg2[%c0_259, %c6_260, %c0_261, %c0_262] : memref<1x8x8x16xf32, #tpu.memory_space<vmem>>, vector<1x1x8x16xf32>
    %212 = vector.shape_cast %211 : vector<1x1x8x16xf32> to vector<8x16xf32>
    %cst_263 = arith.constant dense<0.000000e+00> : vector<8x16xf32>
    %213 = tpu.matmul %212, %0, %cst_263 {dimension_numbers = #tpu.dot_dimension_numbers<[1], [0], [0], [1], [0, 0, 1, 1], [], []>} : vector<8x16xf32>, vector<16x16xf32>, vector<8x16xf32> -> vector<8x16xf32>
    %214 = vector.extract_strided_slice %213 {offsets = [0, 0], sizes = [8, 2], strides = [1, 1]} : vector<8x16xf32> to vector<8x2xf32>
    %c0_264 = arith.constant 0 : index
    %c0_265 = arith.constant 0 : index
    %c12 = arith.constant 12 : index
    %c0_266 = arith.constant 0 : index
    %c0_267 = arith.constant 0 : index
    %215 = vector.load %arg4[%c0_264, %c0_265, %c12, %c0_266, %c0_267] : memref<1x4x16x8x2xf32, #tpu.memory_space<vmem>>, vector<1x1x1x8x2xf32>
    %216 = vector.shape_cast %215 : vector<1x1x1x8x2xf32> to vector<8x2xf32>
    %217 = vector.shape_cast %214 : vector<8x2xf32> to vector<1x1x1x8x2xf32>
    tpu.vector_store %arg4[%c0_264, %c0_265, %c12, %c0_266, %c0_267], %217 {strides = array<i32>} : memref<1x4x16x8x2xf32, #tpu.memory_space<vmem>>, vector<1x1x1x8x2xf32>,
    %218 = vector.extract_strided_slice %213 {offsets = [0, 2], sizes = [8, 2], strides = [1, 1]} : vector<8x16xf32> to vector<8x2xf32>
    %c0_268 = arith.constant 0 : index
    %c0_269 = arith.constant 0 : index
    %c13 = arith.constant 13 : index
    %c0_270 = arith.constant 0 : index
    %c0_271 = arith.constant 0 : index
    %219 = vector.load %arg4[%c0_268, %c0_269, %c13, %c0_270, %c0_271] : memref<1x4x16x8x2xf32, #tpu.memory_space<vmem>>, vector<1x1x1x8x2xf32>
    %220 = vector.shape_cast %219 : vector<1x1x1x8x2xf32> to vector<8x2xf32>
    %221 = vector.shape_cast %218 : vector<8x2xf32> to vector<1x1x1x8x2xf32>
    tpu.vector_store %arg4[%c0_268, %c0_269, %c13, %c0_270, %c0_271], %221 {strides = array<i32>} : memref<1x4x16x8x2xf32, #tpu.memory_space<vmem>>, vector<1x1x1x8x2xf32>,
    %222 = vector.extract_strided_slice %213 {offsets = [0, 4], sizes = [8, 2], strides = [1, 1]} : vector<8x16xf32> to vector<8x2xf32>
    %c0_272 = arith.constant 0 : index
    %c1_273 = arith.constant 1 : index
    %c12_274 = arith.constant 12 : index
    %c0_275 = arith.constant 0 : index
    %c0_276 = arith.constant 0 : index
    %223 = vector.load %arg4[%c0_272, %c1_273, %c12_274, %c0_275, %c0_276] : memref<1x4x16x8x2xf32, #tpu.memory_space<vmem>>, vector<1x1x1x8x2xf32>
    %224 = vector.shape_cast %223 : vector<1x1x1x8x2xf32> to vector<8x2xf32>
    %225 = vector.shape_cast %222 : vector<8x2xf32> to vector<1x1x1x8x2xf32>
    tpu.vector_store %arg4[%c0_272, %c1_273, %c12_274, %c0_275, %c0_276], %225 {strides = array<i32>} : memref<1x4x16x8x2xf32, #tpu.memory_space<vmem>>, vector<1x1x1x8x2xf32>,
    %226 = vector.extract_strided_slice %213 {offsets = [0, 6], sizes = [8, 2], strides = [1, 1]} : vector<8x16xf32> to vector<8x2xf32>
    %c0_277 = arith.constant 0 : index
    %c1_278 = arith.constant 1 : index
    %c13_279 = arith.constant 13 : index
    %c0_280 = arith.constant 0 : index
    %c0_281 = arith.constant 0 : index
    %227 = vector.load %arg4[%c0_277, %c1_278, %c13_279, %c0_280, %c0_281] : memref<1x4x16x8x2xf32, #tpu.memory_space<vmem>>, vector<1x1x1x8x2xf32>
    %228 = vector.shape_cast %227 : vector<1x1x1x8x2xf32> to vector<8x2xf32>
    %229 = vector.shape_cast %226 : vector<8x2xf32> to vector<1x1x1x8x2xf32>
    tpu.vector_store %arg4[%c0_277, %c1_278, %c13_279, %c0_280, %c0_281], %229 {strides = array<i32>} : memref<1x4x16x8x2xf32, #tpu.memory_space<vmem>>, vector<1x1x1x8x2xf32>,
    %230 = vector.extract_strided_slice %213 {offsets = [0, 8], sizes = [8, 2], strides = [1, 1]} : vector<8x16xf32> to vector<8x2xf32>
    %c0_282 = arith.constant 0 : index
    %c2_283 = arith.constant 2 : index
    %c12_284 = arith.constant 12 : index
    %c0_285 = arith.constant 0 : index
    %c0_286 = arith.constant 0 : index
    %231 = vector.load %arg4[%c0_282, %c2_283, %c12_284, %c0_285, %c0_286] : memref<1x4x16x8x2xf32, #tpu.memory_space<vmem>>, vector<1x1x1x8x2xf32>
    %232 = vector.shape_cast %231 : vector<1x1x1x8x2xf32> to vector<8x2xf32>
    %233 = vector.shape_cast %230 : vector<8x2xf32> to vector<1x1x1x8x2xf32>
    tpu.vector_store %arg4[%c0_282, %c2_283, %c12_284, %c0_285, %c0_286], %233 {strides = array<i32>} : memref<1x4x16x8x2xf32, #tpu.memory_space<vmem>>, vector<1x1x1x8x2xf32>,
    %234 = vector.extract_strided_slice %213 {offsets = [0, 10], sizes = [8, 2], strides = [1, 1]} : vector<8x16xf32> to vector<8x2xf32>
    %c0_287 = arith.constant 0 : index
    %c2_288 = arith.constant 2 : index
    %c13_289 = arith.constant 13 : index
    %c0_290 = arith.constant 0 : index
    %c0_291 = arith.constant 0 : index
    %235 = vector.load %arg4[%c0_287, %c2_288, %c13_289, %c0_290, %c0_291] : memref<1x4x16x8x2xf32, #tpu.memory_space<vmem>>, vector<1x1x1x8x2xf32>
    %236 = vector.shape_cast %235 : vector<1x1x1x8x2xf32> to vector<8x2xf32>
    %237 = vector.shape_cast %234 : vector<8x2xf32> to vector<1x1x1x8x2xf32>
    tpu.vector_store %arg4[%c0_287, %c2_288, %c13_289, %c0_290, %c0_291], %237 {strides = array<i32>} : memref<1x4x16x8x2xf32, #tpu.memory_space<vmem>>, vector<1x1x1x8x2xf32>,
    %238 = vector.extract_strided_slice %213 {offsets = [0, 12], sizes = [8, 2], strides = [1, 1]} : vector<8x16xf32> to vector<8x2xf32>
    %c0_292 = arith.constant 0 : index
    %c3_293 = arith.constant 3 : index
    %c12_294 = arith.constant 12 : index
    %c0_295 = arith.constant 0 : index
    %c0_296 = arith.constant 0 : index
    %239 = vector.load %arg4[%c0_292, %c3_293, %c12_294, %c0_295, %c0_296] : memref<1x4x16x8x2xf32, #tpu.memory_space<vmem>>, vector<1x1x1x8x2xf32>
    %240 = vector.shape_cast %239 : vector<1x1x1x8x2xf32> to vector<8x2xf32>
    %241 = vector.shape_cast %238 : vector<8x2xf32> to vector<1x1x1x8x2xf32>
    tpu.vector_store %arg4[%c0_292, %c3_293, %c12_294, %c0_295, %c0_296], %241 {strides = array<i32>} : memref<1x4x16x8x2xf32, #tpu.memory_space<vmem>>, vector<1x1x1x8x2xf32>,
    %242 = vector.extract_strided_slice %213 {offsets = [0, 14], sizes = [8, 2], strides = [1, 1]} : vector<8x16xf32> to vector<8x2xf32>
    %c0_297 = arith.constant 0 : index
    %c3_298 = arith.constant 3 : index
    %c13_299 = arith.constant 13 : index
    %c0_300 = arith.constant 0 : index
    %c0_301 = arith.constant 0 : index
    %243 = vector.load %arg4[%c0_297, %c3_298, %c13_299, %c0_300, %c0_301] : memref<1x4x16x8x2xf32, #tpu.memory_space<vmem>>, vector<1x1x1x8x2xf32>
    %244 = vector.shape_cast %243 : vector<1x1x1x8x2xf32> to vector<8x2xf32>
    %245 = vector.shape_cast %242 : vector<8x2xf32> to vector<1x1x1x8x2xf32>
    tpu.vector_store %arg4[%c0_297, %c3_298, %c13_299, %c0_300, %c0_301], %245 {strides = array<i32>} : memref<1x4x16x8x2xf32, #tpu.memory_space<vmem>>, vector<1x1x1x8x2xf32>,
    %c0_302 = arith.constant 0 : index
    %c7_303 = arith.constant 7 : index
    %c0_304 = arith.constant 0 : index
    %c0_305 = arith.constant 0 : index
    %246 = vector.load %arg2[%c0_302, %c7_303, %c0_304, %c0_305] : memref<1x8x8x16xf32, #tpu.memory_space<vmem>>, vector<1x1x8x16xf32>
    %247 = vector.shape_cast %246 : vector<1x1x8x16xf32> to vector<8x16xf32>
    %cst_306 = arith.constant dense<0.000000e+00> : vector<8x16xf32>
    %248 = tpu.matmul %247, %0, %cst_306 {dimension_numbers = #tpu.dot_dimension_numbers<[1], [0], [0], [1], [0, 0, 1, 1], [], []>} : vector<8x16xf32>, vector<16x16xf32>, vector<8x16xf32> -> vector<8x16xf32>
    %249 = vector.extract_strided_slice %248 {offsets = [0, 0], sizes = [8, 2], strides = [1, 1]} : vector<8x16xf32> to vector<8x2xf32>
    %c0_307 = arith.constant 0 : index
    %c0_308 = arith.constant 0 : index
    %c14 = arith.constant 14 : index
    %c0_309 = arith.constant 0 : index
    %c0_310 = arith.constant 0 : index
    %250 = vector.load %arg4[%c0_307, %c0_308, %c14, %c0_309, %c0_310] : memref<1x4x16x8x2xf32, #tpu.memory_space<vmem>>, vector<1x1x1x8x2xf32>
    %251 = vector.shape_cast %250 : vector<1x1x1x8x2xf32> to vector<8x2xf32>
    %252 = vector.shape_cast %249 : vector<8x2xf32> to vector<1x1x1x8x2xf32>
    tpu.vector_store %arg4[%c0_307, %c0_308, %c14, %c0_309, %c0_310], %252 {strides = array<i32>} : memref<1x4x16x8x2xf32, #tpu.memory_space<vmem>>, vector<1x1x1x8x2xf32>,
    %253 = vector.extract_strided_slice %248 {offsets = [0, 2], sizes = [8, 2], strides = [1, 1]} : vector<8x16xf32> to vector<8x2xf32>
    %c0_311 = arith.constant 0 : index
    %c0_312 = arith.constant 0 : index
    %c15 = arith.constant 15 : index
    %c0_313 = arith.constant 0 : index
    %c0_314 = arith.constant 0 : index
    %254 = vector.load %arg4[%c0_311, %c0_312, %c15, %c0_313, %c0_314] : memref<1x4x16x8x2xf32, #tpu.memory_space<vmem>>, vector<1x1x1x8x2xf32>
    %255 = vector.shape_cast %254 : vector<1x1x1x8x2xf32> to vector<8x2xf32>
    %256 = vector.shape_cast %253 : vector<8x2xf32> to vector<1x1x1x8x2xf32>
    tpu.vector_store %arg4[%c0_311, %c0_312, %c15, %c0_313, %c0_314], %256 {strides = array<i32>} : memref<1x4x16x8x2xf32, #tpu.memory_space<vmem>>, vector<1x1x1x8x2xf32>,
    %257 = vector.extract_strided_slice %248 {offsets = [0, 4], sizes = [8, 2], strides = [1, 1]} : vector<8x16xf32> to vector<8x2xf32>
    %c0_315 = arith.constant 0 : index
    %c1_316 = arith.constant 1 : index
    %c14_317 = arith.constant 14 : index
    %c0_318 = arith.constant 0 : index
    %c0_319 = arith.constant 0 : index
    %258 = vector.load %arg4[%c0_315, %c1_316, %c14_317, %c0_318, %c0_319] : memref<1x4x16x8x2xf32, #tpu.memory_space<vmem>>, vector<1x1x1x8x2xf32>
    %259 = vector.shape_cast %258 : vector<1x1x1x8x2xf32> to vector<8x2xf32>
    %260 = vector.shape_cast %257 : vector<8x2xf32> to vector<1x1x1x8x2xf32>
    tpu.vector_store %arg4[%c0_315, %c1_316, %c14_317, %c0_318, %c0_319], %260 {strides = array<i32>} : memref<1x4x16x8x2xf32, #tpu.memory_space<vmem>>, vector<1x1x1x8x2xf32>,
    %261 = vector.extract_strided_slice %248 {offsets = [0, 6], sizes = [8, 2], strides = [1, 1]} : vector<8x16xf32> to vector<8x2xf32>
    %c0_320 = arith.constant 0 : index
    %c1_321 = arith.constant 1 : index
    %c15_322 = arith.constant 15 : index
    %c0_323 = arith.constant 0 : index
    %c0_324 = arith.constant 0 : index
    %262 = vector.load %arg4[%c0_320, %c1_321, %c15_322, %c0_323, %c0_324] : memref<1x4x16x8x2xf32, #tpu.memory_space<vmem>>, vector<1x1x1x8x2xf32>
    %263 = vector.shape_cast %262 : vector<1x1x1x8x2xf32> to vector<8x2xf32>
    %264 = vector.shape_cast %261 : vector<8x2xf32> to vector<1x1x1x8x2xf32>
    tpu.vector_store %arg4[%c0_320, %c1_321, %c15_322, %c0_323, %c0_324], %264 {strides = array<i32>} : memref<1x4x16x8x2xf32, #tpu.memory_space<vmem>>, vector<1x1x1x8x2xf32>,
    %265 = vector.extract_strided_slice %248 {offsets = [0, 8], sizes = [8, 2], strides = [1, 1]} : vector<8x16xf32> to vector<8x2xf32>
    %c0_325 = arith.constant 0 : index
    %c2_326 = arith.constant 2 : index
    %c14_327 = arith.constant 14 : index
    %c0_328 = arith.constant 0 : index
    %c0_329 = arith.constant 0 : index
    %266 = vector.load %arg4[%c0_325, %c2_326, %c14_327, %c0_328, %c0_329] : memref<1x4x16x8x2xf32, #tpu.memory_space<vmem>>, vector<1x1x1x8x2xf32>
    %267 = vector.shape_cast %266 : vector<1x1x1x8x2xf32> to vector<8x2xf32>
    %268 = vector.shape_cast %265 : vector<8x2xf32> to vector<1x1x1x8x2xf32>
    tpu.vector_store %arg4[%c0_325, %c2_326, %c14_327, %c0_328, %c0_329], %268 {strides = array<i32>} : memref<1x4x16x8x2xf32, #tpu.memory_space<vmem>>, vector<1x1x1x8x2xf32>,
    %269 = vector.extract_strided_slice %248 {offsets = [0, 10], sizes = [8, 2], strides = [1, 1]} : vector<8x16xf32> to vector<8x2xf32>
    %c0_330 = arith.constant 0 : index
    %c2_331 = arith.constant 2 : index
    %c15_332 = arith.constant 15 : index
    %c0_333 = arith.constant 0 : index
    %c0_334 = arith.constant 0 : index
    %270 = vector.load %arg4[%c0_330, %c2_331, %c15_332, %c0_333, %c0_334] : memref<1x4x16x8x2xf32, #tpu.memory_space<vmem>>, vector<1x1x1x8x2xf32>
    %271 = vector.shape_cast %270 : vector<1x1x1x8x2xf32> to vector<8x2xf32>
    %272 = vector.shape_cast %269 : vector<8x2xf32> to vector<1x1x1x8x2xf32>
    tpu.vector_store %arg4[%c0_330, %c2_331, %c15_332, %c0_333, %c0_334], %272 {strides = array<i32>} : memref<1x4x16x8x2xf32, #tpu.memory_space<vmem>>, vector<1x1x1x8x2xf32>,
    %273 = vector.extract_strided_slice %248 {offsets = [0, 12], sizes = [8, 2], strides = [1, 1]} : vector<8x16xf32> to vector<8x2xf32>
    %c0_335 = arith.constant 0 : index
    %c3_336 = arith.constant 3 : index
    %c14_337 = arith.constant 14 : index
    %c0_338 = arith.constant 0 : index
    %c0_339 = arith.constant 0 : index
    %274 = vector.load %arg4[%c0_335, %c3_336, %c14_337, %c0_338, %c0_339] : memref<1x4x16x8x2xf32, #tpu.memory_space<vmem>>, vector<1x1x1x8x2xf32>
    %275 = vector.shape_cast %274 : vector<1x1x1x8x2xf32> to vector<8x2xf32>
    %276 = vector.shape_cast %273 : vector<8x2xf32> to vector<1x1x1x8x2xf32>
    tpu.vector_store %arg4[%c0_335, %c3_336, %c14_337, %c0_338, %c0_339], %276 {strides = array<i32>} : memref<1x4x16x8x2xf32, #tpu.memory_space<vmem>>, vector<1x1x1x8x2xf32>,
    %277 = vector.extract_strided_slice %248 {offsets = [0, 14], sizes = [8, 2], strides = [1, 1]} : vector<8x16xf32> to vector<8x2xf32>
    %c0_340 = arith.constant 0 : index
    %c3_341 = arith.constant 3 : index
    %c15_342 = arith.constant 15 : index
    %c0_343 = arith.constant 0 : index
    %c0_344 = arith.constant 0 : index
    %278 = vector.load %arg4[%c0_340, %c3_341, %c15_342, %c0_343, %c0_344] : memref<1x4x16x8x2xf32, #tpu.memory_space<vmem>>, vector<1x1x1x8x2xf32>
    %279 = vector.shape_cast %278 : vector<1x1x1x8x2xf32> to vector<8x2xf32>
    %280 = vector.shape_cast %277 : vector<8x2xf32> to vector<1x1x1x8x2xf32>
    tpu.vector_store %arg4[%c0_340, %c3_341, %c15_342, %c0_343, %c0_344], %280 {strides = array<i32>} : memref<1x4x16x8x2xf32, #tpu.memory_space<vmem>>, vector<1x1x1x8x2xf32>,
    return
  }
  func.func @transform_0(%arg0: i32, %arg1: i32) -> (i32, i32, i32, i32) {
    %c0_i32 = arith.constant 0 : i32
    %c0_i32_0 = arith.constant 0 : i32
    %c0_i32_1 = arith.constant 0 : i32
    return %arg0, %arg1, %c0_i32, %c0_i32_0 : i32, i32, i32, i32
  }
  func.func @transform_1(%arg0: i32, %arg1: i32) -> (i32, i32) {
    %c0_i32 = arith.constant 0 : i32
    %c0_i32_0 = arith.constant 0 : i32
    %c0_i32_1 = arith.constant 0 : i32
    return %c0_i32, %c0_i32_0 : i32, i32
  }
  func.func @transform_2(%arg0: i32, %arg1: i32) -> (i32, i32, i32, i32, i32) {
    %c0_i32 = arith.constant 0 : i32
    %c0_i32_0 = arith.constant 0 : i32
    %c0_i32_1 = arith.constant 0 : i32
    %c0_i32_2 = arith.constant 0 : i32
    return %arg0, %c0_i32, %arg1, %c0_i32_0, %c0_i32_1 : i32, i32, i32, i32, i32
  }
}

</mosaic_0001>

<llo_original>
// kernel: tpu_custom_call.1
$region0: #{tpu_custom_call.1}
  #allocation0 [shape = 'u32[]', space=smem, size = 0x4, offset = 0x4, fixed_abs, tag = 'smem constant byte address 0x4 - core index']
  #allocation1 [shape = 'u32[144,128]{1,0:T(1,128)}', space=vmem, size = 0x12000, scoped, tag = 'internal scratch']
  %s0 = inlined_call_operand.vmem [shape: f32[2,64,16], index: 0, kind: input, shape index: {}]
  %s1 = inlined_call_operand.vmem [shape: f32[16,16], index: 1, kind: input, shape index: {}]
  %s2 = inlined_call_operand.hbm [shape: f32[2,4,8,2,16], index: 2, kind: output, shape index: {}]
  %s3 = sld [smem:[#allocation0]]
  $region41: #{tpu_custom_call.1} parent=0
    _
  %s5 = ssub.s32 1, %s3
  %s6 = scalar_select 0, %s5, %s3
  $region1: #{tpu_custom_call.1} parent=0
    #allocation2 [shape = 'u8[65536]{0}', space=vmem, size = 0x10000, scoped, tag = 'output window, operand 0']
    #allocation3 [shape = 's32[2]{0}', space=sflag, size = 0x8, scoped, tag = 'scoped memory for tpu_custom_call.1']
    %7 = vsyncpa [#allocation3], 0
    %s8 = scalar_lea.sflag [#allocation3], 1
    %9 = vsyncpa %s8, 0
    loop: start=0, step=1, limit=4
    $region2: #{tpu_custom_call.1} parent=1 // loop_pre_header
      _
    $region3: #{tpu_custom_call.1} parent=1 // loop_header
      %s11 = sphi 0, %s15
      %p12 = scmp.ge.s32.totalorder %s11, 4
      %s18 = sphi 0, %s30
      %s19 = sphi 0, %s26
      %s20 = sphi 0, %s18
      %s21 = sphi 0, %s19
      %s22 = sphi 0, %s20
      %s23 = sphi 0, %s21
      %s35 = sphi 0, %s37
      %s38 = sphi 0, %s35
      %s39 = sphi 0, %s38
      %s55 = sphi 0, %s39
      %s59 = sphi 0, %s59
      %s61 = sphi 0, %s59
      %s62 = sphi 0, %s61
      %s76 = sphi 0, %s62
      %s84 = sphi 0, %s86
      %s87 = sphi 0, %s84
      %s88 = sphi 0, %s87
      %s104 = sphi 0, %s88
    $region4: #{tpu_custom_call.1} parent=1 // loop_header_branch
      %14 = sbr.rel (%p12) target = $region8
    $region5: #{tpu_custom_call.1} parent=1 // loop_body
      %s16 = ssub.s32 %s11, 1
      %s17 = ssub.s32 %s11, 2
      %s24 = sadd.s32 1, %s19
      %p25 = scmp.ge.s32.totalorder %s24, 1
      %s26 = scalar_select %p25, 0, %s24
      %s27 = sadd.s32 1, %s18
      %s28 = scalar_select %p25, %s27, %s18
      %p29 = scmp.ge.s32.totalorder %s28, 2
      %s30 = scalar_select %p29, 0, %s28
      %s31 = ssub.s32 %s18, %s30
      %s32 = ssub.s32 %s19, %s26
      %s33 = sor.u32 %s31, %s32
      %p34 = scmp.eq.s32.totalorder %s33, 0
      %s36 = sadd.s32 %s35, 1
      %s37 = scalar_select %p34, %s35, %s36
      %p40 = pneg %p34
      %p41 = scmp.eq.s32.totalorder %s11, 1
      %p42 = por %p40, %p41
      %p43 = scmp.ne.s32.totalorder %s35, %s38
      %p44 = scmp.eq.s32.totalorder %s11, 0
      %p45 = por %p43, %p44
      %p46 = scmp.ne.s32.totalorder %s35, %s38
      %p47 = scmp.eq.s32.totalorder %s16, 1
      %p48 = por %p46, %p47
      %p49 = scmp.ne.s32.totalorder %s38, %s39
      %p50 = scmp.eq.s32.totalorder %s16, 0
      %p51 = por %p49, %p50
      %p52 = scmp.ne.s32.totalorder %s38, %s39
      %p53 = scmp.eq.s32.totalorder %s17, 1
      %p54 = por %p52, %p53
      %p56 = scmp.ne.s32.totalorder %s39, %s55
      %p57 = scmp.eq.s32.totalorder %s17, 0
      %p58 = por %p56, %p57
      %s60 = sadd.s32 %s59, 1
      %p63 = scmp.eq.s32.totalorder %s11, 1
      %p64 = scmp.ne.s32.totalorder %s59, %s61
      %p65 = scmp.eq.s32.totalorder %s11, 0
      %p66 = por %p64, %p65
      %p67 = scmp.ne.s32.totalorder %s59, %s61
      %p68 = scmp.eq.s32.totalorder %s16, 1
      %p69 = por %p67, %p68
      %p70 = scmp.ne.s32.totalorder %s61, %s62
      %p71 = scmp.eq.s32.totalorder %s16, 0
      %p72 = por %p70, %p71
      %p73 = scmp.ne.s32.totalorder %s61, %s62
      %p74 = scmp.eq.s32.totalorder %s17, 1
      %p75 = por %p73, %p74
      %p77 = scmp.ne.s32.totalorder %s62, %s76
      %p78 = scmp.eq.s32.totalorder %s17, 0
      %p79 = por %p77, %p78
      %s80 = ssub.s32 %s18, %s30
      %s81 = ssub.s32 %s19, %s26
      %s82 = sor.u32 %s80, %s81
      %p83 = scmp.eq.s32.totalorder %s82, 0
      %s85 = sadd.s32 %s84, 1
      %s86 = scalar_select %p83, %s84, %s85
      %p89 = pneg %p83
      %p90 = scmp.eq.s32.totalorder %s11, 1
      %p91 = por %p89, %p90
      %p92 = scmp.ne.s32.totalorder %s84, %s87
      %p93 = scmp.eq.s32.totalorder %s11, 0
      %p94 = por %p92, %p93
      %p95 = scmp.ne.s32.totalorder %s84, %s87
      %p96 = scmp.eq.s32.totalorder %s16, 1
      %p97 = por %p95, %p96
      %p98 = scmp.ne.s32.totalorder %s87, %s88
      %p99 = scmp.eq.s32.totalorder %s16, 0
      %p100 = por %p98, %p99
      %p101 = scmp.ne.s32.totalorder %s87, %s88
      %p102 = scmp.eq.s32.totalorder %s17, 1
      %p103 = por %p101, %p102
      %p105 = scmp.ne.s32.totalorder %s88, %s104
      %p106 = scmp.eq.s32.totalorder %s17, 0
      %p107 = por %p105, %p106
      %p108 = scmp.le.s32.totalorder 1, %s11
      %p109 = scmp.lt.s32.totalorder %s11, 3
      %p110 = pnand %p108, %p109
      %p111 = pneg %p110
      // Predicated region
      $region9: #{tpu_custom_call.1} parent=5 // pred_check
        _
      $region10: #{tpu_custom_call.1} parent=5 // pred_check_branch
        %113 = sbr.rel (%p110) target = $region12
      $region11: #{tpu_custom_call.1} parent=5 // pred_region
        %s114 = ssub.s32 %s11, 1
        // Predicated region
        $region13: #{tpu_custom_call.1} parent=11 // pred_check
          %p115 = pneg %p72
        $region14: #{tpu_custom_call.1} parent=11 // pred_check_branch
          %117 = sbr.rel (%p115) target = $region16
        $region15: #{tpu_custom_call.1} parent=11 // pred_region
          _
        $region16: #{tpu_custom_call.1} parent=11 // pred_fallthru
          _
      $region12: #{tpu_custom_call.1} parent=5 // pred_fallthru
        _
      %p118 = scmp.lt.s32.totalorder %s11, 2
      // Predicated region
      $region17: #{tpu_custom_call.1} parent=5 // pred_check
        %p119 = pneg %p118
      $region18: #{tpu_custom_call.1} parent=5 // pred_check_branch
        %121 = sbr.rel (%p119) target = $region20
      $region19: #{tpu_custom_call.1} parent=5 // pred_region
        // Predicated region
        $region21: #{tpu_custom_call.1} parent=19 // pred_check
          %p122 = pneg %p45
        $region22: #{tpu_custom_call.1} parent=19 // pred_check_branch
          %124 = sbr.rel (%p122) target = $region24
        $region23: #{tpu_custom_call.1} parent=19 // pred_region
          %s125 = smul.u32 8, %s19
          %p126 = scmp.lt.s32.totalorder %s18, 1
          %s127 = scalar_select %p126, %s18, 1
          %p128 = scmp.lt.s32.totalorder %s125, 7
          %s129 = scalar_select %p128, %s125, 7
          %s130 = smul.addr %s127, 8
          %s131 = sadd.s32 %s129, %s130
          %s132 = smul.addr %s131, 8
          %s133 = scalar_lea.vmem %s0, %s132
          %s134 = smul.u32 8, %s19
        $region24: #{tpu_custom_call.1} parent=19 // pred_fallthru
          _
      $region20: #{tpu_custom_call.1} parent=5 // pred_fallthru
        _
      %p135 = scmp.le.s32.totalorder 1, %s11
      %p136 = scmp.lt.s32.totalorder %s11, 3
      %p137 = pnand %p135, %p136
      %p138 = pneg %p137
      // Predicated region
      $region25: #{tpu_custom_call.1} parent=5 // pred_check
        _
      $region26: #{tpu_custom_call.1} parent=5 // pred_check_branch
        %140 = sbr.rel (%p137) target = $region28
      $region27: #{tpu_custom_call.1} parent=5 // pred_region
        %s141 = ssub.s32 %s11, 1
        %s142 = smul.u32 8, %s21
        %p143 = scmp.lt.s32.totalorder %s20, 1
        %s144 = scalar_select %p143, %s20, 1
        %p145 = scmp.lt.s32.totalorder %s142, 7
        %s146 = scalar_select %p145, %s142, 7
        %s147 = smul.addr %s144, 8
        %s148 = sadd.s32 %s146, %s147
        %s149 = smul.addr %s148, 8
        %s150 = scalar_lea.vmem %s0, %s149
        %p151 = pneg %p51
        %p152 = pneg %p48
        %p153 = pneg %p72
        %p154 = pneg %p69
        %p155 = pneg %p100
        %p156 = pneg %p97
        %s157 = sand.u32 %s87, 1
        %s158 = scalar_lea.sflag [#allocation3], %s157
        %s159 = sand.u32 %s87, 1
        %s160 = smul.addr %s159, 64
        %s161 = scalar_lea.vmem [#allocation2], %s160
        %s162 = smul.u32 8, %s21
        %p163 = scmp.lt.s32.totalorder %s20, 1
        %s164 = scalar_select %p163, %s20, 1
        %p165 = scmp.lt.s32.totalorder %s162, 7
        %s166 = scalar_select %p165, %s162, 7
        %s167 = smul.addr %s164, 8
        %s168 = sadd.s32 %s166, %s167
        %s169 = smul.addr %s168, 8
        %s170 = scalar_lea.vmem %s0, %s169
        %s171 = smul.u32 8, %s21
        %s172 = smul.u32 8, %s21
        %v173 = vld [vmem:[%s170] sm:$0xff]
        %v174 = vld [vmem:[%s170 + $0x8] sm:$0xff]
        %v175 = vld [vmem:[%s170 + $0x10] sm:$0xff]
        %v176 = vld [vmem:[%s170 + $0x18] sm:$0xff]
        %v177 = vld [vmem:[%s170 + $0x20] sm:$0xff]
        %v178 = vld [vmem:[%s170 + $0x28] sm:$0xff]
        %v179 = vld [vmem:[%s170 + $0x30] sm:$0xff]
        %v180 = vld [vmem:[%s170 + $0x38] sm:$0xff]
        %v181 = vld [vmem:[%s1] sm:$0xff]
        %v182 = vld [vmem:[%s1 + $0x8] sm:$0xff]
        %vm183 = vcmask 130048
        %v185 = vsel %vm183, %v173, 0
        %v188 = vsel %vm183, %v174, 0
        %v191 = vsel %vm183, %v175, 0
        %v194 = vsel %vm183, %v176, 0
        %v197 = vsel %vm183, %v177, 0
        %v200 = vsel %vm183, %v178, 0
        %v203 = vsel %vm183, %v179, 0
        %v206 = vsel %vm183, %v180, 0
        %208 = vmatprep.subr.mxu0 0.0
        %209 = vmatpush1.msra.mxu0 %v181
        %210 = vmatprep.subr.mxu0 0.0
        %211 = vmatpush1.msra.mxu0 %v182
        %212 = vmatprep.subr.mxu0 0.0
        %213 = vmatpush1.msra.mxu0 0.0
        %214 = vmatprep.subr.mxu0 0.0
        %215 = vmatpush1.msra.mxu0 0.0
        %216 = vmatprep.subr.mxu0 0.0
        %217 = vmatpush1.msra.mxu0 0.0
        %218 = vmatprep.subr.mxu0 0.0
        %219 = vmatpush1.msra.mxu0 0.0
        %220 = vmatprep.subr.mxu0 0.0
        %221 = vmatpush1.msra.mxu0 0.0
        %222 = vmatprep.subr.mxu0 0.0
        %223 = vmatpush1.msra.mxu0 0.0
        %224 = vmatprep.subr.mxu0 0.0
        %225 = vmatpush1.msra.mxu0 0.0
        %226 = vmatprep.subr.mxu0 0.0
        %227 = vmatpush1.msra.mxu0 0.0
        %228 = vmatprep.subr.mxu0 0.0
        %229 = vmatpush1.msra.mxu0 0.0
        %230 = vmatprep.subr.mxu0 0.0
        %231 = vmatpush1.msra.mxu0 0.0
        %232 = vmatprep.subr.mxu0 0.0
        %233 = vmatpush1.msra.mxu0 0.0
        %234 = vmatprep.subr.mxu0 0.0
        %235 = vmatpush1.msra.mxu0 0.0
        %236 = vmatprep.subr.mxu0 0.0
        %237 = vmatpush1.msra.mxu0 0.0
        %238 = vmatprep.subr.mxu0 0.0
        %239 = vmatpush1.msra.mxu0 0.0
        %240 = vmatprep.subr.mxu0 0.0
        %241 = vmatpush1.msra.mxu0 0.0
        %242 = vmatprep.subr.mxu0 0.0
        %243 = vmatpush1.msra.mxu0 0.0
        %244 = vmatprep.subr.mxu0 0.0
        %245 = vmatpush1.msra.mxu0 0.0
        %246 = vmatprep.subr.mxu0 0.0
        %247 = vmatpush1.msra.mxu0 0.0
        %248 = vmatprep.subr.mxu0 0.0
        %249 = vmatpush1.msra.mxu0 0.0
        %250 = vmatprep.subr.mxu0 0.0
        %251 = vmatpush1.msra.mxu0 0.0
        %252 = vmatprep.subr.mxu0 0.0
        %253 = vmatpush1.msra.mxu0 0.0
        %254 = vmatprep.subr.mxu0 0.0
        %255 = vmatpush1.msra.mxu0 0.0
        %256 = vmatprep.subr.mxu0 0.0
        %257 = vmatpush1.msra.mxu0 0.0
        %258 = vmatprep.subr.mxu0 0.0
        %259 = vmatpush1.msra.mxu0 0.0
        %260 = vmatprep.subr.mxu0 0.0
        %261 = vmatpush1.msra.mxu0 0.0
        %262 = vmatprep.subr.mxu0 0.0
        %263 = vmatpush1.msra.mxu0 0.0
        %264 = vmatprep.subr.mxu0 0.0
        %265 = vmatpush1.msra.mxu0 0.0
        %266 = vmatprep.subr.mxu0 0.0
        %267 = vmatpush1.msra.mxu0 0.0
        %268 = vmatprep.subr.mxu0 0.0
        %269 = vmatpush1.msra.mxu0 0.0
        %270 = vmatprep.subr.mxu0 0.0
        %271 = vmatpush1.msra.mxu0 0.0
        %272 = vmatprep.mubr.f32.mxu0 0.0
        %273 = vmatmul.mubr.f32.gmra.mrb[0].mxu0 %v185
        %v274 = vpop.f32.mrb[0].mxu0
        %v275 = vadd.f32 0.0, %v274
        %v276 = vpop.f32.mrb[0].mxu0
        %277 = vmatprep.mubr.f32.mxu0 0.0
        %278 = vmatmul.mubr.f32.gmra.mrb[0].mxu0 %v188
        %v279 = vpop.f32.mrb[0].mxu0
        %v280 = vadd.f32 0.0, %v279
        %v281 = vpop.f32.mrb[0].mxu0
        %282 = vmatprep.mubr.f32.mxu0 0.0
        %283 = vmatmul.mubr.f32.gmra.mrb[0].mxu0 %v191
        %v284 = vpop.f32.mrb[0].mxu0
        %v285 = vadd.f32 0.0, %v284
        %v286 = vpop.f32.mrb[0].mxu0
        %287 = vmatprep.mubr.f32.mxu0 0.0
        %288 = vmatmul.mubr.f32.gmra.mrb[0].mxu0 %v194
        %v289 = vpop.f32.mrb[0].mxu0
        %v290 = vadd.f32 0.0, %v289
        %v291 = vpop.f32.mrb[0].mxu0
        %292 = vmatprep.mubr.f32.mxu0 0.0
        %293 = vmatmul.mubr.f32.gmra.mrb[0].mxu0 %v197
        %v294 = vpop.f32.mrb[0].mxu0
        %v295 = vadd.f32 0.0, %v294
        %v296 = vpop.f32.mrb[0].mxu0
        %297 = vmatprep.mubr.f32.mxu0 0.0
        %298 = vmatmul.mubr.f32.gmra.mrb[0].mxu0 %v200
        %v299 = vpop.f32.mrb[0].mxu0
        %v300 = vadd.f32 0.0, %v299
        %v301 = vpop.f32.mrb[0].mxu0
        %302 = vmatprep.mubr.f32.mxu0 0.0
        %303 = vmatmul.mubr.f32.gmra.mrb[0].mxu0 %v203
        %v304 = vpop.f32.mrb[0].mxu0
        %v305 = vadd.f32 0.0, %v304
        %v306 = vpop.f32.mrb[0].mxu0
        %307 = vmatprep.mubr.f32.mxu0 0.0
        %308 = vmatmul.mubr.f32.gmra.mrb[0].mxu0 %v206
        %v309 = vpop.f32.mrb[0].mxu0
        %v310 = vadd.f32 0.0, %v309
        %v311 = vpop.f32.mrb[0].mxu0
        %312 = vdwg.mxu0
        %321 = vrot.lane.b32.xlu0 %v275, 126
        %v322 = vpop.permute.xlu0 %321
        %323 = vrot.lane.b32.xlu0 %v280, 126
        %v324 = vpop.permute.xlu0 %323
        %325 = vrot.lane.b32.xlu0 %v285, 126
        %v326 = vpop.permute.xlu0 %325
        %327 = vrot.lane.b32.xlu0 %v290, 126
        %v328 = vpop.permute.xlu0 %327
        %329 = vrot.lane.b32.xlu0 %v295, 126
        %v330 = vpop.permute.xlu0 %329
        %331 = vrot.lane.b32.xlu0 %v300, 126
        %v332 = vpop.permute.xlu0 %331
        %333 = vrot.lane.b32.xlu0 %v305, 126
        %v334 = vpop.permute.xlu0 %333
        %335 = vrot.lane.b32.xlu0 %v310, 126
        %v336 = vpop.permute.xlu0 %335
        %v345 = vcombine.high %v275, 0.0
        %v347 = vunpack.c.l.s4 1983009808
        %v348 = vunpack.c.0.s8 %v347
        %v349 = vlaneseq
        %v350 = vshrl.u32 %v349, 7
        %v351 = vsub.s32 %v348, %v350
        %v352 = vrot.slane %v275, %v351
        %v354 = vunpack.c.l.s4 1983009808
        %v355 = vunpack.c.0.s8 %v354
        %v356 = vlaneseq
        %v357 = vshrl.u32 %v356, 7
        %v358 = vsub.s32 %v355, %v357
        %v359 = vrot.slane %v345, %v358
        %v360 = vcombine.high %v322, 0.0
        %v362 = vunpack.c.l.s4 1983009808
        %v363 = vunpack.c.0.s8 %v362
        %v364 = vlaneseq
        %v365 = vshrl.u32 %v364, 7
        %v366 = vsub.s32 %v363, %v365
        %v367 = vrot.slane %v322, %v366
        %v369 = vunpack.c.l.s4 1983009808
        %v370 = vunpack.c.0.s8 %v369
        %v371 = vlaneseq
        %v372 = vshrl.u32 %v371, 7
        %v373 = vsub.s32 %v370, %v372
        %v374 = vrot.slane %v360, %v373
        %v375 = vcombine.low %v352, %v367
        %v376 = vcombine.high %v352, %v367
        %v378 = vunpack.c.l.s4 1934713408
        %v379 = vunpack.c.0.s8 %v378
        %v380 = vlaneseq
        %v381 = vshrl.u32 %v380, 7
        %v382 = vsub.s32 %v379, %v381
        %v383 = vrot.slane %v375, %v382
        %v385 = vunpack.c.l.s4 1934713408
        %v386 = vunpack.c.0.s8 %v385
        %v387 = vlaneseq
        %v388 = vshrl.u32 %v387, 7
        %v389 = vsub.s32 %v386, %v388
        %v390 = vrot.slane %v376, %v389
        %v391 = vcombine.low %v359, %v374
        %v392 = vcombine.high %v359, %v374
        %v394 = vunpack.c.l.s4 1934713408
        %v395 = vunpack.c.0.s8 %v394
        %v396 = vlaneseq
        %v397 = vshrl.u32 %v396, 7
        %v398 = vsub.s32 %v395, %v397
        %v399 = vrot.slane %v391, %v398
        %v401 = vunpack.c.l.s4 1934713408
        %v402 = vunpack.c.0.s8 %v401
        %v403 = vlaneseq
        %v404 = vshrl.u32 %v403, 7
        %v405 = vsub.s32 %v402, %v404
        %v406 = vrot.slane %v392, %v405
        %v407 = vcombine.high %v383, 0.0
        %v408 = vcombine.high %v390, 0.0
        %v409 = vcombine.high %v399, 0.0
        %v410 = vcombine.high %v406, 0.0
        %v411 = vcombine.high %v280, 0.0
        %v413 = vunpack.c.l.s4 1983009808
        %v414 = vunpack.c.0.s8 %v413
        %v415 = vlaneseq
        %v416 = vshrl.u32 %v415, 7
        %v417 = vsub.s32 %v414, %v416
        %v418 = vrot.slane %v280, %v417
        %v420 = vunpack.c.l.s4 1983009808
        %v421 = vunpack.c.0.s8 %v420
        %v422 = vlaneseq
        %v423 = vshrl.u32 %v422, 7
        %v424 = vsub.s32 %v421, %v423
        %v425 = vrot.slane %v411, %v424
        %v426 = vcombine.high %v324, 0.0
        %v428 = vunpack.c.l.s4 1983009808
        %v429 = vunpack.c.0.s8 %v428
        %v430 = vlaneseq
        %v431 = vshrl.u32 %v430, 7
        %v432 = vsub.s32 %v429, %v431
        %v433 = vrot.slane %v324, %v432
        %v435 = vunpack.c.l.s4 1983009808
        %v436 = vunpack.c.0.s8 %v435
        %v437 = vlaneseq
        %v438 = vshrl.u32 %v437, 7
        %v439 = vsub.s32 %v436, %v438
        %v440 = vrot.slane %v426, %v439
        %v441 = vcombine.low %v418, %v433
        %v442 = vcombine.high %v418, %v433
        %v444 = vunpack.c.l.s4 1934713408
        %v445 = vunpack.c.0.s8 %v444
        %v446 = vlaneseq
        %v447 = vshrl.u32 %v446, 7
        %v448 = vsub.s32 %v445, %v447
        %v449 = vrot.slane %v441, %v448
        %v451 = vunpack.c.l.s4 1934713408
        %v452 = vunpack.c.0.s8 %v451
        %v453 = vlaneseq
        %v454 = vshrl.u32 %v453, 7
        %v455 = vsub.s32 %v452, %v454
        %v456 = vrot.slane %v442, %v455
        %v457 = vcombine.low %v425, %v440
        %v458 = vcombine.high %v425, %v440
        %v460 = vunpack.c.l.s4 1934713408
        %v461 = vunpack.c.0.s8 %v460
        %v462 = vlaneseq
        %v463 = vshrl.u32 %v462, 7
        %v464 = vsub.s32 %v461, %v463
        %v465 = vrot.slane %v457, %v464
        %v467 = vunpack.c.l.s4 1934713408
        %v468 = vunpack.c.0.s8 %v467
        %v469 = vlaneseq
        %v470 = vshrl.u32 %v469, 7
        %v471 = vsub.s32 %v468, %v470
        %v472 = vrot.slane %v458, %v471
        %v473 = vcombine.high %v449, 0.0
        %v474 = vcombine.high %v456, 0.0
        %v475 = vcombine.high %v465, 0.0
        %v476 = vcombine.high %v472, 0.0
        %v477 = vcombine.high %v285, 0.0
        %v479 = vunpack.c.l.s4 1983009808
        %v480 = vunpack.c.0.s8 %v479
        %v481 = vlaneseq
        %v482 = vshrl.u32 %v481, 7
        %v483 = vsub.s32 %v480, %v482
        %v484 = vrot.slane %v285, %v483
        %v486 = vunpack.c.l.s4 1983009808
        %v487 = vunpack.c.0.s8 %v486
        %v488 = vlaneseq
        %v489 = vshrl.u32 %v488, 7
        %v490 = vsub.s32 %v487, %v489
        %v491 = vrot.slane %v477, %v490
        %v492 = vcombine.high %v326, 0.0
        %v494 = vunpack.c.l.s4 1983009808
        %v495 = vunpack.c.0.s8 %v494
        %v496 = vlaneseq
        %v497 = vshrl.u32 %v496, 7
        %v498 = vsub.s32 %v495, %v497
        %v499 = vrot.slane %v326, %v498
        %v501 = vunpack.c.l.s4 1983009808
        %v502 = vunpack.c.0.s8 %v501
        %v503 = vlaneseq
        %v504 = vshrl.u32 %v503, 7
        %v505 = vsub.s32 %v502, %v504
        %v506 = vrot.slane %v492, %v505
        %v507 = vcombine.low %v484, %v499
        %v508 = vcombine.high %v484, %v499
        %v510 = vunpack.c.l.s4 1934713408
        %v511 = vunpack.c.0.s8 %v510
        %v512 = vlaneseq
        %v513 = vshrl.u32 %v512, 7
        %v514 = vsub.s32 %v511, %v513
        %v515 = vrot.slane %v507, %v514
        %v517 = vunpack.c.l.s4 1934713408
        %v518 = vunpack.c.0.s8 %v517
        %v519 = vlaneseq
        %v520 = vshrl.u32 %v519, 7
        %v521 = vsub.s32 %v518, %v520
        %v522 = vrot.slane %v508, %v521
        %v523 = vcombine.low %v491, %v506
        %v524 = vcombine.high %v491, %v506
        %v526 = vunpack.c.l.s4 1934713408
        %v527 = vunpack.c.0.s8 %v526
        %v528 = vlaneseq
        %v529 = vshrl.u32 %v528, 7
        %v530 = vsub.s32 %v527, %v529
        %v531 = vrot.slane %v523, %v530
        %v533 = vunpack.c.l.s4 1934713408
        %v534 = vunpack.c.0.s8 %v533
        %v535 = vlaneseq
        %v536 = vshrl.u32 %v535, 7
        %v537 = vsub.s32 %v534, %v536
        %v538 = vrot.slane %v524, %v537
        %v539 = vcombine.high %v515, 0.0
        %v540 = vcombine.high %v522, 0.0
        %v541 = vcombine.high %v531, 0.0
        %v542 = vcombine.high %v538, 0.0
        %v543 = vcombine.high %v290, 0.0
        %v545 = vunpack.c.l.s4 1983009808
        %v546 = vunpack.c.0.s8 %v545
        %v547 = vlaneseq
        %v548 = vshrl.u32 %v547, 7
        %v549 = vsub.s32 %v546, %v548
        %v550 = vrot.slane %v290, %v549
        %v552 = vunpack.c.l.s4 1983009808
        %v553 = vunpack.c.0.s8 %v552
        %v554 = vlaneseq
        %v555 = vshrl.u32 %v554, 7
        %v556 = vsub.s32 %v553, %v555
        %v557 = vrot.slane %v543, %v556
        %v558 = vcombine.high %v328, 0.0
        %v560 = vunpack.c.l.s4 1983009808
        %v561 = vunpack.c.0.s8 %v560
        %v562 = vlaneseq
        %v563 = vshrl.u32 %v562, 7
        %v564 = vsub.s32 %v561, %v563
        %v565 = vrot.slane %v328, %v564
        %v567 = vunpack.c.l.s4 1983009808
        %v568 = vunpack.c.0.s8 %v567
        %v569 = vlaneseq
        %v570 = vshrl.u32 %v569, 7
        %v571 = vsub.s32 %v568, %v570
        %v572 = vrot.slane %v558, %v571
        %v573 = vcombine.low %v550, %v565
        %v574 = vcombine.high %v550, %v565
        %v576 = vunpack.c.l.s4 1934713408
        %v577 = vunpack.c.0.s8 %v576
        %v578 = vlaneseq
        %v579 = vshrl.u32 %v578, 7
        %v580 = vsub.s32 %v577, %v579
        %v581 = vrot.slane %v573, %v580
        %v583 = vunpack.c.l.s4 1934713408
        %v584 = vunpack.c.0.s8 %v583
        %v585 = vlaneseq
        %v586 = vshrl.u32 %v585, 7
        %v587 = vsub.s32 %v584, %v586
        %v588 = vrot.slane %v574, %v587
        %v589 = vcombine.low %v557, %v572
        %v590 = vcombine.high %v557, %v572
        %v592 = vunpack.c.l.s4 1934713408
        %v593 = vunpack.c.0.s8 %v592
        %v594 = vlaneseq
        %v595 = vshrl.u32 %v594, 7
        %v596 = vsub.s32 %v593, %v595
        %v597 = vrot.slane %v589, %v596
        %v599 = vunpack.c.l.s4 1934713408
        %v600 = vunpack.c.0.s8 %v599
        %v601 = vlaneseq
        %v602 = vshrl.u32 %v601, 7
        %v603 = vsub.s32 %v600, %v602
        %v604 = vrot.slane %v590, %v603
        %v605 = vcombine.high %v581, 0.0
        %v606 = vcombine.high %v588, 0.0
        %v607 = vcombine.high %v597, 0.0
        %v608 = vcombine.high %v604, 0.0
        %v609 = vcombine.high %v295, 0.0
        %v611 = vunpack.c.l.s4 1983009808
        %v612 = vunpack.c.0.s8 %v611
        %v613 = vlaneseq
        %v614 = vshrl.u32 %v613, 7
        %v615 = vsub.s32 %v612, %v614
        %v616 = vrot.slane %v295, %v615
        %v618 = vunpack.c.l.s4 1983009808
        %v619 = vunpack.c.0.s8 %v618
        %v620 = vlaneseq
        %v621 = vshrl.u32 %v620, 7
        %v622 = vsub.s32 %v619, %v621
        %v623 = vrot.slane %v609, %v622
        %v624 = vcombine.high %v330, 0.0
        %v626 = vunpack.c.l.s4 1983009808
        %v627 = vunpack.c.0.s8 %v626
        %v628 = vlaneseq
        %v629 = vshrl.u32 %v628, 7
        %v630 = vsub.s32 %v627, %v629
        %v631 = vrot.slane %v330, %v630
        %v633 = vunpack.c.l.s4 1983009808
        %v634 = vunpack.c.0.s8 %v633
        %v635 = vlaneseq
        %v636 = vshrl.u32 %v635, 7
        %v637 = vsub.s32 %v634, %v636
        %v638 = vrot.slane %v624, %v637
        %v639 = vcombine.low %v616, %v631
        %v640 = vcombine.high %v616, %v631
        %v642 = vunpack.c.l.s4 1934713408
        %v643 = vunpack.c.0.s8 %v642
        %v644 = vlaneseq
        %v645 = vshrl.u32 %v644, 7
        %v646 = vsub.s32 %v643, %v645
        %v647 = vrot.slane %v639, %v646
        %v649 = vunpack.c.l.s4 1934713408
        %v650 = vunpack.c.0.s8 %v649
        %v651 = vlaneseq
        %v652 = vshrl.u32 %v651, 7
        %v653 = vsub.s32 %v650, %v652
        %v654 = vrot.slane %v640, %v653
        %v655 = vcombine.low %v623, %v638
        %v656 = vcombine.high %v623, %v638
        %v658 = vunpack.c.l.s4 1934713408
        %v659 = vunpack.c.0.s8 %v658
        %v660 = vlaneseq
        %v661 = vshrl.u32 %v660, 7
        %v662 = vsub.s32 %v659, %v661
        %v663 = vrot.slane %v655, %v662
        %v665 = vunpack.c.l.s4 1934713408
        %v666 = vunpack.c.0.s8 %v665
        %v667 = vlaneseq
        %v668 = vshrl.u32 %v667, 7
        %v669 = vsub.s32 %v666, %v668
        %v670 = vrot.slane %v656, %v669
        %v671 = vcombine.high %v647, 0.0
        %v672 = vcombine.high %v654, 0.0
        %v673 = vcombine.high %v663, 0.0
        %v674 = vcombine.high %v670, 0.0
        %v675 = vcombine.high %v300, 0.0
        %v677 = vunpack.c.l.s4 1983009808
        %v678 = vunpack.c.0.s8 %v677
        %v679 = vlaneseq
        %v680 = vshrl.u32 %v679, 7
        %v681 = vsub.s32 %v678, %v680
        %v682 = vrot.slane %v300, %v681
        %v684 = vunpack.c.l.s4 1983009808
        %v685 = vunpack.c.0.s8 %v684
        %v686 = vlaneseq
        %v687 = vshrl.u32 %v686, 7
        %v688 = vsub.s32 %v685, %v687
        %v689 = vrot.slane %v675, %v688
        %v690 = vcombine.high %v332, 0.0
        %v692 = vunpack.c.l.s4 1983009808
        %v693 = vunpack.c.0.s8 %v692
        %v694 = vlaneseq
        %v695 = vshrl.u32 %v694, 7
        %v696 = vsub.s32 %v693, %v695
        %v697 = vrot.slane %v332, %v696
        %v699 = vunpack.c.l.s4 1983009808
        %v700 = vunpack.c.0.s8 %v699
        %v701 = vlaneseq
        %v702 = vshrl.u32 %v701, 7
        %v703 = vsub.s32 %v700, %v702
        %v704 = vrot.slane %v690, %v703
        %v705 = vcombine.low %v682, %v697
        %v706 = vcombine.high %v682, %v697
        %v708 = vunpack.c.l.s4 1934713408
        %v709 = vunpack.c.0.s8 %v708
        %v710 = vlaneseq
        %v711 = vshrl.u32 %v710, 7
        %v712 = vsub.s32 %v709, %v711
        %v713 = vrot.slane %v705, %v712
        %v715 = vunpack.c.l.s4 1934713408
        %v716 = vunpack.c.0.s8 %v715
        %v717 = vlaneseq
        %v718 = vshrl.u32 %v717, 7
        %v719 = vsub.s32 %v716, %v718
        %v720 = vrot.slane %v706, %v719
        %v721 = vcombine.low %v689, %v704
        %v722 = vcombine.high %v689, %v704
        %v724 = vunpack.c.l.s4 1934713408
        %v725 = vunpack.c.0.s8 %v724
        %v726 = vlaneseq
        %v727 = vshrl.u32 %v726, 7
        %v728 = vsub.s32 %v725, %v727
        %v729 = vrot.slane %v721, %v728
        %v731 = vunpack.c.l.s4 1934713408
        %v732 = vunpack.c.0.s8 %v731
        %v733 = vlaneseq
        %v734 = vshrl.u32 %v733, 7
        %v735 = vsub.s32 %v732, %v734
        %v736 = vrot.slane %v722, %v735
        %v737 = vcombine.high %v713, 0.0
        %v738 = vcombine.high %v720, 0.0
        %v739 = vcombine.high %v729, 0.0
        %v740 = vcombine.high %v736, 0.0
        %v741 = vcombine.high %v305, 0.0
        %v743 = vunpack.c.l.s4 1983009808
        %v744 = vunpack.c.0.s8 %v743
        %v745 = vlaneseq
        %v746 = vshrl.u32 %v745, 7
        %v747 = vsub.s32 %v744, %v746
        %v748 = vrot.slane %v305, %v747
        %v750 = vunpack.c.l.s4 1983009808
        %v751 = vunpack.c.0.s8 %v750
        %v752 = vlaneseq
        %v753 = vshrl.u32 %v752, 7
        %v754 = vsub.s32 %v751, %v753
        %v755 = vrot.slane %v741, %v754
        %v756 = vcombine.high %v334, 0.0
        %v758 = vunpack.c.l.s4 1983009808
        %v759 = vunpack.c.0.s8 %v758
        %v760 = vlaneseq
        %v761 = vshrl.u32 %v760, 7
        %v762 = vsub.s32 %v759, %v761
        %v763 = vrot.slane %v334, %v762
        %v765 = vunpack.c.l.s4 1983009808
        %v766 = vunpack.c.0.s8 %v765
        %v767 = vlaneseq
        %v768 = vshrl.u32 %v767, 7
        %v769 = vsub.s32 %v766, %v768
        %v770 = vrot.slane %v756, %v769
        %v771 = vcombine.low %v748, %v763
        %v772 = vcombine.high %v748, %v763
        %v774 = vunpack.c.l.s4 1934713408
        %v775 = vunpack.c.0.s8 %v774
        %v776 = vlaneseq
        %v777 = vshrl.u32 %v776, 7
        %v778 = vsub.s32 %v775, %v777
        %v779 = vrot.slane %v771, %v778
        %v781 = vunpack.c.l.s4 1934713408
        %v782 = vunpack.c.0.s8 %v781
        %v783 = vlaneseq
        %v784 = vshrl.u32 %v783, 7
        %v785 = vsub.s32 %v782, %v784
        %v786 = vrot.slane %v772, %v785
        %v787 = vcombine.low %v755, %v770
        %v788 = vcombine.high %v755, %v770
        %v790 = vunpack.c.l.s4 1934713408
        %v791 = vunpack.c.0.s8 %v790
        %v792 = vlaneseq
        %v793 = vshrl.u32 %v792, 7
        %v794 = vsub.s32 %v791, %v793
        %v795 = vrot.slane %v787, %v794
        %v797 = vunpack.c.l.s4 1934713408
        %v798 = vunpack.c.0.s8 %v797
        %v799 = vlaneseq
        %v800 = vshrl.u32 %v799, 7
        %v801 = vsub.s32 %v798, %v800
        %v802 = vrot.slane %v788, %v801
        %v803 = vcombine.high %v779, 0.0
        %v804 = vcombine.high %v786, 0.0
        %v805 = vcombine.high %v795, 0.0
        %v806 = vcombine.high %v802, 0.0
        %v807 = vcombine.high %v310, 0.0
        %v809 = vunpack.c.l.s4 1983009808
        %v810 = vunpack.c.0.s8 %v809
        %v811 = vlaneseq
        %v812 = vshrl.u32 %v811, 7
        %v813 = vsub.s32 %v810, %v812
        %v814 = vrot.slane %v310, %v813
        %v816 = vunpack.c.l.s4 1983009808
        %v817 = vunpack.c.0.s8 %v816
        %v818 = vlaneseq
        %v819 = vshrl.u32 %v818, 7
        %v820 = vsub.s32 %v817, %v819
        %v821 = vrot.slane %v807, %v820
        %v822 = vcombine.high %v336, 0.0
        %v824 = vunpack.c.l.s4 1983009808
        %v825 = vunpack.c.0.s8 %v824
        %v826 = vlaneseq
        %v827 = vshrl.u32 %v826, 7
        %v828 = vsub.s32 %v825, %v827
        %v829 = vrot.slane %v336, %v828
        %v831 = vunpack.c.l.s4 1983009808
        %v832 = vunpack.c.0.s8 %v831
        %v833 = vlaneseq
        %v834 = vshrl.u32 %v833, 7
        %v835 = vsub.s32 %v832, %v834
        %v836 = vrot.slane %v822, %v835
        %v837 = vcombine.low %v814, %v829
        %v838 = vcombine.high %v814, %v829
        %v840 = vunpack.c.l.s4 1934713408
        %v841 = vunpack.c.0.s8 %v840
        %v842 = vlaneseq
        %v843 = vshrl.u32 %v842, 7
        %v844 = vsub.s32 %v841, %v843
        %v845 = vrot.slane %v837, %v844
        %v847 = vunpack.c.l.s4 1934713408
        %v848 = vunpack.c.0.s8 %v847
        %v849 = vlaneseq
        %v850 = vshrl.u32 %v849, 7
        %v851 = vsub.s32 %v848, %v850
        %v852 = vrot.slane %v838, %v851
        %v853 = vcombine.low %v821, %v836
        %v854 = vcombine.high %v821, %v836
        %v856 = vunpack.c.l.s4 1934713408
        %v857 = vunpack.c.0.s8 %v856
        %v858 = vlaneseq
        %v859 = vshrl.u32 %v858, 7
        %v860 = vsub.s32 %v857, %v859
        %v861 = vrot.slane %v853, %v860
        %v863 = vunpack.c.l.s4 1934713408
        %v864 = vunpack.c.0.s8 %v863
        %v865 = vlaneseq
        %v866 = vshrl.u32 %v865, 7
        %v867 = vsub.s32 %v864, %v866
        %v868 = vrot.slane %v854, %v867
        %v869 = vcombine.high %v845, 0.0
        %v870 = vcombine.high %v852, 0.0
        %v871 = vcombine.high %v861, 0.0
        %v872 = vcombine.high %v868, 0.0
        %v873 = vcombine.low %v383, %v390
        %v875 = vunpack.c.l.s4 1983009808
        %v876 = vunpack.c.0.s8 %v875
        %v877 = vlaneseq
        %v878 = vshrl.u32 %v877, 7
        %v879 = vsub.s32 %v876, %v878
        %v880 = vrot.slane %v873, %v879
        %v881 = vcombine.low %v407, %v408
        %v883 = vunpack.c.l.s4 1983009808
        %v884 = vunpack.c.0.s8 %v883
        %v885 = vlaneseq
        %v886 = vshrl.u32 %v885, 7
        %v887 = vsub.s32 %v884, %v886
        %v888 = vrot.slane %v881, %v887
        %v889 = vcombine.low %v399, %v406
        %v891 = vunpack.c.l.s4 1983009808
        %v892 = vunpack.c.0.s8 %v891
        %v893 = vlaneseq
        %v894 = vshrl.u32 %v893, 7
        %v895 = vsub.s32 %v892, %v894
        %v896 = vrot.slane %v889, %v895
        %v897 = vcombine.low %v409, %v410
        %v899 = vunpack.c.l.s4 1983009808
        %v900 = vunpack.c.0.s8 %v899
        %v901 = vlaneseq
        %v902 = vshrl.u32 %v901, 7
        %v903 = vsub.s32 %v900, %v902
        %v904 = vrot.slane %v897, %v903
        %v905 = vcombine.low %v880, %v888
        %v907 = vunpack.c.l.s4 1934713408
        %v908 = vunpack.c.0.s8 %v907
        %v909 = vlaneseq
        %v910 = vshrl.u32 %v909, 7
        %v911 = vsub.s32 %v908, %v910
        %v912 = vrot.slane %v905, %v911
        %v913 = vcombine.low %v896, %v904
        %v915 = vunpack.c.l.s4 1934713408
        %v916 = vunpack.c.0.s8 %v915
        %v917 = vlaneseq
        %v918 = vshrl.u32 %v917, 7
        %v919 = vsub.s32 %v916, %v918
        %v920 = vrot.slane %v913, %v919
        %v921 = vcombine.low %v912, %v920
        %v922 = vcombine.high %v912, %v920
        %v923 = vcombine.low %v449, %v456
        %v925 = vunpack.c.l.s4 1983009808
        %v926 = vunpack.c.0.s8 %v925
        %v927 = vlaneseq
        %v928 = vshrl.u32 %v927, 7
        %v929 = vsub.s32 %v926, %v928
        %v930 = vrot.slane %v923, %v929
        %v931 = vcombine.low %v473, %v474
        %v933 = vunpack.c.l.s4 1983009808
        %v934 = vunpack.c.0.s8 %v933
        %v935 = vlaneseq
        %v936 = vshrl.u32 %v935, 7
        %v937 = vsub.s32 %v934, %v936
        %v938 = vrot.slane %v931, %v937
        %v939 = vcombine.low %v465, %v472
        %v941 = vunpack.c.l.s4 1983009808
        %v942 = vunpack.c.0.s8 %v941
        %v943 = vlaneseq
        %v944 = vshrl.u32 %v943, 7
        %v945 = vsub.s32 %v942, %v944
        %v946 = vrot.slane %v939, %v945
        %v947 = vcombine.low %v475, %v476
        %v949 = vunpack.c.l.s4 1983009808
        %v950 = vunpack.c.0.s8 %v949
        %v951 = vlaneseq
        %v952 = vshrl.u32 %v951, 7
        %v953 = vsub.s32 %v950, %v952
        %v954 = vrot.slane %v947, %v953
        %v955 = vcombine.low %v930, %v938
        %v957 = vunpack.c.l.s4 1934713408
        %v958 = vunpack.c.0.s8 %v957
        %v959 = vlaneseq
        %v960 = vshrl.u32 %v959, 7
        %v961 = vsub.s32 %v958, %v960
        %v962 = vrot.slane %v955, %v961
        %v963 = vcombine.low %v946, %v954
        %v965 = vunpack.c.l.s4 1934713408
        %v966 = vunpack.c.0.s8 %v965
        %v967 = vlaneseq
        %v968 = vshrl.u32 %v967, 7
        %v969 = vsub.s32 %v966, %v968
        %v970 = vrot.slane %v963, %v969
        %v971 = vcombine.low %v962, %v970
        %v972 = vcombine.high %v962, %v970
        %v973 = vcombine.low %v515, %v522
        %v975 = vunpack.c.l.s4 1983009808
        %v976 = vunpack.c.0.s8 %v975
        %v977 = vlaneseq
        %v978 = vshrl.u32 %v977, 7
        %v979 = vsub.s32 %v976, %v978
        %v980 = vrot.slane %v973, %v979
        %v981 = vcombine.low %v539, %v540
        %v983 = vunpack.c.l.s4 1983009808
        %v984 = vunpack.c.0.s8 %v983
        %v985 = vlaneseq
        %v986 = vshrl.u32 %v985, 7
        %v987 = vsub.s32 %v984, %v986
        %v988 = vrot.slane %v981, %v987
        %v989 = vcombine.low %v531, %v538
        %v991 = vunpack.c.l.s4 1983009808
        %v992 = vunpack.c.0.s8 %v991
        %v993 = vlaneseq
        %v994 = vshrl.u32 %v993, 7
        %v995 = vsub.s32 %v992, %v994
        %v996 = vrot.slane %v989, %v995
        %v997 = vcombine.low %v541, %v542
        %v999 = vunpack.c.l.s4 1983009808
        %v1000 = vunpack.c.0.s8 %v999
        %v1001 = vlaneseq
        %v1002 = vshrl.u32 %v1001, 7
        %v1003 = vsub.s32 %v1000, %v1002
        %v1004 = vrot.slane %v997, %v1003
        %v1005 = vcombine.low %v980, %v988
        %v1007 = vunpack.c.l.s4 1934713408
        %v1008 = vunpack.c.0.s8 %v1007
        %v1009 = vlaneseq
        %v1010 = vshrl.u32 %v1009, 7
        %v1011 = vsub.s32 %v1008, %v1010
        %v1012 = vrot.slane %v1005, %v1011
        %v1013 = vcombine.low %v996, %v1004
        %v1015 = vunpack.c.l.s4 1934713408
        %v1016 = vunpack.c.0.s8 %v1015
        %v1017 = vlaneseq
        %v1018 = vshrl.u32 %v1017, 7
        %v1019 = vsub.s32 %v1016, %v1018
        %v1020 = vrot.slane %v1013, %v1019
        %v1021 = vcombine.low %v1012, %v1020
        %v1022 = vcombine.high %v1012, %v1020
        %v1023 = vcombine.low %v581, %v588
        %v1025 = vunpack.c.l.s4 1983009808
        %v1026 = vunpack.c.0.s8 %v1025
        %v1027 = vlaneseq
        %v1028 = vshrl.u32 %v1027, 7
        %v1029 = vsub.s32 %v1026, %v1028
        %v1030 = vrot.slane %v1023, %v1029
        %v1031 = vcombine.low %v605, %v606
        %v1033 = vunpack.c.l.s4 1983009808
        %v1034 = vunpack.c.0.s8 %v1033
        %v1035 = vlaneseq
        %v1036 = vshrl.u32 %v1035, 7
        %v1037 = vsub.s32 %v1034, %v1036
        %v1038 = vrot.slane %v1031, %v1037
        %v1039 = vcombine.low %v597, %v604
        %v1041 = vunpack.c.l.s4 1983009808
        %v1042 = vunpack.c.0.s8 %v1041
        %v1043 = vlaneseq
        %v1044 = vshrl.u32 %v1043, 7
        %v1045 = vsub.s32 %v1042, %v1044
        %v1046 = vrot.slane %v1039, %v1045
        %v1047 = vcombine.low %v607, %v608
        %v1049 = vunpack.c.l.s4 1983009808
        %v1050 = vunpack.c.0.s8 %v1049
        %v1051 = vlaneseq
        %v1052 = vshrl.u32 %v1051, 7
        %v1053 = vsub.s32 %v1050, %v1052
        %v1054 = vrot.slane %v1047, %v1053
        %v1055 = vcombine.low %v1030, %v1038
        %v1057 = vunpack.c.l.s4 1934713408
        %v1058 = vunpack.c.0.s8 %v1057
        %v1059 = vlaneseq
        %v1060 = vshrl.u32 %v1059, 7
        %v1061 = vsub.s32 %v1058, %v1060
        %v1062 = vrot.slane %v1055, %v1061
        %v1063 = vcombine.low %v1046, %v1054
        %v1065 = vunpack.c.l.s4 1934713408
        %v1066 = vunpack.c.0.s8 %v1065
        %v1067 = vlaneseq
        %v1068 = vshrl.u32 %v1067, 7
        %v1069 = vsub.s32 %v1066, %v1068
        %v1070 = vrot.slane %v1063, %v1069
        %v1071 = vcombine.low %v1062, %v1070
        %v1072 = vcombine.high %v1062, %v1070
        %v1073 = vcombine.low %v647, %v654
        %v1075 = vunpack.c.l.s4 1983009808
        %v1076 = vunpack.c.0.s8 %v1075
        %v1077 = vlaneseq
        %v1078 = vshrl.u32 %v1077, 7
        %v1079 = vsub.s32 %v1076, %v1078
        %v1080 = vrot.slane %v1073, %v1079
        %v1081 = vcombine.low %v671, %v672
        %v1083 = vunpack.c.l.s4 1983009808
        %v1084 = vunpack.c.0.s8 %v1083
        %v1085 = vlaneseq
        %v1086 = vshrl.u32 %v1085, 7
        %v1087 = vsub.s32 %v1084, %v1086
        %v1088 = vrot.slane %v1081, %v1087
        %v1089 = vcombine.low %v663, %v670
        %v1091 = vunpack.c.l.s4 1983009808
        %v1092 = vunpack.c.0.s8 %v1091
        %v1093 = vlaneseq
        %v1094 = vshrl.u32 %v1093, 7
        %v1095 = vsub.s32 %v1092, %v1094
        %v1096 = vrot.slane %v1089, %v1095
        %v1097 = vcombine.low %v673, %v674
        %v1099 = vunpack.c.l.s4 1983009808
        %v1100 = vunpack.c.0.s8 %v1099
        %v1101 = vlaneseq
        %v1102 = vshrl.u32 %v1101, 7
        %v1103 = vsub.s32 %v1100, %v1102
        %v1104 = vrot.slane %v1097, %v1103
        %v1105 = vcombine.low %v1080, %v1088
        %v1107 = vunpack.c.l.s4 1934713408
        %v1108 = vunpack.c.0.s8 %v1107
        %v1109 = vlaneseq
        %v1110 = vshrl.u32 %v1109, 7
        %v1111 = vsub.s32 %v1108, %v1110
        %v1112 = vrot.slane %v1105, %v1111
        %v1113 = vcombine.low %v1096, %v1104
        %v1115 = vunpack.c.l.s4 1934713408
        %v1116 = vunpack.c.0.s8 %v1115
        %v1117 = vlaneseq
        %v1118 = vshrl.u32 %v1117, 7
        %v1119 = vsub.s32 %v1116, %v1118
        %v1120 = vrot.slane %v1113, %v1119
        %v1121 = vcombine.low %v1112, %v1120
        %v1122 = vcombine.high %v1112, %v1120
        %v1123 = vcombine.low %v713, %v720
        %v1125 = vunpack.c.l.s4 1983009808
        %v1126 = vunpack.c.0.s8 %v1125
        %v1127 = vlaneseq
        %v1128 = vshrl.u32 %v1127, 7
        %v1129 = vsub.s32 %v1126, %v1128
        %v1130 = vrot.slane %v1123, %v1129
        %v1131 = vcombine.low %v737, %v738
        %v1133 = vunpack.c.l.s4 1983009808
        %v1134 = vunpack.c.0.s8 %v1133
        %v1135 = vlaneseq
        %v1136 = vshrl.u32 %v1135, 7
        %v1137 = vsub.s32 %v1134, %v1136
        %v1138 = vrot.slane %v1131, %v1137
        %v1139 = vcombine.low %v729, %v736
        %v1141 = vunpack.c.l.s4 1983009808
        %v1142 = vunpack.c.0.s8 %v1141
        %v1143 = vlaneseq
        %v1144 = vshrl.u32 %v1143, 7
        %v1145 = vsub.s32 %v1142, %v1144
        %v1146 = vrot.slane %v1139, %v1145
        %v1147 = vcombine.low %v739, %v740
        %v1149 = vunpack.c.l.s4 1983009808
        %v1150 = vunpack.c.0.s8 %v1149
        %v1151 = vlaneseq
        %v1152 = vshrl.u32 %v1151, 7
        %v1153 = vsub.s32 %v1150, %v1152
        %v1154 = vrot.slane %v1147, %v1153
        %v1155 = vcombine.low %v1130, %v1138
        %v1157 = vunpack.c.l.s4 1934713408
        %v1158 = vunpack.c.0.s8 %v1157
        %v1159 = vlaneseq
        %v1160 = vshrl.u32 %v1159, 7
        %v1161 = vsub.s32 %v1158, %v1160
        %v1162 = vrot.slane %v1155, %v1161
        %v1163 = vcombine.low %v1146, %v1154
        %v1165 = vunpack.c.l.s4 1934713408
        %v1166 = vunpack.c.0.s8 %v1165
        %v1167 = vlaneseq
        %v1168 = vshrl.u32 %v1167, 7
        %v1169 = vsub.s32 %v1166, %v1168
        %v1170 = vrot.slane %v1163, %v1169
        %v1171 = vcombine.low %v1162, %v1170
        %v1172 = vcombine.high %v1162, %v1170
        %v1173 = vcombine.low %v779, %v786
        %v1175 = vunpack.c.l.s4 1983009808
        %v1176 = vunpack.c.0.s8 %v1175
        %v1177 = vlaneseq
        %v1178 = vshrl.u32 %v1177, 7
        %v1179 = vsub.s32 %v1176, %v1178
        %v1180 = vrot.slane %v1173, %v1179
        %v1181 = vcombine.low %v803, %v804
        %v1183 = vunpack.c.l.s4 1983009808
        %v1184 = vunpack.c.0.s8 %v1183
        %v1185 = vlaneseq
        %v1186 = vshrl.u32 %v1185, 7
        %v1187 = vsub.s32 %v1184, %v1186
        %v1188 = vrot.slane %v1181, %v1187
        %v1189 = vcombine.low %v795, %v802
        %v1191 = vunpack.c.l.s4 1983009808
        %v1192 = vunpack.c.0.s8 %v1191
        %v1193 = vlaneseq
        %v1194 = vshrl.u32 %v1193, 7
        %v1195 = vsub.s32 %v1192, %v1194
        %v1196 = vrot.slane %v1189, %v1195
        %v1197 = vcombine.low %v805, %v806
        %v1199 = vunpack.c.l.s4 1983009808
        %v1200 = vunpack.c.0.s8 %v1199
        %v1201 = vlaneseq
        %v1202 = vshrl.u32 %v1201, 7
        %v1203 = vsub.s32 %v1200, %v1202
        %v1204 = vrot.slane %v1197, %v1203
        %v1205 = vcombine.low %v1180, %v1188
        %v1207 = vunpack.c.l.s4 1934713408
        %v1208 = vunpack.c.0.s8 %v1207
        %v1209 = vlaneseq
        %v1210 = vshrl.u32 %v1209, 7
        %v1211 = vsub.s32 %v1208, %v1210
        %v1212 = vrot.slane %v1205, %v1211
        %v1213 = vcombine.low %v1196, %v1204
        %v1215 = vunpack.c.l.s4 1934713408
        %v1216 = vunpack.c.0.s8 %v1215
        %v1217 = vlaneseq
        %v1218 = vshrl.u32 %v1217, 7
        %v1219 = vsub.s32 %v1216, %v1218
        %v1220 = vrot.slane %v1213, %v1219
        %v1221 = vcombine.low %v1212, %v1220
        %v1222 = vcombine.high %v1212, %v1220
        %v1223 = vcombine.low %v845, %v852
        %v1225 = vunpack.c.l.s4 1983009808
        %v1226 = vunpack.c.0.s8 %v1225
        %v1227 = vlaneseq
        %v1228 = vshrl.u32 %v1227, 7
        %v1229 = vsub.s32 %v1226, %v1228
        %v1230 = vrot.slane %v1223, %v1229
        %v1231 = vcombine.low %v869, %v870
        %v1233 = vunpack.c.l.s4 1983009808
        %v1234 = vunpack.c.0.s8 %v1233
        %v1235 = vlaneseq
        %v1236 = vshrl.u32 %v1235, 7
        %v1237 = vsub.s32 %v1234, %v1236
        %v1238 = vrot.slane %v1231, %v1237
        %v1239 = vcombine.low %v861, %v868
        %v1241 = vunpack.c.l.s4 1983009808
        %v1242 = vunpack.c.0.s8 %v1241
        %v1243 = vlaneseq
        %v1244 = vshrl.u32 %v1243, 7
        %v1245 = vsub.s32 %v1242, %v1244
        %v1246 = vrot.slane %v1239, %v1245
        %v1247 = vcombine.low %v871, %v872
        %v1249 = vunpack.c.l.s4 1983009808
        %v1250 = vunpack.c.0.s8 %v1249
        %v1251 = vlaneseq
        %v1252 = vshrl.u32 %v1251, 7
        %v1253 = vsub.s32 %v1250, %v1252
        %v1254 = vrot.slane %v1247, %v1253
        %v1255 = vcombine.low %v1230, %v1238
        %v1257 = vunpack.c.l.s4 1934713408
        %v1258 = vunpack.c.0.s8 %v1257
        %v1259 = vlaneseq
        %v1260 = vshrl.u32 %v1259, 7
        %v1261 = vsub.s32 %v1258, %v1260
        %v1262 = vrot.slane %v1255, %v1261
        %v1263 = vcombine.low %v1246, %v1254
        %v1265 = vunpack.c.l.s4 1934713408
        %v1266 = vunpack.c.0.s8 %v1265
        %v1267 = vlaneseq
        %v1268 = vshrl.u32 %v1267, 7
        %v1269 = vsub.s32 %v1266, %v1268
        %v1270 = vrot.slane %v1263, %v1269
        %v1271 = vcombine.low %v1262, %v1270
        %v1272 = vcombine.high %v1262, %v1270
        %v1273 = vcombine.high %v921, 0.0
        %v1275 = vunpack.c.l.s4 1983009808
        %v1276 = vunpack.c.0.s8 %v1275
        %v1277 = vlaneseq
        %v1278 = vshrl.u32 %v1277, 7
        %v1279 = vsub.s32 %v1276, %v1278
        %v1280 = vrot.slane %v921, %v1279
        %v1282 = vunpack.c.l.s4 1983009808
        %v1283 = vunpack.c.0.s8 %v1282
        %v1284 = vlaneseq
        %v1285 = vshrl.u32 %v1284, 7
        %v1286 = vsub.s32 %v1283, %v1285
        %v1287 = vrot.slane %v1273, %v1286
        %v1288 = vcombine.high %v922, 0.0
        %v1290 = vunpack.c.l.s4 1983009808
        %v1291 = vunpack.c.0.s8 %v1290
        %v1292 = vlaneseq
        %v1293 = vshrl.u32 %v1292, 7
        %v1294 = vsub.s32 %v1291, %v1293
        %v1295 = vrot.slane %v922, %v1294
        %v1297 = vunpack.c.l.s4 1983009808
        %v1298 = vunpack.c.0.s8 %v1297
        %v1299 = vlaneseq
        %v1300 = vshrl.u32 %v1299, 7
        %v1301 = vsub.s32 %v1298, %v1300
        %v1302 = vrot.slane %v1288, %v1301
        %v1303 = vcombine.low %v1280, %v1295
        %v1304 = vcombine.high %v1280, %v1295
        %v1306 = vunpack.c.l.s4 1934713408
        %v1307 = vunpack.c.0.s8 %v1306
        %v1308 = vlaneseq
        %v1309 = vshrl.u32 %v1308, 7
        %v1310 = vsub.s32 %v1307, %v1309
        %v1311 = vrot.slane %v1303, %v1310
        %v1313 = vunpack.c.l.s4 1934713408
        %v1314 = vunpack.c.0.s8 %v1313
        %v1315 = vlaneseq
        %v1316 = vshrl.u32 %v1315, 7
        %v1317 = vsub.s32 %v1314, %v1316
        %v1318 = vrot.slane %v1304, %v1317
        %v1319 = vcombine.low %v1287, %v1302
        %v1320 = vcombine.high %v1287, %v1302
        %v1322 = vunpack.c.l.s4 1934713408
        %v1323 = vunpack.c.0.s8 %v1322
        %v1324 = vlaneseq
        %v1325 = vshrl.u32 %v1324, 7
        %v1326 = vsub.s32 %v1323, %v1325
        %v1327 = vrot.slane %v1319, %v1326
        %v1329 = vunpack.c.l.s4 1934713408
        %v1330 = vunpack.c.0.s8 %v1329
        %v1331 = vlaneseq
        %v1332 = vshrl.u32 %v1331, 7
        %v1333 = vsub.s32 %v1330, %v1332
        %v1334 = vrot.slane %v1320, %v1333
        %v1335 = vcombine.high %v1311, 0.0
        %v1336 = vcombine.high %v1318, 0.0
        %v1337 = vcombine.high %v1327, 0.0
        %v1338 = vcombine.high %v1334, 0.0
        %v1339 = vcombine.high %v971, 0.0
        %v1341 = vunpack.c.l.s4 1983009808
        %v1342 = vunpack.c.0.s8 %v1341
        %v1343 = vlaneseq
        %v1344 = vshrl.u32 %v1343, 7
        %v1345 = vsub.s32 %v1342, %v1344
        %v1346 = vrot.slane %v971, %v1345
        %v1348 = vunpack.c.l.s4 1983009808
        %v1349 = vunpack.c.0.s8 %v1348
        %v1350 = vlaneseq
        %v1351 = vshrl.u32 %v1350, 7
        %v1352 = vsub.s32 %v1349, %v1351
        %v1353 = vrot.slane %v1339, %v1352
        %v1354 = vcombine.high %v972, 0.0
        %v1356 = vunpack.c.l.s4 1983009808
        %v1357 = vunpack.c.0.s8 %v1356
        %v1358 = vlaneseq
        %v1359 = vshrl.u32 %v1358, 7
        %v1360 = vsub.s32 %v1357, %v1359
        %v1361 = vrot.slane %v972, %v1360
        %v1363 = vunpack.c.l.s4 1983009808
        %v1364 = vunpack.c.0.s8 %v1363
        %v1365 = vlaneseq
        %v1366 = vshrl.u32 %v1365, 7
        %v1367 = vsub.s32 %v1364, %v1366
        %v1368 = vrot.slane %v1354, %v1367
        %v1369 = vcombine.low %v1346, %v1361
        %v1370 = vcombine.high %v1346, %v1361
        %v1372 = vunpack.c.l.s4 1934713408
        %v1373 = vunpack.c.0.s8 %v1372
        %v1374 = vlaneseq
        %v1375 = vshrl.u32 %v1374, 7
        %v1376 = vsub.s32 %v1373, %v1375
        %v1377 = vrot.slane %v1369, %v1376
        %v1379 = vunpack.c.l.s4 1934713408
        %v1380 = vunpack.c.0.s8 %v1379
        %v1381 = vlaneseq
        %v1382 = vshrl.u32 %v1381, 7
        %v1383 = vsub.s32 %v1380, %v1382
        %v1384 = vrot.slane %v1370, %v1383
        %v1385 = vcombine.low %v1353, %v1368
        %v1386 = vcombine.high %v1353, %v1368
        %v1388 = vunpack.c.l.s4 1934713408
        %v1389 = vunpack.c.0.s8 %v1388
        %v1390 = vlaneseq
        %v1391 = vshrl.u32 %v1390, 7
        %v1392 = vsub.s32 %v1389, %v1391
        %v1393 = vrot.slane %v1385, %v1392
        %v1395 = vunpack.c.l.s4 1934713408
        %v1396 = vunpack.c.0.s8 %v1395
        %v1397 = vlaneseq
        %v1398 = vshrl.u32 %v1397, 7
        %v1399 = vsub.s32 %v1396, %v1398
        %v1400 = vrot.slane %v1386, %v1399
        %v1401 = vcombine.high %v1377, 0.0
        %v1402 = vcombine.high %v1384, 0.0
        %v1403 = vcombine.high %v1393, 0.0
        %v1404 = vcombine.high %v1400, 0.0
        %v1405 = vcombine.high %v1021, 0.0
        %v1407 = vunpack.c.l.s4 1983009808
        %v1408 = vunpack.c.0.s8 %v1407
        %v1409 = vlaneseq
        %v1410 = vshrl.u32 %v1409, 7
        %v1411 = vsub.s32 %v1408, %v1410
        %v1412 = vrot.slane %v1021, %v1411
        %v1414 = vunpack.c.l.s4 1983009808
        %v1415 = vunpack.c.0.s8 %v1414
        %v1416 = vlaneseq
        %v1417 = vshrl.u32 %v1416, 7
        %v1418 = vsub.s32 %v1415, %v1417
        %v1419 = vrot.slane %v1405, %v1418
        %v1420 = vcombine.high %v1022, 0.0
        %v1422 = vunpack.c.l.s4 1983009808
        %v1423 = vunpack.c.0.s8 %v1422
        %v1424 = vlaneseq
        %v1425 = vshrl.u32 %v1424, 7
        %v1426 = vsub.s32 %v1423, %v1425
        %v1427 = vrot.slane %v1022, %v1426
        %v1429 = vunpack.c.l.s4 1983009808
        %v1430 = vunpack.c.0.s8 %v1429
        %v1431 = vlaneseq
        %v1432 = vshrl.u32 %v1431, 7
        %v1433 = vsub.s32 %v1430, %v1432
        %v1434 = vrot.slane %v1420, %v1433
        %v1435 = vcombine.low %v1412, %v1427
        %v1436 = vcombine.high %v1412, %v1427
        %v1438 = vunpack.c.l.s4 1934713408
        %v1439 = vunpack.c.0.s8 %v1438
        %v1440 = vlaneseq
        %v1441 = vshrl.u32 %v1440, 7
        %v1442 = vsub.s32 %v1439, %v1441
        %v1443 = vrot.slane %v1435, %v1442
        %v1445 = vunpack.c.l.s4 1934713408
        %v1446 = vunpack.c.0.s8 %v1445
        %v1447 = vlaneseq
        %v1448 = vshrl.u32 %v1447, 7
        %v1449 = vsub.s32 %v1446, %v1448
        %v1450 = vrot.slane %v1436, %v1449
        %v1451 = vcombine.low %v1419, %v1434
        %v1452 = vcombine.high %v1419, %v1434
        %v1454 = vunpack.c.l.s4 1934713408
        %v1455 = vunpack.c.0.s8 %v1454
        %v1456 = vlaneseq
        %v1457 = vshrl.u32 %v1456, 7
        %v1458 = vsub.s32 %v1455, %v1457
        %v1459 = vrot.slane %v1451, %v1458
        %v1461 = vunpack.c.l.s4 1934713408
        %v1462 = vunpack.c.0.s8 %v1461
        %v1463 = vlaneseq
        %v1464 = vshrl.u32 %v1463, 7
        %v1465 = vsub.s32 %v1462, %v1464
        %v1466 = vrot.slane %v1452, %v1465
        %v1467 = vcombine.high %v1443, 0.0
        %v1468 = vcombine.high %v1450, 0.0
        %v1469 = vcombine.high %v1459, 0.0
        %v1470 = vcombine.high %v1466, 0.0
        %v1471 = vcombine.high %v1071, 0.0
        %v1473 = vunpack.c.l.s4 1983009808
        %v1474 = vunpack.c.0.s8 %v1473
        %v1475 = vlaneseq
        %v1476 = vshrl.u32 %v1475, 7
        %v1477 = vsub.s32 %v1474, %v1476
        %v1478 = vrot.slane %v1071, %v1477
        %v1480 = vunpack.c.l.s4 1983009808
        %v1481 = vunpack.c.0.s8 %v1480
        %v1482 = vlaneseq
        %v1483 = vshrl.u32 %v1482, 7
        %v1484 = vsub.s32 %v1481, %v1483
        %v1485 = vrot.slane %v1471, %v1484
        %v1486 = vcombine.high %v1072, 0.0
        %v1488 = vunpack.c.l.s4 1983009808
        %v1489 = vunpack.c.0.s8 %v1488
        %v1490 = vlaneseq
        %v1491 = vshrl.u32 %v1490, 7
        %v1492 = vsub.s32 %v1489, %v1491
        %v1493 = vrot.slane %v1072, %v1492
        %v1495 = vunpack.c.l.s4 1983009808
        %v1496 = vunpack.c.0.s8 %v1495
        %v1497 = vlaneseq
        %v1498 = vshrl.u32 %v1497, 7
        %v1499 = vsub.s32 %v1496, %v1498
        %v1500 = vrot.slane %v1486, %v1499
        %v1501 = vcombine.low %v1478, %v1493
        %v1502 = vcombine.high %v1478, %v1493
        %v1504 = vunpack.c.l.s4 1934713408
        %v1505 = vunpack.c.0.s8 %v1504
        %v1506 = vlaneseq
        %v1507 = vshrl.u32 %v1506, 7
        %v1508 = vsub.s32 %v1505, %v1507
        %v1509 = vrot.slane %v1501, %v1508
        %v1511 = vunpack.c.l.s4 1934713408
        %v1512 = vunpack.c.0.s8 %v1511
        %v1513 = vlaneseq
        %v1514 = vshrl.u32 %v1513, 7
        %v1515 = vsub.s32 %v1512, %v1514
        %v1516 = vrot.slane %v1502, %v1515
        %v1517 = vcombine.low %v1485, %v1500
        %v1518 = vcombine.high %v1485, %v1500
        %v1520 = vunpack.c.l.s4 1934713408
        %v1521 = vunpack.c.0.s8 %v1520
        %v1522 = vlaneseq
        %v1523 = vshrl.u32 %v1522, 7
        %v1524 = vsub.s32 %v1521, %v1523
        %v1525 = vrot.slane %v1517, %v1524
        %v1527 = vunpack.c.l.s4 1934713408
        %v1528 = vunpack.c.0.s8 %v1527
        %v1529 = vlaneseq
        %v1530 = vshrl.u32 %v1529, 7
        %v1531 = vsub.s32 %v1528, %v1530
        %v1532 = vrot.slane %v1518, %v1531
        %v1533 = vcombine.high %v1509, 0.0
        %v1534 = vcombine.high %v1516, 0.0
        %v1535 = vcombine.high %v1525, 0.0
        %v1536 = vcombine.high %v1532, 0.0
        %v1537 = vcombine.high %v1121, 0.0
        %v1539 = vunpack.c.l.s4 1983009808
        %v1540 = vunpack.c.0.s8 %v1539
        %v1541 = vlaneseq
        %v1542 = vshrl.u32 %v1541, 7
        %v1543 = vsub.s32 %v1540, %v1542
        %v1544 = vrot.slane %v1121, %v1543
        %v1546 = vunpack.c.l.s4 1983009808
        %v1547 = vunpack.c.0.s8 %v1546
        %v1548 = vlaneseq
        %v1549 = vshrl.u32 %v1548, 7
        %v1550 = vsub.s32 %v1547, %v1549
        %v1551 = vrot.slane %v1537, %v1550
        %v1552 = vcombine.high %v1122, 0.0
        %v1554 = vunpack.c.l.s4 1983009808
        %v1555 = vunpack.c.0.s8 %v1554
        %v1556 = vlaneseq
        %v1557 = vshrl.u32 %v1556, 7
        %v1558 = vsub.s32 %v1555, %v1557
        %v1559 = vrot.slane %v1122, %v1558
        %v1561 = vunpack.c.l.s4 1983009808
        %v1562 = vunpack.c.0.s8 %v1561
        %v1563 = vlaneseq
        %v1564 = vshrl.u32 %v1563, 7
        %v1565 = vsub.s32 %v1562, %v1564
        %v1566 = vrot.slane %v1552, %v1565
        %v1567 = vcombine.low %v1544, %v1559
        %v1568 = vcombine.high %v1544, %v1559
        %v1570 = vunpack.c.l.s4 1934713408
        %v1571 = vunpack.c.0.s8 %v1570
        %v1572 = vlaneseq
        %v1573 = vshrl.u32 %v1572, 7
        %v1574 = vsub.s32 %v1571, %v1573
        %v1575 = vrot.slane %v1567, %v1574
        %v1577 = vunpack.c.l.s4 1934713408
        %v1578 = vunpack.c.0.s8 %v1577
        %v1579 = vlaneseq
        %v1580 = vshrl.u32 %v1579, 7
        %v1581 = vsub.s32 %v1578, %v1580
        %v1582 = vrot.slane %v1568, %v1581
        %v1583 = vcombine.low %v1551, %v1566
        %v1584 = vcombine.high %v1551, %v1566
        %v1586 = vunpack.c.l.s4 1934713408
        %v1587 = vunpack.c.0.s8 %v1586
        %v1588 = vlaneseq
        %v1589 = vshrl.u32 %v1588, 7
        %v1590 = vsub.s32 %v1587, %v1589
        %v1591 = vrot.slane %v1583, %v1590
        %v1593 = vunpack.c.l.s4 1934713408
        %v1594 = vunpack.c.0.s8 %v1593
        %v1595 = vlaneseq
        %v1596 = vshrl.u32 %v1595, 7
        %v1597 = vsub.s32 %v1594, %v1596
        %v1598 = vrot.slane %v1584, %v1597
        %v1599 = vcombine.high %v1575, 0.0
        %v1600 = vcombine.high %v1582, 0.0
        %v1601 = vcombine.high %v1591, 0.0
        %v1602 = vcombine.high %v1598, 0.0
        %v1603 = vcombine.high %v1171, 0.0
        %v1605 = vunpack.c.l.s4 1983009808
        %v1606 = vunpack.c.0.s8 %v1605
        %v1607 = vlaneseq
        %v1608 = vshrl.u32 %v1607, 7
        %v1609 = vsub.s32 %v1606, %v1608
        %v1610 = vrot.slane %v1171, %v1609
        %v1612 = vunpack.c.l.s4 1983009808
        %v1613 = vunpack.c.0.s8 %v1612
        %v1614 = vlaneseq
        %v1615 = vshrl.u32 %v1614, 7
        %v1616 = vsub.s32 %v1613, %v1615
        %v1617 = vrot.slane %v1603, %v1616
        %v1618 = vcombine.high %v1172, 0.0
        %v1620 = vunpack.c.l.s4 1983009808
        %v1621 = vunpack.c.0.s8 %v1620
        %v1622 = vlaneseq
        %v1623 = vshrl.u32 %v1622, 7
        %v1624 = vsub.s32 %v1621, %v1623
        %v1625 = vrot.slane %v1172, %v1624
        %v1627 = vunpack.c.l.s4 1983009808
        %v1628 = vunpack.c.0.s8 %v1627
        %v1629 = vlaneseq
        %v1630 = vshrl.u32 %v1629, 7
        %v1631 = vsub.s32 %v1628, %v1630
        %v1632 = vrot.slane %v1618, %v1631
        %v1633 = vcombine.low %v1610, %v1625
        %v1634 = vcombine.high %v1610, %v1625
        %v1636 = vunpack.c.l.s4 1934713408
        %v1637 = vunpack.c.0.s8 %v1636
        %v1638 = vlaneseq
        %v1639 = vshrl.u32 %v1638, 7
        %v1640 = vsub.s32 %v1637, %v1639
        %v1641 = vrot.slane %v1633, %v1640
        %v1643 = vunpack.c.l.s4 1934713408
        %v1644 = vunpack.c.0.s8 %v1643
        %v1645 = vlaneseq
        %v1646 = vshrl.u32 %v1645, 7
        %v1647 = vsub.s32 %v1644, %v1646
        %v1648 = vrot.slane %v1634, %v1647
        %v1649 = vcombine.low %v1617, %v1632
        %v1650 = vcombine.high %v1617, %v1632
        %v1652 = vunpack.c.l.s4 1934713408
        %v1653 = vunpack.c.0.s8 %v1652
        %v1654 = vlaneseq
        %v1655 = vshrl.u32 %v1654, 7
        %v1656 = vsub.s32 %v1653, %v1655
        %v1657 = vrot.slane %v1649, %v1656
        %v1659 = vunpack.c.l.s4 1934713408
        %v1660 = vunpack.c.0.s8 %v1659
        %v1661 = vlaneseq
        %v1662 = vshrl.u32 %v1661, 7
        %v1663 = vsub.s32 %v1660, %v1662
        %v1664 = vrot.slane %v1650, %v1663
        %v1665 = vcombine.high %v1641, 0.0
        %v1666 = vcombine.high %v1648, 0.0
        %v1667 = vcombine.high %v1657, 0.0
        %v1668 = vcombine.high %v1664, 0.0
        %v1669 = vcombine.high %v1221, 0.0
        %v1671 = vunpack.c.l.s4 1983009808
        %v1672 = vunpack.c.0.s8 %v1671
        %v1673 = vlaneseq
        %v1674 = vshrl.u32 %v1673, 7
        %v1675 = vsub.s32 %v1672, %v1674
        %v1676 = vrot.slane %v1221, %v1675
        %v1678 = vunpack.c.l.s4 1983009808
        %v1679 = vunpack.c.0.s8 %v1678
        %v1680 = vlaneseq
        %v1681 = vshrl.u32 %v1680, 7
        %v1682 = vsub.s32 %v1679, %v1681
        %v1683 = vrot.slane %v1669, %v1682
        %v1684 = vcombine.high %v1222, 0.0
        %v1686 = vunpack.c.l.s4 1983009808
        %v1687 = vunpack.c.0.s8 %v1686
        %v1688 = vlaneseq
        %v1689 = vshrl.u32 %v1688, 7
        %v1690 = vsub.s32 %v1687, %v1689
        %v1691 = vrot.slane %v1222, %v1690
        %v1693 = vunpack.c.l.s4 1983009808
        %v1694 = vunpack.c.0.s8 %v1693
        %v1695 = vlaneseq
        %v1696 = vshrl.u32 %v1695, 7
        %v1697 = vsub.s32 %v1694, %v1696
        %v1698 = vrot.slane %v1684, %v1697
        %v1699 = vcombine.low %v1676, %v1691
        %v1700 = vcombine.high %v1676, %v1691
        %v1702 = vunpack.c.l.s4 1934713408
        %v1703 = vunpack.c.0.s8 %v1702
        %v1704 = vlaneseq
        %v1705 = vshrl.u32 %v1704, 7
        %v1706 = vsub.s32 %v1703, %v1705
        %v1707 = vrot.slane %v1699, %v1706
        %v1709 = vunpack.c.l.s4 1934713408
        %v1710 = vunpack.c.0.s8 %v1709
        %v1711 = vlaneseq
        %v1712 = vshrl.u32 %v1711, 7
        %v1713 = vsub.s32 %v1710, %v1712
        %v1714 = vrot.slane %v1700, %v1713
        %v1715 = vcombine.low %v1683, %v1698
        %v1716 = vcombine.high %v1683, %v1698
        %v1718 = vunpack.c.l.s4 1934713408
        %v1719 = vunpack.c.0.s8 %v1718
        %v1720 = vlaneseq
        %v1721 = vshrl.u32 %v1720, 7
        %v1722 = vsub.s32 %v1719, %v1721
        %v1723 = vrot.slane %v1715, %v1722
        %v1725 = vunpack.c.l.s4 1934713408
        %v1726 = vunpack.c.0.s8 %v1725
        %v1727 = vlaneseq
        %v1728 = vshrl.u32 %v1727, 7
        %v1729 = vsub.s32 %v1726, %v1728
        %v1730 = vrot.slane %v1716, %v1729
        %v1731 = vcombine.high %v1707, 0.0
        %v1732 = vcombine.high %v1714, 0.0
        %v1733 = vcombine.high %v1723, 0.0
        %v1734 = vcombine.high %v1730, 0.0
        %v1735 = vcombine.high %v1271, 0.0
        %v1737 = vunpack.c.l.s4 1983009808
        %v1738 = vunpack.c.0.s8 %v1737
        %v1739 = vlaneseq
        %v1740 = vshrl.u32 %v1739, 7
        %v1741 = vsub.s32 %v1738, %v1740
        %v1742 = vrot.slane %v1271, %v1741
        %v1744 = vunpack.c.l.s4 1983009808
        %v1745 = vunpack.c.0.s8 %v1744
        %v1746 = vlaneseq
        %v1747 = vshrl.u32 %v1746, 7
        %v1748 = vsub.s32 %v1745, %v1747
        %v1749 = vrot.slane %v1735, %v1748
        %v1750 = vcombine.high %v1272, 0.0
        %v1752 = vunpack.c.l.s4 1983009808
        %v1753 = vunpack.c.0.s8 %v1752
        %v1754 = vlaneseq
        %v1755 = vshrl.u32 %v1754, 7
        %v1756 = vsub.s32 %v1753, %v1755
        %v1757 = vrot.slane %v1272, %v1756
        %v1759 = vunpack.c.l.s4 1983009808
        %v1760 = vunpack.c.0.s8 %v1759
        %v1761 = vlaneseq
        %v1762 = vshrl.u32 %v1761, 7
        %v1763 = vsub.s32 %v1760, %v1762
        %v1764 = vrot.slane %v1750, %v1763
        %v1765 = vcombine.low %v1742, %v1757
        %v1766 = vcombine.high %v1742, %v1757
        %v1768 = vunpack.c.l.s4 1934713408
        %v1769 = vunpack.c.0.s8 %v1768
        %v1770 = vlaneseq
        %v1771 = vshrl.u32 %v1770, 7
        %v1772 = vsub.s32 %v1769, %v1771
        %v1773 = vrot.slane %v1765, %v1772
        %v1775 = vunpack.c.l.s4 1934713408
        %v1776 = vunpack.c.0.s8 %v1775
        %v1777 = vlaneseq
        %v1778 = vshrl.u32 %v1777, 7
        %v1779 = vsub.s32 %v1776, %v1778
        %v1780 = vrot.slane %v1766, %v1779
        %v1781 = vcombine.low %v1749, %v1764
        %v1782 = vcombine.high %v1749, %v1764
        %v1784 = vunpack.c.l.s4 1934713408
        %v1785 = vunpack.c.0.s8 %v1784
        %v1786 = vlaneseq
        %v1787 = vshrl.u32 %v1786, 7
        %v1788 = vsub.s32 %v1785, %v1787
        %v1789 = vrot.slane %v1781, %v1788
        %v1791 = vunpack.c.l.s4 1934713408
        %v1792 = vunpack.c.0.s8 %v1791
        %v1793 = vlaneseq
        %v1794 = vshrl.u32 %v1793, 7
        %v1795 = vsub.s32 %v1792, %v1794
        %v1796 = vrot.slane %v1782, %v1795
        %v1797 = vcombine.high %v1773, 0.0
        %v1798 = vcombine.high %v1780, 0.0
        %v1799 = vcombine.high %v1789, 0.0
        %v1800 = vcombine.high %v1796, 0.0
        %1809 = vrot.lane.b32.xlu0 %v1335, 2
        %v1810 = vpop.permute.xlu0 %1809
        %1811 = vrot.lane.b32.xlu0 %v1401, 2
        %v1812 = vpop.permute.xlu0 %1811
        %1813 = vrot.lane.b32.xlu0 %v1467, 2
        %v1814 = vpop.permute.xlu0 %1813
        %1815 = vrot.lane.b32.xlu0 %v1533, 2
        %v1816 = vpop.permute.xlu0 %1815
        %1817 = vrot.lane.b32.xlu0 %v1599, 2
        %v1818 = vpop.permute.xlu0 %1817
        %1819 = vrot.lane.b32.xlu0 %v1665, 2
        %v1820 = vpop.permute.xlu0 %1819
        %1821 = vrot.lane.b32.xlu0 %v1731, 2
        %v1822 = vpop.permute.xlu0 %1821
        %1823 = vrot.lane.b32.xlu0 %v1797, 2
        %v1824 = vpop.permute.xlu0 %1823
        %1841 = vrot.lane.b32.xlu0 %v1318, 4
        %v1842 = vpop.permute.xlu0 %1841
        %1843 = vrot.lane.b32.xlu0 %v1384, 4
        %v1844 = vpop.permute.xlu0 %1843
        %1845 = vrot.lane.b32.xlu0 %v1450, 4
        %v1846 = vpop.permute.xlu0 %1845
        %1847 = vrot.lane.b32.xlu0 %v1516, 4
        %v1848 = vpop.permute.xlu0 %1847
        %1849 = vrot.lane.b32.xlu0 %v1582, 4
        %v1850 = vpop.permute.xlu0 %1849
        %1851 = vrot.lane.b32.xlu0 %v1648, 4
        %v1852 = vpop.permute.xlu0 %1851
        %1853 = vrot.lane.b32.xlu0 %v1714, 4
        %v1854 = vpop.permute.xlu0 %1853
        %1855 = vrot.lane.b32.xlu0 %v1780, 4
        %v1856 = vpop.permute.xlu0 %1855
        %1873 = vrot.lane.b32.xlu0 %v1336, 6
        %v1874 = vpop.permute.xlu0 %1873
        %1875 = vrot.lane.b32.xlu0 %v1402, 6
        %v1876 = vpop.permute.xlu0 %1875
        %1877 = vrot.lane.b32.xlu0 %v1468, 6
        %v1878 = vpop.permute.xlu0 %1877
        %1879 = vrot.lane.b32.xlu0 %v1534, 6
        %v1880 = vpop.permute.xlu0 %1879
        %1881 = vrot.lane.b32.xlu0 %v1600, 6
        %v1882 = vpop.permute.xlu0 %1881
        %1883 = vrot.lane.b32.xlu0 %v1666, 6
        %v1884 = vpop.permute.xlu0 %1883
        %1885 = vrot.lane.b32.xlu0 %v1732, 6
        %v1886 = vpop.permute.xlu0 %1885
        %1887 = vrot.lane.b32.xlu0 %v1798, 6
        %v1888 = vpop.permute.xlu0 %1887
        %1905 = vrot.lane.b32.xlu0 %v1327, 8
        %v1906 = vpop.permute.xlu0 %1905
        %1907 = vrot.lane.b32.xlu0 %v1393, 8
        %v1908 = vpop.permute.xlu0 %1907
        %1909 = vrot.lane.b32.xlu0 %v1459, 8
        %v1910 = vpop.permute.xlu0 %1909
        %1911 = vrot.lane.b32.xlu0 %v1525, 8
        %v1912 = vpop.permute.xlu0 %1911
        %1913 = vrot.lane.b32.xlu0 %v1591, 8
        %v1914 = vpop.permute.xlu0 %1913
        %1915 = vrot.lane.b32.xlu0 %v1657, 8
        %v1916 = vpop.permute.xlu0 %1915
        %1917 = vrot.lane.b32.xlu0 %v1723, 8
        %v1918 = vpop.permute.xlu0 %1917
        %1919 = vrot.lane.b32.xlu0 %v1789, 8
        %v1920 = vpop.permute.xlu0 %1919
        %1937 = vrot.lane.b32.xlu0 %v1337, 10
        %v1938 = vpop.permute.xlu0 %1937
        %1939 = vrot.lane.b32.xlu0 %v1403, 10
        %v1940 = vpop.permute.xlu0 %1939
        %1941 = vrot.lane.b32.xlu0 %v1469, 10
        %v1942 = vpop.permute.xlu0 %1941
        %1943 = vrot.lane.b32.xlu0 %v1535, 10
        %v1944 = vpop.permute.xlu0 %1943
        %1945 = vrot.lane.b32.xlu0 %v1601, 10
        %v1946 = vpop.permute.xlu0 %1945
        %1947 = vrot.lane.b32.xlu0 %v1667, 10
        %v1948 = vpop.permute.xlu0 %1947
        %1949 = vrot.lane.b32.xlu0 %v1733, 10
        %v1950 = vpop.permute.xlu0 %1949
        %1951 = vrot.lane.b32.xlu0 %v1799, 10
        %v1952 = vpop.permute.xlu0 %1951
        %1969 = vrot.lane.b32.xlu0 %v1334, 12
        %v1970 = vpop.permute.xlu0 %1969
        %1971 = vrot.lane.b32.xlu0 %v1400, 12
        %v1972 = vpop.permute.xlu0 %1971
        %1973 = vrot.lane.b32.xlu0 %v1466, 12
        %v1974 = vpop.permute.xlu0 %1973
        %1975 = vrot.lane.b32.xlu0 %v1532, 12
        %v1976 = vpop.permute.xlu0 %1975
        %1977 = vrot.lane.b32.xlu0 %v1598, 12
        %v1978 = vpop.permute.xlu0 %1977
        %1979 = vrot.lane.b32.xlu0 %v1664, 12
        %v1980 = vpop.permute.xlu0 %1979
        %1981 = vrot.lane.b32.xlu0 %v1730, 12
        %v1982 = vpop.permute.xlu0 %1981
        %1983 = vrot.lane.b32.xlu0 %v1796, 12
        %v1984 = vpop.permute.xlu0 %1983
        %2001 = vrot.lane.b32.xlu0 %v1338, 14
        %v2002 = vpop.permute.xlu0 %2001
        %2003 = vrot.lane.b32.xlu0 %v1404, 14
        %v2004 = vpop.permute.xlu0 %2003
        %2005 = vrot.lane.b32.xlu0 %v1470, 14
        %v2006 = vpop.permute.xlu0 %2005
        %2007 = vrot.lane.b32.xlu0 %v1536, 14
        %v2008 = vpop.permute.xlu0 %2007
        %2009 = vrot.lane.b32.xlu0 %v1602, 14
        %v2010 = vpop.permute.xlu0 %2009
        %2011 = vrot.lane.b32.xlu0 %v1668, 14
        %v2012 = vpop.permute.xlu0 %2011
        %2013 = vrot.lane.b32.xlu0 %v1734, 14
        %v2014 = vpop.permute.xlu0 %2013
        %2015 = vrot.lane.b32.xlu0 %v1800, 14
        %v2016 = vpop.permute.xlu0 %2015
        %vm2025 = vcmask 15360
        %v2026 = vsel %vm2025, %v1311, %v1810
        %v2027 = vsel %vm2025, %v1377, %v1812
        %v2028 = vsel %vm2025, %v1443, %v1814
        %v2029 = vsel %vm2025, %v1509, %v1816
        %v2030 = vsel %vm2025, %v1575, %v1818
        %v2031 = vsel %vm2025, %v1641, %v1820
        %v2032 = vsel %vm2025, %v1707, %v1822
        %v2033 = vsel %vm2025, %v1773, %v1824
        %vm2034 = vcmask 31744
        %v2035 = vsel %vm2034, %v2026, %v1842
        %v2036 = vsel %vm2034, %v2027, %v1844
        %v2037 = vsel %vm2034, %v2028, %v1846
        %v2038 = vsel %vm2034, %v2029, %v1848
        %v2039 = vsel %vm2034, %v2030, %v1850
        %v2040 = vsel %vm2034, %v2031, %v1852
        %v2041 = vsel %vm2034, %v2032, %v1854
        %v2042 = vsel %vm2034, %v2033, %v1856
        %vm2043 = vcmask 48128
        %v2044 = vsel %vm2043, %v2035, %v1874
        %v2045 = vsel %vm2043, %v2036, %v1876
        %v2046 = vsel %vm2043, %v2037, %v1878
        %v2047 = vsel %vm2043, %v2038, %v1880
        %v2048 = vsel %vm2043, %v2039, %v1882
        %v2049 = vsel %vm2043, %v2040, %v1884
        %v2050 = vsel %vm2043, %v2041, %v1886
        %v2051 = vsel %vm2043, %v2042, %v1888
        %vm2052 = vcmask 64512
        %v2053 = vsel %vm2052, %v2044, %v1906
        %v2054 = vsel %vm2052, %v2045, %v1908
        %v2055 = vsel %vm2052, %v2046, %v1910
        %v2056 = vsel %vm2052, %v2047, %v1912
        %v2057 = vsel %vm2052, %v2048, %v1914
        %v2058 = vsel %vm2052, %v2049, %v1916
        %v2059 = vsel %vm2052, %v2050, %v1918
        %v2060 = vsel %vm2052, %v2051, %v1920
        %vm2061 = vcmask 80896
        %v2062 = vsel %vm2061, %v2053, %v1938
        %v2063 = vsel %vm2061, %v2054, %v1940
        %v2064 = vsel %vm2061, %v2055, %v1942
        %v2065 = vsel %vm2061, %v2056, %v1944
        %v2066 = vsel %vm2061, %v2057, %v1946
        %v2067 = vsel %vm2061, %v2058, %v1948
        %v2068 = vsel %vm2061, %v2059, %v1950
        %v2069 = vsel %vm2061, %v2060, %v1952
        %vm2070 = vcmask 97280
        %v2071 = vsel %vm2070, %v2062, %v1970
        %v2072 = vsel %vm2070, %v2063, %v1972
        %v2073 = vsel %vm2070, %v2064, %v1974
        %v2074 = vsel %vm2070, %v2065, %v1976
        %v2075 = vsel %vm2070, %v2066, %v1978
        %v2076 = vsel %vm2070, %v2067, %v1980
        %v2077 = vsel %vm2070, %v2068, %v1982
        %v2078 = vsel %vm2070, %v2069, %v1984
        %vm2079 = vcmask 113664
        %v2080 = vsel %vm2079, %v2071, %v2002
        %v2081 = vsel %vm2079, %v2072, %v2004
        %v2082 = vsel %vm2079, %v2073, %v2006
        %v2083 = vsel %vm2079, %v2074, %v2008
        %v2084 = vsel %vm2079, %v2075, %v2010
        %v2085 = vsel %vm2079, %v2076, %v2012
        %v2086 = vsel %vm2079, %v2077, %v2014
        %v2087 = vsel %vm2079, %v2078, %v2016
        %vm2088 = vcmask 123904
        %2089 = vst.msk [vmem:[%s161] sm:$0x3] %vm2088, %v2080
        %2090 = vst.msk [vmem:[%s161 + $0x2] sm:$0x3] %vm2088, %v2081
        %2091 = vst.msk [vmem:[%s161 + $0x4] sm:$0x3] %vm2088, %v2082
        %2092 = vst.msk [vmem:[%s161 + $0x6] sm:$0x3] %vm2088, %v2083
        %2093 = vst.msk [vmem:[%s161 + $0x8] sm:$0x3] %vm2088, %v2084
        %2094 = vst.msk [vmem:[%s161 + $0xa] sm:$0x3] %vm2088, %v2085
        %2095 = vst.msk [vmem:[%s161 + $0xc] sm:$0x3] %vm2088, %v2086
        %2096 = vst.msk [vmem:[%s161 + $0xe] sm:$0x3] %vm2088, %v2087
        %2097 = vrot.lane.b32.xlu0 %v275, 124
        %v2098 = vpop.permute.xlu0 %2097
        %2099 = vrot.lane.b32.xlu0 %v280, 124
        %v2100 = vpop.permute.xlu0 %2099
        %2101 = vrot.lane.b32.xlu0 %v285, 124
        %v2102 = vpop.permute.xlu0 %2101
        %2103 = vrot.lane.b32.xlu0 %v290, 124
        %v2104 = vpop.permute.xlu0 %2103
        %2105 = vrot.lane.b32.xlu0 %v295, 124
        %v2106 = vpop.permute.xlu0 %2105
        %2107 = vrot.lane.b32.xlu0 %v300, 124
        %v2108 = vpop.permute.xlu0 %2107
        %2109 = vrot.lane.b32.xlu0 %v305, 124
        %v2110 = vpop.permute.xlu0 %2109
        %2111 = vrot.lane.b32.xlu0 %v310, 124
        %v2112 = vpop.permute.xlu0 %2111
        %2113 = vrot.lane.b32.xlu0 %v322, 124
        %v2114 = vpop.permute.xlu0 %2113
        %2115 = vrot.lane.b32.xlu0 %v324, 124
        %v2116 = vpop.permute.xlu0 %2115
        %2117 = vrot.lane.b32.xlu0 %v326, 124
        %v2118 = vpop.permute.xlu0 %2117
        %2119 = vrot.lane.b32.xlu0 %v328, 124
        %v2120 = vpop.permute.xlu0 %2119
        %2121 = vrot.lane.b32.xlu0 %v330, 124
        %v2122 = vpop.permute.xlu0 %2121
        %2123 = vrot.lane.b32.xlu0 %v332, 124
        %v2124 = vpop.permute.xlu0 %2123
        %2125 = vrot.lane.b32.xlu0 %v334, 124
        %v2126 = vpop.permute.xlu0 %2125
        %2127 = vrot.lane.b32.xlu0 %v336, 124
        %v2128 = vpop.permute.xlu0 %2127
        %v2145 = vcombine.high %v2098, 0.0
        %v2147 = vunpack.c.l.s4 1983009808
        %v2148 = vunpack.c.0.s8 %v2147
        %v2149 = vlaneseq
        %v2150 = vshrl.u32 %v2149, 7
        %v2151 = vsub.s32 %v2148, %v2150
        %v2152 = vrot.slane %v2098, %v2151
        %v2154 = vunpack.c.l.s4 1983009808
        %v2155 = vunpack.c.0.s8 %v2154
        %v2156 = vlaneseq
        %v2157 = vshrl.u32 %v2156, 7
        %v2158 = vsub.s32 %v2155, %v2157
        %v2159 = vrot.slane %v2145, %v2158
        %v2160 = vcombine.high %v2114, 0.0
        %v2162 = vunpack.c.l.s4 1983009808
        %v2163 = vunpack.c.0.s8 %v2162
        %v2164 = vlaneseq
        %v2165 = vshrl.u32 %v2164, 7
        %v2166 = vsub.s32 %v2163, %v2165
        %v2167 = vrot.slane %v2114, %v2166
        %v2169 = vunpack.c.l.s4 1983009808
        %v2170 = vunpack.c.0.s8 %v2169
        %v2171 = vlaneseq
        %v2172 = vshrl.u32 %v2171, 7
        %v2173 = vsub.s32 %v2170, %v2172
        %v2174 = vrot.slane %v2160, %v2173
        %v2175 = vcombine.low %v2152, %v2167
        %v2176 = vcombine.high %v2152, %v2167
        %v2178 = vunpack.c.l.s4 1934713408
        %v2179 = vunpack.c.0.s8 %v2178
        %v2180 = vlaneseq
        %v2181 = vshrl.u32 %v2180, 7
        %v2182 = vsub.s32 %v2179, %v2181
        %v2183 = vrot.slane %v2175, %v2182
        %v2185 = vunpack.c.l.s4 1934713408
        %v2186 = vunpack.c.0.s8 %v2185
        %v2187 = vlaneseq
        %v2188 = vshrl.u32 %v2187, 7
        %v2189 = vsub.s32 %v2186, %v2188
        %v2190 = vrot.slane %v2176, %v2189
        %v2191 = vcombine.low %v2159, %v2174
        %v2192 = vcombine.high %v2159, %v2174
        %v2194 = vunpack.c.l.s4 1934713408
        %v2195 = vunpack.c.0.s8 %v2194
        %v2196 = vlaneseq
        %v2197 = vshrl.u32 %v2196, 7
        %v2198 = vsub.s32 %v2195, %v2197
        %v2199 = vrot.slane %v2191, %v2198
        %v2201 = vunpack.c.l.s4 1934713408
        %v2202 = vunpack.c.0.s8 %v2201
        %v2203 = vlaneseq
        %v2204 = vshrl.u32 %v2203, 7
        %v2205 = vsub.s32 %v2202, %v2204
        %v2206 = vrot.slane %v2192, %v2205
        %v2207 = vcombine.high %v2183, 0.0
        %v2208 = vcombine.high %v2190, 0.0
        %v2209 = vcombine.high %v2199, 0.0
        %v2210 = vcombine.high %v2206, 0.0
        %v2211 = vcombine.high %v2100, 0.0
        %v2213 = vunpack.c.l.s4 1983009808
        %v2214 = vunpack.c.0.s8 %v2213
        %v2215 = vlaneseq
        %v2216 = vshrl.u32 %v2215, 7
        %v2217 = vsub.s32 %v2214, %v2216
        %v2218 = vrot.slane %v2100, %v2217
        %v2220 = vunpack.c.l.s4 1983009808
        %v2221 = vunpack.c.0.s8 %v2220
        %v2222 = vlaneseq
        %v2223 = vshrl.u32 %v2222, 7
        %v2224 = vsub.s32 %v2221, %v2223
        %v2225 = vrot.slane %v2211, %v2224
        %v2226 = vcombine.high %v2116, 0.0
        %v2228 = vunpack.c.l.s4 1983009808
        %v2229 = vunpack.c.0.s8 %v2228
        %v2230 = vlaneseq
        %v2231 = vshrl.u32 %v2230, 7
        %v2232 = vsub.s32 %v2229, %v2231
        %v2233 = vrot.slane %v2116, %v2232
        %v2235 = vunpack.c.l.s4 1983009808
        %v2236 = vunpack.c.0.s8 %v2235
        %v2237 = vlaneseq
        %v2238 = vshrl.u32 %v2237, 7
        %v2239 = vsub.s32 %v2236, %v2238
        %v2240 = vrot.slane %v2226, %v2239
        %v2241 = vcombine.low %v2218, %v2233
        %v2242 = vcombine.high %v2218, %v2233
        %v2244 = vunpack.c.l.s4 1934713408
        %v2245 = vunpack.c.0.s8 %v2244
        %v2246 = vlaneseq
        %v2247 = vshrl.u32 %v2246, 7
        %v2248 = vsub.s32 %v2245, %v2247
        %v2249 = vrot.slane %v2241, %v2248
        %v2251 = vunpack.c.l.s4 1934713408
        %v2252 = vunpack.c.0.s8 %v2251
        %v2253 = vlaneseq
        %v2254 = vshrl.u32 %v2253, 7
        %v2255 = vsub.s32 %v2252, %v2254
        %v2256 = vrot.slane %v2242, %v2255
        %v2257 = vcombine.low %v2225, %v2240
        %v2258 = vcombine.high %v2225, %v2240
        %v2260 = vunpack.c.l.s4 1934713408
        %v2261 = vunpack.c.0.s8 %v2260
        %v2262 = vlaneseq
        %v2263 = vshrl.u32 %v2262, 7
        %v2264 = vsub.s32 %v2261, %v2263
        %v2265 = vrot.slane %v2257, %v2264
        %v2267 = vunpack.c.l.s4 1934713408
        %v2268 = vunpack.c.0.s8 %v2267
        %v2269 = vlaneseq
        %v2270 = vshrl.u32 %v2269, 7
        %v2271 = vsub.s32 %v2268, %v2270
        %v2272 = vrot.slane %v2258, %v2271
        %v2273 = vcombine.high %v2249, 0.0
        %v2274 = vcombine.high %v2256, 0.0
        %v2275 = vcombine.high %v2265, 0.0
        %v2276 = vcombine.high %v2272, 0.0
        %v2277 = vcombine.high %v2102, 0.0
        %v2279 = vunpack.c.l.s4 1983009808
        %v2280 = vunpack.c.0.s8 %v2279
        %v2281 = vlaneseq
        %v2282 = vshrl.u32 %v2281, 7
        %v2283 = vsub.s32 %v2280, %v2282
        %v2284 = vrot.slane %v2102, %v2283
        %v2286 = vunpack.c.l.s4 1983009808
        %v2287 = vunpack.c.0.s8 %v2286
        %v2288 = vlaneseq
        %v2289 = vshrl.u32 %v2288, 7
        %v2290 = vsub.s32 %v2287, %v2289
        %v2291 = vrot.slane %v2277, %v2290
        %v2292 = vcombine.high %v2118, 0.0
        %v2294 = vunpack.c.l.s4 1983009808
        %v2295 = vunpack.c.0.s8 %v2294
        %v2296 = vlaneseq
        %v2297 = vshrl.u32 %v2296, 7
        %v2298 = vsub.s32 %v2295, %v2297
        %v2299 = vrot.slane %v2118, %v2298
        %v2301 = vunpack.c.l.s4 1983009808
        %v2302 = vunpack.c.0.s8 %v2301
        %v2303 = vlaneseq
        %v2304 = vshrl.u32 %v2303, 7
        %v2305 = vsub.s32 %v2302, %v2304
        %v2306 = vrot.slane %v2292, %v2305
        %v2307 = vcombine.low %v2284, %v2299
        %v2308 = vcombine.high %v2284, %v2299
        %v2310 = vunpack.c.l.s4 1934713408
        %v2311 = vunpack.c.0.s8 %v2310
        %v2312 = vlaneseq
        %v2313 = vshrl.u32 %v2312, 7
        %v2314 = vsub.s32 %v2311, %v2313
        %v2315 = vrot.slane %v2307, %v2314
        %v2317 = vunpack.c.l.s4 1934713408
        %v2318 = vunpack.c.0.s8 %v2317
        %v2319 = vlaneseq
        %v2320 = vshrl.u32 %v2319, 7
        %v2321 = vsub.s32 %v2318, %v2320
        %v2322 = vrot.slane %v2308, %v2321
        %v2323 = vcombine.low %v2291, %v2306
        %v2324 = vcombine.high %v2291, %v2306
        %v2326 = vunpack.c.l.s4 1934713408
        %v2327 = vunpack.c.0.s8 %v2326
        %v2328 = vlaneseq
        %v2329 = vshrl.u32 %v2328, 7
        %v2330 = vsub.s32 %v2327, %v2329
        %v2331 = vrot.slane %v2323, %v2330
        %v2333 = vunpack.c.l.s4 1934713408
        %v2334 = vunpack.c.0.s8 %v2333
        %v2335 = vlaneseq
        %v2336 = vshrl.u32 %v2335, 7
        %v2337 = vsub.s32 %v2334, %v2336
        %v2338 = vrot.slane %v2324, %v2337
        %v2339 = vcombine.high %v2315, 0.0
        %v2340 = vcombine.high %v2322, 0.0
        %v2341 = vcombine.high %v2331, 0.0
        %v2342 = vcombine.high %v2338, 0.0
        %v2343 = vcombine.high %v2104, 0.0
        %v2345 = vunpack.c.l.s4 1983009808
        %v2346 = vunpack.c.0.s8 %v2345
        %v2347 = vlaneseq
        %v2348 = vshrl.u32 %v2347, 7
        %v2349 = vsub.s32 %v2346, %v2348
        %v2350 = vrot.slane %v2104, %v2349
        %v2352 = vunpack.c.l.s4 1983009808
        %v2353 = vunpack.c.0.s8 %v2352
        %v2354 = vlaneseq
        %v2355 = vshrl.u32 %v2354, 7
        %v2356 = vsub.s32 %v2353, %v2355
        %v2357 = vrot.slane %v2343, %v2356
        %v2358 = vcombine.high %v2120, 0.0
        %v2360 = vunpack.c.l.s4 1983009808
        %v2361 = vunpack.c.0.s8 %v2360
        %v2362 = vlaneseq
        %v2363 = vshrl.u32 %v2362, 7
        %v2364 = vsub.s32 %v2361, %v2363
        %v2365 = vrot.slane %v2120, %v2364
        %v2367 = vunpack.c.l.s4 1983009808
        %v2368 = vunpack.c.0.s8 %v2367
        %v2369 = vlaneseq
        %v2370 = vshrl.u32 %v2369, 7
        %v2371 = vsub.s32 %v2368, %v2370
        %v2372 = vrot.slane %v2358, %v2371
        %v2373 = vcombine.low %v2350, %v2365
        %v2374 = vcombine.high %v2350, %v2365
        %v2376 = vunpack.c.l.s4 1934713408
        %v2377 = vunpack.c.0.s8 %v2376
        %v2378 = vlaneseq
        %v2379 = vshrl.u32 %v2378, 7
        %v2380 = vsub.s32 %v2377, %v2379
        %v2381 = vrot.slane %v2373, %v2380
        %v2383 = vunpack.c.l.s4 1934713408
        %v2384 = vunpack.c.0.s8 %v2383
        %v2385 = vlaneseq
        %v2386 = vshrl.u32 %v2385, 7
        %v2387 = vsub.s32 %v2384, %v2386
        %v2388 = vrot.slane %v2374, %v2387
        %v2389 = vcombine.low %v2357, %v2372
        %v2390 = vcombine.high %v2357, %v2372
        %v2392 = vunpack.c.l.s4 1934713408
        %v2393 = vunpack.c.0.s8 %v2392
        %v2394 = vlaneseq
        %v2395 = vshrl.u32 %v2394, 7
        %v2396 = vsub.s32 %v2393, %v2395
        %v2397 = vrot.slane %v2389, %v2396
        %v2399 = vunpack.c.l.s4 1934713408
        %v2400 = vunpack.c.0.s8 %v2399
        %v2401 = vlaneseq
        %v2402 = vshrl.u32 %v2401, 7
        %v2403 = vsub.s32 %v2400, %v2402
        %v2404 = vrot.slane %v2390, %v2403
        %v2405 = vcombine.high %v2381, 0.0
        %v2406 = vcombine.high %v2388, 0.0
        %v2407 = vcombine.high %v2397, 0.0
        %v2408 = vcombine.high %v2404, 0.0
        %v2409 = vcombine.high %v2106, 0.0
        %v2411 = vunpack.c.l.s4 1983009808
        %v2412 = vunpack.c.0.s8 %v2411
        %v2413 = vlaneseq
        %v2414 = vshrl.u32 %v2413, 7
        %v2415 = vsub.s32 %v2412, %v2414
        %v2416 = vrot.slane %v2106, %v2415
        %v2418 = vunpack.c.l.s4 1983009808
        %v2419 = vunpack.c.0.s8 %v2418
        %v2420 = vlaneseq
        %v2421 = vshrl.u32 %v2420, 7
        %v2422 = vsub.s32 %v2419, %v2421
        %v2423 = vrot.slane %v2409, %v2422
        %v2424 = vcombine.high %v2122, 0.0
        %v2426 = vunpack.c.l.s4 1983009808
        %v2427 = vunpack.c.0.s8 %v2426
        %v2428 = vlaneseq
        %v2429 = vshrl.u32 %v2428, 7
        %v2430 = vsub.s32 %v2427, %v2429
        %v2431 = vrot.slane %v2122, %v2430
        %v2433 = vunpack.c.l.s4 1983009808
        %v2434 = vunpack.c.0.s8 %v2433
        %v2435 = vlaneseq
        %v2436 = vshrl.u32 %v2435, 7
        %v2437 = vsub.s32 %v2434, %v2436
        %v2438 = vrot.slane %v2424, %v2437
        %v2439 = vcombine.low %v2416, %v2431
        %v2440 = vcombine.high %v2416, %v2431
        %v2442 = vunpack.c.l.s4 1934713408
        %v2443 = vunpack.c.0.s8 %v2442
        %v2444 = vlaneseq
        %v2445 = vshrl.u32 %v2444, 7
        %v2446 = vsub.s32 %v2443, %v2445
        %v2447 = vrot.slane %v2439, %v2446
        %v2449 = vunpack.c.l.s4 1934713408
        %v2450 = vunpack.c.0.s8 %v2449
        %v2451 = vlaneseq
        %v2452 = vshrl.u32 %v2451, 7
        %v2453 = vsub.s32 %v2450, %v2452
        %v2454 = vrot.slane %v2440, %v2453
        %v2455 = vcombine.low %v2423, %v2438
        %v2456 = vcombine.high %v2423, %v2438
        %v2458 = vunpack.c.l.s4 1934713408
        %v2459 = vunpack.c.0.s8 %v2458
        %v2460 = vlaneseq
        %v2461 = vshrl.u32 %v2460, 7
        %v2462 = vsub.s32 %v2459, %v2461
        %v2463 = vrot.slane %v2455, %v2462
        %v2465 = vunpack.c.l.s4 1934713408
        %v2466 = vunpack.c.0.s8 %v2465
        %v2467 = vlaneseq
        %v2468 = vshrl.u32 %v2467, 7
        %v2469 = vsub.s32 %v2466, %v2468
        %v2470 = vrot.slane %v2456, %v2469
        %v2471 = vcombine.high %v2447, 0.0
        %v2472 = vcombine.high %v2454, 0.0
        %v2473 = vcombine.high %v2463, 0.0
        %v2474 = vcombine.high %v2470, 0.0
        %v2475 = vcombine.high %v2108, 0.0
        %v2477 = vunpack.c.l.s4 1983009808
        %v2478 = vunpack.c.0.s8 %v2477
        %v2479 = vlaneseq
        %v2480 = vshrl.u32 %v2479, 7
        %v2481 = vsub.s32 %v2478, %v2480
        %v2482 = vrot.slane %v2108, %v2481
        %v2484 = vunpack.c.l.s4 1983009808
        %v2485 = vunpack.c.0.s8 %v2484
        %v2486 = vlaneseq
        %v2487 = vshrl.u32 %v2486, 7
        %v2488 = vsub.s32 %v2485, %v2487
        %v2489 = vrot.slane %v2475, %v2488
        %v2490 = vcombine.high %v2124, 0.0
        %v2492 = vunpack.c.l.s4 1983009808
        %v2493 = vunpack.c.0.s8 %v2492
        %v2494 = vlaneseq
        %v2495 = vshrl.u32 %v2494, 7
        %v2496 = vsub.s32 %v2493, %v2495
        %v2497 = vrot.slane %v2124, %v2496
        %v2499 = vunpack.c.l.s4 1983009808
        %v2500 = vunpack.c.0.s8 %v2499
        %v2501 = vlaneseq
        %v2502 = vshrl.u32 %v2501, 7
        %v2503 = vsub.s32 %v2500, %v2502
        %v2504 = vrot.slane %v2490, %v2503
        %v2505 = vcombine.low %v2482, %v2497
        %v2506 = vcombine.high %v2482, %v2497
        %v2508 = vunpack.c.l.s4 1934713408
        %v2509 = vunpack.c.0.s8 %v2508
        %v2510 = vlaneseq
        %v2511 = vshrl.u32 %v2510, 7
        %v2512 = vsub.s32 %v2509, %v2511
        %v2513 = vrot.slane %v2505, %v2512
        %v2515 = vunpack.c.l.s4 1934713408
        %v2516 = vunpack.c.0.s8 %v2515
        %v2517 = vlaneseq
        %v2518 = vshrl.u32 %v2517, 7
        %v2519 = vsub.s32 %v2516, %v2518
        %v2520 = vrot.slane %v2506, %v2519
        %v2521 = vcombine.low %v2489, %v2504
        %v2522 = vcombine.high %v2489, %v2504
        %v2524 = vunpack.c.l.s4 1934713408
        %v2525 = vunpack.c.0.s8 %v2524
        %v2526 = vlaneseq
        %v2527 = vshrl.u32 %v2526, 7
        %v2528 = vsub.s32 %v2525, %v2527
        %v2529 = vrot.slane %v2521, %v2528
        %v2531 = vunpack.c.l.s4 1934713408
        %v2532 = vunpack.c.0.s8 %v2531
        %v2533 = vlaneseq
        %v2534 = vshrl.u32 %v2533, 7
        %v2535 = vsub.s32 %v2532, %v2534
        %v2536 = vrot.slane %v2522, %v2535
        %v2537 = vcombine.high %v2513, 0.0
        %v2538 = vcombine.high %v2520, 0.0
        %v2539 = vcombine.high %v2529, 0.0
        %v2540 = vcombine.high %v2536, 0.0
        %v2541 = vcombine.high %v2110, 0.0
        %v2543 = vunpack.c.l.s4 1983009808
        %v2544 = vunpack.c.0.s8 %v2543
        %v2545 = vlaneseq
        %v2546 = vshrl.u32 %v2545, 7
        %v2547 = vsub.s32 %v2544, %v2546
        %v2548 = vrot.slane %v2110, %v2547
        %v2550 = vunpack.c.l.s4 1983009808
        %v2551 = vunpack.c.0.s8 %v2550
        %v2552 = vlaneseq
        %v2553 = vshrl.u32 %v2552, 7
        %v2554 = vsub.s32 %v2551, %v2553
        %v2555 = vrot.slane %v2541, %v2554
        %v2556 = vcombine.high %v2126, 0.0
        %v2558 = vunpack.c.l.s4 1983009808
        %v2559 = vunpack.c.0.s8 %v2558
        %v2560 = vlaneseq
        %v2561 = vshrl.u32 %v2560, 7
        %v2562 = vsub.s32 %v2559, %v2561
        %v2563 = vrot.slane %v2126, %v2562
        %v2565 = vunpack.c.l.s4 1983009808
        %v2566 = vunpack.c.0.s8 %v2565
        %v2567 = vlaneseq
        %v2568 = vshrl.u32 %v2567, 7
        %v2569 = vsub.s32 %v2566, %v2568
        %v2570 = vrot.slane %v2556, %v2569
        %v2571 = vcombine.low %v2548, %v2563
        %v2572 = vcombine.high %v2548, %v2563
        %v2574 = vunpack.c.l.s4 1934713408
        %v2575 = vunpack.c.0.s8 %v2574
        %v2576 = vlaneseq
        %v2577 = vshrl.u32 %v2576, 7
        %v2578 = vsub.s32 %v2575, %v2577
        %v2579 = vrot.slane %v2571, %v2578
        %v2581 = vunpack.c.l.s4 1934713408
        %v2582 = vunpack.c.0.s8 %v2581
        %v2583 = vlaneseq
        %v2584 = vshrl.u32 %v2583, 7
        %v2585 = vsub.s32 %v2582, %v2584
        %v2586 = vrot.slane %v2572, %v2585
        %v2587 = vcombine.low %v2555, %v2570
        %v2588 = vcombine.high %v2555, %v2570
        %v2590 = vunpack.c.l.s4 1934713408
        %v2591 = vunpack.c.0.s8 %v2590
        %v2592 = vlaneseq
        %v2593 = vshrl.u32 %v2592, 7
        %v2594 = vsub.s32 %v2591, %v2593
        %v2595 = vrot.slane %v2587, %v2594
        %v2597 = vunpack.c.l.s4 1934713408
        %v2598 = vunpack.c.0.s8 %v2597
        %v2599 = vlaneseq
        %v2600 = vshrl.u32 %v2599, 7
        %v2601 = vsub.s32 %v2598, %v2600
        %v2602 = vrot.slane %v2588, %v2601
        %v2603 = vcombine.high %v2579, 0.0
        %v2604 = vcombine.high %v2586, 0.0
        %v2605 = vcombine.high %v2595, 0.0
        %v2606 = vcombine.high %v2602, 0.0
        %v2607 = vcombine.high %v2112, 0.0
        %v2609 = vunpack.c.l.s4 1983009808
        %v2610 = vunpack.c.0.s8 %v2609
        %v2611 = vlaneseq
        %v2612 = vshrl.u32 %v2611, 7
        %v2613 = vsub.s32 %v2610, %v2612
        %v2614 = vrot.slane %v2112, %v2613
        %v2616 = vunpack.c.l.s4 1983009808
        %v2617 = vunpack.c.0.s8 %v2616
        %v2618 = vlaneseq
        %v2619 = vshrl.u32 %v2618, 7
        %v2620 = vsub.s32 %v2617, %v2619
        %v2621 = vrot.slane %v2607, %v2620
        %v2622 = vcombine.high %v2128, 0.0
        %v2624 = vunpack.c.l.s4 1983009808
        %v2625 = vunpack.c.0.s8 %v2624
        %v2626 = vlaneseq
        %v2627 = vshrl.u32 %v2626, 7
        %v2628 = vsub.s32 %v2625, %v2627
        %v2629 = vrot.slane %v2128, %v2628
        %v2631 = vunpack.c.l.s4 1983009808
        %v2632 = vunpack.c.0.s8 %v2631
        %v2633 = vlaneseq
        %v2634 = vshrl.u32 %v2633, 7
        %v2635 = vsub.s32 %v2632, %v2634
        %v2636 = vrot.slane %v2622, %v2635
        %v2637 = vcombine.low %v2614, %v2629
        %v2638 = vcombine.high %v2614, %v2629
        %v2640 = vunpack.c.l.s4 1934713408
        %v2641 = vunpack.c.0.s8 %v2640
        %v2642 = vlaneseq
        %v2643 = vshrl.u32 %v2642, 7
        %v2644 = vsub.s32 %v2641, %v2643
        %v2645 = vrot.slane %v2637, %v2644
        %v2647 = vunpack.c.l.s4 1934713408
        %v2648 = vunpack.c.0.s8 %v2647
        %v2649 = vlaneseq
        %v2650 = vshrl.u32 %v2649, 7
        %v2651 = vsub.s32 %v2648, %v2650
        %v2652 = vrot.slane %v2638, %v2651
        %v2653 = vcombine.low %v2621, %v2636
        %v2654 = vcombine.high %v2621, %v2636
        %v2656 = vunpack.c.l.s4 1934713408
        %v2657 = vunpack.c.0.s8 %v2656
        %v2658 = vlaneseq
        %v2659 = vshrl.u32 %v2658, 7
        %v2660 = vsub.s32 %v2657, %v2659
        %v2661 = vrot.slane %v2653, %v2660
        %v2663 = vunpack.c.l.s4 1934713408
        %v2664 = vunpack.c.0.s8 %v2663
        %v2665 = vlaneseq
        %v2666 = vshrl.u32 %v2665, 7
        %v2667 = vsub.s32 %v2664, %v2666
        %v2668 = vrot.slane %v2654, %v2667
        %v2669 = vcombine.high %v2645, 0.0
        %v2670 = vcombine.high %v2652, 0.0
        %v2671 = vcombine.high %v2661, 0.0
        %v2672 = vcombine.high %v2668, 0.0
        %v2673 = vcombine.low %v2183, %v2190
        %v2675 = vunpack.c.l.s4 1983009808
        %v2676 = vunpack.c.0.s8 %v2675
        %v2677 = vlaneseq
        %v2678 = vshrl.u32 %v2677, 7
        %v2679 = vsub.s32 %v2676, %v2678
        %v2680 = vrot.slane %v2673, %v2679
        %v2681 = vcombine.low %v2207, %v2208
        %v2683 = vunpack.c.l.s4 1983009808
        %v2684 = vunpack.c.0.s8 %v2683
        %v2685 = vlaneseq
        %v2686 = vshrl.u32 %v2685, 7
        %v2687 = vsub.s32 %v2684, %v2686
        %v2688 = vrot.slane %v2681, %v2687
        %v2689 = vcombine.low %v2199, %v2206
        %v2691 = vunpack.c.l.s4 1983009808
        %v2692 = vunpack.c.0.s8 %v2691
        %v2693 = vlaneseq
        %v2694 = vshrl.u32 %v2693, 7
        %v2695 = vsub.s32 %v2692, %v2694
        %v2696 = vrot.slane %v2689, %v2695
        %v2697 = vcombine.low %v2209, %v2210
        %v2699 = vunpack.c.l.s4 1983009808
        %v2700 = vunpack.c.0.s8 %v2699
        %v2701 = vlaneseq
        %v2702 = vshrl.u32 %v2701, 7
        %v2703 = vsub.s32 %v2700, %v2702
        %v2704 = vrot.slane %v2697, %v2703
        %v2705 = vcombine.low %v2680, %v2688
        %v2707 = vunpack.c.l.s4 1934713408
        %v2708 = vunpack.c.0.s8 %v2707
        %v2709 = vlaneseq
        %v2710 = vshrl.u32 %v2709, 7
        %v2711 = vsub.s32 %v2708, %v2710
        %v2712 = vrot.slane %v2705, %v2711
        %v2713 = vcombine.low %v2696, %v2704
        %v2715 = vunpack.c.l.s4 1934713408
        %v2716 = vunpack.c.0.s8 %v2715
        %v2717 = vlaneseq
        %v2718 = vshrl.u32 %v2717, 7
        %v2719 = vsub.s32 %v2716, %v2718
        %v2720 = vrot.slane %v2713, %v2719
        %v2721 = vcombine.low %v2712, %v2720
        %v2722 = vcombine.high %v2712, %v2720
        %v2723 = vcombine.low %v2249, %v2256
        %v2725 = vunpack.c.l.s4 1983009808
        %v2726 = vunpack.c.0.s8 %v2725
        %v2727 = vlaneseq
        %v2728 = vshrl.u32 %v2727, 7
        %v2729 = vsub.s32 %v2726, %v2728
        %v2730 = vrot.slane %v2723, %v2729
        %v2731 = vcombine.low %v2273, %v2274
        %v2733 = vunpack.c.l.s4 1983009808
        %v2734 = vunpack.c.0.s8 %v2733
        %v2735 = vlaneseq
        %v2736 = vshrl.u32 %v2735, 7
        %v2737 = vsub.s32 %v2734, %v2736
        %v2738 = vrot.slane %v2731, %v2737
        %v2739 = vcombine.low %v2265, %v2272
        %v2741 = vunpack.c.l.s4 1983009808
        %v2742 = vunpack.c.0.s8 %v2741
        %v2743 = vlaneseq
        %v2744 = vshrl.u32 %v2743, 7
        %v2745 = vsub.s32 %v2742, %v2744
        %v2746 = vrot.slane %v2739, %v2745
        %v2747 = vcombine.low %v2275, %v2276
        %v2749 = vunpack.c.l.s4 1983009808
        %v2750 = vunpack.c.0.s8 %v2749
        %v2751 = vlaneseq
        %v2752 = vshrl.u32 %v2751, 7
        %v2753 = vsub.s32 %v2750, %v2752
        %v2754 = vrot.slane %v2747, %v2753
        %v2755 = vcombine.low %v2730, %v2738
        %v2757 = vunpack.c.l.s4 1934713408
        %v2758 = vunpack.c.0.s8 %v2757
        %v2759 = vlaneseq
        %v2760 = vshrl.u32 %v2759, 7
        %v2761 = vsub.s32 %v2758, %v2760
        %v2762 = vrot.slane %v2755, %v2761
        %v2763 = vcombine.low %v2746, %v2754
        %v2765 = vunpack.c.l.s4 1934713408
        %v2766 = vunpack.c.0.s8 %v2765
        %v2767 = vlaneseq
        %v2768 = vshrl.u32 %v2767, 7
        %v2769 = vsub.s32 %v2766, %v2768
        %v2770 = vrot.slane %v2763, %v2769
        %v2771 = vcombine.low %v2762, %v2770
        %v2772 = vcombine.high %v2762, %v2770
        %v2773 = vcombine.low %v2315, %v2322
        %v2775 = vunpack.c.l.s4 1983009808
        %v2776 = vunpack.c.0.s8 %v2775
        %v2777 = vlaneseq
        %v2778 = vshrl.u32 %v2777, 7
        %v2779 = vsub.s32 %v2776, %v2778
        %v2780 = vrot.slane %v2773, %v2779
        %v2781 = vcombine.low %v2339, %v2340
        %v2783 = vunpack.c.l.s4 1983009808
        %v2784 = vunpack.c.0.s8 %v2783
        %v2785 = vlaneseq
        %v2786 = vshrl.u32 %v2785, 7
        %v2787 = vsub.s32 %v2784, %v2786
        %v2788 = vrot.slane %v2781, %v2787
        %v2789 = vcombine.low %v2331, %v2338
        %v2791 = vunpack.c.l.s4 1983009808
        %v2792 = vunpack.c.0.s8 %v2791
        %v2793 = vlaneseq
        %v2794 = vshrl.u32 %v2793, 7
        %v2795 = vsub.s32 %v2792, %v2794
        %v2796 = vrot.slane %v2789, %v2795
        %v2797 = vcombine.low %v2341, %v2342
        %v2799 = vunpack.c.l.s4 1983009808
        %v2800 = vunpack.c.0.s8 %v2799
        %v2801 = vlaneseq
        %v2802 = vshrl.u32 %v2801, 7
        %v2803 = vsub.s32 %v2800, %v2802
        %v2804 = vrot.slane %v2797, %v2803
        %v2805 = vcombine.low %v2780, %v2788
        %v2807 = vunpack.c.l.s4 1934713408
        %v2808 = vunpack.c.0.s8 %v2807
        %v2809 = vlaneseq
        %v2810 = vshrl.u32 %v2809, 7
        %v2811 = vsub.s32 %v2808, %v2810
        %v2812 = vrot.slane %v2805, %v2811
        %v2813 = vcombine.low %v2796, %v2804
        %v2815 = vunpack.c.l.s4 1934713408
        %v2816 = vunpack.c.0.s8 %v2815
        %v2817 = vlaneseq
        %v2818 = vshrl.u32 %v2817, 7
        %v2819 = vsub.s32 %v2816, %v2818
        %v2820 = vrot.slane %v2813, %v2819
        %v2821 = vcombine.low %v2812, %v2820
        %v2822 = vcombine.high %v2812, %v2820
        %v2823 = vcombine.low %v2381, %v2388
        %v2825 = vunpack.c.l.s4 1983009808
        %v2826 = vunpack.c.0.s8 %v2825
        %v2827 = vlaneseq
        %v2828 = vshrl.u32 %v2827, 7
        %v2829 = vsub.s32 %v2826, %v2828
        %v2830 = vrot.slane %v2823, %v2829
        %v2831 = vcombine.low %v2405, %v2406
        %v2833 = vunpack.c.l.s4 1983009808
        %v2834 = vunpack.c.0.s8 %v2833
        %v2835 = vlaneseq
        %v2836 = vshrl.u32 %v2835, 7
        %v2837 = vsub.s32 %v2834, %v2836
        %v2838 = vrot.slane %v2831, %v2837
        %v2839 = vcombine.low %v2397, %v2404
        %v2841 = vunpack.c.l.s4 1983009808
        %v2842 = vunpack.c.0.s8 %v2841
        %v2843 = vlaneseq
        %v2844 = vshrl.u32 %v2843, 7
        %v2845 = vsub.s32 %v2842, %v2844
        %v2846 = vrot.slane %v2839, %v2845
        %v2847 = vcombine.low %v2407, %v2408
        %v2849 = vunpack.c.l.s4 1983009808
        %v2850 = vunpack.c.0.s8 %v2849
        %v2851 = vlaneseq
        %v2852 = vshrl.u32 %v2851, 7
        %v2853 = vsub.s32 %v2850, %v2852
        %v2854 = vrot.slane %v2847, %v2853
        %v2855 = vcombine.low %v2830, %v2838
        %v2857 = vunpack.c.l.s4 1934713408
        %v2858 = vunpack.c.0.s8 %v2857
        %v2859 = vlaneseq
        %v2860 = vshrl.u32 %v2859, 7
        %v2861 = vsub.s32 %v2858, %v2860
        %v2862 = vrot.slane %v2855, %v2861
        %v2863 = vcombine.low %v2846, %v2854
        %v2865 = vunpack.c.l.s4 1934713408
        %v2866 = vunpack.c.0.s8 %v2865
        %v2867 = vlaneseq
        %v2868 = vshrl.u32 %v2867, 7
        %v2869 = vsub.s32 %v2866, %v2868
        %v2870 = vrot.slane %v2863, %v2869
        %v2871 = vcombine.low %v2862, %v2870
        %v2872 = vcombine.high %v2862, %v2870
        %v2873 = vcombine.low %v2447, %v2454
        %v2875 = vunpack.c.l.s4 1983009808
        %v2876 = vunpack.c.0.s8 %v2875
        %v2877 = vlaneseq
        %v2878 = vshrl.u32 %v2877, 7
        %v2879 = vsub.s32 %v2876, %v2878
        %v2880 = vrot.slane %v2873, %v2879
        %v2881 = vcombine.low %v2471, %v2472
        %v2883 = vunpack.c.l.s4 1983009808
        %v2884 = vunpack.c.0.s8 %v2883
        %v2885 = vlaneseq
        %v2886 = vshrl.u32 %v2885, 7
        %v2887 = vsub.s32 %v2884, %v2886
        %v2888 = vrot.slane %v2881, %v2887
        %v2889 = vcombine.low %v2463, %v2470
        %v2891 = vunpack.c.l.s4 1983009808
        %v2892 = vunpack.c.0.s8 %v2891
        %v2893 = vlaneseq
        %v2894 = vshrl.u32 %v2893, 7
        %v2895 = vsub.s32 %v2892, %v2894
        %v2896 = vrot.slane %v2889, %v2895
        %v2897 = vcombine.low %v2473, %v2474
        %v2899 = vunpack.c.l.s4 1983009808
        %v2900 = vunpack.c.0.s8 %v2899
        %v2901 = vlaneseq
        %v2902 = vshrl.u32 %v2901, 7
        %v2903 = vsub.s32 %v2900, %v2902
        %v2904 = vrot.slane %v2897, %v2903
        %v2905 = vcombine.low %v2880, %v2888
        %v2907 = vunpack.c.l.s4 1934713408
        %v2908 = vunpack.c.0.s8 %v2907
        %v2909 = vlaneseq
        %v2910 = vshrl.u32 %v2909, 7
        %v2911 = vsub.s32 %v2908, %v2910
        %v2912 = vrot.slane %v2905, %v2911
        %v2913 = vcombine.low %v2896, %v2904
        %v2915 = vunpack.c.l.s4 1934713408
        %v2916 = vunpack.c.0.s8 %v2915
        %v2917 = vlaneseq
        %v2918 = vshrl.u32 %v2917, 7
        %v2919 = vsub.s32 %v2916, %v2918
        %v2920 = vrot.slane %v2913, %v2919
        %v2921 = vcombine.low %v2912, %v2920
        %v2922 = vcombine.high %v2912, %v2920
        %v2923 = vcombine.low %v2513, %v2520
        %v2925 = vunpack.c.l.s4 1983009808
        %v2926 = vunpack.c.0.s8 %v2925
        %v2927 = vlaneseq
        %v2928 = vshrl.u32 %v2927, 7
        %v2929 = vsub.s32 %v2926, %v2928
        %v2930 = vrot.slane %v2923, %v2929
        %v2931 = vcombine.low %v2537, %v2538
        %v2933 = vunpack.c.l.s4 1983009808
        %v2934 = vunpack.c.0.s8 %v2933
        %v2935 = vlaneseq
        %v2936 = vshrl.u32 %v2935, 7
        %v2937 = vsub.s32 %v2934, %v2936
        %v2938 = vrot.slane %v2931, %v2937
        %v2939 = vcombine.low %v2529, %v2536
        %v2941 = vunpack.c.l.s4 1983009808
        %v2942 = vunpack.c.0.s8 %v2941
        %v2943 = vlaneseq
        %v2944 = vshrl.u32 %v2943, 7
        %v2945 = vsub.s32 %v2942, %v2944
        %v2946 = vrot.slane %v2939, %v2945
        %v2947 = vcombine.low %v2539, %v2540
        %v2949 = vunpack.c.l.s4 1983009808
        %v2950 = vunpack.c.0.s8 %v2949
        %v2951 = vlaneseq
        %v2952 = vshrl.u32 %v2951, 7
        %v2953 = vsub.s32 %v2950, %v2952
        %v2954 = vrot.slane %v2947, %v2953
        %v2955 = vcombine.low %v2930, %v2938
        %v2957 = vunpack.c.l.s4 1934713408
        %v2958 = vunpack.c.0.s8 %v2957
        %v2959 = vlaneseq
        %v2960 = vshrl.u32 %v2959, 7
        %v2961 = vsub.s32 %v2958, %v2960
        %v2962 = vrot.slane %v2955, %v2961
        %v2963 = vcombine.low %v2946, %v2954
        %v2965 = vunpack.c.l.s4 1934713408
        %v2966 = vunpack.c.0.s8 %v2965
        %v2967 = vlaneseq
        %v2968 = vshrl.u32 %v2967, 7
        %v2969 = vsub.s32 %v2966, %v2968
        %v2970 = vrot.slane %v2963, %v2969
        %v2971 = vcombine.low %v2962, %v2970
        %v2972 = vcombine.high %v2962, %v2970
        %v2973 = vcombine.low %v2579, %v2586
        %v2975 = vunpack.c.l.s4 1983009808
        %v2976 = vunpack.c.0.s8 %v2975
        %v2977 = vlaneseq
        %v2978 = vshrl.u32 %v2977, 7
        %v2979 = vsub.s32 %v2976, %v2978
        %v2980 = vrot.slane %v2973, %v2979
        %v2981 = vcombine.low %v2603, %v2604
        %v2983 = vunpack.c.l.s4 1983009808
        %v2984 = vunpack.c.0.s8 %v2983
        %v2985 = vlaneseq
        %v2986 = vshrl.u32 %v2985, 7
        %v2987 = vsub.s32 %v2984, %v2986
        %v2988 = vrot.slane %v2981, %v2987
        %v2989 = vcombine.low %v2595, %v2602
        %v2991 = vunpack.c.l.s4 1983009808
        %v2992 = vunpack.c.0.s8 %v2991
        %v2993 = vlaneseq
        %v2994 = vshrl.u32 %v2993, 7
        %v2995 = vsub.s32 %v2992, %v2994
        %v2996 = vrot.slane %v2989, %v2995
        %v2997 = vcombine.low %v2605, %v2606
        %v2999 = vunpack.c.l.s4 1983009808
        %v3000 = vunpack.c.0.s8 %v2999
        %v3001 = vlaneseq
        %v3002 = vshrl.u32 %v3001, 7
        %v3003 = vsub.s32 %v3000, %v3002
        %v3004 = vrot.slane %v2997, %v3003
        %v3005 = vcombine.low %v2980, %v2988
        %v3007 = vunpack.c.l.s4 1934713408
        %v3008 = vunpack.c.0.s8 %v3007
        %v3009 = vlaneseq
        %v3010 = vshrl.u32 %v3009, 7
        %v3011 = vsub.s32 %v3008, %v3010
        %v3012 = vrot.slane %v3005, %v3011
        %v3013 = vcombine.low %v2996, %v3004
        %v3015 = vunpack.c.l.s4 1934713408
        %v3016 = vunpack.c.0.s8 %v3015
        %v3017 = vlaneseq
        %v3018 = vshrl.u32 %v3017, 7
        %v3019 = vsub.s32 %v3016, %v3018
        %v3020 = vrot.slane %v3013, %v3019
        %v3021 = vcombine.low %v3012, %v3020
        %v3022 = vcombine.high %v3012, %v3020
        %v3023 = vcombine.low %v2645, %v2652
        %v3025 = vunpack.c.l.s4 1983009808
        %v3026 = vunpack.c.0.s8 %v3025
        %v3027 = vlaneseq
        %v3028 = vshrl.u32 %v3027, 7
        %v3029 = vsub.s32 %v3026, %v3028
        %v3030 = vrot.slane %v3023, %v3029
        %v3031 = vcombine.low %v2669, %v2670
        %v3033 = vunpack.c.l.s4 1983009808
        %v3034 = vunpack.c.0.s8 %v3033
        %v3035 = vlaneseq
        %v3036 = vshrl.u32 %v3035, 7
        %v3037 = vsub.s32 %v3034, %v3036
        %v3038 = vrot.slane %v3031, %v3037
        %v3039 = vcombine.low %v2661, %v2668
        %v3041 = vunpack.c.l.s4 1983009808
        %v3042 = vunpack.c.0.s8 %v3041
        %v3043 = vlaneseq
        %v3044 = vshrl.u32 %v3043, 7
        %v3045 = vsub.s32 %v3042, %v3044
        %v3046 = vrot.slane %v3039, %v3045
        %v3047 = vcombine.low %v2671, %v2672
        %v3049 = vunpack.c.l.s4 1983009808
        %v3050 = vunpack.c.0.s8 %v3049
        %v3051 = vlaneseq
        %v3052 = vshrl.u32 %v3051, 7
        %v3053 = vsub.s32 %v3050, %v3052
        %v3054 = vrot.slane %v3047, %v3053
        %v3055 = vcombine.low %v3030, %v3038
        %v3057 = vunpack.c.l.s4 1934713408
        %v3058 = vunpack.c.0.s8 %v3057
        %v3059 = vlaneseq
        %v3060 = vshrl.u32 %v3059, 7
        %v3061 = vsub.s32 %v3058, %v3060
        %v3062 = vrot.slane %v3055, %v3061
        %v3063 = vcombine.low %v3046, %v3054
        %v3065 = vunpack.c.l.s4 1934713408
        %v3066 = vunpack.c.0.s8 %v3065
        %v3067 = vlaneseq
        %v3068 = vshrl.u32 %v3067, 7
        %v3069 = vsub.s32 %v3066, %v3068
        %v3070 = vrot.slane %v3063, %v3069
        %v3071 = vcombine.low %v3062, %v3070
        %v3072 = vcombine.high %v3062, %v3070
        %v3073 = vcombine.high %v2721, 0.0
        %v3075 = vunpack.c.l.s4 1983009808
        %v3076 = vunpack.c.0.s8 %v3075
        %v3077 = vlaneseq
        %v3078 = vshrl.u32 %v3077, 7
        %v3079 = vsub.s32 %v3076, %v3078
        %v3080 = vrot.slane %v2721, %v3079
        %v3082 = vunpack.c.l.s4 1983009808
        %v3083 = vunpack.c.0.s8 %v3082
        %v3084 = vlaneseq
        %v3085 = vshrl.u32 %v3084, 7
        %v3086 = vsub.s32 %v3083, %v3085
        %v3087 = vrot.slane %v3073, %v3086
        %v3088 = vcombine.high %v2722, 0.0
        %v3090 = vunpack.c.l.s4 1983009808
        %v3091 = vunpack.c.0.s8 %v3090
        %v3092 = vlaneseq
        %v3093 = vshrl.u32 %v3092, 7
        %v3094 = vsub.s32 %v3091, %v3093
        %v3095 = vrot.slane %v2722, %v3094
        %v3097 = vunpack.c.l.s4 1983009808
        %v3098 = vunpack.c.0.s8 %v3097
        %v3099 = vlaneseq
        %v3100 = vshrl.u32 %v3099, 7
        %v3101 = vsub.s32 %v3098, %v3100
        %v3102 = vrot.slane %v3088, %v3101
        %v3103 = vcombine.low %v3080, %v3095
        %v3104 = vcombine.high %v3080, %v3095
        %v3106 = vunpack.c.l.s4 1934713408
        %v3107 = vunpack.c.0.s8 %v3106
        %v3108 = vlaneseq
        %v3109 = vshrl.u32 %v3108, 7
        %v3110 = vsub.s32 %v3107, %v3109
        %v3111 = vrot.slane %v3103, %v3110
        %v3113 = vunpack.c.l.s4 1934713408
        %v3114 = vunpack.c.0.s8 %v3113
        %v3115 = vlaneseq
        %v3116 = vshrl.u32 %v3115, 7
        %v3117 = vsub.s32 %v3114, %v3116
        %v3118 = vrot.slane %v3104, %v3117
        %v3119 = vcombine.low %v3087, %v3102
        %v3120 = vcombine.high %v3087, %v3102
        %v3122 = vunpack.c.l.s4 1934713408
        %v3123 = vunpack.c.0.s8 %v3122
        %v3124 = vlaneseq
        %v3125 = vshrl.u32 %v3124, 7
        %v3126 = vsub.s32 %v3123, %v3125
        %v3127 = vrot.slane %v3119, %v3126
        %v3129 = vunpack.c.l.s4 1934713408
        %v3130 = vunpack.c.0.s8 %v3129
        %v3131 = vlaneseq
        %v3132 = vshrl.u32 %v3131, 7
        %v3133 = vsub.s32 %v3130, %v3132
        %v3134 = vrot.slane %v3120, %v3133
        %v3135 = vcombine.high %v3111, 0.0
        %v3136 = vcombine.high %v3118, 0.0
        %v3137 = vcombine.high %v3127, 0.0
        %v3138 = vcombine.high %v3134, 0.0
        %v3139 = vcombine.high %v2771, 0.0
        %v3141 = vunpack.c.l.s4 1983009808
        %v3142 = vunpack.c.0.s8 %v3141
        %v3143 = vlaneseq
        %v3144 = vshrl.u32 %v3143, 7
        %v3145 = vsub.s32 %v3142, %v3144
        %v3146 = vrot.slane %v2771, %v3145
        %v3148 = vunpack.c.l.s4 1983009808
        %v3149 = vunpack.c.0.s8 %v3148
        %v3150 = vlaneseq
        %v3151 = vshrl.u32 %v3150, 7
        %v3152 = vsub.s32 %v3149, %v3151
        %v3153 = vrot.slane %v3139, %v3152
        %v3154 = vcombine.high %v2772, 0.0
        %v3156 = vunpack.c.l.s4 1983009808
        %v3157 = vunpack.c.0.s8 %v3156
        %v3158 = vlaneseq
        %v3159 = vshrl.u32 %v3158, 7
        %v3160 = vsub.s32 %v3157, %v3159
        %v3161 = vrot.slane %v2772, %v3160
        %v3163 = vunpack.c.l.s4 1983009808
        %v3164 = vunpack.c.0.s8 %v3163
        %v3165 = vlaneseq
        %v3166 = vshrl.u32 %v3165, 7
        %v3167 = vsub.s32 %v3164, %v3166
        %v3168 = vrot.slane %v3154, %v3167
        %v3169 = vcombine.low %v3146, %v3161
        %v3170 = vcombine.high %v3146, %v3161
        %v3172 = vunpack.c.l.s4 1934713408
        %v3173 = vunpack.c.0.s8 %v3172
        %v3174 = vlaneseq
        %v3175 = vshrl.u32 %v3174, 7
        %v3176 = vsub.s32 %v3173, %v3175
        %v3177 = vrot.slane %v3169, %v3176
        %v3179 = vunpack.c.l.s4 1934713408
        %v3180 = vunpack.c.0.s8 %v3179
        %v3181 = vlaneseq
        %v3182 = vshrl.u32 %v3181, 7
        %v3183 = vsub.s32 %v3180, %v3182
        %v3184 = vrot.slane %v3170, %v3183
        %v3185 = vcombine.low %v3153, %v3168
        %v3186 = vcombine.high %v3153, %v3168
        %v3188 = vunpack.c.l.s4 1934713408
        %v3189 = vunpack.c.0.s8 %v3188
        %v3190 = vlaneseq
        %v3191 = vshrl.u32 %v3190, 7
        %v3192 = vsub.s32 %v3189, %v3191
        %v3193 = vrot.slane %v3185, %v3192
        %v3195 = vunpack.c.l.s4 1934713408
        %v3196 = vunpack.c.0.s8 %v3195
        %v3197 = vlaneseq
        %v3198 = vshrl.u32 %v3197, 7
        %v3199 = vsub.s32 %v3196, %v3198
        %v3200 = vrot.slane %v3186, %v3199
        %v3201 = vcombine.high %v3177, 0.0
        %v3202 = vcombine.high %v3184, 0.0
        %v3203 = vcombine.high %v3193, 0.0
        %v3204 = vcombine.high %v3200, 0.0
        %v3205 = vcombine.high %v2821, 0.0
        %v3207 = vunpack.c.l.s4 1983009808
        %v3208 = vunpack.c.0.s8 %v3207
        %v3209 = vlaneseq
        %v3210 = vshrl.u32 %v3209, 7
        %v3211 = vsub.s32 %v3208, %v3210
        %v3212 = vrot.slane %v2821, %v3211
        %v3214 = vunpack.c.l.s4 1983009808
        %v3215 = vunpack.c.0.s8 %v3214
        %v3216 = vlaneseq
        %v3217 = vshrl.u32 %v3216, 7
        %v3218 = vsub.s32 %v3215, %v3217
        %v3219 = vrot.slane %v3205, %v3218
        %v3220 = vcombine.high %v2822, 0.0
        %v3222 = vunpack.c.l.s4 1983009808
        %v3223 = vunpack.c.0.s8 %v3222
        %v3224 = vlaneseq
        %v3225 = vshrl.u32 %v3224, 7
        %v3226 = vsub.s32 %v3223, %v3225
        %v3227 = vrot.slane %v2822, %v3226
        %v3229 = vunpack.c.l.s4 1983009808
        %v3230 = vunpack.c.0.s8 %v3229
        %v3231 = vlaneseq
        %v3232 = vshrl.u32 %v3231, 7
        %v3233 = vsub.s32 %v3230, %v3232
        %v3234 = vrot.slane %v3220, %v3233
        %v3235 = vcombine.low %v3212, %v3227
        %v3236 = vcombine.high %v3212, %v3227
        %v3238 = vunpack.c.l.s4 1934713408
        %v3239 = vunpack.c.0.s8 %v3238
        %v3240 = vlaneseq
        %v3241 = vshrl.u32 %v3240, 7
        %v3242 = vsub.s32 %v3239, %v3241
        %v3243 = vrot.slane %v3235, %v3242
        %v3245 = vunpack.c.l.s4 1934713408
        %v3246 = vunpack.c.0.s8 %v3245
        %v3247 = vlaneseq
        %v3248 = vshrl.u32 %v3247, 7
        %v3249 = vsub.s32 %v3246, %v3248
        %v3250 = vrot.slane %v3236, %v3249
        %v3251 = vcombine.low %v3219, %v3234
        %v3252 = vcombine.high %v3219, %v3234
        %v3254 = vunpack.c.l.s4 1934713408
        %v3255 = vunpack.c.0.s8 %v3254
        %v3256 = vlaneseq
        %v3257 = vshrl.u32 %v3256, 7
        %v3258 = vsub.s32 %v3255, %v3257
        %v3259 = vrot.slane %v3251, %v3258
        %v3261 = vunpack.c.l.s4 1934713408
        %v3262 = vunpack.c.0.s8 %v3261
        %v3263 = vlaneseq
        %v3264 = vshrl.u32 %v3263, 7
        %v3265 = vsub.s32 %v3262, %v3264
        %v3266 = vrot.slane %v3252, %v3265
        %v3267 = vcombine.high %v3243, 0.0
        %v3268 = vcombine.high %v3250, 0.0
        %v3269 = vcombine.high %v3259, 0.0
        %v3270 = vcombine.high %v3266, 0.0
        %v3271 = vcombine.high %v2871, 0.0
        %v3273 = vunpack.c.l.s4 1983009808
        %v3274 = vunpack.c.0.s8 %v3273
        %v3275 = vlaneseq
        %v3276 = vshrl.u32 %v3275, 7
        %v3277 = vsub.s32 %v3274, %v3276
        %v3278 = vrot.slane %v2871, %v3277
        %v3280 = vunpack.c.l.s4 1983009808
        %v3281 = vunpack.c.0.s8 %v3280
        %v3282 = vlaneseq
        %v3283 = vshrl.u32 %v3282, 7
        %v3284 = vsub.s32 %v3281, %v3283
        %v3285 = vrot.slane %v3271, %v3284
        %v3286 = vcombine.high %v2872, 0.0
        %v3288 = vunpack.c.l.s4 1983009808
        %v3289 = vunpack.c.0.s8 %v3288
        %v3290 = vlaneseq
        %v3291 = vshrl.u32 %v3290, 7
        %v3292 = vsub.s32 %v3289, %v3291
        %v3293 = vrot.slane %v2872, %v3292
        %v3295 = vunpack.c.l.s4 1983009808
        %v3296 = vunpack.c.0.s8 %v3295
        %v3297 = vlaneseq
        %v3298 = vshrl.u32 %v3297, 7
        %v3299 = vsub.s32 %v3296, %v3298
        %v3300 = vrot.slane %v3286, %v3299
        %v3301 = vcombine.low %v3278, %v3293
        %v3302 = vcombine.high %v3278, %v3293
        %v3304 = vunpack.c.l.s4 1934713408
        %v3305 = vunpack.c.0.s8 %v3304
        %v3306 = vlaneseq
        %v3307 = vshrl.u32 %v3306, 7
        %v3308 = vsub.s32 %v3305, %v3307
        %v3309 = vrot.slane %v3301, %v3308
        %v3311 = vunpack.c.l.s4 1934713408
        %v3312 = vunpack.c.0.s8 %v3311
        %v3313 = vlaneseq
        %v3314 = vshrl.u32 %v3313, 7
        %v3315 = vsub.s32 %v3312, %v3314
        %v3316 = vrot.slane %v3302, %v3315
        %v3317 = vcombine.low %v3285, %v3300
        %v3318 = vcombine.high %v3285, %v3300
        %v3320 = vunpack.c.l.s4 1934713408
        %v3321 = vunpack.c.0.s8 %v3320
        %v3322 = vlaneseq
        %v3323 = vshrl.u32 %v3322, 7
        %v3324 = vsub.s32 %v3321, %v3323
        %v3325 = vrot.slane %v3317, %v3324
        %v3327 = vunpack.c.l.s4 1934713408
        %v3328 = vunpack.c.0.s8 %v3327
        %v3329 = vlaneseq
        %v3330 = vshrl.u32 %v3329, 7
        %v3331 = vsub.s32 %v3328, %v3330
        %v3332 = vrot.slane %v3318, %v3331
        %v3333 = vcombine.high %v3309, 0.0
        %v3334 = vcombine.high %v3316, 0.0
        %v3335 = vcombine.high %v3325, 0.0
        %v3336 = vcombine.high %v3332, 0.0
        %v3337 = vcombine.high %v2921, 0.0
        %v3339 = vunpack.c.l.s4 1983009808
        %v3340 = vunpack.c.0.s8 %v3339
        %v3341 = vlaneseq
        %v3342 = vshrl.u32 %v3341, 7
        %v3343 = vsub.s32 %v3340, %v3342
        %v3344 = vrot.slane %v2921, %v3343
        %v3346 = vunpack.c.l.s4 1983009808
        %v3347 = vunpack.c.0.s8 %v3346
        %v3348 = vlaneseq
        %v3349 = vshrl.u32 %v3348, 7
        %v3350 = vsub.s32 %v3347, %v3349
        %v3351 = vrot.slane %v3337, %v3350
        %v3352 = vcombine.high %v2922, 0.0
        %v3354 = vunpack.c.l.s4 1983009808
        %v3355 = vunpack.c.0.s8 %v3354
        %v3356 = vlaneseq
        %v3357 = vshrl.u32 %v3356, 7
        %v3358 = vsub.s32 %v3355, %v3357
        %v3359 = vrot.slane %v2922, %v3358
        %v3361 = vunpack.c.l.s4 1983009808
        %v3362 = vunpack.c.0.s8 %v3361
        %v3363 = vlaneseq
        %v3364 = vshrl.u32 %v3363, 7
        %v3365 = vsub.s32 %v3362, %v3364
        %v3366 = vrot.slane %v3352, %v3365
        %v3367 = vcombine.low %v3344, %v3359
        %v3368 = vcombine.high %v3344, %v3359
        %v3370 = vunpack.c.l.s4 1934713408
        %v3371 = vunpack.c.0.s8 %v3370
        %v3372 = vlaneseq
        %v3373 = vshrl.u32 %v3372, 7
        %v3374 = vsub.s32 %v3371, %v3373
        %v3375 = vrot.slane %v3367, %v3374
        %v3377 = vunpack.c.l.s4 1934713408
        %v3378 = vunpack.c.0.s8 %v3377
        %v3379 = vlaneseq
        %v3380 = vshrl.u32 %v3379, 7
        %v3381 = vsub.s32 %v3378, %v3380
        %v3382 = vrot.slane %v3368, %v3381
        %v3383 = vcombine.low %v3351, %v3366
        %v3384 = vcombine.high %v3351, %v3366
        %v3386 = vunpack.c.l.s4 1934713408
        %v3387 = vunpack.c.0.s8 %v3386
        %v3388 = vlaneseq
        %v3389 = vshrl.u32 %v3388, 7
        %v3390 = vsub.s32 %v3387, %v3389
        %v3391 = vrot.slane %v3383, %v3390
        %v3393 = vunpack.c.l.s4 1934713408
        %v3394 = vunpack.c.0.s8 %v3393
        %v3395 = vlaneseq
        %v3396 = vshrl.u32 %v3395, 7
        %v3397 = vsub.s32 %v3394, %v3396
        %v3398 = vrot.slane %v3384, %v3397
        %v3399 = vcombine.high %v3375, 0.0
        %v3400 = vcombine.high %v3382, 0.0
        %v3401 = vcombine.high %v3391, 0.0
        %v3402 = vcombine.high %v3398, 0.0
        %v3403 = vcombine.high %v2971, 0.0
        %v3405 = vunpack.c.l.s4 1983009808
        %v3406 = vunpack.c.0.s8 %v3405
        %v3407 = vlaneseq
        %v3408 = vshrl.u32 %v3407, 7
        %v3409 = vsub.s32 %v3406, %v3408
        %v3410 = vrot.slane %v2971, %v3409
        %v3412 = vunpack.c.l.s4 1983009808
        %v3413 = vunpack.c.0.s8 %v3412
        %v3414 = vlaneseq
        %v3415 = vshrl.u32 %v3414, 7
        %v3416 = vsub.s32 %v3413, %v3415
        %v3417 = vrot.slane %v3403, %v3416
        %v3418 = vcombine.high %v2972, 0.0
        %v3420 = vunpack.c.l.s4 1983009808
        %v3421 = vunpack.c.0.s8 %v3420
        %v3422 = vlaneseq
        %v3423 = vshrl.u32 %v3422, 7
        %v3424 = vsub.s32 %v3421, %v3423
        %v3425 = vrot.slane %v2972, %v3424
        %v3427 = vunpack.c.l.s4 1983009808
        %v3428 = vunpack.c.0.s8 %v3427
        %v3429 = vlaneseq
        %v3430 = vshrl.u32 %v3429, 7
        %v3431 = vsub.s32 %v3428, %v3430
        %v3432 = vrot.slane %v3418, %v3431
        %v3433 = vcombine.low %v3410, %v3425
        %v3434 = vcombine.high %v3410, %v3425
        %v3436 = vunpack.c.l.s4 1934713408
        %v3437 = vunpack.c.0.s8 %v3436
        %v3438 = vlaneseq
        %v3439 = vshrl.u32 %v3438, 7
        %v3440 = vsub.s32 %v3437, %v3439
        %v3441 = vrot.slane %v3433, %v3440
        %v3443 = vunpack.c.l.s4 1934713408
        %v3444 = vunpack.c.0.s8 %v3443
        %v3445 = vlaneseq
        %v3446 = vshrl.u32 %v3445, 7
        %v3447 = vsub.s32 %v3444, %v3446
        %v3448 = vrot.slane %v3434, %v3447
        %v3449 = vcombine.low %v3417, %v3432
        %v3450 = vcombine.high %v3417, %v3432
        %v3452 = vunpack.c.l.s4 1934713408
        %v3453 = vunpack.c.0.s8 %v3452
        %v3454 = vlaneseq
        %v3455 = vshrl.u32 %v3454, 7
        %v3456 = vsub.s32 %v3453, %v3455
        %v3457 = vrot.slane %v3449, %v3456
        %v3459 = vunpack.c.l.s4 1934713408
        %v3460 = vunpack.c.0.s8 %v3459
        %v3461 = vlaneseq
        %v3462 = vshrl.u32 %v3461, 7
        %v3463 = vsub.s32 %v3460, %v3462
        %v3464 = vrot.slane %v3450, %v3463
        %v3465 = vcombine.high %v3441, 0.0
        %v3466 = vcombine.high %v3448, 0.0
        %v3467 = vcombine.high %v3457, 0.0
        %v3468 = vcombine.high %v3464, 0.0
        %v3469 = vcombine.high %v3021, 0.0
        %v3471 = vunpack.c.l.s4 1983009808
        %v3472 = vunpack.c.0.s8 %v3471
        %v3473 = vlaneseq
        %v3474 = vshrl.u32 %v3473, 7
        %v3475 = vsub.s32 %v3472, %v3474
        %v3476 = vrot.slane %v3021, %v3475
        %v3478 = vunpack.c.l.s4 1983009808
        %v3479 = vunpack.c.0.s8 %v3478
        %v3480 = vlaneseq
        %v3481 = vshrl.u32 %v3480, 7
        %v3482 = vsub.s32 %v3479, %v3481
        %v3483 = vrot.slane %v3469, %v3482
        %v3484 = vcombine.high %v3022, 0.0
        %v3486 = vunpack.c.l.s4 1983009808
        %v3487 = vunpack.c.0.s8 %v3486
        %v3488 = vlaneseq
        %v3489 = vshrl.u32 %v3488, 7
        %v3490 = vsub.s32 %v3487, %v3489
        %v3491 = vrot.slane %v3022, %v3490
        %v3493 = vunpack.c.l.s4 1983009808
        %v3494 = vunpack.c.0.s8 %v3493
        %v3495 = vlaneseq
        %v3496 = vshrl.u32 %v3495, 7
        %v3497 = vsub.s32 %v3494, %v3496
        %v3498 = vrot.slane %v3484, %v3497
        %v3499 = vcombine.low %v3476, %v3491
        %v3500 = vcombine.high %v3476, %v3491
        %v3502 = vunpack.c.l.s4 1934713408
        %v3503 = vunpack.c.0.s8 %v3502
        %v3504 = vlaneseq
        %v3505 = vshrl.u32 %v3504, 7
        %v3506 = vsub.s32 %v3503, %v3505
        %v3507 = vrot.slane %v3499, %v3506
        %v3509 = vunpack.c.l.s4 1934713408
        %v3510 = vunpack.c.0.s8 %v3509
        %v3511 = vlaneseq
        %v3512 = vshrl.u32 %v3511, 7
        %v3513 = vsub.s32 %v3510, %v3512
        %v3514 = vrot.slane %v3500, %v3513
        %v3515 = vcombine.low %v3483, %v3498
        %v3516 = vcombine.high %v3483, %v3498
        %v3518 = vunpack.c.l.s4 1934713408
        %v3519 = vunpack.c.0.s8 %v3518
        %v3520 = vlaneseq
        %v3521 = vshrl.u32 %v3520, 7
        %v3522 = vsub.s32 %v3519, %v3521
        %v3523 = vrot.slane %v3515, %v3522
        %v3525 = vunpack.c.l.s4 1934713408
        %v3526 = vunpack.c.0.s8 %v3525
        %v3527 = vlaneseq
        %v3528 = vshrl.u32 %v3527, 7
        %v3529 = vsub.s32 %v3526, %v3528
        %v3530 = vrot.slane %v3516, %v3529
        %v3531 = vcombine.high %v3507, 0.0
        %v3532 = vcombine.high %v3514, 0.0
        %v3533 = vcombine.high %v3523, 0.0
        %v3534 = vcombine.high %v3530, 0.0
        %v3535 = vcombine.high %v3071, 0.0
        %v3537 = vunpack.c.l.s4 1983009808
        %v3538 = vunpack.c.0.s8 %v3537
        %v3539 = vlaneseq
        %v3540 = vshrl.u32 %v3539, 7
        %v3541 = vsub.s32 %v3538, %v3540
        %v3542 = vrot.slane %v3071, %v3541
        %v3544 = vunpack.c.l.s4 1983009808
        %v3545 = vunpack.c.0.s8 %v3544
        %v3546 = vlaneseq
        %v3547 = vshrl.u32 %v3546, 7
        %v3548 = vsub.s32 %v3545, %v3547
        %v3549 = vrot.slane %v3535, %v3548
        %v3550 = vcombine.high %v3072, 0.0
        %v3552 = vunpack.c.l.s4 1983009808
        %v3553 = vunpack.c.0.s8 %v3552
        %v3554 = vlaneseq
        %v3555 = vshrl.u32 %v3554, 7
        %v3556 = vsub.s32 %v3553, %v3555
        %v3557 = vrot.slane %v3072, %v3556
        %v3559 = vunpack.c.l.s4 1983009808
        %v3560 = vunpack.c.0.s8 %v3559
        %v3561 = vlaneseq
        %v3562 = vshrl.u32 %v3561, 7
        %v3563 = vsub.s32 %v3560, %v3562
        %v3564 = vrot.slane %v3550, %v3563
        %v3565 = vcombine.low %v3542, %v3557
        %v3566 = vcombine.high %v3542, %v3557
        %v3568 = vunpack.c.l.s4 1934713408
        %v3569 = vunpack.c.0.s8 %v3568
        %v3570 = vlaneseq
        %v3571 = vshrl.u32 %v3570, 7
        %v3572 = vsub.s32 %v3569, %v3571
        %v3573 = vrot.slane %v3565, %v3572
        %v3575 = vunpack.c.l.s4 1934713408
        %v3576 = vunpack.c.0.s8 %v3575
        %v3577 = vlaneseq
        %v3578 = vshrl.u32 %v3577, 7
        %v3579 = vsub.s32 %v3576, %v3578
        %v3580 = vrot.slane %v3566, %v3579
        %v3581 = vcombine.low %v3549, %v3564
        %v3582 = vcombine.high %v3549, %v3564
        %v3584 = vunpack.c.l.s4 1934713408
        %v3585 = vunpack.c.0.s8 %v3584
        %v3586 = vlaneseq
        %v3587 = vshrl.u32 %v3586, 7
        %v3588 = vsub.s32 %v3585, %v3587
        %v3589 = vrot.slane %v3581, %v3588
        %v3591 = vunpack.c.l.s4 1934713408
        %v3592 = vunpack.c.0.s8 %v3591
        %v3593 = vlaneseq
        %v3594 = vshrl.u32 %v3593, 7
        %v3595 = vsub.s32 %v3592, %v3594
        %v3596 = vrot.slane %v3582, %v3595
        %v3597 = vcombine.high %v3573, 0.0
        %v3598 = vcombine.high %v3580, 0.0
        %v3599 = vcombine.high %v3589, 0.0
        %v3600 = vcombine.high %v3596, 0.0
        %3609 = vrot.lane.b32.xlu0 %v3135, 2
        %v3610 = vpop.permute.xlu0 %3609
        %3611 = vrot.lane.b32.xlu0 %v3201, 2
        %v3612 = vpop.permute.xlu0 %3611
        %3613 = vrot.lane.b32.xlu0 %v3267, 2
        %v3614 = vpop.permute.xlu0 %3613
        %3615 = vrot.lane.b32.xlu0 %v3333, 2
        %v3616 = vpop.permute.xlu0 %3615
        %3617 = vrot.lane.b32.xlu0 %v3399, 2
        %v3618 = vpop.permute.xlu0 %3617
        %3619 = vrot.lane.b32.xlu0 %v3465, 2
        %v3620 = vpop.permute.xlu0 %3619
        %3621 = vrot.lane.b32.xlu0 %v3531, 2
        %v3622 = vpop.permute.xlu0 %3621
        %3623 = vrot.lane.b32.xlu0 %v3597, 2
        %v3624 = vpop.permute.xlu0 %3623
        %3641 = vrot.lane.b32.xlu0 %v3118, 4
        %v3642 = vpop.permute.xlu0 %3641
        %3643 = vrot.lane.b32.xlu0 %v3184, 4
        %v3644 = vpop.permute.xlu0 %3643
        %3645 = vrot.lane.b32.xlu0 %v3250, 4
        %v3646 = vpop.permute.xlu0 %3645
        %3647 = vrot.lane.b32.xlu0 %v3316, 4
        %v3648 = vpop.permute.xlu0 %3647
        %3649 = vrot.lane.b32.xlu0 %v3382, 4
        %v3650 = vpop.permute.xlu0 %3649
        %3651 = vrot.lane.b32.xlu0 %v3448, 4
        %v3652 = vpop.permute.xlu0 %3651
        %3653 = vrot.lane.b32.xlu0 %v3514, 4
        %v3654 = vpop.permute.xlu0 %3653
        %3655 = vrot.lane.b32.xlu0 %v3580, 4
        %v3656 = vpop.permute.xlu0 %3655
        %3673 = vrot.lane.b32.xlu0 %v3136, 6
        %v3674 = vpop.permute.xlu0 %3673
        %3675 = vrot.lane.b32.xlu0 %v3202, 6
        %v3676 = vpop.permute.xlu0 %3675
        %3677 = vrot.lane.b32.xlu0 %v3268, 6
        %v3678 = vpop.permute.xlu0 %3677
        %3679 = vrot.lane.b32.xlu0 %v3334, 6
        %v3680 = vpop.permute.xlu0 %3679
        %3681 = vrot.lane.b32.xlu0 %v3400, 6
        %v3682 = vpop.permute.xlu0 %3681
        %3683 = vrot.lane.b32.xlu0 %v3466, 6
        %v3684 = vpop.permute.xlu0 %3683
        %3685 = vrot.lane.b32.xlu0 %v3532, 6
        %v3686 = vpop.permute.xlu0 %3685
        %3687 = vrot.lane.b32.xlu0 %v3598, 6
        %v3688 = vpop.permute.xlu0 %3687
        %3705 = vrot.lane.b32.xlu0 %v3127, 8
        %v3706 = vpop.permute.xlu0 %3705
        %3707 = vrot.lane.b32.xlu0 %v3193, 8
        %v3708 = vpop.permute.xlu0 %3707
        %3709 = vrot.lane.b32.xlu0 %v3259, 8
        %v3710 = vpop.permute.xlu0 %3709
        %3711 = vrot.lane.b32.xlu0 %v3325, 8
        %v3712 = vpop.permute.xlu0 %3711
        %3713 = vrot.lane.b32.xlu0 %v3391, 8
        %v3714 = vpop.permute.xlu0 %3713
        %3715 = vrot.lane.b32.xlu0 %v3457, 8
        %v3716 = vpop.permute.xlu0 %3715
        %3717 = vrot.lane.b32.xlu0 %v3523, 8
        %v3718 = vpop.permute.xlu0 %3717
        %3719 = vrot.lane.b32.xlu0 %v3589, 8
        %v3720 = vpop.permute.xlu0 %3719
        %3737 = vrot.lane.b32.xlu0 %v3137, 10
        %v3738 = vpop.permute.xlu0 %3737
        %3739 = vrot.lane.b32.xlu0 %v3203, 10
        %v3740 = vpop.permute.xlu0 %3739
        %3741 = vrot.lane.b32.xlu0 %v3269, 10
        %v3742 = vpop.permute.xlu0 %3741
        %3743 = vrot.lane.b32.xlu0 %v3335, 10
        %v3744 = vpop.permute.xlu0 %3743
        %3745 = vrot.lane.b32.xlu0 %v3401, 10
        %v3746 = vpop.permute.xlu0 %3745
        %3747 = vrot.lane.b32.xlu0 %v3467, 10
        %v3748 = vpop.permute.xlu0 %3747
        %3749 = vrot.lane.b32.xlu0 %v3533, 10
        %v3750 = vpop.permute.xlu0 %3749
        %3751 = vrot.lane.b32.xlu0 %v3599, 10
        %v3752 = vpop.permute.xlu0 %3751
        %3769 = vrot.lane.b32.xlu0 %v3134, 12
        %v3770 = vpop.permute.xlu0 %3769
        %3771 = vrot.lane.b32.xlu0 %v3200, 12
        %v3772 = vpop.permute.xlu0 %3771
        %3773 = vrot.lane.b32.xlu0 %v3266, 12
        %v3774 = vpop.permute.xlu0 %3773
        %3775 = vrot.lane.b32.xlu0 %v3332, 12
        %v3776 = vpop.permute.xlu0 %3775
        %3777 = vrot.lane.b32.xlu0 %v3398, 12
        %v3778 = vpop.permute.xlu0 %3777
        %3779 = vrot.lane.b32.xlu0 %v3464, 12
        %v3780 = vpop.permute.xlu0 %3779
        %3781 = vrot.lane.b32.xlu0 %v3530, 12
        %v3782 = vpop.permute.xlu0 %3781
        %3783 = vrot.lane.b32.xlu0 %v3596, 12
        %v3784 = vpop.permute.xlu0 %3783
        %3801 = vrot.lane.b32.xlu0 %v3138, 14
        %v3802 = vpop.permute.xlu0 %3801
        %3803 = vrot.lane.b32.xlu0 %v3204, 14
        %v3804 = vpop.permute.xlu0 %3803
        %3805 = vrot.lane.b32.xlu0 %v3270, 14
        %v3806 = vpop.permute.xlu0 %3805
        %3807 = vrot.lane.b32.xlu0 %v3336, 14
        %v3808 = vpop.permute.xlu0 %3807
        %3809 = vrot.lane.b32.xlu0 %v3402, 14
        %v3810 = vpop.permute.xlu0 %3809
        %3811 = vrot.lane.b32.xlu0 %v3468, 14
        %v3812 = vpop.permute.xlu0 %3811
        %3813 = vrot.lane.b32.xlu0 %v3534, 14
        %v3814 = vpop.permute.xlu0 %3813
        %3815 = vrot.lane.b32.xlu0 %v3600, 14
        %v3816 = vpop.permute.xlu0 %3815
        %v3825 = vsel %vm2025, %v3111, %v3610
        %v3826 = vsel %vm2025, %v3177, %v3612
        %v3827 = vsel %vm2025, %v3243, %v3614
        %v3828 = vsel %vm2025, %v3309, %v3616
        %v3829 = vsel %vm2025, %v3375, %v3618
        %v3830 = vsel %vm2025, %v3441, %v3620
        %v3831 = vsel %vm2025, %v3507, %v3622
        %v3832 = vsel %vm2025, %v3573, %v3624
        %v3833 = vsel %vm2034, %v3825, %v3642
        %v3834 = vsel %vm2034, %v3826, %v3644
        %v3835 = vsel %vm2034, %v3827, %v3646
        %v3836 = vsel %vm2034, %v3828, %v3648
        %v3837 = vsel %vm2034, %v3829, %v3650
        %v3838 = vsel %vm2034, %v3830, %v3652
        %v3839 = vsel %vm2034, %v3831, %v3654
        %v3840 = vsel %vm2034, %v3832, %v3656
        %v3841 = vsel %vm2043, %v3833, %v3674
        %v3842 = vsel %vm2043, %v3834, %v3676
        %v3843 = vsel %vm2043, %v3835, %v3678
        %v3844 = vsel %vm2043, %v3836, %v3680
        %v3845 = vsel %vm2043, %v3837, %v3682
        %v3846 = vsel %vm2043, %v3838, %v3684
        %v3847 = vsel %vm2043, %v3839, %v3686
        %v3848 = vsel %vm2043, %v3840, %v3688
        %v3849 = vsel %vm2052, %v3841, %v3706
        %v3850 = vsel %vm2052, %v3842, %v3708
        %v3851 = vsel %vm2052, %v3843, %v3710
        %v3852 = vsel %vm2052, %v3844, %v3712
        %v3853 = vsel %vm2052, %v3845, %v3714
        %v3854 = vsel %vm2052, %v3846, %v3716
        %v3855 = vsel %vm2052, %v3847, %v3718
        %v3856 = vsel %vm2052, %v3848, %v3720
        %v3857 = vsel %vm2061, %v3849, %v3738
        %v3858 = vsel %vm2061, %v3850, %v3740
        %v3859 = vsel %vm2061, %v3851, %v3742
        %v3860 = vsel %vm2061, %v3852, %v3744
        %v3861 = vsel %vm2061, %v3853, %v3746
        %v3862 = vsel %vm2061, %v3854, %v3748
        %v3863 = vsel %vm2061, %v3855, %v3750
        %v3864 = vsel %vm2061, %v3856, %v3752
        %v3865 = vsel %vm2070, %v3857, %v3770
        %v3866 = vsel %vm2070, %v3858, %v3772
        %v3867 = vsel %vm2070, %v3859, %v3774
        %v3868 = vsel %vm2070, %v3860, %v3776
        %v3869 = vsel %vm2070, %v3861, %v3778
        %v3870 = vsel %vm2070, %v3862, %v3780
        %v3871 = vsel %vm2070, %v3863, %v3782
        %v3872 = vsel %vm2070, %v3864, %v3784
        %v3873 = vsel %vm2079, %v3865, %v3802
        %v3874 = vsel %vm2079, %v3866, %v3804
        %v3875 = vsel %vm2079, %v3867, %v3806
        %v3876 = vsel %vm2079, %v3868, %v3808
        %v3877 = vsel %vm2079, %v3869, %v3810
        %v3878 = vsel %vm2079, %v3870, %v3812
        %v3879 = vsel %vm2079, %v3871, %v3814
        %v3880 = vsel %vm2079, %v3872, %v3816
        %s3881 = scalar_lea.vmem %s161, 16 [#allocation2]
        %3882 = vst.msk [vmem:[%s3881] sm:$0x3] %vm2088, %v3873
        %3883 = vst.msk [vmem:[%s3881 + $0x2] sm:$0x3] %vm2088, %v3874
        %3884 = vst.msk [vmem:[%s3881 + $0x4] sm:$0x3] %vm2088, %v3875
        %3885 = vst.msk [vmem:[%s3881 + $0x6] sm:$0x3] %vm2088, %v3876
        %3886 = vst.msk [vmem:[%s3881 + $0x8] sm:$0x3] %vm2088, %v3877
        %3887 = vst.msk [vmem:[%s3881 + $0xa] sm:$0x3] %vm2088, %v3878
        %3888 = vst.msk [vmem:[%s3881 + $0xc] sm:$0x3] %vm2088, %v3879
        %3889 = vst.msk [vmem:[%s3881 + $0xe] sm:$0x3] %vm2088, %v3880
        %3890 = vrot.lane.b32.xlu0 %v275, 120
        %v3891 = vpop.permute.xlu0 %3890
        %3892 = vrot.lane.b32.xlu0 %v280, 120
        %v3893 = vpop.permute.xlu0 %3892
        %3894 = vrot.lane.b32.xlu0 %v285, 120
        %v3895 = vpop.permute.xlu0 %3894
        %3896 = vrot.lane.b32.xlu0 %v290, 120
        %v3897 = vpop.permute.xlu0 %3896
        %3898 = vrot.lane.b32.xlu0 %v295, 120
        %v3899 = vpop.permute.xlu0 %3898
        %3900 = vrot.lane.b32.xlu0 %v300, 120
        %v3901 = vpop.permute.xlu0 %3900
        %3902 = vrot.lane.b32.xlu0 %v305, 120
        %v3903 = vpop.permute.xlu0 %3902
        %3904 = vrot.lane.b32.xlu0 %v310, 120
        %v3905 = vpop.permute.xlu0 %3904
        %3906 = vrot.lane.b32.xlu0 %v322, 120
        %v3907 = vpop.permute.xlu0 %3906
        %3908 = vrot.lane.b32.xlu0 %v324, 120
        %v3909 = vpop.permute.xlu0 %3908
        %3910 = vrot.lane.b32.xlu0 %v326, 120
        %v3911 = vpop.permute.xlu0 %3910
        %3912 = vrot.lane.b32.xlu0 %v328, 120
        %v3913 = vpop.permute.xlu0 %3912
        %3914 = vrot.lane.b32.xlu0 %v330, 120
        %v3915 = vpop.permute.xlu0 %3914
        %3916 = vrot.lane.b32.xlu0 %v332, 120
        %v3917 = vpop.permute.xlu0 %3916
        %3918 = vrot.lane.b32.xlu0 %v334, 120
        %v3919 = vpop.permute.xlu0 %3918
        %3920 = vrot.lane.b32.xlu0 %v336, 120
        %v3921 = vpop.permute.xlu0 %3920
        %v3938 = vcombine.high %v3891, 0.0
        %v3940 = vunpack.c.l.s4 1983009808
        %v3941 = vunpack.c.0.s8 %v3940
        %v3942 = vlaneseq
        %v3943 = vshrl.u32 %v3942, 7
        %v3944 = vsub.s32 %v3941, %v3943
        %v3945 = vrot.slane %v3891, %v3944
        %v3947 = vunpack.c.l.s4 1983009808
        %v3948 = vunpack.c.0.s8 %v3947
        %v3949 = vlaneseq
        %v3950 = vshrl.u32 %v3949, 7
        %v3951 = vsub.s32 %v3948, %v3950
        %v3952 = vrot.slane %v3938, %v3951
        %v3953 = vcombine.high %v3907, 0.0
        %v3955 = vunpack.c.l.s4 1983009808
        %v3956 = vunpack.c.0.s8 %v3955
        %v3957 = vlaneseq
        %v3958 = vshrl.u32 %v3957, 7
        %v3959 = vsub.s32 %v3956, %v3958
        %v3960 = vrot.slane %v3907, %v3959
        %v3962 = vunpack.c.l.s4 1983009808
        %v3963 = vunpack.c.0.s8 %v3962
        %v3964 = vlaneseq
        %v3965 = vshrl.u32 %v3964, 7
        %v3966 = vsub.s32 %v3963, %v3965
        %v3967 = vrot.slane %v3953, %v3966
        %v3968 = vcombine.low %v3945, %v3960
        %v3969 = vcombine.high %v3945, %v3960
        %v3971 = vunpack.c.l.s4 1934713408
        %v3972 = vunpack.c.0.s8 %v3971
        %v3973 = vlaneseq
        %v3974 = vshrl.u32 %v3973, 7
        %v3975 = vsub.s32 %v3972, %v3974
        %v3976 = vrot.slane %v3968, %v3975
        %v3978 = vunpack.c.l.s4 1934713408
        %v3979 = vunpack.c.0.s8 %v3978
        %v3980 = vlaneseq
        %v3981 = vshrl.u32 %v3980, 7
        %v3982 = vsub.s32 %v3979, %v3981
        %v3983 = vrot.slane %v3969, %v3982
        %v3984 = vcombine.low %v3952, %v3967
        %v3985 = vcombine.high %v3952, %v3967
        %v3987 = vunpack.c.l.s4 1934713408
        %v3988 = vunpack.c.0.s8 %v3987
        %v3989 = vlaneseq
        %v3990 = vshrl.u32 %v3989, 7
        %v3991 = vsub.s32 %v3988, %v3990
        %v3992 = vrot.slane %v3984, %v3991
        %v3994 = vunpack.c.l.s4 1934713408
        %v3995 = vunpack.c.0.s8 %v3994
        %v3996 = vlaneseq
        %v3997 = vshrl.u32 %v3996, 7
        %v3998 = vsub.s32 %v3995, %v3997
        %v3999 = vrot.slane %v3985, %v3998
        %v4000 = vcombine.high %v3976, 0.0
        %v4001 = vcombine.high %v3983, 0.0
        %v4002 = vcombine.high %v3992, 0.0
        %v4003 = vcombine.high %v3999, 0.0
        %v4004 = vcombine.high %v3893, 0.0
        %v4006 = vunpack.c.l.s4 1983009808
        %v4007 = vunpack.c.0.s8 %v4006
        %v4008 = vlaneseq
        %v4009 = vshrl.u32 %v4008, 7
        %v4010 = vsub.s32 %v4007, %v4009
        %v4011 = vrot.slane %v3893, %v4010
        %v4013 = vunpack.c.l.s4 1983009808
        %v4014 = vunpack.c.0.s8 %v4013
        %v4015 = vlaneseq
        %v4016 = vshrl.u32 %v4015, 7
        %v4017 = vsub.s32 %v4014, %v4016
        %v4018 = vrot.slane %v4004, %v4017
        %v4019 = vcombine.high %v3909, 0.0
        %v4021 = vunpack.c.l.s4 1983009808
        %v4022 = vunpack.c.0.s8 %v4021
        %v4023 = vlaneseq
        %v4024 = vshrl.u32 %v4023, 7
        %v4025 = vsub.s32 %v4022, %v4024
        %v4026 = vrot.slane %v3909, %v4025
        %v4028 = vunpack.c.l.s4 1983009808
        %v4029 = vunpack.c.0.s8 %v4028
        %v4030 = vlaneseq
        %v4031 = vshrl.u32 %v4030, 7
        %v4032 = vsub.s32 %v4029, %v4031
        %v4033 = vrot.slane %v4019, %v4032
        %v4034 = vcombine.low %v4011, %v4026
        %v4035 = vcombine.high %v4011, %v4026
        %v4037 = vunpack.c.l.s4 1934713408
        %v4038 = vunpack.c.0.s8 %v4037
        %v4039 = vlaneseq
        %v4040 = vshrl.u32 %v4039, 7
        %v4041 = vsub.s32 %v4038, %v4040
        %v4042 = vrot.slane %v4034, %v4041
        %v4044 = vunpack.c.l.s4 1934713408
        %v4045 = vunpack.c.0.s8 %v4044
        %v4046 = vlaneseq
        %v4047 = vshrl.u32 %v4046, 7
        %v4048 = vsub.s32 %v4045, %v4047
        %v4049 = vrot.slane %v4035, %v4048
        %v4050 = vcombine.low %v4018, %v4033
        %v4051 = vcombine.high %v4018, %v4033
        %v4053 = vunpack.c.l.s4 1934713408
        %v4054 = vunpack.c.0.s8 %v4053
        %v4055 = vlaneseq
        %v4056 = vshrl.u32 %v4055, 7
        %v4057 = vsub.s32 %v4054, %v4056
        %v4058 = vrot.slane %v4050, %v4057
        %v4060 = vunpack.c.l.s4 1934713408
        %v4061 = vunpack.c.0.s8 %v4060
        %v4062 = vlaneseq
        %v4063 = vshrl.u32 %v4062, 7
        %v4064 = vsub.s32 %v4061, %v4063
        %v4065 = vrot.slane %v4051, %v4064
        %v4066 = vcombine.high %v4042, 0.0
        %v4067 = vcombine.high %v4049, 0.0
        %v4068 = vcombine.high %v4058, 0.0
        %v4069 = vcombine.high %v4065, 0.0
        %v4070 = vcombine.high %v3895, 0.0
        %v4072 = vunpack.c.l.s4 1983009808
        %v4073 = vunpack.c.0.s8 %v4072
        %v4074 = vlaneseq
        %v4075 = vshrl.u32 %v4074, 7
        %v4076 = vsub.s32 %v4073, %v4075
        %v4077 = vrot.slane %v3895, %v4076
        %v4079 = vunpack.c.l.s4 1983009808
        %v4080 = vunpack.c.0.s8 %v4079
        %v4081 = vlaneseq
        %v4082 = vshrl.u32 %v4081, 7
        %v4083 = vsub.s32 %v4080, %v4082
        %v4084 = vrot.slane %v4070, %v4083
        %v4085 = vcombine.high %v3911, 0.0
        %v4087 = vunpack.c.l.s4 1983009808
        %v4088 = vunpack.c.0.s8 %v4087
        %v4089 = vlaneseq
        %v4090 = vshrl.u32 %v4089, 7
        %v4091 = vsub.s32 %v4088, %v4090
        %v4092 = vrot.slane %v3911, %v4091
        %v4094 = vunpack.c.l.s4 1983009808
        %v4095 = vunpack.c.0.s8 %v4094
        %v4096 = vlaneseq
        %v4097 = vshrl.u32 %v4096, 7
        %v4098 = vsub.s32 %v4095, %v4097
        %v4099 = vrot.slane %v4085, %v4098
        %v4100 = vcombine.low %v4077, %v4092
        %v4101 = vcombine.high %v4077, %v4092
        %v4103 = vunpack.c.l.s4 1934713408
        %v4104 = vunpack.c.0.s8 %v4103
        %v4105 = vlaneseq
        %v4106 = vshrl.u32 %v4105, 7
        %v4107 = vsub.s32 %v4104, %v4106
        %v4108 = vrot.slane %v4100, %v4107
        %v4110 = vunpack.c.l.s4 1934713408
        %v4111 = vunpack.c.0.s8 %v4110
        %v4112 = vlaneseq
        %v4113 = vshrl.u32 %v4112, 7
        %v4114 = vsub.s32 %v4111, %v4113
        %v4115 = vrot.slane %v4101, %v4114
        %v4116 = vcombine.low %v4084, %v4099
        %v4117 = vcombine.high %v4084, %v4099
        %v4119 = vunpack.c.l.s4 1934713408
        %v4120 = vunpack.c.0.s8 %v4119
        %v4121 = vlaneseq
        %v4122 = vshrl.u32 %v4121, 7
        %v4123 = vsub.s32 %v4120, %v4122
        %v4124 = vrot.slane %v4116, %v4123
        %v4126 = vunpack.c.l.s4 1934713408
        %v4127 = vunpack.c.0.s8 %v4126
        %v4128 = vlaneseq
        %v4129 = vshrl.u32 %v4128, 7
        %v4130 = vsub.s32 %v4127, %v4129
        %v4131 = vrot.slane %v4117, %v4130
        %v4132 = vcombine.high %v4108, 0.0
        %v4133 = vcombine.high %v4115, 0.0
        %v4134 = vcombine.high %v4124, 0.0
        %v4135 = vcombine.high %v4131, 0.0
        %v4136 = vcombine.high %v3897, 0.0
        %v4138 = vunpack.c.l.s4 1983009808
        %v4139 = vunpack.c.0.s8 %v4138
        %v4140 = vlaneseq
        %v4141 = vshrl.u32 %v4140, 7
        %v4142 = vsub.s32 %v4139, %v4141
        %v4143 = vrot.slane %v3897, %v4142
        %v4145 = vunpack.c.l.s4 1983009808
        %v4146 = vunpack.c.0.s8 %v4145
        %v4147 = vlaneseq
        %v4148 = vshrl.u32 %v4147, 7
        %v4149 = vsub.s32 %v4146, %v4148
        %v4150 = vrot.slane %v4136, %v4149
        %v4151 = vcombine.high %v3913, 0.0
        %v4153 = vunpack.c.l.s4 1983009808
        %v4154 = vunpack.c.0.s8 %v4153
        %v4155 = vlaneseq
        %v4156 = vshrl.u32 %v4155, 7
        %v4157 = vsub.s32 %v4154, %v4156
        %v4158 = vrot.slane %v3913, %v4157
        %v4160 = vunpack.c.l.s4 1983009808
        %v4161 = vunpack.c.0.s8 %v4160
        %v4162 = vlaneseq
        %v4163 = vshrl.u32 %v4162, 7
        %v4164 = vsub.s32 %v4161, %v4163
        %v4165 = vrot.slane %v4151, %v4164
        %v4166 = vcombine.low %v4143, %v4158
        %v4167 = vcombine.high %v4143, %v4158
        %v4169 = vunpack.c.l.s4 1934713408
        %v4170 = vunpack.c.0.s8 %v4169
        %v4171 = vlaneseq
        %v4172 = vshrl.u32 %v4171, 7
        %v4173 = vsub.s32 %v4170, %v4172
        %v4174 = vrot.slane %v4166, %v4173
        %v4176 = vunpack.c.l.s4 1934713408
        %v4177 = vunpack.c.0.s8 %v4176
        %v4178 = vlaneseq
        %v4179 = vshrl.u32 %v4178, 7
        %v4180 = vsub.s32 %v4177, %v4179
        %v4181 = vrot.slane %v4167, %v4180
        %v4182 = vcombine.low %v4150, %v4165
        %v4183 = vcombine.high %v4150, %v4165
        %v4185 = vunpack.c.l.s4 1934713408
        %v4186 = vunpack.c.0.s8 %v4185
        %v4187 = vlaneseq
        %v4188 = vshrl.u32 %v4187, 7
        %v4189 = vsub.s32 %v4186, %v4188
        %v4190 = vrot.slane %v4182, %v4189
        %v4192 = vunpack.c.l.s4 1934713408
        %v4193 = vunpack.c.0.s8 %v4192
        %v4194 = vlaneseq
        %v4195 = vshrl.u32 %v4194, 7
        %v4196 = vsub.s32 %v4193, %v4195
        %v4197 = vrot.slane %v4183, %v4196
        %v4198 = vcombine.high %v4174, 0.0
        %v4199 = vcombine.high %v4181, 0.0
        %v4200 = vcombine.high %v4190, 0.0
        %v4201 = vcombine.high %v4197, 0.0
        %v4202 = vcombine.high %v3899, 0.0
        %v4204 = vunpack.c.l.s4 1983009808
        %v4205 = vunpack.c.0.s8 %v4204
        %v4206 = vlaneseq
        %v4207 = vshrl.u32 %v4206, 7
        %v4208 = vsub.s32 %v4205, %v4207
        %v4209 = vrot.slane %v3899, %v4208
        %v4211 = vunpack.c.l.s4 1983009808
        %v4212 = vunpack.c.0.s8 %v4211
        %v4213 = vlaneseq
        %v4214 = vshrl.u32 %v4213, 7
        %v4215 = vsub.s32 %v4212, %v4214
        %v4216 = vrot.slane %v4202, %v4215
        %v4217 = vcombine.high %v3915, 0.0
        %v4219 = vunpack.c.l.s4 1983009808
        %v4220 = vunpack.c.0.s8 %v4219
        %v4221 = vlaneseq
        %v4222 = vshrl.u32 %v4221, 7
        %v4223 = vsub.s32 %v4220, %v4222
        %v4224 = vrot.slane %v3915, %v4223
        %v4226 = vunpack.c.l.s4 1983009808
        %v4227 = vunpack.c.0.s8 %v4226
        %v4228 = vlaneseq
        %v4229 = vshrl.u32 %v4228, 7
        %v4230 = vsub.s32 %v4227, %v4229
        %v4231 = vrot.slane %v4217, %v4230
        %v4232 = vcombine.low %v4209, %v4224
        %v4233 = vcombine.high %v4209, %v4224
        %v4235 = vunpack.c.l.s4 1934713408
        %v4236 = vunpack.c.0.s8 %v4235
        %v4237 = vlaneseq
        %v4238 = vshrl.u32 %v4237, 7
        %v4239 = vsub.s32 %v4236, %v4238
        %v4240 = vrot.slane %v4232, %v4239
        %v4242 = vunpack.c.l.s4 1934713408
        %v4243 = vunpack.c.0.s8 %v4242
        %v4244 = vlaneseq
        %v4245 = vshrl.u32 %v4244, 7
        %v4246 = vsub.s32 %v4243, %v4245
        %v4247 = vrot.slane %v4233, %v4246
        %v4248 = vcombine.low %v4216, %v4231
        %v4249 = vcombine.high %v4216, %v4231
        %v4251 = vunpack.c.l.s4 1934713408
        %v4252 = vunpack.c.0.s8 %v4251
        %v4253 = vlaneseq
        %v4254 = vshrl.u32 %v4253, 7
        %v4255 = vsub.s32 %v4252, %v4254
        %v4256 = vrot.slane %v4248, %v4255
        %v4258 = vunpack.c.l.s4 1934713408
        %v4259 = vunpack.c.0.s8 %v4258
        %v4260 = vlaneseq
        %v4261 = vshrl.u32 %v4260, 7
        %v4262 = vsub.s32 %v4259, %v4261
        %v4263 = vrot.slane %v4249, %v4262
        %v4264 = vcombine.high %v4240, 0.0
        %v4265 = vcombine.high %v4247, 0.0
        %v4266 = vcombine.high %v4256, 0.0
        %v4267 = vcombine.high %v4263, 0.0
        %v4268 = vcombine.high %v3901, 0.0
        %v4270 = vunpack.c.l.s4 1983009808
        %v4271 = vunpack.c.0.s8 %v4270
        %v4272 = vlaneseq
        %v4273 = vshrl.u32 %v4272, 7
        %v4274 = vsub.s32 %v4271, %v4273
        %v4275 = vrot.slane %v3901, %v4274
        %v4277 = vunpack.c.l.s4 1983009808
        %v4278 = vunpack.c.0.s8 %v4277
        %v4279 = vlaneseq
        %v4280 = vshrl.u32 %v4279, 7
        %v4281 = vsub.s32 %v4278, %v4280
        %v4282 = vrot.slane %v4268, %v4281
        %v4283 = vcombine.high %v3917, 0.0
        %v4285 = vunpack.c.l.s4 1983009808
        %v4286 = vunpack.c.0.s8 %v4285
        %v4287 = vlaneseq
        %v4288 = vshrl.u32 %v4287, 7
        %v4289 = vsub.s32 %v4286, %v4288
        %v4290 = vrot.slane %v3917, %v4289
        %v4292 = vunpack.c.l.s4 1983009808
        %v4293 = vunpack.c.0.s8 %v4292
        %v4294 = vlaneseq
        %v4295 = vshrl.u32 %v4294, 7
        %v4296 = vsub.s32 %v4293, %v4295
        %v4297 = vrot.slane %v4283, %v4296
        %v4298 = vcombine.low %v4275, %v4290
        %v4299 = vcombine.high %v4275, %v4290
        %v4301 = vunpack.c.l.s4 1934713408
        %v4302 = vunpack.c.0.s8 %v4301
        %v4303 = vlaneseq
        %v4304 = vshrl.u32 %v4303, 7
        %v4305 = vsub.s32 %v4302, %v4304
        %v4306 = vrot.slane %v4298, %v4305
        %v4308 = vunpack.c.l.s4 1934713408
        %v4309 = vunpack.c.0.s8 %v4308
        %v4310 = vlaneseq
        %v4311 = vshrl.u32 %v4310, 7
        %v4312 = vsub.s32 %v4309, %v4311
        %v4313 = vrot.slane %v4299, %v4312
        %v4314 = vcombine.low %v4282, %v4297
        %v4315 = vcombine.high %v4282, %v4297
        %v4317 = vunpack.c.l.s4 1934713408
        %v4318 = vunpack.c.0.s8 %v4317
        %v4319 = vlaneseq
        %v4320 = vshrl.u32 %v4319, 7
        %v4321 = vsub.s32 %v4318, %v4320
        %v4322 = vrot.slane %v4314, %v4321
        %v4324 = vunpack.c.l.s4 1934713408
        %v4325 = vunpack.c.0.s8 %v4324
        %v4326 = vlaneseq
        %v4327 = vshrl.u32 %v4326, 7
        %v4328 = vsub.s32 %v4325, %v4327
        %v4329 = vrot.slane %v4315, %v4328
        %v4330 = vcombine.high %v4306, 0.0
        %v4331 = vcombine.high %v4313, 0.0
        %v4332 = vcombine.high %v4322, 0.0
        %v4333 = vcombine.high %v4329, 0.0
        %v4334 = vcombine.high %v3903, 0.0
        %v4336 = vunpack.c.l.s4 1983009808
        %v4337 = vunpack.c.0.s8 %v4336
        %v4338 = vlaneseq
        %v4339 = vshrl.u32 %v4338, 7
        %v4340 = vsub.s32 %v4337, %v4339
        %v4341 = vrot.slane %v3903, %v4340
        %v4343 = vunpack.c.l.s4 1983009808
        %v4344 = vunpack.c.0.s8 %v4343
        %v4345 = vlaneseq
        %v4346 = vshrl.u32 %v4345, 7
        %v4347 = vsub.s32 %v4344, %v4346
        %v4348 = vrot.slane %v4334, %v4347
        %v4349 = vcombine.high %v3919, 0.0
        %v4351 = vunpack.c.l.s4 1983009808
        %v4352 = vunpack.c.0.s8 %v4351
        %v4353 = vlaneseq
        %v4354 = vshrl.u32 %v4353, 7
        %v4355 = vsub.s32 %v4352, %v4354
        %v4356 = vrot.slane %v3919, %v4355
        %v4358 = vunpack.c.l.s4 1983009808
        %v4359 = vunpack.c.0.s8 %v4358
        %v4360 = vlaneseq
        %v4361 = vshrl.u32 %v4360, 7
        %v4362 = vsub.s32 %v4359, %v4361
        %v4363 = vrot.slane %v4349, %v4362
        %v4364 = vcombine.low %v4341, %v4356
        %v4365 = vcombine.high %v4341, %v4356
        %v4367 = vunpack.c.l.s4 1934713408
        %v4368 = vunpack.c.0.s8 %v4367
        %v4369 = vlaneseq
        %v4370 = vshrl.u32 %v4369, 7
        %v4371 = vsub.s32 %v4368, %v4370
        %v4372 = vrot.slane %v4364, %v4371
        %v4374 = vunpack.c.l.s4 1934713408
        %v4375 = vunpack.c.0.s8 %v4374
        %v4376 = vlaneseq
        %v4377 = vshrl.u32 %v4376, 7
        %v4378 = vsub.s32 %v4375, %v4377
        %v4379 = vrot.slane %v4365, %v4378
        %v4380 = vcombine.low %v4348, %v4363
        %v4381 = vcombine.high %v4348, %v4363
        %v4383 = vunpack.c.l.s4 1934713408
        %v4384 = vunpack.c.0.s8 %v4383
        %v4385 = vlaneseq
        %v4386 = vshrl.u32 %v4385, 7
        %v4387 = vsub.s32 %v4384, %v4386
        %v4388 = vrot.slane %v4380, %v4387
        %v4390 = vunpack.c.l.s4 1934713408
        %v4391 = vunpack.c.0.s8 %v4390
        %v4392 = vlaneseq
        %v4393 = vshrl.u32 %v4392, 7
        %v4394 = vsub.s32 %v4391, %v4393
        %v4395 = vrot.slane %v4381, %v4394
        %v4396 = vcombine.high %v4372, 0.0
        %v4397 = vcombine.high %v4379, 0.0
        %v4398 = vcombine.high %v4388, 0.0
        %v4399 = vcombine.high %v4395, 0.0
        %v4400 = vcombine.high %v3905, 0.0
        %v4402 = vunpack.c.l.s4 1983009808
        %v4403 = vunpack.c.0.s8 %v4402
        %v4404 = vlaneseq
        %v4405 = vshrl.u32 %v4404, 7
        %v4406 = vsub.s32 %v4403, %v4405
        %v4407 = vrot.slane %v3905, %v4406
        %v4409 = vunpack.c.l.s4 1983009808
        %v4410 = vunpack.c.0.s8 %v4409
        %v4411 = vlaneseq
        %v4412 = vshrl.u32 %v4411, 7
        %v4413 = vsub.s32 %v4410, %v4412
        %v4414 = vrot.slane %v4400, %v4413
        %v4415 = vcombine.high %v3921, 0.0
        %v4417 = vunpack.c.l.s4 1983009808
        %v4418 = vunpack.c.0.s8 %v4417
        %v4419 = vlaneseq
        %v4420 = vshrl.u32 %v4419, 7
        %v4421 = vsub.s32 %v4418, %v4420
        %v4422 = vrot.slane %v3921, %v4421
        %v4424 = vunpack.c.l.s4 1983009808
        %v4425 = vunpack.c.0.s8 %v4424
        %v4426 = vlaneseq
        %v4427 = vshrl.u32 %v4426, 7
        %v4428 = vsub.s32 %v4425, %v4427
        %v4429 = vrot.slane %v4415, %v4428
        %v4430 = vcombine.low %v4407, %v4422
        %v4431 = vcombine.high %v4407, %v4422
        %v4433 = vunpack.c.l.s4 1934713408
        %v4434 = vunpack.c.0.s8 %v4433
        %v4435 = vlaneseq
        %v4436 = vshrl.u32 %v4435, 7
        %v4437 = vsub.s32 %v4434, %v4436
        %v4438 = vrot.slane %v4430, %v4437
        %v4440 = vunpack.c.l.s4 1934713408
        %v4441 = vunpack.c.0.s8 %v4440
        %v4442 = vlaneseq
        %v4443 = vshrl.u32 %v4442, 7
        %v4444 = vsub.s32 %v4441, %v4443
        %v4445 = vrot.slane %v4431, %v4444
        %v4446 = vcombine.low %v4414, %v4429
        %v4447 = vcombine.high %v4414, %v4429
        %v4449 = vunpack.c.l.s4 1934713408
        %v4450 = vunpack.c.0.s8 %v4449
        %v4451 = vlaneseq
        %v4452 = vshrl.u32 %v4451, 7
        %v4453 = vsub.s32 %v4450, %v4452
        %v4454 = vrot.slane %v4446, %v4453
        %v4456 = vunpack.c.l.s4 1934713408
        %v4457 = vunpack.c.0.s8 %v4456
        %v4458 = vlaneseq
        %v4459 = vshrl.u32 %v4458, 7
        %v4460 = vsub.s32 %v4457, %v4459
        %v4461 = vrot.slane %v4447, %v4460
        %v4462 = vcombine.high %v4438, 0.0
        %v4463 = vcombine.high %v4445, 0.0
        %v4464 = vcombine.high %v4454, 0.0
        %v4465 = vcombine.high %v4461, 0.0
        %v4466 = vcombine.low %v3976, %v3983
        %v4468 = vunpack.c.l.s4 1983009808
        %v4469 = vunpack.c.0.s8 %v4468
        %v4470 = vlaneseq
        %v4471 = vshrl.u32 %v4470, 7
        %v4472 = vsub.s32 %v4469, %v4471
        %v4473 = vrot.slane %v4466, %v4472
        %v4474 = vcombine.low %v4000, %v4001
        %v4476 = vunpack.c.l.s4 1983009808
        %v4477 = vunpack.c.0.s8 %v4476
        %v4478 = vlaneseq
        %v4479 = vshrl.u32 %v4478, 7
        %v4480 = vsub.s32 %v4477, %v4479
        %v4481 = vrot.slane %v4474, %v4480
        %v4482 = vcombine.low %v3992, %v3999
        %v4484 = vunpack.c.l.s4 1983009808
        %v4485 = vunpack.c.0.s8 %v4484
        %v4486 = vlaneseq
        %v4487 = vshrl.u32 %v4486, 7
        %v4488 = vsub.s32 %v4485, %v4487
        %v4489 = vrot.slane %v4482, %v4488
        %v4490 = vcombine.low %v4002, %v4003
        %v4492 = vunpack.c.l.s4 1983009808
        %v4493 = vunpack.c.0.s8 %v4492
        %v4494 = vlaneseq
        %v4495 = vshrl.u32 %v4494, 7
        %v4496 = vsub.s32 %v4493, %v4495
        %v4497 = vrot.slane %v4490, %v4496
        %v4498 = vcombine.low %v4473, %v4481
        %v4500 = vunpack.c.l.s4 1934713408
        %v4501 = vunpack.c.0.s8 %v4500
        %v4502 = vlaneseq
        %v4503 = vshrl.u32 %v4502, 7
        %v4504 = vsub.s32 %v4501, %v4503
        %v4505 = vrot.slane %v4498, %v4504
        %v4506 = vcombine.low %v4489, %v4497
        %v4508 = vunpack.c.l.s4 1934713408
        %v4509 = vunpack.c.0.s8 %v4508
        %v4510 = vlaneseq
        %v4511 = vshrl.u32 %v4510, 7
        %v4512 = vsub.s32 %v4509, %v4511
        %v4513 = vrot.slane %v4506, %v4512
        %v4514 = vcombine.low %v4505, %v4513
        %v4515 = vcombine.high %v4505, %v4513
        %v4516 = vcombine.low %v4042, %v4049
        %v4518 = vunpack.c.l.s4 1983009808
        %v4519 = vunpack.c.0.s8 %v4518
        %v4520 = vlaneseq
        %v4521 = vshrl.u32 %v4520, 7
        %v4522 = vsub.s32 %v4519, %v4521
        %v4523 = vrot.slane %v4516, %v4522
        %v4524 = vcombine.low %v4066, %v4067
        %v4526 = vunpack.c.l.s4 1983009808
        %v4527 = vunpack.c.0.s8 %v4526
        %v4528 = vlaneseq
        %v4529 = vshrl.u32 %v4528, 7
        %v4530 = vsub.s32 %v4527, %v4529
        %v4531 = vrot.slane %v4524, %v4530
        %v4532 = vcombine.low %v4058, %v4065
        %v4534 = vunpack.c.l.s4 1983009808
        %v4535 = vunpack.c.0.s8 %v4534
        %v4536 = vlaneseq
        %v4537 = vshrl.u32 %v4536, 7
        %v4538 = vsub.s32 %v4535, %v4537
        %v4539 = vrot.slane %v4532, %v4538
        %v4540 = vcombine.low %v4068, %v4069
        %v4542 = vunpack.c.l.s4 1983009808
        %v4543 = vunpack.c.0.s8 %v4542
        %v4544 = vlaneseq
        %v4545 = vshrl.u32 %v4544, 7
        %v4546 = vsub.s32 %v4543, %v4545
        %v4547 = vrot.slane %v4540, %v4546
        %v4548 = vcombine.low %v4523, %v4531
        %v4550 = vunpack.c.l.s4 1934713408
        %v4551 = vunpack.c.0.s8 %v4550
        %v4552 = vlaneseq
        %v4553 = vshrl.u32 %v4552, 7
        %v4554 = vsub.s32 %v4551, %v4553
        %v4555 = vrot.slane %v4548, %v4554
        %v4556 = vcombine.low %v4539, %v4547
        %v4558 = vunpack.c.l.s4 1934713408
        %v4559 = vunpack.c.0.s8 %v4558
        %v4560 = vlaneseq
        %v4561 = vshrl.u32 %v4560, 7
        %v4562 = vsub.s32 %v4559, %v4561
        %v4563 = vrot.slane %v4556, %v4562
        %v4564 = vcombine.low %v4555, %v4563
        %v4565 = vcombine.high %v4555, %v4563
        %v4566 = vcombine.low %v4108, %v4115
        %v4568 = vunpack.c.l.s4 1983009808
        %v4569 = vunpack.c.0.s8 %v4568
        %v4570 = vlaneseq
        %v4571 = vshrl.u32 %v4570, 7
        %v4572 = vsub.s32 %v4569, %v4571
        %v4573 = vrot.slane %v4566, %v4572
        %v4574 = vcombine.low %v4132, %v4133
        %v4576 = vunpack.c.l.s4 1983009808
        %v4577 = vunpack.c.0.s8 %v4576
        %v4578 = vlaneseq
        %v4579 = vshrl.u32 %v4578, 7
        %v4580 = vsub.s32 %v4577, %v4579
        %v4581 = vrot.slane %v4574, %v4580
        %v4582 = vcombine.low %v4124, %v4131
        %v4584 = vunpack.c.l.s4 1983009808
        %v4585 = vunpack.c.0.s8 %v4584
        %v4586 = vlaneseq
        %v4587 = vshrl.u32 %v4586, 7
        %v4588 = vsub.s32 %v4585, %v4587
        %v4589 = vrot.slane %v4582, %v4588
        %v4590 = vcombine.low %v4134, %v4135
        %v4592 = vunpack.c.l.s4 1983009808
        %v4593 = vunpack.c.0.s8 %v4592
        %v4594 = vlaneseq
        %v4595 = vshrl.u32 %v4594, 7
        %v4596 = vsub.s32 %v4593, %v4595
        %v4597 = vrot.slane %v4590, %v4596
        %v4598 = vcombine.low %v4573, %v4581
        %v4600 = vunpack.c.l.s4 1934713408
        %v4601 = vunpack.c.0.s8 %v4600
        %v4602 = vlaneseq
        %v4603 = vshrl.u32 %v4602, 7
        %v4604 = vsub.s32 %v4601, %v4603
        %v4605 = vrot.slane %v4598, %v4604
        %v4606 = vcombine.low %v4589, %v4597
        %v4608 = vunpack.c.l.s4 1934713408
        %v4609 = vunpack.c.0.s8 %v4608
        %v4610 = vlaneseq
        %v4611 = vshrl.u32 %v4610, 7
        %v4612 = vsub.s32 %v4609, %v4611
        %v4613 = vrot.slane %v4606, %v4612
        %v4614 = vcombine.low %v4605, %v4613
        %v4615 = vcombine.high %v4605, %v4613
        %v4616 = vcombine.low %v4174, %v4181
        %v4618 = vunpack.c.l.s4 1983009808
        %v4619 = vunpack.c.0.s8 %v4618
        %v4620 = vlaneseq
        %v4621 = vshrl.u32 %v4620, 7
        %v4622 = vsub.s32 %v4619, %v4621
        %v4623 = vrot.slane %v4616, %v4622
        %v4624 = vcombine.low %v4198, %v4199
        %v4626 = vunpack.c.l.s4 1983009808
        %v4627 = vunpack.c.0.s8 %v4626
        %v4628 = vlaneseq
        %v4629 = vshrl.u32 %v4628, 7
        %v4630 = vsub.s32 %v4627, %v4629
        %v4631 = vrot.slane %v4624, %v4630
        %v4632 = vcombine.low %v4190, %v4197
        %v4634 = vunpack.c.l.s4 1983009808
        %v4635 = vunpack.c.0.s8 %v4634
        %v4636 = vlaneseq
        %v4637 = vshrl.u32 %v4636, 7
        %v4638 = vsub.s32 %v4635, %v4637
        %v4639 = vrot.slane %v4632, %v4638
        %v4640 = vcombine.low %v4200, %v4201
        %v4642 = vunpack.c.l.s4 1983009808
        %v4643 = vunpack.c.0.s8 %v4642
        %v4644 = vlaneseq
        %v4645 = vshrl.u32 %v4644, 7
        %v4646 = vsub.s32 %v4643, %v4645
        %v4647 = vrot.slane %v4640, %v4646
        %v4648 = vcombine.low %v4623, %v4631
        %v4650 = vunpack.c.l.s4 1934713408
        %v4651 = vunpack.c.0.s8 %v4650
        %v4652 = vlaneseq
        %v4653 = vshrl.u32 %v4652, 7
        %v4654 = vsub.s32 %v4651, %v4653
        %v4655 = vrot.slane %v4648, %v4654
        %v4656 = vcombine.low %v4639, %v4647
        %v4658 = vunpack.c.l.s4 1934713408
        %v4659 = vunpack.c.0.s8 %v4658
        %v4660 = vlaneseq
        %v4661 = vshrl.u32 %v4660, 7
        %v4662 = vsub.s32 %v4659, %v4661
        %v4663 = vrot.slane %v4656, %v4662
        %v4664 = vcombine.low %v4655, %v4663
        %v4665 = vcombine.high %v4655, %v4663
        %v4666 = vcombine.low %v4240, %v4247
        %v4668 = vunpack.c.l.s4 1983009808
        %v4669 = vunpack.c.0.s8 %v4668
        %v4670 = vlaneseq
        %v4671 = vshrl.u32 %v4670, 7
        %v4672 = vsub.s32 %v4669, %v4671
        %v4673 = vrot.slane %v4666, %v4672
        %v4674 = vcombine.low %v4264, %v4265
        %v4676 = vunpack.c.l.s4 1983009808
        %v4677 = vunpack.c.0.s8 %v4676
        %v4678 = vlaneseq
        %v4679 = vshrl.u32 %v4678, 7
        %v4680 = vsub.s32 %v4677, %v4679
        %v4681 = vrot.slane %v4674, %v4680
        %v4682 = vcombine.low %v4256, %v4263
        %v4684 = vunpack.c.l.s4 1983009808
        %v4685 = vunpack.c.0.s8 %v4684
        %v4686 = vlaneseq
        %v4687 = vshrl.u32 %v4686, 7
        %v4688 = vsub.s32 %v4685, %v4687
        %v4689 = vrot.slane %v4682, %v4688
        %v4690 = vcombine.low %v4266, %v4267
        %v4692 = vunpack.c.l.s4 1983009808
        %v4693 = vunpack.c.0.s8 %v4692
        %v4694 = vlaneseq
        %v4695 = vshrl.u32 %v4694, 7
        %v4696 = vsub.s32 %v4693, %v4695
        %v4697 = vrot.slane %v4690, %v4696
        %v4698 = vcombine.low %v4673, %v4681
        %v4700 = vunpack.c.l.s4 1934713408
        %v4701 = vunpack.c.0.s8 %v4700
        %v4702 = vlaneseq
        %v4703 = vshrl.u32 %v4702, 7
        %v4704 = vsub.s32 %v4701, %v4703
        %v4705 = vrot.slane %v4698, %v4704
        %v4706 = vcombine.low %v4689, %v4697
        %v4708 = vunpack.c.l.s4 1934713408
        %v4709 = vunpack.c.0.s8 %v4708
        %v4710 = vlaneseq
        %v4711 = vshrl.u32 %v4710, 7
        %v4712 = vsub.s32 %v4709, %v4711
        %v4713 = vrot.slane %v4706, %v4712
        %v4714 = vcombine.low %v4705, %v4713
        %v4715 = vcombine.high %v4705, %v4713
        %v4716 = vcombine.low %v4306, %v4313
        %v4718 = vunpack.c.l.s4 1983009808
        %v4719 = vunpack.c.0.s8 %v4718
        %v4720 = vlaneseq
        %v4721 = vshrl.u32 %v4720, 7
        %v4722 = vsub.s32 %v4719, %v4721
        %v4723 = vrot.slane %v4716, %v4722
        %v4724 = vcombine.low %v4330, %v4331
        %v4726 = vunpack.c.l.s4 1983009808
        %v4727 = vunpack.c.0.s8 %v4726
        %v4728 = vlaneseq
        %v4729 = vshrl.u32 %v4728, 7
        %v4730 = vsub.s32 %v4727, %v4729
        %v4731 = vrot.slane %v4724, %v4730
        %v4732 = vcombine.low %v4322, %v4329
        %v4734 = vunpack.c.l.s4 1983009808
        %v4735 = vunpack.c.0.s8 %v4734
        %v4736 = vlaneseq
        %v4737 = vshrl.u32 %v4736, 7
        %v4738 = vsub.s32 %v4735, %v4737
        %v4739 = vrot.slane %v4732, %v4738
        %v4740 = vcombine.low %v4332, %v4333
        %v4742 = vunpack.c.l.s4 1983009808
        %v4743 = vunpack.c.0.s8 %v4742
        %v4744 = vlaneseq
        %v4745 = vshrl.u32 %v4744, 7
        %v4746 = vsub.s32 %v4743, %v4745
        %v4747 = vrot.slane %v4740, %v4746
        %v4748 = vcombine.low %v4723, %v4731
        %v4750 = vunpack.c.l.s4 1934713408
        %v4751 = vunpack.c.0.s8 %v4750
        %v4752 = vlaneseq
        %v4753 = vshrl.u32 %v4752, 7
        %v4754 = vsub.s32 %v4751, %v4753
        %v4755 = vrot.slane %v4748, %v4754
        %v4756 = vcombine.low %v4739, %v4747
        %v4758 = vunpack.c.l.s4 1934713408
        %v4759 = vunpack.c.0.s8 %v4758
        %v4760 = vlaneseq
        %v4761 = vshrl.u32 %v4760, 7
        %v4762 = vsub.s32 %v4759, %v4761
        %v4763 = vrot.slane %v4756, %v4762
        %v4764 = vcombine.low %v4755, %v4763
        %v4765 = vcombine.high %v4755, %v4763
        %v4766 = vcombine.low %v4372, %v4379
        %v4768 = vunpack.c.l.s4 1983009808
        %v4769 = vunpack.c.0.s8 %v4768
        %v4770 = vlaneseq
        %v4771 = vshrl.u32 %v4770, 7
        %v4772 = vsub.s32 %v4769, %v4771
        %v4773 = vrot.slane %v4766, %v4772
        %v4774 = vcombine.low %v4396, %v4397
        %v4776 = vunpack.c.l.s4 1983009808
        %v4777 = vunpack.c.0.s8 %v4776
        %v4778 = vlaneseq
        %v4779 = vshrl.u32 %v4778, 7
        %v4780 = vsub.s32 %v4777, %v4779
        %v4781 = vrot.slane %v4774, %v4780
        %v4782 = vcombine.low %v4388, %v4395
        %v4784 = vunpack.c.l.s4 1983009808
        %v4785 = vunpack.c.0.s8 %v4784
        %v4786 = vlaneseq
        %v4787 = vshrl.u32 %v4786, 7
        %v4788 = vsub.s32 %v4785, %v4787
        %v4789 = vrot.slane %v4782, %v4788
        %v4790 = vcombine.low %v4398, %v4399
        %v4792 = vunpack.c.l.s4 1983009808
        %v4793 = vunpack.c.0.s8 %v4792
        %v4794 = vlaneseq
        %v4795 = vshrl.u32 %v4794, 7
        %v4796 = vsub.s32 %v4793, %v4795
        %v4797 = vrot.slane %v4790, %v4796
        %v4798 = vcombine.low %v4773, %v4781
        %v4800 = vunpack.c.l.s4 1934713408
        %v4801 = vunpack.c.0.s8 %v4800
        %v4802 = vlaneseq
        %v4803 = vshrl.u32 %v4802, 7
        %v4804 = vsub.s32 %v4801, %v4803
        %v4805 = vrot.slane %v4798, %v4804
        %v4806 = vcombine.low %v4789, %v4797
        %v4808 = vunpack.c.l.s4 1934713408
        %v4809 = vunpack.c.0.s8 %v4808
        %v4810 = vlaneseq
        %v4811 = vshrl.u32 %v4810, 7
        %v4812 = vsub.s32 %v4809, %v4811
        %v4813 = vrot.slane %v4806, %v4812
        %v4814 = vcombine.low %v4805, %v4813
        %v4815 = vcombine.high %v4805, %v4813
        %v4816 = vcombine.low %v4438, %v4445
        %v4818 = vunpack.c.l.s4 1983009808
        %v4819 = vunpack.c.0.s8 %v4818
        %v4820 = vlaneseq
        %v4821 = vshrl.u32 %v4820, 7
        %v4822 = vsub.s32 %v4819, %v4821
        %v4823 = vrot.slane %v4816, %v4822
        %v4824 = vcombine.low %v4462, %v4463
        %v4826 = vunpack.c.l.s4 1983009808
        %v4827 = vunpack.c.0.s8 %v4826
        %v4828 = vlaneseq
        %v4829 = vshrl.u32 %v4828, 7
        %v4830 = vsub.s32 %v4827, %v4829
        %v4831 = vrot.slane %v4824, %v4830
        %v4832 = vcombine.low %v4454, %v4461
        %v4834 = vunpack.c.l.s4 1983009808
        %v4835 = vunpack.c.0.s8 %v4834
        %v4836 = vlaneseq
        %v4837 = vshrl.u32 %v4836, 7
        %v4838 = vsub.s32 %v4835, %v4837
        %v4839 = vrot.slane %v4832, %v4838
        %v4840 = vcombine.low %v4464, %v4465
        %v4842 = vunpack.c.l.s4 1983009808
        %v4843 = vunpack.c.0.s8 %v4842
        %v4844 = vlaneseq
        %v4845 = vshrl.u32 %v4844, 7
        %v4846 = vsub.s32 %v4843, %v4845
        %v4847 = vrot.slane %v4840, %v4846
        %v4848 = vcombine.low %v4823, %v4831
        %v4850 = vunpack.c.l.s4 1934713408
        %v4851 = vunpack.c.0.s8 %v4850
        %v4852 = vlaneseq
        %v4853 = vshrl.u32 %v4852, 7
        %v4854 = vsub.s32 %v4851, %v4853
        %v4855 = vrot.slane %v4848, %v4854
        %v4856 = vcombine.low %v4839, %v4847
        %v4858 = vunpack.c.l.s4 1934713408
        %v4859 = vunpack.c.0.s8 %v4858
        %v4860 = vlaneseq
        %v4861 = vshrl.u32 %v4860, 7
        %v4862 = vsub.s32 %v4859, %v4861
        %v4863 = vrot.slane %v4856, %v4862
        %v4864 = vcombine.low %v4855, %v4863
        %v4865 = vcombine.high %v4855, %v4863
        %v4866 = vcombine.high %v4514, 0.0
        %v4868 = vunpack.c.l.s4 1983009808
        %v4869 = vunpack.c.0.s8 %v4868
        %v4870 = vlaneseq
        %v4871 = vshrl.u32 %v4870, 7
        %v4872 = vsub.s32 %v4869, %v4871
        %v4873 = vrot.slane %v4514, %v4872
        %v4875 = vunpack.c.l.s4 1983009808
        %v4876 = vunpack.c.0.s8 %v4875
        %v4877 = vlaneseq
        %v4878 = vshrl.u32 %v4877, 7
        %v4879 = vsub.s32 %v4876, %v4878
        %v4880 = vrot.slane %v4866, %v4879
        %v4881 = vcombine.high %v4515, 0.0
        %v4883 = vunpack.c.l.s4 1983009808
        %v4884 = vunpack.c.0.s8 %v4883
        %v4885 = vlaneseq
        %v4886 = vshrl.u32 %v4885, 7
        %v4887 = vsub.s32 %v4884, %v4886
        %v4888 = vrot.slane %v4515, %v4887
        %v4890 = vunpack.c.l.s4 1983009808
        %v4891 = vunpack.c.0.s8 %v4890
        %v4892 = vlaneseq
        %v4893 = vshrl.u32 %v4892, 7
        %v4894 = vsub.s32 %v4891, %v4893
        %v4895 = vrot.slane %v4881, %v4894
        %v4896 = vcombine.low %v4873, %v4888
        %v4897 = vcombine.high %v4873, %v4888
        %v4899 = vunpack.c.l.s4 1934713408
        %v4900 = vunpack.c.0.s8 %v4899
        %v4901 = vlaneseq
        %v4902 = vshrl.u32 %v4901, 7
        %v4903 = vsub.s32 %v4900, %v4902
        %v4904 = vrot.slane %v4896, %v4903
        %v4906 = vunpack.c.l.s4 1934713408
        %v4907 = vunpack.c.0.s8 %v4906
        %v4908 = vlaneseq
        %v4909 = vshrl.u32 %v4908, 7
        %v4910 = vsub.s32 %v4907, %v4909
        %v4911 = vrot.slane %v4897, %v4910
        %v4912 = vcombine.low %v4880, %v4895
        %v4913 = vcombine.high %v4880, %v4895
        %v4915 = vunpack.c.l.s4 1934713408
        %v4916 = vunpack.c.0.s8 %v4915
        %v4917 = vlaneseq
        %v4918 = vshrl.u32 %v4917, 7
        %v4919 = vsub.s32 %v4916, %v4918
        %v4920 = vrot.slane %v4912, %v4919
        %v4922 = vunpack.c.l.s4 1934713408
        %v4923 = vunpack.c.0.s8 %v4922
        %v4924 = vlaneseq
        %v4925 = vshrl.u32 %v4924, 7
        %v4926 = vsub.s32 %v4923, %v4925
        %v4927 = vrot.slane %v4913, %v4926
        %v4928 = vcombine.high %v4904, 0.0
        %v4929 = vcombine.high %v4911, 0.0
        %v4930 = vcombine.high %v4920, 0.0
        %v4931 = vcombine.high %v4927, 0.0
        %v4932 = vcombine.high %v4564, 0.0
        %v4934 = vunpack.c.l.s4 1983009808
        %v4935 = vunpack.c.0.s8 %v4934
        %v4936 = vlaneseq
        %v4937 = vshrl.u32 %v4936, 7
        %v4938 = vsub.s32 %v4935, %v4937
        %v4939 = vrot.slane %v4564, %v4938
        %v4941 = vunpack.c.l.s4 1983009808
        %v4942 = vunpack.c.0.s8 %v4941
        %v4943 = vlaneseq
        %v4944 = vshrl.u32 %v4943, 7
        %v4945 = vsub.s32 %v4942, %v4944
        %v4946 = vrot.slane %v4932, %v4945
        %v4947 = vcombine.high %v4565, 0.0
        %v4949 = vunpack.c.l.s4 1983009808
        %v4950 = vunpack.c.0.s8 %v4949
        %v4951 = vlaneseq
        %v4952 = vshrl.u32 %v4951, 7
        %v4953 = vsub.s32 %v4950, %v4952
        %v4954 = vrot.slane %v4565, %v4953
        %v4956 = vunpack.c.l.s4 1983009808
        %v4957 = vunpack.c.0.s8 %v4956
        %v4958 = vlaneseq
        %v4959 = vshrl.u32 %v4958, 7
        %v4960 = vsub.s32 %v4957, %v4959
        %v4961 = vrot.slane %v4947, %v4960
        %v4962 = vcombine.low %v4939, %v4954
        %v4963 = vcombine.high %v4939, %v4954
        %v4965 = vunpack.c.l.s4 1934713408
        %v4966 = vunpack.c.0.s8 %v4965
        %v4967 = vlaneseq
        %v4968 = vshrl.u32 %v4967, 7
        %v4969 = vsub.s32 %v4966, %v4968
        %v4970 = vrot.slane %v4962, %v4969
        %v4972 = vunpack.c.l.s4 1934713408
        %v4973 = vunpack.c.0.s8 %v4972
        %v4974 = vlaneseq
        %v4975 = vshrl.u32 %v4974, 7
        %v4976 = vsub.s32 %v4973, %v4975
        %v4977 = vrot.slane %v4963, %v4976
        %v4978 = vcombine.low %v4946, %v4961
        %v4979 = vcombine.high %v4946, %v4961
        %v4981 = vunpack.c.l.s4 1934713408
        %v4982 = vunpack.c.0.s8 %v4981
        %v4983 = vlaneseq
        %v4984 = vshrl.u32 %v4983, 7
        %v4985 = vsub.s32 %v4982, %v4984
        %v4986 = vrot.slane %v4978, %v4985
        %v4988 = vunpack.c.l.s4 1934713408
        %v4989 = vunpack.c.0.s8 %v4988
        %v4990 = vlaneseq
        %v4991 = vshrl.u32 %v4990, 7
        %v4992 = vsub.s32 %v4989, %v4991
        %v4993 = vrot.slane %v4979, %v4992
        %v4994 = vcombine.high %v4970, 0.0
        %v4995 = vcombine.high %v4977, 0.0
        %v4996 = vcombine.high %v4986, 0.0
        %v4997 = vcombine.high %v4993, 0.0
        %v4998 = vcombine.high %v4614, 0.0
        %v5000 = vunpack.c.l.s4 1983009808
        %v5001 = vunpack.c.0.s8 %v5000
        %v5002 = vlaneseq
        %v5003 = vshrl.u32 %v5002, 7
        %v5004 = vsub.s32 %v5001, %v5003
        %v5005 = vrot.slane %v4614, %v5004
        %v5007 = vunpack.c.l.s4 1983009808
        %v5008 = vunpack.c.0.s8 %v5007
        %v5009 = vlaneseq
        %v5010 = vshrl.u32 %v5009, 7
        %v5011 = vsub.s32 %v5008, %v5010
        %v5012 = vrot.slane %v4998, %v5011
        %v5013 = vcombine.high %v4615, 0.0
        %v5015 = vunpack.c.l.s4 1983009808
        %v5016 = vunpack.c.0.s8 %v5015
        %v5017 = vlaneseq
        %v5018 = vshrl.u32 %v5017, 7
        %v5019 = vsub.s32 %v5016, %v5018
        %v5020 = vrot.slane %v4615, %v5019
        %v5022 = vunpack.c.l.s4 1983009808
        %v5023 = vunpack.c.0.s8 %v5022
        %v5024 = vlaneseq
        %v5025 = vshrl.u32 %v5024, 7
        %v5026 = vsub.s32 %v5023, %v5025
        %v5027 = vrot.slane %v5013, %v5026
        %v5028 = vcombine.low %v5005, %v5020
        %v5029 = vcombine.high %v5005, %v5020
        %v5031 = vunpack.c.l.s4 1934713408
        %v5032 = vunpack.c.0.s8 %v5031
        %v5033 = vlaneseq
        %v5034 = vshrl.u32 %v5033, 7
        %v5035 = vsub.s32 %v5032, %v5034
        %v5036 = vrot.slane %v5028, %v5035
        %v5038 = vunpack.c.l.s4 1934713408
        %v5039 = vunpack.c.0.s8 %v5038
        %v5040 = vlaneseq
        %v5041 = vshrl.u32 %v5040, 7
        %v5042 = vsub.s32 %v5039, %v5041
        %v5043 = vrot.slane %v5029, %v5042
        %v5044 = vcombine.low %v5012, %v5027
        %v5045 = vcombine.high %v5012, %v5027
        %v5047 = vunpack.c.l.s4 1934713408
        %v5048 = vunpack.c.0.s8 %v5047
        %v5049 = vlaneseq
        %v5050 = vshrl.u32 %v5049, 7
        %v5051 = vsub.s32 %v5048, %v5050
        %v5052 = vrot.slane %v5044, %v5051
        %v5054 = vunpack.c.l.s4 1934713408
        %v5055 = vunpack.c.0.s8 %v5054
        %v5056 = vlaneseq
        %v5057 = vshrl.u32 %v5056, 7
        %v5058 = vsub.s32 %v5055, %v5057
        %v5059 = vrot.slane %v5045, %v5058
        %v5060 = vcombine.high %v5036, 0.0
        %v5061 = vcombine.high %v5043, 0.0
        %v5062 = vcombine.high %v5052, 0.0
        %v5063 = vcombine.high %v5059, 0.0
        %v5064 = vcombine.high %v4664, 0.0
        %v5066 = vunpack.c.l.s4 1983009808
        %v5067 = vunpack.c.0.s8 %v5066
        %v5068 = vlaneseq
        %v5069 = vshrl.u32 %v5068, 7
        %v5070 = vsub.s32 %v5067, %v5069
        %v5071 = vrot.slane %v4664, %v5070
        %v5073 = vunpack.c.l.s4 1983009808
        %v5074 = vunpack.c.0.s8 %v5073
        %v5075 = vlaneseq
        %v5076 = vshrl.u32 %v5075, 7
        %v5077 = vsub.s32 %v5074, %v5076
        %v5078 = vrot.slane %v5064, %v5077
        %v5079 = vcombine.high %v4665, 0.0
        %v5081 = vunpack.c.l.s4 1983009808
        %v5082 = vunpack.c.0.s8 %v5081
        %v5083 = vlaneseq
        %v5084 = vshrl.u32 %v5083, 7
        %v5085 = vsub.s32 %v5082, %v5084
        %v5086 = vrot.slane %v4665, %v5085
        %v5088 = vunpack.c.l.s4 1983009808
        %v5089 = vunpack.c.0.s8 %v5088
        %v5090 = vlaneseq
        %v5091 = vshrl.u32 %v5090, 7
        %v5092 = vsub.s32 %v5089, %v5091
        %v5093 = vrot.slane %v5079, %v5092
        %v5094 = vcombine.low %v5071, %v5086
        %v5095 = vcombine.high %v5071, %v5086
        %v5097 = vunpack.c.l.s4 1934713408
        %v5098 = vunpack.c.0.s8 %v5097
        %v5099 = vlaneseq
        %v5100 = vshrl.u32 %v5099, 7
        %v5101 = vsub.s32 %v5098, %v5100
        %v5102 = vrot.slane %v5094, %v5101
        %v5104 = vunpack.c.l.s4 1934713408
        %v5105 = vunpack.c.0.s8 %v5104
        %v5106 = vlaneseq
        %v5107 = vshrl.u32 %v5106, 7
        %v5108 = vsub.s32 %v5105, %v5107
        %v5109 = vrot.slane %v5095, %v5108
        %v5110 = vcombine.low %v5078, %v5093
        %v5111 = vcombine.high %v5078, %v5093
        %v5113 = vunpack.c.l.s4 1934713408
        %v5114 = vunpack.c.0.s8 %v5113
        %v5115 = vlaneseq
        %v5116 = vshrl.u32 %v5115, 7
        %v5117 = vsub.s32 %v5114, %v5116
        %v5118 = vrot.slane %v5110, %v5117
        %v5120 = vunpack.c.l.s4 1934713408
        %v5121 = vunpack.c.0.s8 %v5120
        %v5122 = vlaneseq
        %v5123 = vshrl.u32 %v5122, 7
        %v5124 = vsub.s32 %v5121, %v5123
        %v5125 = vrot.slane %v5111, %v5124
        %v5126 = vcombine.high %v5102, 0.0
        %v5127 = vcombine.high %v5109, 0.0
        %v5128 = vcombine.high %v5118, 0.0
        %v5129 = vcombine.high %v5125, 0.0
        %v5130 = vcombine.high %v4714, 0.0
        %v5132 = vunpack.c.l.s4 1983009808
        %v5133 = vunpack.c.0.s8 %v5132
        %v5134 = vlaneseq
        %v5135 = vshrl.u32 %v5134, 7
        %v5136 = vsub.s32 %v5133, %v5135
        %v5137 = vrot.slane %v4714, %v5136
        %v5139 = vunpack.c.l.s4 1983009808
        %v5140 = vunpack.c.0.s8 %v5139
        %v5141 = vlaneseq
        %v5142 = vshrl.u32 %v5141, 7
        %v5143 = vsub.s32 %v5140, %v5142
        %v5144 = vrot.slane %v5130, %v5143
        %v5145 = vcombine.high %v4715, 0.0
        %v5147 = vunpack.c.l.s4 1983009808
        %v5148 = vunpack.c.0.s8 %v5147
        %v5149 = vlaneseq
        %v5150 = vshrl.u32 %v5149, 7
        %v5151 = vsub.s32 %v5148, %v5150
        %v5152 = vrot.slane %v4715, %v5151
        %v5154 = vunpack.c.l.s4 1983009808
        %v5155 = vunpack.c.0.s8 %v5154
        %v5156 = vlaneseq
        %v5157 = vshrl.u32 %v5156, 7
        %v5158 = vsub.s32 %v5155, %v5157
        %v5159 = vrot.slane %v5145, %v5158
        %v5160 = vcombine.low %v5137, %v5152
        %v5161 = vcombine.high %v5137, %v5152
        %v5163 = vunpack.c.l.s4 1934713408
        %v5164 = vunpack.c.0.s8 %v5163
        %v5165 = vlaneseq
        %v5166 = vshrl.u32 %v5165, 7
        %v5167 = vsub.s32 %v5164, %v5166
        %v5168 = vrot.slane %v5160, %v5167
        %v5170 = vunpack.c.l.s4 1934713408
        %v5171 = vunpack.c.0.s8 %v5170
        %v5172 = vlaneseq
        %v5173 = vshrl.u32 %v5172, 7
        %v5174 = vsub.s32 %v5171, %v5173
        %v5175 = vrot.slane %v5161, %v5174
        %v5176 = vcombine.low %v5144, %v5159
        %v5177 = vcombine.high %v5144, %v5159
        %v5179 = vunpack.c.l.s4 1934713408
        %v5180 = vunpack.c.0.s8 %v5179
        %v5181 = vlaneseq
        %v5182 = vshrl.u32 %v5181, 7
        %v5183 = vsub.s32 %v5180, %v5182
        %v5184 = vrot.slane %v5176, %v5183
        %v5186 = vunpack.c.l.s4 1934713408
        %v5187 = vunpack.c.0.s8 %v5186
        %v5188 = vlaneseq
        %v5189 = vshrl.u32 %v5188, 7
        %v5190 = vsub.s32 %v5187, %v5189
        %v5191 = vrot.slane %v5177, %v5190
        %v5192 = vcombine.high %v5168, 0.0
        %v5193 = vcombine.high %v5175, 0.0
        %v5194 = vcombine.high %v5184, 0.0
        %v5195 = vcombine.high %v5191, 0.0
        %v5196 = vcombine.high %v4764, 0.0
        %v5198 = vunpack.c.l.s4 1983009808
        %v5199 = vunpack.c.0.s8 %v5198
        %v5200 = vlaneseq
        %v5201 = vshrl.u32 %v5200, 7
        %v5202 = vsub.s32 %v5199, %v5201
        %v5203 = vrot.slane %v4764, %v5202
        %v5205 = vunpack.c.l.s4 1983009808
        %v5206 = vunpack.c.0.s8 %v5205
        %v5207 = vlaneseq
        %v5208 = vshrl.u32 %v5207, 7
        %v5209 = vsub.s32 %v5206, %v5208
        %v5210 = vrot.slane %v5196, %v5209
        %v5211 = vcombine.high %v4765, 0.0
        %v5213 = vunpack.c.l.s4 1983009808
        %v5214 = vunpack.c.0.s8 %v5213
        %v5215 = vlaneseq
        %v5216 = vshrl.u32 %v5215, 7
        %v5217 = vsub.s32 %v5214, %v5216
        %v5218 = vrot.slane %v4765, %v5217
        %v5220 = vunpack.c.l.s4 1983009808
        %v5221 = vunpack.c.0.s8 %v5220
        %v5222 = vlaneseq
        %v5223 = vshrl.u32 %v5222, 7
        %v5224 = vsub.s32 %v5221, %v5223
        %v5225 = vrot.slane %v5211, %v5224
        %v5226 = vcombine.low %v5203, %v5218
        %v5227 = vcombine.high %v5203, %v5218
        %v5229 = vunpack.c.l.s4 1934713408
        %v5230 = vunpack.c.0.s8 %v5229
        %v5231 = vlaneseq
        %v5232 = vshrl.u32 %v5231, 7
        %v5233 = vsub.s32 %v5230, %v5232
        %v5234 = vrot.slane %v5226, %v5233
        %v5236 = vunpack.c.l.s4 1934713408
        %v5237 = vunpack.c.0.s8 %v5236
        %v5238 = vlaneseq
        %v5239 = vshrl.u32 %v5238, 7
        %v5240 = vsub.s32 %v5237, %v5239
        %v5241 = vrot.slane %v5227, %v5240
        %v5242 = vcombine.low %v5210, %v5225
        %v5243 = vcombine.high %v5210, %v5225
        %v5245 = vunpack.c.l.s4 1934713408
        %v5246 = vunpack.c.0.s8 %v5245
        %v5247 = vlaneseq
        %v5248 = vshrl.u32 %v5247, 7
        %v5249 = vsub.s32 %v5246, %v5248
        %v5250 = vrot.slane %v5242, %v5249
        %v5252 = vunpack.c.l.s4 1934713408
        %v5253 = vunpack.c.0.s8 %v5252
        %v5254 = vlaneseq
        %v5255 = vshrl.u32 %v5254, 7
        %v5256 = vsub.s32 %v5253, %v5255
        %v5257 = vrot.slane %v5243, %v5256
        %v5258 = vcombine.high %v5234, 0.0
        %v5259 = vcombine.high %v5241, 0.0
        %v5260 = vcombine.high %v5250, 0.0
        %v5261 = vcombine.high %v5257, 0.0
        %v5262 = vcombine.high %v4814, 0.0
        %v5264 = vunpack.c.l.s4 1983009808
        %v5265 = vunpack.c.0.s8 %v5264
        %v5266 = vlaneseq
        %v5267 = vshrl.u32 %v5266, 7
        %v5268 = vsub.s32 %v5265, %v5267
        %v5269 = vrot.slane %v4814, %v5268
        %v5271 = vunpack.c.l.s4 1983009808
        %v5272 = vunpack.c.0.s8 %v5271
        %v5273 = vlaneseq
        %v5274 = vshrl.u32 %v5273, 7
        %v5275 = vsub.s32 %v5272, %v5274
        %v5276 = vrot.slane %v5262, %v5275
        %v5277 = vcombine.high %v4815, 0.0
        %v5279 = vunpack.c.l.s4 1983009808
        %v5280 = vunpack.c.0.s8 %v5279
        %v5281 = vlaneseq
        %v5282 = vshrl.u32 %v5281, 7
        %v5283 = vsub.s32 %v5280, %v5282
        %v5284 = vrot.slane %v4815, %v5283
        %v5286 = vunpack.c.l.s4 1983009808
        %v5287 = vunpack.c.0.s8 %v5286
        %v5288 = vlaneseq
        %v5289 = vshrl.u32 %v5288, 7
        %v5290 = vsub.s32 %v5287, %v5289
        %v5291 = vrot.slane %v5277, %v5290
        %v5292 = vcombine.low %v5269, %v5284
        %v5293 = vcombine.high %v5269, %v5284
        %v5295 = vunpack.c.l.s4 1934713408
        %v5296 = vunpack.c.0.s8 %v5295
        %v5297 = vlaneseq
        %v5298 = vshrl.u32 %v5297, 7
        %v5299 = vsub.s32 %v5296, %v5298
        %v5300 = vrot.slane %v5292, %v5299
        %v5302 = vunpack.c.l.s4 1934713408
        %v5303 = vunpack.c.0.s8 %v5302
        %v5304 = vlaneseq
        %v5305 = vshrl.u32 %v5304, 7
        %v5306 = vsub.s32 %v5303, %v5305
        %v5307 = vrot.slane %v5293, %v5306
        %v5308 = vcombine.low %v5276, %v5291
        %v5309 = vcombine.high %v5276, %v5291
        %v5311 = vunpack.c.l.s4 1934713408
        %v5312 = vunpack.c.0.s8 %v5311
        %v5313 = vlaneseq
        %v5314 = vshrl.u32 %v5313, 7
        %v5315 = vsub.s32 %v5312, %v5314
        %v5316 = vrot.slane %v5308, %v5315
        %v5318 = vunpack.c.l.s4 1934713408
        %v5319 = vunpack.c.0.s8 %v5318
        %v5320 = vlaneseq
        %v5321 = vshrl.u32 %v5320, 7
        %v5322 = vsub.s32 %v5319, %v5321
        %v5323 = vrot.slane %v5309, %v5322
        %v5324 = vcombine.high %v5300, 0.0
        %v5325 = vcombine.high %v5307, 0.0
        %v5326 = vcombine.high %v5316, 0.0
        %v5327 = vcombine.high %v5323, 0.0
        %v5328 = vcombine.high %v4864, 0.0
        %v5330 = vunpack.c.l.s4 1983009808
        %v5331 = vunpack.c.0.s8 %v5330
        %v5332 = vlaneseq
        %v5333 = vshrl.u32 %v5332, 7
        %v5334 = vsub.s32 %v5331, %v5333
        %v5335 = vrot.slane %v4864, %v5334
        %v5337 = vunpack.c.l.s4 1983009808
        %v5338 = vunpack.c.0.s8 %v5337
        %v5339 = vlaneseq
        %v5340 = vshrl.u32 %v5339, 7
        %v5341 = vsub.s32 %v5338, %v5340
        %v5342 = vrot.slane %v5328, %v5341
        %v5343 = vcombine.high %v4865, 0.0
        %v5345 = vunpack.c.l.s4 1983009808
        %v5346 = vunpack.c.0.s8 %v5345
        %v5347 = vlaneseq
        %v5348 = vshrl.u32 %v5347, 7
        %v5349 = vsub.s32 %v5346, %v5348
        %v5350 = vrot.slane %v4865, %v5349
        %v5352 = vunpack.c.l.s4 1983009808
        %v5353 = vunpack.c.0.s8 %v5352
        %v5354 = vlaneseq
        %v5355 = vshrl.u32 %v5354, 7
        %v5356 = vsub.s32 %v5353, %v5355
        %v5357 = vrot.slane %v5343, %v5356
        %v5358 = vcombine.low %v5335, %v5350
        %v5359 = vcombine.high %v5335, %v5350
        %v5361 = vunpack.c.l.s4 1934713408
        %v5362 = vunpack.c.0.s8 %v5361
        %v5363 = vlaneseq
        %v5364 = vshrl.u32 %v5363, 7
        %v5365 = vsub.s32 %v5362, %v5364
        %v5366 = vrot.slane %v5358, %v5365
        %v5368 = vunpack.c.l.s4 1934713408
        %v5369 = vunpack.c.0.s8 %v5368
        %v5370 = vlaneseq
        %v5371 = vshrl.u32 %v5370, 7
        %v5372 = vsub.s32 %v5369, %v5371
        %v5373 = vrot.slane %v5359, %v5372
        %v5374 = vcombine.low %v5342, %v5357
        %v5375 = vcombine.high %v5342, %v5357
        %v5377 = vunpack.c.l.s4 1934713408
        %v5378 = vunpack.c.0.s8 %v5377
        %v5379 = vlaneseq
        %v5380 = vshrl.u32 %v5379, 7
        %v5381 = vsub.s32 %v5378, %v5380
        %v5382 = vrot.slane %v5374, %v5381
        %v5384 = vunpack.c.l.s4 1934713408
        %v5385 = vunpack.c.0.s8 %v5384
        %v5386 = vlaneseq
        %v5387 = vshrl.u32 %v5386, 7
        %v5388 = vsub.s32 %v5385, %v5387
        %v5389 = vrot.slane %v5375, %v5388
        %v5390 = vcombine.high %v5366, 0.0
        %v5391 = vcombine.high %v5373, 0.0
        %v5392 = vcombine.high %v5382, 0.0
        %v5393 = vcombine.high %v5389, 0.0
        %5402 = vrot.lane.b32.xlu0 %v4928, 2
        %v5403 = vpop.permute.xlu0 %5402
        %5404 = vrot.lane.b32.xlu0 %v4994, 2
        %v5405 = vpop.permute.xlu0 %5404
        %5406 = vrot.lane.b32.xlu0 %v5060, 2
        %v5407 = vpop.permute.xlu0 %5406
        %5408 = vrot.lane.b32.xlu0 %v5126, 2
        %v5409 = vpop.permute.xlu0 %5408
        %5410 = vrot.lane.b32.xlu0 %v5192, 2
        %v5411 = vpop.permute.xlu0 %5410
        %5412 = vrot.lane.b32.xlu0 %v5258, 2
        %v5413 = vpop.permute.xlu0 %5412
        %5414 = vrot.lane.b32.xlu0 %v5324, 2
        %v5415 = vpop.permute.xlu0 %5414
        %5416 = vrot.lane.b32.xlu0 %v5390, 2
        %v5417 = vpop.permute.xlu0 %5416
        %5434 = vrot.lane.b32.xlu0 %v4911, 4
        %v5435 = vpop.permute.xlu0 %5434
        %5436 = vrot.lane.b32.xlu0 %v4977, 4
        %v5437 = vpop.permute.xlu0 %5436
        %5438 = vrot.lane.b32.xlu0 %v5043, 4
        %v5439 = vpop.permute.xlu0 %5438
        %5440 = vrot.lane.b32.xlu0 %v5109, 4
        %v5441 = vpop.permute.xlu0 %5440
        %5442 = vrot.lane.b32.xlu0 %v5175, 4
        %v5443 = vpop.permute.xlu0 %5442
        %5444 = vrot.lane.b32.xlu0 %v5241, 4
        %v5445 = vpop.permute.xlu0 %5444
        %5446 = vrot.lane.b32.xlu0 %v5307, 4
        %v5447 = vpop.permute.xlu0 %5446
        %5448 = vrot.lane.b32.xlu0 %v5373, 4
        %v5449 = vpop.permute.xlu0 %5448
        %5466 = vrot.lane.b32.xlu0 %v4929, 6
        %v5467 = vpop.permute.xlu0 %5466
        %5468 = vrot.lane.b32.xlu0 %v4995, 6
        %v5469 = vpop.permute.xlu0 %5468
        %5470 = vrot.lane.b32.xlu0 %v5061, 6
        %v5471 = vpop.permute.xlu0 %5470
        %5472 = vrot.lane.b32.xlu0 %v5127, 6
        %v5473 = vpop.permute.xlu0 %5472
        %5474 = vrot.lane.b32.xlu0 %v5193, 6
        %v5475 = vpop.permute.xlu0 %5474
        %5476 = vrot.lane.b32.xlu0 %v5259, 6
        %v5477 = vpop.permute.xlu0 %5476
        %5478 = vrot.lane.b32.xlu0 %v5325, 6
        %v5479 = vpop.permute.xlu0 %5478
        %5480 = vrot.lane.b32.xlu0 %v5391, 6
        %v5481 = vpop.permute.xlu0 %5480
        %5498 = vrot.lane.b32.xlu0 %v4920, 8
        %v5499 = vpop.permute.xlu0 %5498
        %5500 = vrot.lane.b32.xlu0 %v4986, 8
        %v5501 = vpop.permute.xlu0 %5500
        %5502 = vrot.lane.b32.xlu0 %v5052, 8
        %v5503 = vpop.permute.xlu0 %5502
        %5504 = vrot.lane.b32.xlu0 %v5118, 8
        %v5505 = vpop.permute.xlu0 %5504
        %5506 = vrot.lane.b32.xlu0 %v5184, 8
        %v5507 = vpop.permute.xlu0 %5506
        %5508 = vrot.lane.b32.xlu0 %v5250, 8
        %v5509 = vpop.permute.xlu0 %5508
        %5510 = vrot.lane.b32.xlu0 %v5316, 8
        %v5511 = vpop.permute.xlu0 %5510
        %5512 = vrot.lane.b32.xlu0 %v5382, 8
        %v5513 = vpop.permute.xlu0 %5512
        %5530 = vrot.lane.b32.xlu0 %v4930, 10
        %v5531 = vpop.permute.xlu0 %5530
        %5532 = vrot.lane.b32.xlu0 %v4996, 10
        %v5533 = vpop.permute.xlu0 %5532
        %5534 = vrot.lane.b32.xlu0 %v5062, 10
        %v5535 = vpop.permute.xlu0 %5534
        %5536 = vrot.lane.b32.xlu0 %v5128, 10
        %v5537 = vpop.permute.xlu0 %5536
        %5538 = vrot.lane.b32.xlu0 %v5194, 10
        %v5539 = vpop.permute.xlu0 %5538
        %5540 = vrot.lane.b32.xlu0 %v5260, 10
        %v5541 = vpop.permute.xlu0 %5540
        %5542 = vrot.lane.b32.xlu0 %v5326, 10
        %v5543 = vpop.permute.xlu0 %5542
        %5544 = vrot.lane.b32.xlu0 %v5392, 10
        %v5545 = vpop.permute.xlu0 %5544
        %5562 = vrot.lane.b32.xlu0 %v4927, 12
        %v5563 = vpop.permute.xlu0 %5562
        %5564 = vrot.lane.b32.xlu0 %v4993, 12
        %v5565 = vpop.permute.xlu0 %5564
        %5566 = vrot.lane.b32.xlu0 %v5059, 12
        %v5567 = vpop.permute.xlu0 %5566
        %5568 = vrot.lane.b32.xlu0 %v5125, 12
        %v5569 = vpop.permute.xlu0 %5568
        %5570 = vrot.lane.b32.xlu0 %v5191, 12
        %v5571 = vpop.permute.xlu0 %5570
        %5572 = vrot.lane.b32.xlu0 %v5257, 12
        %v5573 = vpop.permute.xlu0 %5572
        %5574 = vrot.lane.b32.xlu0 %v5323, 12
        %v5575 = vpop.permute.xlu0 %5574
        %5576 = vrot.lane.b32.xlu0 %v5389, 12
        %v5577 = vpop.permute.xlu0 %5576
        %5594 = vrot.lane.b32.xlu0 %v4931, 14
        %v5595 = vpop.permute.xlu0 %5594
        %5596 = vrot.lane.b32.xlu0 %v4997, 14
        %v5597 = vpop.permute.xlu0 %5596
        %5598 = vrot.lane.b32.xlu0 %v5063, 14
        %v5599 = vpop.permute.xlu0 %5598
        %5600 = vrot.lane.b32.xlu0 %v5129, 14
        %v5601 = vpop.permute.xlu0 %5600
        %5602 = vrot.lane.b32.xlu0 %v5195, 14
        %v5603 = vpop.permute.xlu0 %5602
        %5604 = vrot.lane.b32.xlu0 %v5261, 14
        %v5605 = vpop.permute.xlu0 %5604
        %5606 = vrot.lane.b32.xlu0 %v5327, 14
        %v5607 = vpop.permute.xlu0 %5606
        %5608 = vrot.lane.b32.xlu0 %v5393, 14
        %v5609 = vpop.permute.xlu0 %5608
        %v5618 = vsel %vm2025, %v4904, %v5403
        %v5619 = vsel %vm2025, %v4970, %v5405
        %v5620 = vsel %vm2025, %v5036, %v5407
        %v5621 = vsel %vm2025, %v5102, %v5409
        %v5622 = vsel %vm2025, %v5168, %v5411
        %v5623 = vsel %vm2025, %v5234, %v5413
        %v5624 = vsel %vm2025, %v5300, %v5415
        %v5625 = vsel %vm2025, %v5366, %v5417
        %v5626 = vsel %vm2034, %v5618, %v5435
        %v5627 = vsel %vm2034, %v5619, %v5437
        %v5628 = vsel %vm2034, %v5620, %v5439
        %v5629 = vsel %vm2034, %v5621, %v5441
        %v5630 = vsel %vm2034, %v5622, %v5443
        %v5631 = vsel %vm2034, %v5623, %v5445
        %v5632 = vsel %vm2034, %v5624, %v5447
        %v5633 = vsel %vm2034, %v5625, %v5449
        %v5634 = vsel %vm2043, %v5626, %v5467
        %v5635 = vsel %vm2043, %v5627, %v5469
        %v5636 = vsel %vm2043, %v5628, %v5471
        %v5637 = vsel %vm2043, %v5629, %v5473
        %v5638 = vsel %vm2043, %v5630, %v5475
        %v5639 = vsel %vm2043, %v5631, %v5477
        %v5640 = vsel %vm2043, %v5632, %v5479
        %v5641 = vsel %vm2043, %v5633, %v5481
        %v5642 = vsel %vm2052, %v5634, %v5499
        %v5643 = vsel %vm2052, %v5635, %v5501
        %v5644 = vsel %vm2052, %v5636, %v5503
        %v5645 = vsel %vm2052, %v5637, %v5505
        %v5646 = vsel %vm2052, %v5638, %v5507
        %v5647 = vsel %vm2052, %v5639, %v5509
        %v5648 = vsel %vm2052, %v5640, %v5511
        %v5649 = vsel %vm2052, %v5641, %v5513
        %v5650 = vsel %vm2061, %v5642, %v5531
        %v5651 = vsel %vm2061, %v5643, %v5533
        %v5652 = vsel %vm2061, %v5644, %v5535
        %v5653 = vsel %vm2061, %v5645, %v5537
        %v5654 = vsel %vm2061, %v5646, %v5539
        %v5655 = vsel %vm2061, %v5647, %v5541
        %v5656 = vsel %vm2061, %v5648, %v5543
        %v5657 = vsel %vm2061, %v5649, %v5545
        %v5658 = vsel %vm2070, %v5650, %v5563
        %v5659 = vsel %vm2070, %v5651, %v5565
        %v5660 = vsel %vm2070, %v5652, %v5567
        %v5661 = vsel %vm2070, %v5653, %v5569
        %v5662 = vsel %vm2070, %v5654, %v5571
        %v5663 = vsel %vm2070, %v5655, %v5573
        %v5664 = vsel %vm2070, %v5656, %v5575
        %v5665 = vsel %vm2070, %v5657, %v5577
        %v5666 = vsel %vm2079, %v5658, %v5595
        %v5667 = vsel %vm2079, %v5659, %v5597
        %v5668 = vsel %vm2079, %v5660, %v5599
        %v5669 = vsel %vm2079, %v5661, %v5601
        %v5670 = vsel %vm2079, %v5662, %v5603
        %v5671 = vsel %vm2079, %v5663, %v5605
        %v5672 = vsel %vm2079, %v5664, %v5607
        %v5673 = vsel %vm2079, %v5665, %v5609
        %s5674 = scalar_lea.vmem %s161, 32 [#allocation2]
        %5675 = vst.msk [vmem:[%s5674] sm:$0x3] %vm2088, %v5666
        %5676 = vst.msk [vmem:[%s5674 + $0x2] sm:$0x3] %vm2088, %v5667
        %5677 = vst.msk [vmem:[%s5674 + $0x4] sm:$0x3] %vm2088, %v5668
        %5678 = vst.msk [vmem:[%s5674 + $0x6] sm:$0x3] %vm2088, %v5669
        %5679 = vst.msk [vmem:[%s5674 + $0x8] sm:$0x3] %vm2088, %v5670
        %5680 = vst.msk [vmem:[%s5674 + $0xa] sm:$0x3] %vm2088, %v5671
        %5681 = vst.msk [vmem:[%s5674 + $0xc] sm:$0x3] %vm2088, %v5672
        %5682 = vst.msk [vmem:[%s5674 + $0xe] sm:$0x3] %vm2088, %v5673
        %5683 = vrot.lane.b32.xlu0 %v275, 116
        %v5684 = vpop.permute.xlu0 %5683
        %5685 = vrot.lane.b32.xlu0 %v280, 116
        %v5686 = vpop.permute.xlu0 %5685
        %5687 = vrot.lane.b32.xlu0 %v285, 116
        %v5688 = vpop.permute.xlu0 %5687
        %5689 = vrot.lane.b32.xlu0 %v290, 116
        %v5690 = vpop.permute.xlu0 %5689
        %5691 = vrot.lane.b32.xlu0 %v295, 116
        %v5692 = vpop.permute.xlu0 %5691
        %5693 = vrot.lane.b32.xlu0 %v300, 116
        %v5694 = vpop.permute.xlu0 %5693
        %5695 = vrot.lane.b32.xlu0 %v305, 116
        %v5696 = vpop.permute.xlu0 %5695
        %5697 = vrot.lane.b32.xlu0 %v310, 116
        %v5698 = vpop.permute.xlu0 %5697
        %5699 = vrot.lane.b32.xlu0 %v322, 116
        %v5700 = vpop.permute.xlu0 %5699
        %5701 = vrot.lane.b32.xlu0 %v324, 116
        %v5702 = vpop.permute.xlu0 %5701
        %5703 = vrot.lane.b32.xlu0 %v326, 116
        %v5704 = vpop.permute.xlu0 %5703
        %5705 = vrot.lane.b32.xlu0 %v328, 116
        %v5706 = vpop.permute.xlu0 %5705
        %5707 = vrot.lane.b32.xlu0 %v330, 116
        %v5708 = vpop.permute.xlu0 %5707
        %5709 = vrot.lane.b32.xlu0 %v332, 116
        %v5710 = vpop.permute.xlu0 %5709
        %5711 = vrot.lane.b32.xlu0 %v334, 116
        %v5712 = vpop.permute.xlu0 %5711
        %5713 = vrot.lane.b32.xlu0 %v336, 116
        %v5714 = vpop.permute.xlu0 %5713
        %v5731 = vcombine.high %v5684, 0.0
        %v5733 = vunpack.c.l.s4 1983009808
        %v5734 = vunpack.c.0.s8 %v5733
        %v5735 = vlaneseq
        %v5736 = vshrl.u32 %v5735, 7
        %v5737 = vsub.s32 %v5734, %v5736
        %v5738 = vrot.slane %v5684, %v5737
        %v5740 = vunpack.c.l.s4 1983009808
        %v5741 = vunpack.c.0.s8 %v5740
        %v5742 = vlaneseq
        %v5743 = vshrl.u32 %v5742, 7
        %v5744 = vsub.s32 %v5741, %v5743
        %v5745 = vrot.slane %v5731, %v5744
        %v5746 = vcombine.high %v5700, 0.0
        %v5748 = vunpack.c.l.s4 1983009808
        %v5749 = vunpack.c.0.s8 %v5748
        %v5750 = vlaneseq
        %v5751 = vshrl.u32 %v5750, 7
        %v5752 = vsub.s32 %v5749, %v5751
        %v5753 = vrot.slane %v5700, %v5752
        %v5755 = vunpack.c.l.s4 1983009808
        %v5756 = vunpack.c.0.s8 %v5755
        %v5757 = vlaneseq
        %v5758 = vshrl.u32 %v5757, 7
        %v5759 = vsub.s32 %v5756, %v5758
        %v5760 = vrot.slane %v5746, %v5759
        %v5761 = vcombine.low %v5738, %v5753
        %v5762 = vcombine.high %v5738, %v5753
        %v5764 = vunpack.c.l.s4 1934713408
        %v5765 = vunpack.c.0.s8 %v5764
        %v5766 = vlaneseq
        %v5767 = vshrl.u32 %v5766, 7
        %v5768 = vsub.s32 %v5765, %v5767
        %v5769 = vrot.slane %v5761, %v5768
        %v5771 = vunpack.c.l.s4 1934713408
        %v5772 = vunpack.c.0.s8 %v5771
        %v5773 = vlaneseq
        %v5774 = vshrl.u32 %v5773, 7
        %v5775 = vsub.s32 %v5772, %v5774
        %v5776 = vrot.slane %v5762, %v5775
        %v5777 = vcombine.low %v5745, %v5760
        %v5778 = vcombine.high %v5745, %v5760
        %v5780 = vunpack.c.l.s4 1934713408
        %v5781 = vunpack.c.0.s8 %v5780
        %v5782 = vlaneseq
        %v5783 = vshrl.u32 %v5782, 7
        %v5784 = vsub.s32 %v5781, %v5783
        %v5785 = vrot.slane %v5777, %v5784
        %v5787 = vunpack.c.l.s4 1934713408
        %v5788 = vunpack.c.0.s8 %v5787
        %v5789 = vlaneseq
        %v5790 = vshrl.u32 %v5789, 7
        %v5791 = vsub.s32 %v5788, %v5790
        %v5792 = vrot.slane %v5778, %v5791
        %v5793 = vcombine.high %v5769, 0.0
        %v5794 = vcombine.high %v5776, 0.0
        %v5795 = vcombine.high %v5785, 0.0
        %v5796 = vcombine.high %v5792, 0.0
        %v5797 = vcombine.high %v5686, 0.0
        %v5799 = vunpack.c.l.s4 1983009808
        %v5800 = vunpack.c.0.s8 %v5799
        %v5801 = vlaneseq
        %v5802 = vshrl.u32 %v5801, 7
        %v5803 = vsub.s32 %v5800, %v5802
        %v5804 = vrot.slane %v5686, %v5803
        %v5806 = vunpack.c.l.s4 1983009808
        %v5807 = vunpack.c.0.s8 %v5806
        %v5808 = vlaneseq
        %v5809 = vshrl.u32 %v5808, 7
        %v5810 = vsub.s32 %v5807, %v5809
        %v5811 = vrot.slane %v5797, %v5810
        %v5812 = vcombine.high %v5702, 0.0
        %v5814 = vunpack.c.l.s4 1983009808
        %v5815 = vunpack.c.0.s8 %v5814
        %v5816 = vlaneseq
        %v5817 = vshrl.u32 %v5816, 7
        %v5818 = vsub.s32 %v5815, %v5817
        %v5819 = vrot.slane %v5702, %v5818
        %v5821 = vunpack.c.l.s4 1983009808
        %v5822 = vunpack.c.0.s8 %v5821
        %v5823 = vlaneseq
        %v5824 = vshrl.u32 %v5823, 7
        %v5825 = vsub.s32 %v5822, %v5824
        %v5826 = vrot.slane %v5812, %v5825
        %v5827 = vcombine.low %v5804, %v5819
        %v5828 = vcombine.high %v5804, %v5819
        %v5830 = vunpack.c.l.s4 1934713408
        %v5831 = vunpack.c.0.s8 %v5830
        %v5832 = vlaneseq
        %v5833 = vshrl.u32 %v5832, 7
        %v5834 = vsub.s32 %v5831, %v5833
        %v5835 = vrot.slane %v5827, %v5834
        %v5837 = vunpack.c.l.s4 1934713408
        %v5838 = vunpack.c.0.s8 %v5837
        %v5839 = vlaneseq
        %v5840 = vshrl.u32 %v5839, 7
        %v5841 = vsub.s32 %v5838, %v5840
        %v5842 = vrot.slane %v5828, %v5841
        %v5843 = vcombine.low %v5811, %v5826
        %v5844 = vcombine.high %v5811, %v5826
        %v5846 = vunpack.c.l.s4 1934713408
        %v5847 = vunpack.c.0.s8 %v5846
        %v5848 = vlaneseq
        %v5849 = vshrl.u32 %v5848, 7
        %v5850 = vsub.s32 %v5847, %v5849
        %v5851 = vrot.slane %v5843, %v5850
        %v5853 = vunpack.c.l.s4 1934713408
        %v5854 = vunpack.c.0.s8 %v5853
        %v5855 = vlaneseq
        %v5856 = vshrl.u32 %v5855, 7
        %v5857 = vsub.s32 %v5854, %v5856
        %v5858 = vrot.slane %v5844, %v5857
        %v5859 = vcombine.high %v5835, 0.0
        %v5860 = vcombine.high %v5842, 0.0
        %v5861 = vcombine.high %v5851, 0.0
        %v5862 = vcombine.high %v5858, 0.0
        %v5863 = vcombine.high %v5688, 0.0
        %v5865 = vunpack.c.l.s4 1983009808
        %v5866 = vunpack.c.0.s8 %v5865
        %v5867 = vlaneseq
        %v5868 = vshrl.u32 %v5867, 7
        %v5869 = vsub.s32 %v5866, %v5868
        %v5870 = vrot.slane %v5688, %v5869
        %v5872 = vunpack.c.l.s4 1983009808
        %v5873 = vunpack.c.0.s8 %v5872
        %v5874 = vlaneseq
        %v5875 = vshrl.u32 %v5874, 7
        %v5876 = vsub.s32 %v5873, %v5875
        %v5877 = vrot.slane %v5863, %v5876
        %v5878 = vcombine.high %v5704, 0.0
        %v5880 = vunpack.c.l.s4 1983009808
        %v5881 = vunpack.c.0.s8 %v5880
        %v5882 = vlaneseq
        %v5883 = vshrl.u32 %v5882, 7
        %v5884 = vsub.s32 %v5881, %v5883
        %v5885 = vrot.slane %v5704, %v5884
        %v5887 = vunpack.c.l.s4 1983009808
        %v5888 = vunpack.c.0.s8 %v5887
        %v5889 = vlaneseq
        %v5890 = vshrl.u32 %v5889, 7
        %v5891 = vsub.s32 %v5888, %v5890
        %v5892 = vrot.slane %v5878, %v5891
        %v5893 = vcombine.low %v5870, %v5885
        %v5894 = vcombine.high %v5870, %v5885
        %v5896 = vunpack.c.l.s4 1934713408
        %v5897 = vunpack.c.0.s8 %v5896
        %v5898 = vlaneseq
        %v5899 = vshrl.u32 %v5898, 7
        %v5900 = vsub.s32 %v5897, %v5899
        %v5901 = vrot.slane %v5893, %v5900
        %v5903 = vunpack.c.l.s4 1934713408
        %v5904 = vunpack.c.0.s8 %v5903
        %v5905 = vlaneseq
        %v5906 = vshrl.u32 %v5905, 7
        %v5907 = vsub.s32 %v5904, %v5906
        %v5908 = vrot.slane %v5894, %v5907
        %v5909 = vcombine.low %v5877, %v5892
        %v5910 = vcombine.high %v5877, %v5892
        %v5912 = vunpack.c.l.s4 1934713408
        %v5913 = vunpack.c.0.s8 %v5912
        %v5914 = vlaneseq
        %v5915 = vshrl.u32 %v5914, 7
        %v5916 = vsub.s32 %v5913, %v5915
        %v5917 = vrot.slane %v5909, %v5916
        %v5919 = vunpack.c.l.s4 1934713408
        %v5920 = vunpack.c.0.s8 %v5919
        %v5921 = vlaneseq
        %v5922 = vshrl.u32 %v5921, 7
        %v5923 = vsub.s32 %v5920, %v5922
        %v5924 = vrot.slane %v5910, %v5923
        %v5925 = vcombine.high %v5901, 0.0
        %v5926 = vcombine.high %v5908, 0.0
        %v5927 = vcombine.high %v5917, 0.0
        %v5928 = vcombine.high %v5924, 0.0
        %v5929 = vcombine.high %v5690, 0.0
        %v5931 = vunpack.c.l.s4 1983009808
        %v5932 = vunpack.c.0.s8 %v5931
        %v5933 = vlaneseq
        %v5934 = vshrl.u32 %v5933, 7
        %v5935 = vsub.s32 %v5932, %v5934
        %v5936 = vrot.slane %v5690, %v5935
        %v5938 = vunpack.c.l.s4 1983009808
        %v5939 = vunpack.c.0.s8 %v5938
        %v5940 = vlaneseq
        %v5941 = vshrl.u32 %v5940, 7
        %v5942 = vsub.s32 %v5939, %v5941
        %v5943 = vrot.slane %v5929, %v5942
        %v5944 = vcombine.high %v5706, 0.0
        %v5946 = vunpack.c.l.s4 1983009808
        %v5947 = vunpack.c.0.s8 %v5946
        %v5948 = vlaneseq
        %v5949 = vshrl.u32 %v5948, 7
        %v5950 = vsub.s32 %v5947, %v5949
        %v5951 = vrot.slane %v5706, %v5950
        %v5953 = vunpack.c.l.s4 1983009808
        %v5954 = vunpack.c.0.s8 %v5953
        %v5955 = vlaneseq
        %v5956 = vshrl.u32 %v5955, 7
        %v5957 = vsub.s32 %v5954, %v5956
        %v5958 = vrot.slane %v5944, %v5957
        %v5959 = vcombine.low %v5936, %v5951
        %v5960 = vcombine.high %v5936, %v5951
        %v5962 = vunpack.c.l.s4 1934713408
        %v5963 = vunpack.c.0.s8 %v5962
        %v5964 = vlaneseq
        %v5965 = vshrl.u32 %v5964, 7
        %v5966 = vsub.s32 %v5963, %v5965
        %v5967 = vrot.slane %v5959, %v5966
        %v5969 = vunpack.c.l.s4 1934713408
        %v5970 = vunpack.c.0.s8 %v5969
        %v5971 = vlaneseq
        %v5972 = vshrl.u32 %v5971, 7
        %v5973 = vsub.s32 %v5970, %v5972
        %v5974 = vrot.slane %v5960, %v5973
        %v5975 = vcombine.low %v5943, %v5958
        %v5976 = vcombine.high %v5943, %v5958
        %v5978 = vunpack.c.l.s4 1934713408
        %v5979 = vunpack.c.0.s8 %v5978
        %v5980 = vlaneseq
        %v5981 = vshrl.u32 %v5980, 7
        %v5982 = vsub.s32 %v5979, %v5981
        %v5983 = vrot.slane %v5975, %v5982
        %v5985 = vunpack.c.l.s4 1934713408
        %v5986 = vunpack.c.0.s8 %v5985
        %v5987 = vlaneseq
        %v5988 = vshrl.u32 %v5987, 7
        %v5989 = vsub.s32 %v5986, %v5988
        %v5990 = vrot.slane %v5976, %v5989
        %v5991 = vcombine.high %v5967, 0.0
        %v5992 = vcombine.high %v5974, 0.0
        %v5993 = vcombine.high %v5983, 0.0
        %v5994 = vcombine.high %v5990, 0.0
        %v5995 = vcombine.high %v5692, 0.0
        %v5997 = vunpack.c.l.s4 1983009808
        %v5998 = vunpack.c.0.s8 %v5997
        %v5999 = vlaneseq
        %v6000 = vshrl.u32 %v5999, 7
        %v6001 = vsub.s32 %v5998, %v6000
        %v6002 = vrot.slane %v5692, %v6001
        %v6004 = vunpack.c.l.s4 1983009808
        %v6005 = vunpack.c.0.s8 %v6004
        %v6006 = vlaneseq
        %v6007 = vshrl.u32 %v6006, 7
        %v6008 = vsub.s32 %v6005, %v6007
        %v6009 = vrot.slane %v5995, %v6008
        %v6010 = vcombine.high %v5708, 0.0
        %v6012 = vunpack.c.l.s4 1983009808
        %v6013 = vunpack.c.0.s8 %v6012
        %v6014 = vlaneseq
        %v6015 = vshrl.u32 %v6014, 7
        %v6016 = vsub.s32 %v6013, %v6015
        %v6017 = vrot.slane %v5708, %v6016
        %v6019 = vunpack.c.l.s4 1983009808
        %v6020 = vunpack.c.0.s8 %v6019
        %v6021 = vlaneseq
        %v6022 = vshrl.u32 %v6021, 7
        %v6023 = vsub.s32 %v6020, %v6022
        %v6024 = vrot.slane %v6010, %v6023
        %v6025 = vcombine.low %v6002, %v6017
        %v6026 = vcombine.high %v6002, %v6017
        %v6028 = vunpack.c.l.s4 1934713408
        %v6029 = vunpack.c.0.s8 %v6028
        %v6030 = vlaneseq
        %v6031 = vshrl.u32 %v6030, 7
        %v6032 = vsub.s32 %v6029, %v6031
        %v6033 = vrot.slane %v6025, %v6032
        %v6035 = vunpack.c.l.s4 1934713408
        %v6036 = vunpack.c.0.s8 %v6035
        %v6037 = vlaneseq
        %v6038 = vshrl.u32 %v6037, 7
        %v6039 = vsub.s32 %v6036, %v6038
        %v6040 = vrot.slane %v6026, %v6039
        %v6041 = vcombine.low %v6009, %v6024
        %v6042 = vcombine.high %v6009, %v6024
        %v6044 = vunpack.c.l.s4 1934713408
        %v6045 = vunpack.c.0.s8 %v6044
        %v6046 = vlaneseq
        %v6047 = vshrl.u32 %v6046, 7
        %v6048 = vsub.s32 %v6045, %v6047
        %v6049 = vrot.slane %v6041, %v6048
        %v6051 = vunpack.c.l.s4 1934713408
        %v6052 = vunpack.c.0.s8 %v6051
        %v6053 = vlaneseq
        %v6054 = vshrl.u32 %v6053, 7
        %v6055 = vsub.s32 %v6052, %v6054
        %v6056 = vrot.slane %v6042, %v6055
        %v6057 = vcombine.high %v6033, 0.0
        %v6058 = vcombine.high %v6040, 0.0
        %v6059 = vcombine.high %v6049, 0.0
        %v6060 = vcombine.high %v6056, 0.0
        %v6061 = vcombine.high %v5694, 0.0
        %v6063 = vunpack.c.l.s4 1983009808
        %v6064 = vunpack.c.0.s8 %v6063
        %v6065 = vlaneseq
        %v6066 = vshrl.u32 %v6065, 7
        %v6067 = vsub.s32 %v6064, %v6066
        %v6068 = vrot.slane %v5694, %v6067
        %v6070 = vunpack.c.l.s4 1983009808
        %v6071 = vunpack.c.0.s8 %v6070
        %v6072 = vlaneseq
        %v6073 = vshrl.u32 %v6072, 7
        %v6074 = vsub.s32 %v6071, %v6073
        %v6075 = vrot.slane %v6061, %v6074
        %v6076 = vcombine.high %v5710, 0.0
        %v6078 = vunpack.c.l.s4 1983009808
        %v6079 = vunpack.c.0.s8 %v6078
        %v6080 = vlaneseq
        %v6081 = vshrl.u32 %v6080, 7
        %v6082 = vsub.s32 %v6079, %v6081
        %v6083 = vrot.slane %v5710, %v6082
        %v6085 = vunpack.c.l.s4 1983009808
        %v6086 = vunpack.c.0.s8 %v6085
        %v6087 = vlaneseq
        %v6088 = vshrl.u32 %v6087, 7
        %v6089 = vsub.s32 %v6086, %v6088
        %v6090 = vrot.slane %v6076, %v6089
        %v6091 = vcombine.low %v6068, %v6083
        %v6092 = vcombine.high %v6068, %v6083
        %v6094 = vunpack.c.l.s4 1934713408
        %v6095 = vunpack.c.0.s8 %v6094
        %v6096 = vlaneseq
        %v6097 = vshrl.u32 %v6096, 7
        %v6098 = vsub.s32 %v6095, %v6097
        %v6099 = vrot.slane %v6091, %v6098
        %v6101 = vunpack.c.l.s4 1934713408
        %v6102 = vunpack.c.0.s8 %v6101
        %v6103 = vlaneseq
        %v6104 = vshrl.u32 %v6103, 7
        %v6105 = vsub.s32 %v6102, %v6104
        %v6106 = vrot.slane %v6092, %v6105
        %v6107 = vcombine.low %v6075, %v6090
        %v6108 = vcombine.high %v6075, %v6090
        %v6110 = vunpack.c.l.s4 1934713408
        %v6111 = vunpack.c.0.s8 %v6110
        %v6112 = vlaneseq
        %v6113 = vshrl.u32 %v6112, 7
        %v6114 = vsub.s32 %v6111, %v6113
        %v6115 = vrot.slane %v6107, %v6114
        %v6117 = vunpack.c.l.s4 1934713408
        %v6118 = vunpack.c.0.s8 %v6117
        %v6119 = vlaneseq
        %v6120 = vshrl.u32 %v6119, 7
        %v6121 = vsub.s32 %v6118, %v6120
        %v6122 = vrot.slane %v6108, %v6121
        %v6123 = vcombine.high %v6099, 0.0
        %v6124 = vcombine.high %v6106, 0.0
        %v6125 = vcombine.high %v6115, 0.0
        %v6126 = vcombine.high %v6122, 0.0
        %v6127 = vcombine.high %v5696, 0.0
        %v6129 = vunpack.c.l.s4 1983009808
        %v6130 = vunpack.c.0.s8 %v6129
        %v6131 = vlaneseq
        %v6132 = vshrl.u32 %v6131, 7
        %v6133 = vsub.s32 %v6130, %v6132
        %v6134 = vrot.slane %v5696, %v6133
        %v6136 = vunpack.c.l.s4 1983009808
        %v6137 = vunpack.c.0.s8 %v6136
        %v6138 = vlaneseq
        %v6139 = vshrl.u32 %v6138, 7
        %v6140 = vsub.s32 %v6137, %v6139
        %v6141 = vrot.slane %v6127, %v6140
        %v6142 = vcombine.high %v5712, 0.0
        %v6144 = vunpack.c.l.s4 1983009808
        %v6145 = vunpack.c.0.s8 %v6144
        %v6146 = vlaneseq
        %v6147 = vshrl.u32 %v6146, 7
        %v6148 = vsub.s32 %v6145, %v6147
        %v6149 = vrot.slane %v5712, %v6148
        %v6151 = vunpack.c.l.s4 1983009808
        %v6152 = vunpack.c.0.s8 %v6151
        %v6153 = vlaneseq
        %v6154 = vshrl.u32 %v6153, 7
        %v6155 = vsub.s32 %v6152, %v6154
        %v6156 = vrot.slane %v6142, %v6155
        %v6157 = vcombine.low %v6134, %v6149
        %v6158 = vcombine.high %v6134, %v6149
        %v6160 = vunpack.c.l.s4 1934713408
        %v6161 = vunpack.c.0.s8 %v6160
        %v6162 = vlaneseq
        %v6163 = vshrl.u32 %v6162, 7
        %v6164 = vsub.s32 %v6161, %v6163
        %v6165 = vrot.slane %v6157, %v6164
        %v6167 = vunpack.c.l.s4 1934713408
        %v6168 = vunpack.c.0.s8 %v6167
        %v6169 = vlaneseq
        %v6170 = vshrl.u32 %v6169, 7
        %v6171 = vsub.s32 %v6168, %v6170
        %v6172 = vrot.slane %v6158, %v6171
        %v6173 = vcombine.low %v6141, %v6156
        %v6174 = vcombine.high %v6141, %v6156
        %v6176 = vunpack.c.l.s4 1934713408
        %v6177 = vunpack.c.0.s8 %v6176
        %v6178 = vlaneseq
        %v6179 = vshrl.u32 %v6178, 7
        %v6180 = vsub.s32 %v6177, %v6179
        %v6181 = vrot.slane %v6173, %v6180
        %v6183 = vunpack.c.l.s4 1934713408
        %v6184 = vunpack.c.0.s8 %v6183
        %v6185 = vlaneseq
        %v6186 = vshrl.u32 %v6185, 7
        %v6187 = vsub.s32 %v6184, %v6186
        %v6188 = vrot.slane %v6174, %v6187
        %v6189 = vcombine.high %v6165, 0.0
        %v6190 = vcombine.high %v6172, 0.0
        %v6191 = vcombine.high %v6181, 0.0
        %v6192 = vcombine.high %v6188, 0.0
        %v6193 = vcombine.high %v5698, 0.0
        %v6195 = vunpack.c.l.s4 1983009808
        %v6196 = vunpack.c.0.s8 %v6195
        %v6197 = vlaneseq
        %v6198 = vshrl.u32 %v6197, 7
        %v6199 = vsub.s32 %v6196, %v6198
        %v6200 = vrot.slane %v5698, %v6199
        %v6202 = vunpack.c.l.s4 1983009808
        %v6203 = vunpack.c.0.s8 %v6202
        %v6204 = vlaneseq
        %v6205 = vshrl.u32 %v6204, 7
        %v6206 = vsub.s32 %v6203, %v6205
        %v6207 = vrot.slane %v6193, %v6206
        %v6208 = vcombine.high %v5714, 0.0
        %v6210 = vunpack.c.l.s4 1983009808
        %v6211 = vunpack.c.0.s8 %v6210
        %v6212 = vlaneseq
        %v6213 = vshrl.u32 %v6212, 7
        %v6214 = vsub.s32 %v6211, %v6213
        %v6215 = vrot.slane %v5714, %v6214
        %v6217 = vunpack.c.l.s4 1983009808
        %v6218 = vunpack.c.0.s8 %v6217
        %v6219 = vlaneseq
        %v6220 = vshrl.u32 %v6219, 7
        %v6221 = vsub.s32 %v6218, %v6220
        %v6222 = vrot.slane %v6208, %v6221
        %v6223 = vcombine.low %v6200, %v6215
        %v6224 = vcombine.high %v6200, %v6215
        %v6226 = vunpack.c.l.s4 1934713408
        %v6227 = vunpack.c.0.s8 %v6226
        %v6228 = vlaneseq
        %v6229 = vshrl.u32 %v6228, 7
        %v6230 = vsub.s32 %v6227, %v6229
        %v6231 = vrot.slane %v6223, %v6230
        %v6233 = vunpack.c.l.s4 1934713408
        %v6234 = vunpack.c.0.s8 %v6233
        %v6235 = vlaneseq
        %v6236 = vshrl.u32 %v6235, 7
        %v6237 = vsub.s32 %v6234, %v6236
        %v6238 = vrot.slane %v6224, %v6237
        %v6239 = vcombine.low %v6207, %v6222
        %v6240 = vcombine.high %v6207, %v6222
        %v6242 = vunpack.c.l.s4 1934713408
        %v6243 = vunpack.c.0.s8 %v6242
        %v6244 = vlaneseq
        %v6245 = vshrl.u32 %v6244, 7
        %v6246 = vsub.s32 %v6243, %v6245
        %v6247 = vrot.slane %v6239, %v6246
        %v6249 = vunpack.c.l.s4 1934713408
        %v6250 = vunpack.c.0.s8 %v6249
        %v6251 = vlaneseq
        %v6252 = vshrl.u32 %v6251, 7
        %v6253 = vsub.s32 %v6250, %v6252
        %v6254 = vrot.slane %v6240, %v6253
        %v6255 = vcombine.high %v6231, 0.0
        %v6256 = vcombine.high %v6238, 0.0
        %v6257 = vcombine.high %v6247, 0.0
        %v6258 = vcombine.high %v6254, 0.0
        %v6259 = vcombine.low %v5769, %v5776
        %v6261 = vunpack.c.l.s4 1983009808
        %v6262 = vunpack.c.0.s8 %v6261
        %v6263 = vlaneseq
        %v6264 = vshrl.u32 %v6263, 7
        %v6265 = vsub.s32 %v6262, %v6264
        %v6266 = vrot.slane %v6259, %v6265
        %v6267 = vcombine.low %v5793, %v5794
        %v6269 = vunpack.c.l.s4 1983009808
        %v6270 = vunpack.c.0.s8 %v6269
        %v6271 = vlaneseq
        %v6272 = vshrl.u32 %v6271, 7
        %v6273 = vsub.s32 %v6270, %v6272
        %v6274 = vrot.slane %v6267, %v6273
        %v6275 = vcombine.low %v5785, %v5792
        %v6277 = vunpack.c.l.s4 1983009808
        %v6278 = vunpack.c.0.s8 %v6277
        %v6279 = vlaneseq
        %v6280 = vshrl.u32 %v6279, 7
        %v6281 = vsub.s32 %v6278, %v6280
        %v6282 = vrot.slane %v6275, %v6281
        %v6283 = vcombine.low %v5795, %v5796
        %v6285 = vunpack.c.l.s4 1983009808
        %v6286 = vunpack.c.0.s8 %v6285
        %v6287 = vlaneseq
        %v6288 = vshrl.u32 %v6287, 7
        %v6289 = vsub.s32 %v6286, %v6288
        %v6290 = vrot.slane %v6283, %v6289
        %v6291 = vcombine.low %v6266, %v6274
        %v6293 = vunpack.c.l.s4 1934713408
        %v6294 = vunpack.c.0.s8 %v6293
        %v6295 = vlaneseq
        %v6296 = vshrl.u32 %v6295, 7
        %v6297 = vsub.s32 %v6294, %v6296
        %v6298 = vrot.slane %v6291, %v6297
        %v6299 = vcombine.low %v6282, %v6290
        %v6301 = vunpack.c.l.s4 1934713408
        %v6302 = vunpack.c.0.s8 %v6301
        %v6303 = vlaneseq
        %v6304 = vshrl.u32 %v6303, 7
        %v6305 = vsub.s32 %v6302, %v6304
        %v6306 = vrot.slane %v6299, %v6305
        %v6307 = vcombine.low %v6298, %v6306
        %v6308 = vcombine.high %v6298, %v6306
        %v6309 = vcombine.low %v5835, %v5842
        %v6311 = vunpack.c.l.s4 1983009808
        %v6312 = vunpack.c.0.s8 %v6311
        %v6313 = vlaneseq
        %v6314 = vshrl.u32 %v6313, 7
        %v6315 = vsub.s32 %v6312, %v6314
        %v6316 = vrot.slane %v6309, %v6315
        %v6317 = vcombine.low %v5859, %v5860
        %v6319 = vunpack.c.l.s4 1983009808
        %v6320 = vunpack.c.0.s8 %v6319
        %v6321 = vlaneseq
        %v6322 = vshrl.u32 %v6321, 7
        %v6323 = vsub.s32 %v6320, %v6322
        %v6324 = vrot.slane %v6317, %v6323
        %v6325 = vcombine.low %v5851, %v5858
        %v6327 = vunpack.c.l.s4 1983009808
        %v6328 = vunpack.c.0.s8 %v6327
        %v6329 = vlaneseq
        %v6330 = vshrl.u32 %v6329, 7
        %v6331 = vsub.s32 %v6328, %v6330
        %v6332 = vrot.slane %v6325, %v6331
        %v6333 = vcombine.low %v5861, %v5862
        %v6335 = vunpack.c.l.s4 1983009808
        %v6336 = vunpack.c.0.s8 %v6335
        %v6337 = vlaneseq
        %v6338 = vshrl.u32 %v6337, 7
        %v6339 = vsub.s32 %v6336, %v6338
        %v6340 = vrot.slane %v6333, %v6339
        %v6341 = vcombine.low %v6316, %v6324
        %v6343 = vunpack.c.l.s4 1934713408
        %v6344 = vunpack.c.0.s8 %v6343
        %v6345 = vlaneseq
        %v6346 = vshrl.u32 %v6345, 7
        %v6347 = vsub.s32 %v6344, %v6346
        %v6348 = vrot.slane %v6341, %v6347
        %v6349 = vcombine.low %v6332, %v6340
        %v6351 = vunpack.c.l.s4 1934713408
        %v6352 = vunpack.c.0.s8 %v6351
        %v6353 = vlaneseq
        %v6354 = vshrl.u32 %v6353, 7
        %v6355 = vsub.s32 %v6352, %v6354
        %v6356 = vrot.slane %v6349, %v6355
        %v6357 = vcombine.low %v6348, %v6356
        %v6358 = vcombine.high %v6348, %v6356
        %v6359 = vcombine.low %v5901, %v5908
        %v6361 = vunpack.c.l.s4 1983009808
        %v6362 = vunpack.c.0.s8 %v6361
        %v6363 = vlaneseq
        %v6364 = vshrl.u32 %v6363, 7
        %v6365 = vsub.s32 %v6362, %v6364
        %v6366 = vrot.slane %v6359, %v6365
        %v6367 = vcombine.low %v5925, %v5926
        %v6369 = vunpack.c.l.s4 1983009808
        %v6370 = vunpack.c.0.s8 %v6369
        %v6371 = vlaneseq
        %v6372 = vshrl.u32 %v6371, 7
        %v6373 = vsub.s32 %v6370, %v6372
        %v6374 = vrot.slane %v6367, %v6373
        %v6375 = vcombine.low %v5917, %v5924
        %v6377 = vunpack.c.l.s4 1983009808
        %v6378 = vunpack.c.0.s8 %v6377
        %v6379 = vlaneseq
        %v6380 = vshrl.u32 %v6379, 7
        %v6381 = vsub.s32 %v6378, %v6380
        %v6382 = vrot.slane %v6375, %v6381
        %v6383 = vcombine.low %v5927, %v5928
        %v6385 = vunpack.c.l.s4 1983009808
        %v6386 = vunpack.c.0.s8 %v6385
        %v6387 = vlaneseq
        %v6388 = vshrl.u32 %v6387, 7
        %v6389 = vsub.s32 %v6386, %v6388
        %v6390 = vrot.slane %v6383, %v6389
        %v6391 = vcombine.low %v6366, %v6374
        %v6393 = vunpack.c.l.s4 1934713408
        %v6394 = vunpack.c.0.s8 %v6393
        %v6395 = vlaneseq
        %v6396 = vshrl.u32 %v6395, 7
        %v6397 = vsub.s32 %v6394, %v6396
        %v6398 = vrot.slane %v6391, %v6397
        %v6399 = vcombine.low %v6382, %v6390
        %v6401 = vunpack.c.l.s4 1934713408
        %v6402 = vunpack.c.0.s8 %v6401
        %v6403 = vlaneseq
        %v6404 = vshrl.u32 %v6403, 7
        %v6405 = vsub.s32 %v6402, %v6404
        %v6406 = vrot.slane %v6399, %v6405
        %v6407 = vcombine.low %v6398, %v6406
        %v6408 = vcombine.high %v6398, %v6406
        %v6409 = vcombine.low %v5967, %v5974
        %v6411 = vunpack.c.l.s4 1983009808
        %v6412 = vunpack.c.0.s8 %v6411
        %v6413 = vlaneseq
        %v6414 = vshrl.u32 %v6413, 7
        %v6415 = vsub.s32 %v6412, %v6414
        %v6416 = vrot.slane %v6409, %v6415
        %v6417 = vcombine.low %v5991, %v5992
        %v6419 = vunpack.c.l.s4 1983009808
        %v6420 = vunpack.c.0.s8 %v6419
        %v6421 = vlaneseq
        %v6422 = vshrl.u32 %v6421, 7
        %v6423 = vsub.s32 %v6420, %v6422
        %v6424 = vrot.slane %v6417, %v6423
        %v6425 = vcombine.low %v5983, %v5990
        %v6427 = vunpack.c.l.s4 1983009808
        %v6428 = vunpack.c.0.s8 %v6427
        %v6429 = vlaneseq
        %v6430 = vshrl.u32 %v6429, 7
        %v6431 = vsub.s32 %v6428, %v6430
        %v6432 = vrot.slane %v6425, %v6431
        %v6433 = vcombine.low %v5993, %v5994
        %v6435 = vunpack.c.l.s4 1983009808
        %v6436 = vunpack.c.0.s8 %v6435
        %v6437 = vlaneseq
        %v6438 = vshrl.u32 %v6437, 7
        %v6439 = vsub.s32 %v6436, %v6438
        %v6440 = vrot.slane %v6433, %v6439
        %v6441 = vcombine.low %v6416, %v6424
        %v6443 = vunpack.c.l.s4 1934713408
        %v6444 = vunpack.c.0.s8 %v6443
        %v6445 = vlaneseq
        %v6446 = vshrl.u32 %v6445, 7
        %v6447 = vsub.s32 %v6444, %v6446
        %v6448 = vrot.slane %v6441, %v6447
        %v6449 = vcombine.low %v6432, %v6440
        %v6451 = vunpack.c.l.s4 1934713408
        %v6452 = vunpack.c.0.s8 %v6451
        %v6453 = vlaneseq
        %v6454 = vshrl.u32 %v6453, 7
        %v6455 = vsub.s32 %v6452, %v6454
        %v6456 = vrot.slane %v6449, %v6455
        %v6457 = vcombine.low %v6448, %v6456
        %v6458 = vcombine.high %v6448, %v6456
        %v6459 = vcombine.low %v6033, %v6040
        %v6461 = vunpack.c.l.s4 1983009808
        %v6462 = vunpack.c.0.s8 %v6461
        %v6463 = vlaneseq
        %v6464 = vshrl.u32 %v6463, 7
        %v6465 = vsub.s32 %v6462, %v6464
        %v6466 = vrot.slane %v6459, %v6465
        %v6467 = vcombine.low %v6057, %v6058
        %v6469 = vunpack.c.l.s4 1983009808
        %v6470 = vunpack.c.0.s8 %v6469
        %v6471 = vlaneseq
        %v6472 = vshrl.u32 %v6471, 7
        %v6473 = vsub.s32 %v6470, %v6472
        %v6474 = vrot.slane %v6467, %v6473
        %v6475 = vcombine.low %v6049, %v6056
        %v6477 = vunpack.c.l.s4 1983009808
        %v6478 = vunpack.c.0.s8 %v6477
        %v6479 = vlaneseq
        %v6480 = vshrl.u32 %v6479, 7
        %v6481 = vsub.s32 %v6478, %v6480
        %v6482 = vrot.slane %v6475, %v6481
        %v6483 = vcombine.low %v6059, %v6060
        %v6485 = vunpack.c.l.s4 1983009808
        %v6486 = vunpack.c.0.s8 %v6485
        %v6487 = vlaneseq
        %v6488 = vshrl.u32 %v6487, 7
        %v6489 = vsub.s32 %v6486, %v6488
        %v6490 = vrot.slane %v6483, %v6489
        %v6491 = vcombine.low %v6466, %v6474
        %v6493 = vunpack.c.l.s4 1934713408
        %v6494 = vunpack.c.0.s8 %v6493
        %v6495 = vlaneseq
        %v6496 = vshrl.u32 %v6495, 7
        %v6497 = vsub.s32 %v6494, %v6496
        %v6498 = vrot.slane %v6491, %v6497
        %v6499 = vcombine.low %v6482, %v6490
        %v6501 = vunpack.c.l.s4 1934713408
        %v6502 = vunpack.c.0.s8 %v6501
        %v6503 = vlaneseq
        %v6504 = vshrl.u32 %v6503, 7
        %v6505 = vsub.s32 %v6502, %v6504
        %v6506 = vrot.slane %v6499, %v6505
        %v6507 = vcombine.low %v6498, %v6506
        %v6508 = vcombine.high %v6498, %v6506
        %v6509 = vcombine.low %v6099, %v6106
        %v6511 = vunpack.c.l.s4 1983009808
        %v6512 = vunpack.c.0.s8 %v6511
        %v6513 = vlaneseq
        %v6514 = vshrl.u32 %v6513, 7
        %v6515 = vsub.s32 %v6512, %v6514
        %v6516 = vrot.slane %v6509, %v6515
        %v6517 = vcombine.low %v6123, %v6124
        %v6519 = vunpack.c.l.s4 1983009808
        %v6520 = vunpack.c.0.s8 %v6519
        %v6521 = vlaneseq
        %v6522 = vshrl.u32 %v6521, 7
        %v6523 = vsub.s32 %v6520, %v6522
        %v6524 = vrot.slane %v6517, %v6523
        %v6525 = vcombine.low %v6115, %v6122
        %v6527 = vunpack.c.l.s4 1983009808
        %v6528 = vunpack.c.0.s8 %v6527
        %v6529 = vlaneseq
        %v6530 = vshrl.u32 %v6529, 7
        %v6531 = vsub.s32 %v6528, %v6530
        %v6532 = vrot.slane %v6525, %v6531
        %v6533 = vcombine.low %v6125, %v6126
        %v6535 = vunpack.c.l.s4 1983009808
        %v6536 = vunpack.c.0.s8 %v6535
        %v6537 = vlaneseq
        %v6538 = vshrl.u32 %v6537, 7
        %v6539 = vsub.s32 %v6536, %v6538
        %v6540 = vrot.slane %v6533, %v6539
        %v6541 = vcombine.low %v6516, %v6524
        %v6543 = vunpack.c.l.s4 1934713408
        %v6544 = vunpack.c.0.s8 %v6543
        %v6545 = vlaneseq
        %v6546 = vshrl.u32 %v6545, 7
        %v6547 = vsub.s32 %v6544, %v6546
        %v6548 = vrot.slane %v6541, %v6547
        %v6549 = vcombine.low %v6532, %v6540
        %v6551 = vunpack.c.l.s4 1934713408
        %v6552 = vunpack.c.0.s8 %v6551
        %v6553 = vlaneseq
        %v6554 = vshrl.u32 %v6553, 7
        %v6555 = vsub.s32 %v6552, %v6554
        %v6556 = vrot.slane %v6549, %v6555
        %v6557 = vcombine.low %v6548, %v6556
        %v6558 = vcombine.high %v6548, %v6556
        %v6559 = vcombine.low %v6165, %v6172
        %v6561 = vunpack.c.l.s4 1983009808
        %v6562 = vunpack.c.0.s8 %v6561
        %v6563 = vlaneseq
        %v6564 = vshrl.u32 %v6563, 7
        %v6565 = vsub.s32 %v6562, %v6564
        %v6566 = vrot.slane %v6559, %v6565
        %v6567 = vcombine.low %v6189, %v6190
        %v6569 = vunpack.c.l.s4 1983009808
        %v6570 = vunpack.c.0.s8 %v6569
        %v6571 = vlaneseq
        %v6572 = vshrl.u32 %v6571, 7
        %v6573 = vsub.s32 %v6570, %v6572
        %v6574 = vrot.slane %v6567, %v6573
        %v6575 = vcombine.low %v6181, %v6188
        %v6577 = vunpack.c.l.s4 1983009808
        %v6578 = vunpack.c.0.s8 %v6577
        %v6579 = vlaneseq
        %v6580 = vshrl.u32 %v6579, 7
        %v6581 = vsub.s32 %v6578, %v6580
        %v6582 = vrot.slane %v6575, %v6581
        %v6583 = vcombine.low %v6191, %v6192
        %v6585 = vunpack.c.l.s4 1983009808
        %v6586 = vunpack.c.0.s8 %v6585
        %v6587 = vlaneseq
        %v6588 = vshrl.u32 %v6587, 7
        %v6589 = vsub.s32 %v6586, %v6588
        %v6590 = vrot.slane %v6583, %v6589
        %v6591 = vcombine.low %v6566, %v6574
        %v6593 = vunpack.c.l.s4 1934713408
        %v6594 = vunpack.c.0.s8 %v6593
        %v6595 = vlaneseq
        %v6596 = vshrl.u32 %v6595, 7
        %v6597 = vsub.s32 %v6594, %v6596
        %v6598 = vrot.slane %v6591, %v6597
        %v6599 = vcombine.low %v6582, %v6590
        %v6601 = vunpack.c.l.s4 1934713408
        %v6602 = vunpack.c.0.s8 %v6601
        %v6603 = vlaneseq
        %v6604 = vshrl.u32 %v6603, 7
        %v6605 = vsub.s32 %v6602, %v6604
        %v6606 = vrot.slane %v6599, %v6605
        %v6607 = vcombine.low %v6598, %v6606
        %v6608 = vcombine.high %v6598, %v6606
        %v6609 = vcombine.low %v6231, %v6238
        %v6611 = vunpack.c.l.s4 1983009808
        %v6612 = vunpack.c.0.s8 %v6611
        %v6613 = vlaneseq
        %v6614 = vshrl.u32 %v6613, 7
        %v6615 = vsub.s32 %v6612, %v6614
        %v6616 = vrot.slane %v6609, %v6615
        %v6617 = vcombine.low %v6255, %v6256
        %v6619 = vunpack.c.l.s4 1983009808
        %v6620 = vunpack.c.0.s8 %v6619
        %v6621 = vlaneseq
        %v6622 = vshrl.u32 %v6621, 7
        %v6623 = vsub.s32 %v6620, %v6622
        %v6624 = vrot.slane %v6617, %v6623
        %v6625 = vcombine.low %v6247, %v6254
        %v6627 = vunpack.c.l.s4 1983009808
        %v6628 = vunpack.c.0.s8 %v6627
        %v6629 = vlaneseq
        %v6630 = vshrl.u32 %v6629, 7
        %v6631 = vsub.s32 %v6628, %v6630
        %v6632 = vrot.slane %v6625, %v6631
        %v6633 = vcombine.low %v6257, %v6258
        %v6635 = vunpack.c.l.s4 1983009808
        %v6636 = vunpack.c.0.s8 %v6635
        %v6637 = vlaneseq
        %v6638 = vshrl.u32 %v6637, 7
        %v6639 = vsub.s32 %v6636, %v6638
        %v6640 = vrot.slane %v6633, %v6639
        %v6641 = vcombine.low %v6616, %v6624
        %v6643 = vunpack.c.l.s4 1934713408
        %v6644 = vunpack.c.0.s8 %v6643
        %v6645 = vlaneseq
        %v6646 = vshrl.u32 %v6645, 7
        %v6647 = vsub.s32 %v6644, %v6646
        %v6648 = vrot.slane %v6641, %v6647
        %v6649 = vcombine.low %v6632, %v6640
        %v6651 = vunpack.c.l.s4 1934713408
        %v6652 = vunpack.c.0.s8 %v6651
        %v6653 = vlaneseq
        %v6654 = vshrl.u32 %v6653, 7
        %v6655 = vsub.s32 %v6652, %v6654
        %v6656 = vrot.slane %v6649, %v6655
        %v6657 = vcombine.low %v6648, %v6656
        %v6658 = vcombine.high %v6648, %v6656
        %v6659 = vcombine.high %v6307, 0.0
        %v6661 = vunpack.c.l.s4 1983009808
        %v6662 = vunpack.c.0.s8 %v6661
        %v6663 = vlaneseq
        %v6664 = vshrl.u32 %v6663, 7
        %v6665 = vsub.s32 %v6662, %v6664
        %v6666 = vrot.slane %v6307, %v6665
        %v6668 = vunpack.c.l.s4 1983009808
        %v6669 = vunpack.c.0.s8 %v6668
        %v6670 = vlaneseq
        %v6671 = vshrl.u32 %v6670, 7
        %v6672 = vsub.s32 %v6669, %v6671
        %v6673 = vrot.slane %v6659, %v6672
        %v6674 = vcombine.high %v6308, 0.0
        %v6676 = vunpack.c.l.s4 1983009808
        %v6677 = vunpack.c.0.s8 %v6676
        %v6678 = vlaneseq
        %v6679 = vshrl.u32 %v6678, 7
        %v6680 = vsub.s32 %v6677, %v6679
        %v6681 = vrot.slane %v6308, %v6680
        %v6683 = vunpack.c.l.s4 1983009808
        %v6684 = vunpack.c.0.s8 %v6683
        %v6685 = vlaneseq
        %v6686 = vshrl.u32 %v6685, 7
        %v6687 = vsub.s32 %v6684, %v6686
        %v6688 = vrot.slane %v6674, %v6687
        %v6689 = vcombine.low %v6666, %v6681
        %v6690 = vcombine.high %v6666, %v6681
        %v6692 = vunpack.c.l.s4 1934713408
        %v6693 = vunpack.c.0.s8 %v6692
        %v6694 = vlaneseq
        %v6695 = vshrl.u32 %v6694, 7
        %v6696 = vsub.s32 %v6693, %v6695
        %v6697 = vrot.slane %v6689, %v6696
        %v6699 = vunpack.c.l.s4 1934713408
        %v6700 = vunpack.c.0.s8 %v6699
        %v6701 = vlaneseq
        %v6702 = vshrl.u32 %v6701, 7
        %v6703 = vsub.s32 %v6700, %v6702
        %v6704 = vrot.slane %v6690, %v6703
        %v6705 = vcombine.low %v6673, %v6688
        %v6706 = vcombine.high %v6673, %v6688
        %v6708 = vunpack.c.l.s4 1934713408
        %v6709 = vunpack.c.0.s8 %v6708
        %v6710 = vlaneseq
        %v6711 = vshrl.u32 %v6710, 7
        %v6712 = vsub.s32 %v6709, %v6711
        %v6713 = vrot.slane %v6705, %v6712
        %v6715 = vunpack.c.l.s4 1934713408
        %v6716 = vunpack.c.0.s8 %v6715
        %v6717 = vlaneseq
        %v6718 = vshrl.u32 %v6717, 7
        %v6719 = vsub.s32 %v6716, %v6718
        %v6720 = vrot.slane %v6706, %v6719
        %v6721 = vcombine.high %v6697, 0.0
        %v6722 = vcombine.high %v6704, 0.0
        %v6723 = vcombine.high %v6713, 0.0
        %v6724 = vcombine.high %v6720, 0.0
        %v6725 = vcombine.high %v6357, 0.0
        %v6727 = vunpack.c.l.s4 1983009808
        %v6728 = vunpack.c.0.s8 %v6727
        %v6729 = vlaneseq
        %v6730 = vshrl.u32 %v6729, 7
        %v6731 = vsub.s32 %v6728, %v6730
        %v6732 = vrot.slane %v6357, %v6731
        %v6734 = vunpack.c.l.s4 1983009808
        %v6735 = vunpack.c.0.s8 %v6734
        %v6736 = vlaneseq
        %v6737 = vshrl.u32 %v6736, 7
        %v6738 = vsub.s32 %v6735, %v6737
        %v6739 = vrot.slane %v6725, %v6738
        %v6740 = vcombine.high %v6358, 0.0
        %v6742 = vunpack.c.l.s4 1983009808
        %v6743 = vunpack.c.0.s8 %v6742
        %v6744 = vlaneseq
        %v6745 = vshrl.u32 %v6744, 7
        %v6746 = vsub.s32 %v6743, %v6745
        %v6747 = vrot.slane %v6358, %v6746
        %v6749 = vunpack.c.l.s4 1983009808
        %v6750 = vunpack.c.0.s8 %v6749
        %v6751 = vlaneseq
        %v6752 = vshrl.u32 %v6751, 7
        %v6753 = vsub.s32 %v6750, %v6752
        %v6754 = vrot.slane %v6740, %v6753
        %v6755 = vcombine.low %v6732, %v6747
        %v6756 = vcombine.high %v6732, %v6747
        %v6758 = vunpack.c.l.s4 1934713408
        %v6759 = vunpack.c.0.s8 %v6758
        %v6760 = vlaneseq
        %v6761 = vshrl.u32 %v6760, 7
        %v6762 = vsub.s32 %v6759, %v6761
        %v6763 = vrot.slane %v6755, %v6762
        %v6765 = vunpack.c.l.s4 1934713408
        %v6766 = vunpack.c.0.s8 %v6765
        %v6767 = vlaneseq
        %v6768 = vshrl.u32 %v6767, 7
        %v6769 = vsub.s32 %v6766, %v6768
        %v6770 = vrot.slane %v6756, %v6769
        %v6771 = vcombine.low %v6739, %v6754
        %v6772 = vcombine.high %v6739, %v6754
        %v6774 = vunpack.c.l.s4 1934713408
        %v6775 = vunpack.c.0.s8 %v6774
        %v6776 = vlaneseq
        %v6777 = vshrl.u32 %v6776, 7
        %v6778 = vsub.s32 %v6775, %v6777
        %v6779 = vrot.slane %v6771, %v6778
        %v6781 = vunpack.c.l.s4 1934713408
        %v6782 = vunpack.c.0.s8 %v6781
        %v6783 = vlaneseq
        %v6784 = vshrl.u32 %v6783, 7
        %v6785 = vsub.s32 %v6782, %v6784
        %v6786 = vrot.slane %v6772, %v6785
        %v6787 = vcombine.high %v6763, 0.0
        %v6788 = vcombine.high %v6770, 0.0
        %v6789 = vcombine.high %v6779, 0.0
        %v6790 = vcombine.high %v6786, 0.0
        %v6791 = vcombine.high %v6407, 0.0
        %v6793 = vunpack.c.l.s4 1983009808
        %v6794 = vunpack.c.0.s8 %v6793
        %v6795 = vlaneseq
        %v6796 = vshrl.u32 %v6795, 7
        %v6797 = vsub.s32 %v6794, %v6796
        %v6798 = vrot.slane %v6407, %v6797
        %v6800 = vunpack.c.l.s4 1983009808
        %v6801 = vunpack.c.0.s8 %v6800
        %v6802 = vlaneseq
        %v6803 = vshrl.u32 %v6802, 7
        %v6804 = vsub.s32 %v6801, %v6803
        %v6805 = vrot.slane %v6791, %v6804
        %v6806 = vcombine.high %v6408, 0.0
        %v6808 = vunpack.c.l.s4 1983009808
        %v6809 = vunpack.c.0.s8 %v6808
        %v6810 = vlaneseq
        %v6811 = vshrl.u32 %v6810, 7
        %v6812 = vsub.s32 %v6809, %v6811
        %v6813 = vrot.slane %v6408, %v6812
        %v6815 = vunpack.c.l.s4 1983009808
        %v6816 = vunpack.c.0.s8 %v6815
        %v6817 = vlaneseq
        %v6818 = vshrl.u32 %v6817, 7
        %v6819 = vsub.s32 %v6816, %v6818
        %v6820 = vrot.slane %v6806, %v6819
        %v6821 = vcombine.low %v6798, %v6813
        %v6822 = vcombine.high %v6798, %v6813
        %v6824 = vunpack.c.l.s4 1934713408
        %v6825 = vunpack.c.0.s8 %v6824
        %v6826 = vlaneseq
        %v6827 = vshrl.u32 %v6826, 7
        %v6828 = vsub.s32 %v6825, %v6827
        %v6829 = vrot.slane %v6821, %v6828
        %v6831 = vunpack.c.l.s4 1934713408
        %v6832 = vunpack.c.0.s8 %v6831
        %v6833 = vlaneseq
        %v6834 = vshrl.u32 %v6833, 7
        %v6835 = vsub.s32 %v6832, %v6834
        %v6836 = vrot.slane %v6822, %v6835
        %v6837 = vcombine.low %v6805, %v6820
        %v6838 = vcombine.high %v6805, %v6820
        %v6840 = vunpack.c.l.s4 1934713408
        %v6841 = vunpack.c.0.s8 %v6840
        %v6842 = vlaneseq
        %v6843 = vshrl.u32 %v6842, 7
        %v6844 = vsub.s32 %v6841, %v6843
        %v6845 = vrot.slane %v6837, %v6844
        %v6847 = vunpack.c.l.s4 1934713408
        %v6848 = vunpack.c.0.s8 %v6847
        %v6849 = vlaneseq
        %v6850 = vshrl.u32 %v6849, 7
        %v6851 = vsub.s32 %v6848, %v6850
        %v6852 = vrot.slane %v6838, %v6851
        %v6853 = vcombine.high %v6829, 0.0
        %v6854 = vcombine.high %v6836, 0.0
        %v6855 = vcombine.high %v6845, 0.0
        %v6856 = vcombine.high %v6852, 0.0
        %v6857 = vcombine.high %v6457, 0.0
        %v6859 = vunpack.c.l.s4 1983009808
        %v6860 = vunpack.c.0.s8 %v6859
        %v6861 = vlaneseq
        %v6862 = vshrl.u32 %v6861, 7
        %v6863 = vsub.s32 %v6860, %v6862
        %v6864 = vrot.slane %v6457, %v6863
        %v6866 = vunpack.c.l.s4 1983009808
        %v6867 = vunpack.c.0.s8 %v6866
        %v6868 = vlaneseq
        %v6869 = vshrl.u32 %v6868, 7
        %v6870 = vsub.s32 %v6867, %v6869
        %v6871 = vrot.slane %v6857, %v6870
        %v6872 = vcombine.high %v6458, 0.0
        %v6874 = vunpack.c.l.s4 1983009808
        %v6875 = vunpack.c.0.s8 %v6874
        %v6876 = vlaneseq
        %v6877 = vshrl.u32 %v6876, 7
        %v6878 = vsub.s32 %v6875, %v6877
        %v6879 = vrot.slane %v6458, %v6878
        %v6881 = vunpack.c.l.s4 1983009808
        %v6882 = vunpack.c.0.s8 %v6881
        %v6883 = vlaneseq
        %v6884 = vshrl.u32 %v6883, 7
        %v6885 = vsub.s32 %v6882, %v6884
        %v6886 = vrot.slane %v6872, %v6885
        %v6887 = vcombine.low %v6864, %v6879
        %v6888 = vcombine.high %v6864, %v6879
        %v6890 = vunpack.c.l.s4 1934713408
        %v6891 = vunpack.c.0.s8 %v6890
        %v6892 = vlaneseq
        %v6893 = vshrl.u32 %v6892, 7
        %v6894 = vsub.s32 %v6891, %v6893
        %v6895 = vrot.slane %v6887, %v6894
        %v6897 = vunpack.c.l.s4 1934713408
        %v6898 = vunpack.c.0.s8 %v6897
        %v6899 = vlaneseq
        %v6900 = vshrl.u32 %v6899, 7
        %v6901 = vsub.s32 %v6898, %v6900
        %v6902 = vrot.slane %v6888, %v6901
        %v6903 = vcombine.low %v6871, %v6886
        %v6904 = vcombine.high %v6871, %v6886
        %v6906 = vunpack.c.l.s4 1934713408
        %v6907 = vunpack.c.0.s8 %v6906
        %v6908 = vlaneseq
        %v6909 = vshrl.u32 %v6908, 7
        %v6910 = vsub.s32 %v6907, %v6909
        %v6911 = vrot.slane %v6903, %v6910
        %v6913 = vunpack.c.l.s4 1934713408
        %v6914 = vunpack.c.0.s8 %v6913
        %v6915 = vlaneseq
        %v6916 = vshrl.u32 %v6915, 7
        %v6917 = vsub.s32 %v6914, %v6916
        %v6918 = vrot.slane %v6904, %v6917
        %v6919 = vcombine.high %v6895, 0.0
        %v6920 = vcombine.high %v6902, 0.0
        %v6921 = vcombine.high %v6911, 0.0
        %v6922 = vcombine.high %v6918, 0.0
        %v6923 = vcombine.high %v6507, 0.0
        %v6925 = vunpack.c.l.s4 1983009808
        %v6926 = vunpack.c.0.s8 %v6925
        %v6927 = vlaneseq
        %v6928 = vshrl.u32 %v6927, 7
        %v6929 = vsub.s32 %v6926, %v6928
        %v6930 = vrot.slane %v6507, %v6929
        %v6932 = vunpack.c.l.s4 1983009808
        %v6933 = vunpack.c.0.s8 %v6932
        %v6934 = vlaneseq
        %v6935 = vshrl.u32 %v6934, 7
        %v6936 = vsub.s32 %v6933, %v6935
        %v6937 = vrot.slane %v6923, %v6936
        %v6938 = vcombine.high %v6508, 0.0
        %v6940 = vunpack.c.l.s4 1983009808
        %v6941 = vunpack.c.0.s8 %v6940
        %v6942 = vlaneseq
        %v6943 = vshrl.u32 %v6942, 7
        %v6944 = vsub.s32 %v6941, %v6943
        %v6945 = vrot.slane %v6508, %v6944
        %v6947 = vunpack.c.l.s4 1983009808
        %v6948 = vunpack.c.0.s8 %v6947
        %v6949 = vlaneseq
        %v6950 = vshrl.u32 %v6949, 7
        %v6951 = vsub.s32 %v6948, %v6950
        %v6952 = vrot.slane %v6938, %v6951
        %v6953 = vcombine.low %v6930, %v6945
        %v6954 = vcombine.high %v6930, %v6945
        %v6956 = vunpack.c.l.s4 1934713408
        %v6957 = vunpack.c.0.s8 %v6956
        %v6958 = vlaneseq
        %v6959 = vshrl.u32 %v6958, 7
        %v6960 = vsub.s32 %v6957, %v6959
        %v6961 = vrot.slane %v6953, %v6960
        %v6963 = vunpack.c.l.s4 1934713408
        %v6964 = vunpack.c.0.s8 %v6963
        %v6965 = vlaneseq
        %v6966 = vshrl.u32 %v6965, 7
        %v6967 = vsub.s32 %v6964, %v6966
        %v6968 = vrot.slane %v6954, %v6967
        %v6969 = vcombine.low %v6937, %v6952
        %v6970 = vcombine.high %v6937, %v6952
        %v6972 = vunpack.c.l.s4 1934713408
        %v6973 = vunpack.c.0.s8 %v6972
        %v6974 = vlaneseq
        %v6975 = vshrl.u32 %v6974, 7
        %v6976 = vsub.s32 %v6973, %v6975
        %v6977 = vrot.slane %v6969, %v6976
        %v6979 = vunpack.c.l.s4 1934713408
        %v6980 = vunpack.c.0.s8 %v6979
        %v6981 = vlaneseq
        %v6982 = vshrl.u32 %v6981, 7
        %v6983 = vsub.s32 %v6980, %v6982
        %v6984 = vrot.slane %v6970, %v6983
        %v6985 = vcombine.high %v6961, 0.0
        %v6986 = vcombine.high %v6968, 0.0
        %v6987 = vcombine.high %v6977, 0.0
        %v6988 = vcombine.high %v6984, 0.0
        %v6989 = vcombine.high %v6557, 0.0
        %v6991 = vunpack.c.l.s4 1983009808
        %v6992 = vunpack.c.0.s8 %v6991
        %v6993 = vlaneseq
        %v6994 = vshrl.u32 %v6993, 7
        %v6995 = vsub.s32 %v6992, %v6994
        %v6996 = vrot.slane %v6557, %v6995
        %v6998 = vunpack.c.l.s4 1983009808
        %v6999 = vunpack.c.0.s8 %v6998
        %v7000 = vlaneseq
        %v7001 = vshrl.u32 %v7000, 7
        %v7002 = vsub.s32 %v6999, %v7001
        %v7003 = vrot.slane %v6989, %v7002
        %v7004 = vcombine.high %v6558, 0.0
        %v7006 = vunpack.c.l.s4 1983009808
        %v7007 = vunpack.c.0.s8 %v7006
        %v7008 = vlaneseq
        %v7009 = vshrl.u32 %v7008, 7
        %v7010 = vsub.s32 %v7007, %v7009
        %v7011 = vrot.slane %v6558, %v7010
        %v7013 = vunpack.c.l.s4 1983009808
        %v7014 = vunpack.c.0.s8 %v7013
        %v7015 = vlaneseq
        %v7016 = vshrl.u32 %v7015, 7
        %v7017 = vsub.s32 %v7014, %v7016
        %v7018 = vrot.slane %v7004, %v7017
        %v7019 = vcombine.low %v6996, %v7011
        %v7020 = vcombine.high %v6996, %v7011
        %v7022 = vunpack.c.l.s4 1934713408
        %v7023 = vunpack.c.0.s8 %v7022
        %v7024 = vlaneseq
        %v7025 = vshrl.u32 %v7024, 7
        %v7026 = vsub.s32 %v7023, %v7025
        %v7027 = vrot.slane %v7019, %v7026
        %v7029 = vunpack.c.l.s4 1934713408
        %v7030 = vunpack.c.0.s8 %v7029
        %v7031 = vlaneseq
        %v7032 = vshrl.u32 %v7031, 7
        %v7033 = vsub.s32 %v7030, %v7032
        %v7034 = vrot.slane %v7020, %v7033
        %v7035 = vcombine.low %v7003, %v7018
        %v7036 = vcombine.high %v7003, %v7018
        %v7038 = vunpack.c.l.s4 1934713408
        %v7039 = vunpack.c.0.s8 %v7038
        %v7040 = vlaneseq
        %v7041 = vshrl.u32 %v7040, 7
        %v7042 = vsub.s32 %v7039, %v7041
        %v7043 = vrot.slane %v7035, %v7042
        %v7045 = vunpack.c.l.s4 1934713408
        %v7046 = vunpack.c.0.s8 %v7045
        %v7047 = vlaneseq
        %v7048 = vshrl.u32 %v7047, 7
        %v7049 = vsub.s32 %v7046, %v7048
        %v7050 = vrot.slane %v7036, %v7049
        %v7051 = vcombine.high %v7027, 0.0
        %v7052 = vcombine.high %v7034, 0.0
        %v7053 = vcombine.high %v7043, 0.0
        %v7054 = vcombine.high %v7050, 0.0
        %v7055 = vcombine.high %v6607, 0.0
        %v7057 = vunpack.c.l.s4 1983009808
        %v7058 = vunpack.c.0.s8 %v7057
        %v7059 = vlaneseq
        %v7060 = vshrl.u32 %v7059, 7
        %v7061 = vsub.s32 %v7058, %v7060
        %v7062 = vrot.slane %v6607, %v7061
        %v7064 = vunpack.c.l.s4 1983009808
        %v7065 = vunpack.c.0.s8 %v7064
        %v7066 = vlaneseq
        %v7067 = vshrl.u32 %v7066, 7
        %v7068 = vsub.s32 %v7065, %v7067
        %v7069 = vrot.slane %v7055, %v7068
        %v7070 = vcombine.high %v6608, 0.0
        %v7072 = vunpack.c.l.s4 1983009808
        %v7073 = vunpack.c.0.s8 %v7072
        %v7074 = vlaneseq
        %v7075 = vshrl.u32 %v7074, 7
        %v7076 = vsub.s32 %v7073, %v7075
        %v7077 = vrot.slane %v6608, %v7076
        %v7079 = vunpack.c.l.s4 1983009808
        %v7080 = vunpack.c.0.s8 %v7079
        %v7081 = vlaneseq
        %v7082 = vshrl.u32 %v7081, 7
        %v7083 = vsub.s32 %v7080, %v7082
        %v7084 = vrot.slane %v7070, %v7083
        %v7085 = vcombine.low %v7062, %v7077
        %v7086 = vcombine.high %v7062, %v7077
        %v7088 = vunpack.c.l.s4 1934713408
        %v7089 = vunpack.c.0.s8 %v7088
        %v7090 = vlaneseq
        %v7091 = vshrl.u32 %v7090, 7
        %v7092 = vsub.s32 %v7089, %v7091
        %v7093 = vrot.slane %v7085, %v7092
        %v7095 = vunpack.c.l.s4 1934713408
        %v7096 = vunpack.c.0.s8 %v7095
        %v7097 = vlaneseq
        %v7098 = vshrl.u32 %v7097, 7
        %v7099 = vsub.s32 %v7096, %v7098
        %v7100 = vrot.slane %v7086, %v7099
        %v7101 = vcombine.low %v7069, %v7084
        %v7102 = vcombine.high %v7069, %v7084
        %v7104 = vunpack.c.l.s4 1934713408
        %v7105 = vunpack.c.0.s8 %v7104
        %v7106 = vlaneseq
        %v7107 = vshrl.u32 %v7106, 7
        %v7108 = vsub.s32 %v7105, %v7107
        %v7109 = vrot.slane %v7101, %v7108
        %v7111 = vunpack.c.l.s4 1934713408
        %v7112 = vunpack.c.0.s8 %v7111
        %v7113 = vlaneseq
        %v7114 = vshrl.u32 %v7113, 7
        %v7115 = vsub.s32 %v7112, %v7114
        %v7116 = vrot.slane %v7102, %v7115
        %v7117 = vcombine.high %v7093, 0.0
        %v7118 = vcombine.high %v7100, 0.0
        %v7119 = vcombine.high %v7109, 0.0
        %v7120 = vcombine.high %v7116, 0.0
        %v7121 = vcombine.high %v6657, 0.0
        %v7123 = vunpack.c.l.s4 1983009808
        %v7124 = vunpack.c.0.s8 %v7123
        %v7125 = vlaneseq
        %v7126 = vshrl.u32 %v7125, 7
        %v7127 = vsub.s32 %v7124, %v7126
        %v7128 = vrot.slane %v6657, %v7127
        %v7130 = vunpack.c.l.s4 1983009808
        %v7131 = vunpack.c.0.s8 %v7130
        %v7132 = vlaneseq
        %v7133 = vshrl.u32 %v7132, 7
        %v7134 = vsub.s32 %v7131, %v7133
        %v7135 = vrot.slane %v7121, %v7134
        %v7136 = vcombine.high %v6658, 0.0
        %v7138 = vunpack.c.l.s4 1983009808
        %v7139 = vunpack.c.0.s8 %v7138
        %v7140 = vlaneseq
        %v7141 = vshrl.u32 %v7140, 7
        %v7142 = vsub.s32 %v7139, %v7141
        %v7143 = vrot.slane %v6658, %v7142
        %v7145 = vunpack.c.l.s4 1983009808
        %v7146 = vunpack.c.0.s8 %v7145
        %v7147 = vlaneseq
        %v7148 = vshrl.u32 %v7147, 7
        %v7149 = vsub.s32 %v7146, %v7148
        %v7150 = vrot.slane %v7136, %v7149
        %v7151 = vcombine.low %v7128, %v7143
        %v7152 = vcombine.high %v7128, %v7143
        %v7154 = vunpack.c.l.s4 1934713408
        %v7155 = vunpack.c.0.s8 %v7154
        %v7156 = vlaneseq
        %v7157 = vshrl.u32 %v7156, 7
        %v7158 = vsub.s32 %v7155, %v7157
        %v7159 = vrot.slane %v7151, %v7158
        %v7161 = vunpack.c.l.s4 1934713408
        %v7162 = vunpack.c.0.s8 %v7161
        %v7163 = vlaneseq
        %v7164 = vshrl.u32 %v7163, 7
        %v7165 = vsub.s32 %v7162, %v7164
        %v7166 = vrot.slane %v7152, %v7165
        %v7167 = vcombine.low %v7135, %v7150
        %v7168 = vcombine.high %v7135, %v7150
        %v7170 = vunpack.c.l.s4 1934713408
        %v7171 = vunpack.c.0.s8 %v7170
        %v7172 = vlaneseq
        %v7173 = vshrl.u32 %v7172, 7
        %v7174 = vsub.s32 %v7171, %v7173
        %v7175 = vrot.slane %v7167, %v7174
        %v7177 = vunpack.c.l.s4 1934713408
        %v7178 = vunpack.c.0.s8 %v7177
        %v7179 = vlaneseq
        %v7180 = vshrl.u32 %v7179, 7
        %v7181 = vsub.s32 %v7178, %v7180
        %v7182 = vrot.slane %v7168, %v7181
        %v7183 = vcombine.high %v7159, 0.0
        %v7184 = vcombine.high %v7166, 0.0
        %v7185 = vcombine.high %v7175, 0.0
        %v7186 = vcombine.high %v7182, 0.0
        %7195 = vrot.lane.b32.xlu0 %v6721, 2
        %v7196 = vpop.permute.xlu0 %7195
        %7197 = vrot.lane.b32.xlu0 %v6787, 2
        %v7198 = vpop.permute.xlu0 %7197
        %7199 = vrot.lane.b32.xlu0 %v6853, 2
        %v7200 = vpop.permute.xlu0 %7199
        %7201 = vrot.lane.b32.xlu0 %v6919, 2
        %v7202 = vpop.permute.xlu0 %7201
        %7203 = vrot.lane.b32.xlu0 %v6985, 2
        %v7204 = vpop.permute.xlu0 %7203
        %7205 = vrot.lane.b32.xlu0 %v7051, 2
        %v7206 = vpop.permute.xlu0 %7205
        %7207 = vrot.lane.b32.xlu0 %v7117, 2
        %v7208 = vpop.permute.xlu0 %7207
        %7209 = vrot.lane.b32.xlu0 %v7183, 2
        %v7210 = vpop.permute.xlu0 %7209
        %7227 = vrot.lane.b32.xlu0 %v6704, 4
        %v7228 = vpop.permute.xlu0 %7227
        %7229 = vrot.lane.b32.xlu0 %v6770, 4
        %v7230 = vpop.permute.xlu0 %7229
        %7231 = vrot.lane.b32.xlu0 %v6836, 4
        %v7232 = vpop.permute.xlu0 %7231
        %7233 = vrot.lane.b32.xlu0 %v6902, 4
        %v7234 = vpop.permute.xlu0 %7233
        %7235 = vrot.lane.b32.xlu0 %v6968, 4
        %v7236 = vpop.permute.xlu0 %7235
        %7237 = vrot.lane.b32.xlu0 %v7034, 4
        %v7238 = vpop.permute.xlu0 %7237
        %7239 = vrot.lane.b32.xlu0 %v7100, 4
        %v7240 = vpop.permute.xlu0 %7239
        %7241 = vrot.lane.b32.xlu0 %v7166, 4
        %v7242 = vpop.permute.xlu0 %7241
        %7259 = vrot.lane.b32.xlu0 %v6722, 6
        %v7260 = vpop.permute.xlu0 %7259
        %7261 = vrot.lane.b32.xlu0 %v6788, 6
        %v7262 = vpop.permute.xlu0 %7261
        %7263 = vrot.lane.b32.xlu0 %v6854, 6
        %v7264 = vpop.permute.xlu0 %7263
        %7265 = vrot.lane.b32.xlu0 %v6920, 6
        %v7266 = vpop.permute.xlu0 %7265
        %7267 = vrot.lane.b32.xlu0 %v6986, 6
        %v7268 = vpop.permute.xlu0 %7267
        %7269 = vrot.lane.b32.xlu0 %v7052, 6
        %v7270 = vpop.permute.xlu0 %7269
        %7271 = vrot.lane.b32.xlu0 %v7118, 6
        %v7272 = vpop.permute.xlu0 %7271
        %7273 = vrot.lane.b32.xlu0 %v7184, 6
        %v7274 = vpop.permute.xlu0 %7273
        %7291 = vrot.lane.b32.xlu0 %v6713, 8
        %v7292 = vpop.permute.xlu0 %7291
        %7293 = vrot.lane.b32.xlu0 %v6779, 8
        %v7294 = vpop.permute.xlu0 %7293
        %7295 = vrot.lane.b32.xlu0 %v6845, 8
        %v7296 = vpop.permute.xlu0 %7295
        %7297 = vrot.lane.b32.xlu0 %v6911, 8
        %v7298 = vpop.permute.xlu0 %7297
        %7299 = vrot.lane.b32.xlu0 %v6977, 8
        %v7300 = vpop.permute.xlu0 %7299
        %7301 = vrot.lane.b32.xlu0 %v7043, 8
        %v7302 = vpop.permute.xlu0 %7301
        %7303 = vrot.lane.b32.xlu0 %v7109, 8
        %v7304 = vpop.permute.xlu0 %7303
        %7305 = vrot.lane.b32.xlu0 %v7175, 8
        %v7306 = vpop.permute.xlu0 %7305
        %7323 = vrot.lane.b32.xlu0 %v6723, 10
        %v7324 = vpop.permute.xlu0 %7323
        %7325 = vrot.lane.b32.xlu0 %v6789, 10
        %v7326 = vpop.permute.xlu0 %7325
        %7327 = vrot.lane.b32.xlu0 %v6855, 10
        %v7328 = vpop.permute.xlu0 %7327
        %7329 = vrot.lane.b32.xlu0 %v6921, 10
        %v7330 = vpop.permute.xlu0 %7329
        %7331 = vrot.lane.b32.xlu0 %v6987, 10
        %v7332 = vpop.permute.xlu0 %7331
        %7333 = vrot.lane.b32.xlu0 %v7053, 10
        %v7334 = vpop.permute.xlu0 %7333
        %7335 = vrot.lane.b32.xlu0 %v7119, 10
        %v7336 = vpop.permute.xlu0 %7335
        %7337 = vrot.lane.b32.xlu0 %v7185, 10
        %v7338 = vpop.permute.xlu0 %7337
        %7355 = vrot.lane.b32.xlu0 %v6720, 12
        %v7356 = vpop.permute.xlu0 %7355
        %7357 = vrot.lane.b32.xlu0 %v6786, 12
        %v7358 = vpop.permute.xlu0 %7357
        %7359 = vrot.lane.b32.xlu0 %v6852, 12
        %v7360 = vpop.permute.xlu0 %7359
        %7361 = vrot.lane.b32.xlu0 %v6918, 12
        %v7362 = vpop.permute.xlu0 %7361
        %7363 = vrot.lane.b32.xlu0 %v6984, 12
        %v7364 = vpop.permute.xlu0 %7363
        %7365 = vrot.lane.b32.xlu0 %v7050, 12
        %v7366 = vpop.permute.xlu0 %7365
        %7367 = vrot.lane.b32.xlu0 %v7116, 12
        %v7368 = vpop.permute.xlu0 %7367
        %7369 = vrot.lane.b32.xlu0 %v7182, 12
        %v7370 = vpop.permute.xlu0 %7369
        %7387 = vrot.lane.b32.xlu0 %v6724, 14
        %v7388 = vpop.permute.xlu0 %7387
        %7389 = vrot.lane.b32.xlu0 %v6790, 14
        %v7390 = vpop.permute.xlu0 %7389
        %7391 = vrot.lane.b32.xlu0 %v6856, 14
        %v7392 = vpop.permute.xlu0 %7391
        %7393 = vrot.lane.b32.xlu0 %v6922, 14
        %v7394 = vpop.permute.xlu0 %7393
        %7395 = vrot.lane.b32.xlu0 %v6988, 14
        %v7396 = vpop.permute.xlu0 %7395
        %7397 = vrot.lane.b32.xlu0 %v7054, 14
        %v7398 = vpop.permute.xlu0 %7397
        %7399 = vrot.lane.b32.xlu0 %v7120, 14
        %v7400 = vpop.permute.xlu0 %7399
        %7401 = vrot.lane.b32.xlu0 %v7186, 14
        %v7402 = vpop.permute.xlu0 %7401
        %v7411 = vsel %vm2025, %v6697, %v7196
        %v7412 = vsel %vm2025, %v6763, %v7198
        %v7413 = vsel %vm2025, %v6829, %v7200
        %v7414 = vsel %vm2025, %v6895, %v7202
        %v7415 = vsel %vm2025, %v6961, %v7204
        %v7416 = vsel %vm2025, %v7027, %v7206
        %v7417 = vsel %vm2025, %v7093, %v7208
        %v7418 = vsel %vm2025, %v7159, %v7210
        %v7419 = vsel %vm2034, %v7411, %v7228
        %v7420 = vsel %vm2034, %v7412, %v7230
        %v7421 = vsel %vm2034, %v7413, %v7232
        %v7422 = vsel %vm2034, %v7414, %v7234
        %v7423 = vsel %vm2034, %v7415, %v7236
        %v7424 = vsel %vm2034, %v7416, %v7238
        %v7425 = vsel %vm2034, %v7417, %v7240
        %v7426 = vsel %vm2034, %v7418, %v7242
        %v7427 = vsel %vm2043, %v7419, %v7260
        %v7428 = vsel %vm2043, %v7420, %v7262
        %v7429 = vsel %vm2043, %v7421, %v7264
        %v7430 = vsel %vm2043, %v7422, %v7266
        %v7431 = vsel %vm2043, %v7423, %v7268
        %v7432 = vsel %vm2043, %v7424, %v7270
        %v7433 = vsel %vm2043, %v7425, %v7272
        %v7434 = vsel %vm2043, %v7426, %v7274
        %v7435 = vsel %vm2052, %v7427, %v7292
        %v7436 = vsel %vm2052, %v7428, %v7294
        %v7437 = vsel %vm2052, %v7429, %v7296
        %v7438 = vsel %vm2052, %v7430, %v7298
        %v7439 = vsel %vm2052, %v7431, %v7300
        %v7440 = vsel %vm2052, %v7432, %v7302
        %v7441 = vsel %vm2052, %v7433, %v7304
        %v7442 = vsel %vm2052, %v7434, %v7306
        %v7443 = vsel %vm2061, %v7435, %v7324
        %v7444 = vsel %vm2061, %v7436, %v7326
        %v7445 = vsel %vm2061, %v7437, %v7328
        %v7446 = vsel %vm2061, %v7438, %v7330
        %v7447 = vsel %vm2061, %v7439, %v7332
        %v7448 = vsel %vm2061, %v7440, %v7334
        %v7449 = vsel %vm2061, %v7441, %v7336
        %v7450 = vsel %vm2061, %v7442, %v7338
        %v7451 = vsel %vm2070, %v7443, %v7356
        %v7452 = vsel %vm2070, %v7444, %v7358
        %v7453 = vsel %vm2070, %v7445, %v7360
        %v7454 = vsel %vm2070, %v7446, %v7362
        %v7455 = vsel %vm2070, %v7447, %v7364
        %v7456 = vsel %vm2070, %v7448, %v7366
        %v7457 = vsel %vm2070, %v7449, %v7368
        %v7458 = vsel %vm2070, %v7450, %v7370
        %v7459 = vsel %vm2079, %v7451, %v7388
        %v7460 = vsel %vm2079, %v7452, %v7390
        %v7461 = vsel %vm2079, %v7453, %v7392
        %v7462 = vsel %vm2079, %v7454, %v7394
        %v7463 = vsel %vm2079, %v7455, %v7396
        %v7464 = vsel %vm2079, %v7456, %v7398
        %v7465 = vsel %vm2079, %v7457, %v7400
        %v7466 = vsel %vm2079, %v7458, %v7402
        %s7467 = scalar_lea.vmem %s161, 48 [#allocation2]
        %7468 = vst.msk [vmem:[%s7467] sm:$0x3] %vm2088, %v7459
        %7469 = vst.msk [vmem:[%s7467 + $0x2] sm:$0x3] %vm2088, %v7460
        %7470 = vst.msk [vmem:[%s7467 + $0x4] sm:$0x3] %vm2088, %v7461
        %7471 = vst.msk [vmem:[%s7467 + $0x6] sm:$0x3] %vm2088, %v7462
        %7472 = vst.msk [vmem:[%s7467 + $0x8] sm:$0x3] %vm2088, %v7463
        %7473 = vst.msk [vmem:[%s7467 + $0xa] sm:$0x3] %vm2088, %v7464
        %7474 = vst.msk [vmem:[%s7467 + $0xc] sm:$0x3] %vm2088, %v7465
        %7475 = vst.msk [vmem:[%s7467 + $0xe] sm:$0x3] %vm2088, %v7466
        %s7476 = sand.u32 %s87, 1
        %s7477 = scalar_lea.sflag [#allocation3], %s7476
        %s7478 = sand.u32 %s87, 1
        %s7479 = smul.addr %s7478, 64
        %s7480 = scalar_lea.vmem [#allocation2], %s7479
        // Predicated region
        $region29: #{tpu_custom_call.1} parent=27 // pred_check
          %p7481 = pneg %p97
        $region30: #{tpu_custom_call.1} parent=27 // pred_check_branch
          %7483 = sbr.rel (%p7481) target = $region32
        $region31: #{tpu_custom_call.1} parent=27 // pred_region
          %s7484 = smul.u32 8, %s21
          %s7486 = ssub.s32 1024, 1024
          %7487 = vsyncadd %s7477, %s7486
          %s7488 = smul.addr %s20, 32
          %s7489 = sadd.s32 %s7484, %s7488
          %s7490 = smul.addr %s7489, 32
          %s7491 = scalar_lea.hbm %s2, %s7490
          %s7492 = sshll.u32 %s7480, 4
          %s7493 = int_to_ptr.vmem [resolvable:$true] %s7492
          %7498 = dma.vmem_to_hbm [thread:$0]  %s7493, 1024, %s7491, %s7477, 32, 32, 2
        $region32: #{tpu_custom_call.1} parent=27 // pred_fallthru
          _
      $region28: #{tpu_custom_call.1} parent=5 // pred_fallthru
        _
      %p7499 = scmp.le.s32.totalorder 2, %s11
      // Predicated region
      $region33: #{tpu_custom_call.1} parent=5 // pred_check
        %p7500 = pneg %p7499
      $region34: #{tpu_custom_call.1} parent=5 // pred_check_branch
        %7502 = sbr.rel (%p7500) target = $region36
      $region35: #{tpu_custom_call.1} parent=5 // pred_region
        %s7503 = ssub.s32 %s11, 2
        // Predicated region
        $region37: #{tpu_custom_call.1} parent=35 // pred_check
          %p7504 = pneg %p103
        $region38: #{tpu_custom_call.1} parent=35 // pred_check_branch
          %7506 = sbr.rel (%p7504) target = $region40
        $region39: #{tpu_custom_call.1} parent=35 // pred_region
          %s7507 = sand.u32 %s88, 1
          %s7508 = scalar_lea.sflag [#allocation3], %s7507
          %s7509 = sand.u32 %s88, 1
          %s7510 = smul.addr %s7509, 64
          %s7511 = scalar_lea.vmem [#allocation2], %s7510
          %7512 = dma.done %s7508, 1024
        $region40: #{tpu_custom_call.1} parent=35 // pred_fallthru
          _
      $region36: #{tpu_custom_call.1} parent=5 // pred_fallthru
        _
    $region6: #{tpu_custom_call.1} parent=1 // loop_footer
      %s15 = sadd.s32 1, %s11
    $region7: #{tpu_custom_call.1} parent=1 // loop_footer_branch
      %10 = sbr.rel target = $region3
    $region8: #{tpu_custom_call.1} parent=1 // loop_exit
      _
    %7513 = vsyncpa [#allocation3], 1
    %s7514 = scalar_lea.sflag [#allocation3], 1
    %7515 = vsyncpa %s7514, 1

// kernel: tpu_custom_call.1
$region0: #{tpu_custom_call.1}
  #allocation0 [shape = 'u32[]', space=smem, size = 0x4, offset = 0x4, fixed_abs, tag = 'smem constant byte address 0x4 - core index']
  #allocation1 [shape = 'u32[144,128]{1,0:T(1,128)}', space=vmem, size = 0x12000, scoped, tag = 'internal scratch']
  %s0 = inlined_call_operand.hbm [shape: f32[2,8,8,16], index: 0, kind: input, shape index: {}]
  %s1 = inlined_call_operand.hbm [shape: f32[16,16], index: 1, kind: input, shape index: {}]
  %s2 = inlined_call_operand.vmem [shape: f32[2,4,16,8,2], index: 2, kind: output, shape index: {}]
  %s3 = sld [smem:[#allocation0]]
  $region49: #{tpu_custom_call.1} parent=0
    _
  %s5 = ssub.s32 1, %s3
  %s6 = scalar_select 0, %s5, %s3
  $region1: #{tpu_custom_call.1} parent=0
    #allocation2 [shape = 'u8[65536]{0}', space=vmem, size = 0x10000, scoped, tag = 'input window, operand 0']
    #allocation3 [shape = 's32[2]{0}', space=sflag, size = 0x8, scoped, tag = 'scoped memory for tpu_custom_call.1']
    #allocation4 [shape = 'u8[8192]{0}', space=vmem, size = 0x2000, scoped, tag = 'input window, operand 1, single buffered']
    #allocation5 [shape = 's32[1]{0}', space=sflag, size = 0x4, scoped, tag = 'scoped memory for tpu_custom_call.1']
    %7 = vsyncpa [#allocation3], 0
    %s8 = scalar_lea.sflag [#allocation3], 1
    %9 = vsyncpa %s8, 0
    %10 = vsyncpa [#allocation5], 0
    loop: start=0, step=1, limit=4
    $region2: #{tpu_custom_call.1} parent=1 // loop_pre_header
      _
    $region3: #{tpu_custom_call.1} parent=1 // loop_header
      %s12 = sphi 0, %s16
      %p13 = scmp.ge.s32.totalorder %s12, 4
      %s19 = sphi 0, %s31
      %s20 = sphi 0, %s27
      %s21 = sphi 0, %s19
      %s22 = sphi 0, %s20
      %s23 = sphi 0, %s21
      %s24 = sphi 0, %s22
      %s36 = sphi 0, %s38
      %s39 = sphi 0, %s36
      %s40 = sphi 0, %s39
      %s56 = sphi 0, %s40
      %s60 = sphi 0, %s60
      %s62 = sphi 0, %s60
      %s63 = sphi 0, %s62
      %s77 = sphi 0, %s63
      %s85 = sphi 0, %s87
      %s88 = sphi 0, %s85
      %s89 = sphi 0, %s88
      %s105 = sphi 0, %s89
    $region4: #{tpu_custom_call.1} parent=1 // loop_header_branch
      %15 = sbr.rel (%p13) target = $region8
    $region5: #{tpu_custom_call.1} parent=1 // loop_body
      %s17 = ssub.s32 %s12, 1
      %s18 = ssub.s32 %s12, 2
      %s25 = sadd.s32 1, %s20
      %p26 = scmp.ge.s32.totalorder %s25, 1
      %s27 = scalar_select %p26, 0, %s25
      %s28 = sadd.s32 1, %s19
      %s29 = scalar_select %p26, %s28, %s19
      %p30 = scmp.ge.s32.totalorder %s29, 2
      %s31 = scalar_select %p30, 0, %s29
      %s32 = ssub.s32 %s19, %s31
      %s33 = ssub.s32 %s20, %s27
      %s34 = sor.u32 %s32, %s33
      %p35 = scmp.eq.s32.totalorder %s34, 0
      %s37 = sadd.s32 %s36, 1
      %s38 = scalar_select %p35, %s36, %s37
      %p41 = pneg %p35
      %p42 = scmp.eq.s32.totalorder %s12, 1
      %p43 = por %p41, %p42
      %p44 = scmp.ne.s32.totalorder %s36, %s39
      %p45 = scmp.eq.s32.totalorder %s12, 0
      %p46 = por %p44, %p45
      %p47 = scmp.ne.s32.totalorder %s36, %s39
      %p48 = scmp.eq.s32.totalorder %s17, 1
      %p49 = por %p47, %p48
      %p50 = scmp.ne.s32.totalorder %s39, %s40
      %p51 = scmp.eq.s32.totalorder %s17, 0
      %p52 = por %p50, %p51
      %p53 = scmp.ne.s32.totalorder %s39, %s40
      %p54 = scmp.eq.s32.totalorder %s18, 1
      %p55 = por %p53, %p54
      %p57 = scmp.ne.s32.totalorder %s40, %s56
      %p58 = scmp.eq.s32.totalorder %s18, 0
      %p59 = por %p57, %p58
      %s61 = sadd.s32 %s60, 1
      %p64 = scmp.eq.s32.totalorder %s12, 1
      %p65 = scmp.ne.s32.totalorder %s60, %s62
      %p66 = scmp.eq.s32.totalorder %s12, 0
      %p67 = por %p65, %p66
      %p68 = scmp.ne.s32.totalorder %s60, %s62
      %p69 = scmp.eq.s32.totalorder %s17, 1
      %p70 = por %p68, %p69
      %p71 = scmp.ne.s32.totalorder %s62, %s63
      %p72 = scmp.eq.s32.totalorder %s17, 0
      %p73 = por %p71, %p72
      %p74 = scmp.ne.s32.totalorder %s62, %s63
      %p75 = scmp.eq.s32.totalorder %s18, 1
      %p76 = por %p74, %p75
      %p78 = scmp.ne.s32.totalorder %s63, %s77
      %p79 = scmp.eq.s32.totalorder %s18, 0
      %p80 = por %p78, %p79
      %s81 = ssub.s32 %s19, %s31
      %s82 = ssub.s32 %s20, %s27
      %s83 = sor.u32 %s81, %s82
      %p84 = scmp.eq.s32.totalorder %s83, 0
      %s86 = sadd.s32 %s85, 1
      %s87 = scalar_select %p84, %s85, %s86
      %p90 = pneg %p84
      %p91 = scmp.eq.s32.totalorder %s12, 1
      %p92 = por %p90, %p91
      %p93 = scmp.ne.s32.totalorder %s85, %s88
      %p94 = scmp.eq.s32.totalorder %s12, 0
      %p95 = por %p93, %p94
      %p96 = scmp.ne.s32.totalorder %s85, %s88
      %p97 = scmp.eq.s32.totalorder %s17, 1
      %p98 = por %p96, %p97
      %p99 = scmp.ne.s32.totalorder %s88, %s89
      %p100 = scmp.eq.s32.totalorder %s17, 0
      %p101 = por %p99, %p100
      %p102 = scmp.ne.s32.totalorder %s88, %s89
      %p103 = scmp.eq.s32.totalorder %s18, 1
      %p104 = por %p102, %p103
      %p106 = scmp.ne.s32.totalorder %s89, %s105
      %p107 = scmp.eq.s32.totalorder %s18, 0
      %p108 = por %p106, %p107
      %p109 = scmp.le.s32.totalorder 1, %s12
      %p110 = scmp.lt.s32.totalorder %s12, 3
      %p111 = pnand %p109, %p110
      %p112 = pneg %p111
      // Predicated region
      $region9: #{tpu_custom_call.1} parent=5 // pred_check
        _
      $region10: #{tpu_custom_call.1} parent=5 // pred_check_branch
        %114 = sbr.rel (%p111) target = $region12
      $region11: #{tpu_custom_call.1} parent=5 // pred_region
        %s115 = ssub.s32 %s12, 1
        // Predicated region
        $region13: #{tpu_custom_call.1} parent=11 // pred_check
          %p116 = pneg %p73
        $region14: #{tpu_custom_call.1} parent=11 // pred_check_branch
          %118 = sbr.rel (%p116) target = $region16
        $region15: #{tpu_custom_call.1} parent=11 // pred_region
          %s120 = ssub.s32 256, 256
          %121 = vsyncadd [#allocation5], %s120
          %s122 = sshll.u32 [#allocation4], 4
          %s123 = int_to_ptr.vmem [resolvable:$true] %s122
          %128 = dma.hbm_to_vmem [thread:$0]  %s1, 256, %s123, [#allocation5], 128, 128, 8
        $region16: #{tpu_custom_call.1} parent=11 // pred_fallthru
          _
      $region12: #{tpu_custom_call.1} parent=5 // pred_fallthru
        _
      %p129 = scmp.lt.s32.totalorder %s12, 2
      // Predicated region
      $region17: #{tpu_custom_call.1} parent=5 // pred_check
        %p130 = pneg %p129
      $region18: #{tpu_custom_call.1} parent=5 // pred_check_branch
        %132 = sbr.rel (%p130) target = $region20
      $region19: #{tpu_custom_call.1} parent=5 // pred_region
        // Predicated region
        $region21: #{tpu_custom_call.1} parent=19 // pred_check
          %p133 = pneg %p46
        $region22: #{tpu_custom_call.1} parent=19 // pred_check_branch
          %135 = sbr.rel (%p133) target = $region24
        $region23: #{tpu_custom_call.1} parent=19 // pred_region
          %s136 = sand.u32 %s36, 1
          %s137 = scalar_lea.sflag [#allocation3], %s136
          %s138 = sand.u32 %s36, 1
          %s139 = smul.addr %s138, 64
          %s140 = scalar_lea.vmem [#allocation2], %s139
          %s141 = smul.u32 8, %s20
          %s143 = ssub.s32 1024, 1024
          %144 = vsyncadd %s137, %s143
          %s145 = smul.addr %s19, 8
          %s146 = sadd.s32 %s141, %s145
          %s147 = smul.addr %s146, 128
          %s148 = scalar_lea.hbm %s0, %s147
          %s149 = sshll.u32 %s140, 4
          %s150 = int_to_ptr.vmem [resolvable:$true] %s149
          %155 = dma.hbm_to_vmem [thread:$0]  %s148, 1024, %s150, %s137, 128, 128, 8
        $region24: #{tpu_custom_call.1} parent=19 // pred_fallthru
          _
      $region20: #{tpu_custom_call.1} parent=5 // pred_fallthru
        _
      %p156 = scmp.le.s32.totalorder 1, %s12
      %p157 = scmp.lt.s32.totalorder %s12, 3
      %p158 = pnand %p156, %p157
      %p159 = pneg %p158
      // Predicated region
      $region25: #{tpu_custom_call.1} parent=5 // pred_check
        _
      $region26: #{tpu_custom_call.1} parent=5 // pred_check_branch
        %161 = sbr.rel (%p158) target = $region28
      $region27: #{tpu_custom_call.1} parent=5 // pred_region
        %s162 = ssub.s32 %s12, 1
        %s163 = sand.u32 %s39, 1
        %s164 = scalar_lea.sflag [#allocation3], %s163
        %s165 = sand.u32 %s39, 1
        %s166 = smul.addr %s165, 64
        %s167 = scalar_lea.vmem [#allocation2], %s166
        // Predicated region
        $region29: #{tpu_custom_call.1} parent=27 // pred_check
          %p168 = pneg %p52
        $region30: #{tpu_custom_call.1} parent=27 // pred_check_branch
          %170 = sbr.rel (%p168) target = $region32
        $region31: #{tpu_custom_call.1} parent=27 // pred_region
          %171 = dma.done %s164, 1024
        $region32: #{tpu_custom_call.1} parent=27 // pred_fallthru
          _
        // Predicated region
        $region33: #{tpu_custom_call.1} parent=27 // pred_check
          %p172 = pneg %p73
        $region34: #{tpu_custom_call.1} parent=27 // pred_check_branch
          %174 = sbr.rel (%p172) target = $region36
        $region35: #{tpu_custom_call.1} parent=27 // pred_region
          %175 = dma.done [#allocation5], 256
        $region36: #{tpu_custom_call.1} parent=27 // pred_fallthru
          _
        %s176 = sand.u32 %s39, 1
        %s177 = scalar_lea.sflag [#allocation3], %s176
        %s178 = sand.u32 %s39, 1
        %s179 = smul.addr %s178, 64
        %s180 = scalar_lea.vmem [#allocation2], %s179
        %p181 = pneg %p52
        %p182 = pneg %p49
        %p183 = pneg %p73
        %p184 = pneg %p70
        %p185 = pneg %p101
        %p186 = pneg %p98
        %s187 = smul.u32 16, %s22
        %p188 = scmp.lt.s32.totalorder %s21, 1
        %s189 = scalar_select %p188, %s21, 1
        %p190 = scmp.lt.s32.totalorder %s187, 15
        %s191 = scalar_select %p190, %s187, 15
        %s192 = smul.addr %s189, 64
        %s193 = sadd.s32 %s191, %s192
        %s194 = smul.addr %s193, 8
        %s195 = scalar_lea.vmem %s2, %s194
        %s196 = smul.u32 8, %s22
        %s197 = smul.u32 16, %s22
        %p198 = scmp.lt.s32.totalorder %s21, 1
        %s199 = scalar_select %p198, %s21, 1
        %p200 = scmp.lt.s32.totalorder %s197, 15
        %s201 = scalar_select %p200, %s197, 15
        %s202 = smul.addr %s199, 64
        %s203 = sadd.s32 %s201, %s202
        %s204 = smul.addr %s203, 8
        %s205 = scalar_lea.vmem %s2, %s204
        %s206 = smul.u32 16, %s22
        %v207 = vld [vmem:[#allocation4] sm:$0xff]
        %v208 = vld [vmem:[#allocation4 + $0x8] sm:$0xff]
        %v209 = vld [vmem:[%s167] sm:$0xff]
        %vm210 = vcmask 130048
        %v212 = vsel %vm210, %v209, 0
        %214 = vmatprep.subr.mxu0 0.0
        %215 = vmatpush1.msra.mxu0 %v207
        %216 = vmatprep.subr.mxu0 0.0
        %217 = vmatpush1.msra.mxu0 %v208
        %218 = vmatprep.subr.mxu0 0.0
        %219 = vmatpush1.msra.mxu0 0.0
        %220 = vmatprep.subr.mxu0 0.0
        %221 = vmatpush1.msra.mxu0 0.0
        %222 = vmatprep.subr.mxu0 0.0
        %223 = vmatpush1.msra.mxu0 0.0
        %224 = vmatprep.subr.mxu0 0.0
        %225 = vmatpush1.msra.mxu0 0.0
        %226 = vmatprep.subr.mxu0 0.0
        %227 = vmatpush1.msra.mxu0 0.0
        %228 = vmatprep.subr.mxu0 0.0
        %229 = vmatpush1.msra.mxu0 0.0
        %230 = vmatprep.subr.mxu0 0.0
        %231 = vmatpush1.msra.mxu0 0.0
        %232 = vmatprep.subr.mxu0 0.0
        %233 = vmatpush1.msra.mxu0 0.0
        %234 = vmatprep.subr.mxu0 0.0
        %235 = vmatpush1.msra.mxu0 0.0
        %236 = vmatprep.subr.mxu0 0.0
        %237 = vmatpush1.msra.mxu0 0.0
        %238 = vmatprep.subr.mxu0 0.0
        %239 = vmatpush1.msra.mxu0 0.0
        %240 = vmatprep.subr.mxu0 0.0
        %241 = vmatpush1.msra.mxu0 0.0
        %242 = vmatprep.subr.mxu0 0.0
        %243 = vmatpush1.msra.mxu0 0.0
        %244 = vmatprep.subr.mxu0 0.0
        %245 = vmatpush1.msra.mxu0 0.0
        %246 = vmatprep.subr.mxu0 0.0
        %247 = vmatpush1.msra.mxu0 0.0
        %248 = vmatprep.subr.mxu0 0.0
        %249 = vmatpush1.msra.mxu0 0.0
        %250 = vmatprep.subr.mxu0 0.0
        %251 = vmatpush1.msra.mxu0 0.0
        %252 = vmatprep.subr.mxu0 0.0
        %253 = vmatpush1.msra.mxu0 0.0
        %254 = vmatprep.subr.mxu0 0.0
        %255 = vmatpush1.msra.mxu0 0.0
        %256 = vmatprep.subr.mxu0 0.0
        %257 = vmatpush1.msra.mxu0 0.0
        %258 = vmatprep.subr.mxu0 0.0
        %259 = vmatpush1.msra.mxu0 0.0
        %260 = vmatprep.subr.mxu0 0.0
        %261 = vmatpush1.msra.mxu0 0.0
        %262 = vmatprep.subr.mxu0 0.0
        %263 = vmatpush1.msra.mxu0 0.0
        %264 = vmatprep.subr.mxu0 0.0
        %265 = vmatpush1.msra.mxu0 0.0
        %266 = vmatprep.subr.mxu0 0.0
        %267 = vmatpush1.msra.mxu0 0.0
        %268 = vmatprep.subr.mxu0 0.0
        %269 = vmatpush1.msra.mxu0 0.0
        %270 = vmatprep.subr.mxu0 0.0
        %271 = vmatpush1.msra.mxu0 0.0
        %272 = vmatprep.subr.mxu0 0.0
        %273 = vmatpush1.msra.mxu0 0.0
        %274 = vmatprep.subr.mxu0 0.0
        %275 = vmatpush1.msra.mxu0 0.0
        %276 = vmatprep.subr.mxu0 0.0
        %277 = vmatpush1.msra.mxu0 0.0
        %278 = vmatprep.mubr.f32.mxu0 0.0
        %279 = vmatmul.mubr.f32.gmra.mrb[0].mxu0 %v212
        %v280 = vpop.f32.mrb[0].mxu0
        %v281 = vadd.f32 0.0, %v280
        %v282 = vpop.f32.mrb[0].mxu0
        %283 = vdwg.mxu0
        %vm284 = vcmask 15360
        %285 = vst.msk [vmem:[%s205] sm:$0xff] %vm284, %v281
        %287 = vrot.lane.b32.xlu0 %v281, 126
        %v288 = vpop.permute.xlu0 %287
        %s290 = scalar_lea.vmem %s205, 8
        %291 = vst.msk [vmem:[%s290] sm:$0xff] %vm284, %v288
        %292 = vrot.lane.b32.xlu0 %v281, 124
        %v293 = vpop.permute.xlu0 %292
        %s295 = scalar_lea.vmem %s205, 128
        %296 = vst.msk [vmem:[%s295] sm:$0xff] %vm284, %v293
        %297 = vrot.lane.b32.xlu0 %v281, 122
        %v298 = vpop.permute.xlu0 %297
        %s300 = scalar_lea.vmem %s205, 136
        %301 = vst.msk [vmem:[%s300] sm:$0xff] %vm284, %v298
        %302 = vrot.lane.b32.xlu0 %v281, 120
        %v303 = vpop.permute.xlu0 %302
        %s305 = scalar_lea.vmem %s205, 256
        %306 = vst.msk [vmem:[%s305] sm:$0xff] %vm284, %v303
        %307 = vrot.lane.b32.xlu0 %v281, 118
        %v308 = vpop.permute.xlu0 %307
        %s310 = scalar_lea.vmem %s205, 264
        %311 = vst.msk [vmem:[%s310] sm:$0xff] %vm284, %v308
        %312 = vrot.lane.b32.xlu0 %v281, 116
        %v313 = vpop.permute.xlu0 %312
        %s315 = scalar_lea.vmem %s205, 384
        %316 = vst.msk [vmem:[%s315] sm:$0xff] %vm284, %v313
        %317 = vrot.lane.b32.xlu0 %v281, 114
        %v318 = vpop.permute.xlu0 %317
        %s320 = scalar_lea.vmem %s205, 392
        %321 = vst.msk [vmem:[%s320] sm:$0xff] %vm284, %v318
        %s322 = scalar_lea.vmem %s167, 8 [#allocation2]
        %v323 = vld [vmem:[%s322] sm:$0xff]
        %v325 = vsel %vm210, %v323, 0
        %327 = vmatprep.subr.mxu0 0.0
        %328 = vmatpush1.msra.mxu0 %v207
        %329 = vmatprep.subr.mxu0 0.0
        %330 = vmatpush1.msra.mxu0 %v208
        %331 = vmatprep.subr.mxu0 0.0
        %332 = vmatpush1.msra.mxu0 0.0
        %333 = vmatprep.subr.mxu0 0.0
        %334 = vmatpush1.msra.mxu0 0.0
        %335 = vmatprep.subr.mxu0 0.0
        %336 = vmatpush1.msra.mxu0 0.0
        %337 = vmatprep.subr.mxu0 0.0
        %338 = vmatpush1.msra.mxu0 0.0
        %339 = vmatprep.subr.mxu0 0.0
        %340 = vmatpush1.msra.mxu0 0.0
        %341 = vmatprep.subr.mxu0 0.0
        %342 = vmatpush1.msra.mxu0 0.0
        %343 = vmatprep.subr.mxu0 0.0
        %344 = vmatpush1.msra.mxu0 0.0
        %345 = vmatprep.subr.mxu0 0.0
        %346 = vmatpush1.msra.mxu0 0.0
        %347 = vmatprep.subr.mxu0 0.0
        %348 = vmatpush1.msra.mxu0 0.0
        %349 = vmatprep.subr.mxu0 0.0
        %350 = vmatpush1.msra.mxu0 0.0
        %351 = vmatprep.subr.mxu0 0.0
        %352 = vmatpush1.msra.mxu0 0.0
        %353 = vmatprep.subr.mxu0 0.0
        %354 = vmatpush1.msra.mxu0 0.0
        %355 = vmatprep.subr.mxu0 0.0
        %356 = vmatpush1.msra.mxu0 0.0
        %357 = vmatprep.subr.mxu0 0.0
        %358 = vmatpush1.msra.mxu0 0.0
        %359 = vmatprep.subr.mxu0 0.0
        %360 = vmatpush1.msra.mxu0 0.0
        %361 = vmatprep.subr.mxu0 0.0
        %362 = vmatpush1.msra.mxu0 0.0
        %363 = vmatprep.subr.mxu0 0.0
        %364 = vmatpush1.msra.mxu0 0.0
        %365 = vmatprep.subr.mxu0 0.0
        %366 = vmatpush1.msra.mxu0 0.0
        %367 = vmatprep.subr.mxu0 0.0
        %368 = vmatpush1.msra.mxu0 0.0
        %369 = vmatprep.subr.mxu0 0.0
        %370 = vmatpush1.msra.mxu0 0.0
        %371 = vmatprep.subr.mxu0 0.0
        %372 = vmatpush1.msra.mxu0 0.0
        %373 = vmatprep.subr.mxu0 0.0
        %374 = vmatpush1.msra.mxu0 0.0
        %375 = vmatprep.subr.mxu0 0.0
        %376 = vmatpush1.msra.mxu0 0.0
        %377 = vmatprep.subr.mxu0 0.0
        %378 = vmatpush1.msra.mxu0 0.0
        %379 = vmatprep.subr.mxu0 0.0
        %380 = vmatpush1.msra.mxu0 0.0
        %381 = vmatprep.subr.mxu0 0.0
        %382 = vmatpush1.msra.mxu0 0.0
        %383 = vmatprep.subr.mxu0 0.0
        %384 = vmatpush1.msra.mxu0 0.0
        %385 = vmatprep.subr.mxu0 0.0
        %386 = vmatpush1.msra.mxu0 0.0
        %387 = vmatprep.subr.mxu0 0.0
        %388 = vmatpush1.msra.mxu0 0.0
        %389 = vmatprep.subr.mxu0 0.0
        %390 = vmatpush1.msra.mxu0 0.0
        %391 = vmatprep.mubr.f32.mxu0 0.0
        %392 = vmatmul.mubr.f32.gmra.mrb[0].mxu0 %v325
        %v393 = vpop.f32.mrb[0].mxu0
        %v394 = vadd.f32 0.0, %v393
        %v395 = vpop.f32.mrb[0].mxu0
        %396 = vdwg.mxu0
        %s397 = scalar_lea.vmem %s205, 16
        %398 = vst.msk [vmem:[%s397] sm:$0xff] %vm284, %v394
        %400 = vrot.lane.b32.xlu0 %v394, 126
        %v401 = vpop.permute.xlu0 %400
        %s403 = scalar_lea.vmem %s205, 24
        %404 = vst.msk [vmem:[%s403] sm:$0xff] %vm284, %v401
        %405 = vrot.lane.b32.xlu0 %v394, 124
        %v406 = vpop.permute.xlu0 %405
        %s408 = scalar_lea.vmem %s205, 144
        %409 = vst.msk [vmem:[%s408] sm:$0xff] %vm284, %v406
        %410 = vrot.lane.b32.xlu0 %v394, 122
        %v411 = vpop.permute.xlu0 %410
        %s413 = scalar_lea.vmem %s205, 152
        %414 = vst.msk [vmem:[%s413] sm:$0xff] %vm284, %v411
        %415 = vrot.lane.b32.xlu0 %v394, 120
        %v416 = vpop.permute.xlu0 %415
        %s418 = scalar_lea.vmem %s205, 272
        %419 = vst.msk [vmem:[%s418] sm:$0xff] %vm284, %v416
        %420 = vrot.lane.b32.xlu0 %v394, 118
        %v421 = vpop.permute.xlu0 %420
        %s423 = scalar_lea.vmem %s205, 280
        %424 = vst.msk [vmem:[%s423] sm:$0xff] %vm284, %v421
        %425 = vrot.lane.b32.xlu0 %v394, 116
        %v426 = vpop.permute.xlu0 %425
        %s428 = scalar_lea.vmem %s205, 400
        %429 = vst.msk [vmem:[%s428] sm:$0xff] %vm284, %v426
        %430 = vrot.lane.b32.xlu0 %v394, 114
        %v431 = vpop.permute.xlu0 %430
        %s433 = scalar_lea.vmem %s205, 408
        %434 = vst.msk [vmem:[%s433] sm:$0xff] %vm284, %v431
        %s435 = scalar_lea.vmem %s167, 16 [#allocation2]
        %v436 = vld [vmem:[%s435] sm:$0xff]
        %v438 = vsel %vm210, %v436, 0
        %440 = vmatprep.subr.mxu0 0.0
        %441 = vmatpush1.msra.mxu0 %v207
        %442 = vmatprep.subr.mxu0 0.0
        %443 = vmatpush1.msra.mxu0 %v208
        %444 = vmatprep.subr.mxu0 0.0
        %445 = vmatpush1.msra.mxu0 0.0
        %446 = vmatprep.subr.mxu0 0.0
        %447 = vmatpush1.msra.mxu0 0.0
        %448 = vmatprep.subr.mxu0 0.0
        %449 = vmatpush1.msra.mxu0 0.0
        %450 = vmatprep.subr.mxu0 0.0
        %451 = vmatpush1.msra.mxu0 0.0
        %452 = vmatprep.subr.mxu0 0.0
        %453 = vmatpush1.msra.mxu0 0.0
        %454 = vmatprep.subr.mxu0 0.0
        %455 = vmatpush1.msra.mxu0 0.0
        %456 = vmatprep.subr.mxu0 0.0
        %457 = vmatpush1.msra.mxu0 0.0
        %458 = vmatprep.subr.mxu0 0.0
        %459 = vmatpush1.msra.mxu0 0.0
        %460 = vmatprep.subr.mxu0 0.0
        %461 = vmatpush1.msra.mxu0 0.0
        %462 = vmatprep.subr.mxu0 0.0
        %463 = vmatpush1.msra.mxu0 0.0
        %464 = vmatprep.subr.mxu0 0.0
        %465 = vmatpush1.msra.mxu0 0.0
        %466 = vmatprep.subr.mxu0 0.0
        %467 = vmatpush1.msra.mxu0 0.0
        %468 = vmatprep.subr.mxu0 0.0
        %469 = vmatpush1.msra.mxu0 0.0
        %470 = vmatprep.subr.mxu0 0.0
        %471 = vmatpush1.msra.mxu0 0.0
        %472 = vmatprep.subr.mxu0 0.0
        %473 = vmatpush1.msra.mxu0 0.0
        %474 = vmatprep.subr.mxu0 0.0
        %475 = vmatpush1.msra.mxu0 0.0
        %476 = vmatprep.subr.mxu0 0.0
        %477 = vmatpush1.msra.mxu0 0.0
        %478 = vmatprep.subr.mxu0 0.0
        %479 = vmatpush1.msra.mxu0 0.0
        %480 = vmatprep.subr.mxu0 0.0
        %481 = vmatpush1.msra.mxu0 0.0
        %482 = vmatprep.subr.mxu0 0.0
        %483 = vmatpush1.msra.mxu0 0.0
        %484 = vmatprep.subr.mxu0 0.0
        %485 = vmatpush1.msra.mxu0 0.0
        %486 = vmatprep.subr.mxu0 0.0
        %487 = vmatpush1.msra.mxu0 0.0
        %488 = vmatprep.subr.mxu0 0.0
        %489 = vmatpush1.msra.mxu0 0.0
        %490 = vmatprep.subr.mxu0 0.0
        %491 = vmatpush1.msra.mxu0 0.0
        %492 = vmatprep.subr.mxu0 0.0
        %493 = vmatpush1.msra.mxu0 0.0
        %494 = vmatprep.subr.mxu0 0.0
        %495 = vmatpush1.msra.mxu0 0.0
        %496 = vmatprep.subr.mxu0 0.0
        %497 = vmatpush1.msra.mxu0 0.0
        %498 = vmatprep.subr.mxu0 0.0
        %499 = vmatpush1.msra.mxu0 0.0
        %500 = vmatprep.subr.mxu0 0.0
        %501 = vmatpush1.msra.mxu0 0.0
        %502 = vmatprep.subr.mxu0 0.0
        %503 = vmatpush1.msra.mxu0 0.0
        %504 = vmatprep.mubr.f32.mxu0 0.0
        %505 = vmatmul.mubr.f32.gmra.mrb[0].mxu0 %v438
        %v506 = vpop.f32.mrb[0].mxu0
        %v507 = vadd.f32 0.0, %v506
        %v508 = vpop.f32.mrb[0].mxu0
        %509 = vdwg.mxu0
        %s510 = scalar_lea.vmem %s205, 32
        %511 = vst.msk [vmem:[%s510] sm:$0xff] %vm284, %v507
        %513 = vrot.lane.b32.xlu0 %v507, 126
        %v514 = vpop.permute.xlu0 %513
        %s516 = scalar_lea.vmem %s205, 40
        %517 = vst.msk [vmem:[%s516] sm:$0xff] %vm284, %v514
        %518 = vrot.lane.b32.xlu0 %v507, 124
        %v519 = vpop.permute.xlu0 %518
        %s521 = scalar_lea.vmem %s205, 160
        %522 = vst.msk [vmem:[%s521] sm:$0xff] %vm284, %v519
        %523 = vrot.lane.b32.xlu0 %v507, 122
        %v524 = vpop.permute.xlu0 %523
        %s526 = scalar_lea.vmem %s205, 168
        %527 = vst.msk [vmem:[%s526] sm:$0xff] %vm284, %v524
        %528 = vrot.lane.b32.xlu0 %v507, 120
        %v529 = vpop.permute.xlu0 %528
        %s531 = scalar_lea.vmem %s205, 288
        %532 = vst.msk [vmem:[%s531] sm:$0xff] %vm284, %v529
        %533 = vrot.lane.b32.xlu0 %v507, 118
        %v534 = vpop.permute.xlu0 %533
        %s536 = scalar_lea.vmem %s205, 296
        %537 = vst.msk [vmem:[%s536] sm:$0xff] %vm284, %v534
        %538 = vrot.lane.b32.xlu0 %v507, 116
        %v539 = vpop.permute.xlu0 %538
        %s541 = scalar_lea.vmem %s205, 416
        %542 = vst.msk [vmem:[%s541] sm:$0xff] %vm284, %v539
        %543 = vrot.lane.b32.xlu0 %v507, 114
        %v544 = vpop.permute.xlu0 %543
        %s546 = scalar_lea.vmem %s205, 424
        %547 = vst.msk [vmem:[%s546] sm:$0xff] %vm284, %v544
        %s548 = scalar_lea.vmem %s167, 24 [#allocation2]
        %v549 = vld [vmem:[%s548] sm:$0xff]
        %v551 = vsel %vm210, %v549, 0
        %553 = vmatprep.subr.mxu0 0.0
        %554 = vmatpush1.msra.mxu0 %v207
        %555 = vmatprep.subr.mxu0 0.0
        %556 = vmatpush1.msra.mxu0 %v208
        %557 = vmatprep.subr.mxu0 0.0
        %558 = vmatpush1.msra.mxu0 0.0
        %559 = vmatprep.subr.mxu0 0.0
        %560 = vmatpush1.msra.mxu0 0.0
        %561 = vmatprep.subr.mxu0 0.0
        %562 = vmatpush1.msra.mxu0 0.0
        %563 = vmatprep.subr.mxu0 0.0
        %564 = vmatpush1.msra.mxu0 0.0
        %565 = vmatprep.subr.mxu0 0.0
        %566 = vmatpush1.msra.mxu0 0.0
        %567 = vmatprep.subr.mxu0 0.0
        %568 = vmatpush1.msra.mxu0 0.0
        %569 = vmatprep.subr.mxu0 0.0
        %570 = vmatpush1.msra.mxu0 0.0
        %571 = vmatprep.subr.mxu0 0.0
        %572 = vmatpush1.msra.mxu0 0.0
        %573 = vmatprep.subr.mxu0 0.0
        %574 = vmatpush1.msra.mxu0 0.0
        %575 = vmatprep.subr.mxu0 0.0
        %576 = vmatpush1.msra.mxu0 0.0
        %577 = vmatprep.subr.mxu0 0.0
        %578 = vmatpush1.msra.mxu0 0.0
        %579 = vmatprep.subr.mxu0 0.0
        %580 = vmatpush1.msra.mxu0 0.0
        %581 = vmatprep.subr.mxu0 0.0
        %582 = vmatpush1.msra.mxu0 0.0
        %583 = vmatprep.subr.mxu0 0.0
        %584 = vmatpush1.msra.mxu0 0.0
        %585 = vmatprep.subr.mxu0 0.0
        %586 = vmatpush1.msra.mxu0 0.0
        %587 = vmatprep.subr.mxu0 0.0
        %588 = vmatpush1.msra.mxu0 0.0
        %589 = vmatprep.subr.mxu0 0.0
        %590 = vmatpush1.msra.mxu0 0.0
        %591 = vmatprep.subr.mxu0 0.0
        %592 = vmatpush1.msra.mxu0 0.0
        %593 = vmatprep.subr.mxu0 0.0
        %594 = vmatpush1.msra.mxu0 0.0
        %595 = vmatprep.subr.mxu0 0.0
        %596 = vmatpush1.msra.mxu0 0.0
        %597 = vmatprep.subr.mxu0 0.0
        %598 = vmatpush1.msra.mxu0 0.0
        %599 = vmatprep.subr.mxu0 0.0
        %600 = vmatpush1.msra.mxu0 0.0
        %601 = vmatprep.subr.mxu0 0.0
        %602 = vmatpush1.msra.mxu0 0.0
        %603 = vmatprep.subr.mxu0 0.0
        %604 = vmatpush1.msra.mxu0 0.0
        %605 = vmatprep.subr.mxu0 0.0
        %606 = vmatpush1.msra.mxu0 0.0
        %607 = vmatprep.subr.mxu0 0.0
        %608 = vmatpush1.msra.mxu0 0.0
        %609 = vmatprep.subr.mxu0 0.0
        %610 = vmatpush1.msra.mxu0 0.0
        %611 = vmatprep.subr.mxu0 0.0
        %612 = vmatpush1.msra.mxu0 0.0
        %613 = vmatprep.subr.mxu0 0.0
        %614 = vmatpush1.msra.mxu0 0.0
        %615 = vmatprep.subr.mxu0 0.0
        %616 = vmatpush1.msra.mxu0 0.0
        %617 = vmatprep.mubr.f32.mxu0 0.0
        %618 = vmatmul.mubr.f32.gmra.mrb[0].mxu0 %v551
        %v619 = vpop.f32.mrb[0].mxu0
        %v620 = vadd.f32 0.0, %v619
        %v621 = vpop.f32.mrb[0].mxu0
        %622 = vdwg.mxu0
        %s623 = scalar_lea.vmem %s205, 48
        %624 = vst.msk [vmem:[%s623] sm:$0xff] %vm284, %v620
        %626 = vrot.lane.b32.xlu0 %v620, 126
        %v627 = vpop.permute.xlu0 %626
        %s629 = scalar_lea.vmem %s205, 56
        %630 = vst.msk [vmem:[%s629] sm:$0xff] %vm284, %v627
        %631 = vrot.lane.b32.xlu0 %v620, 124
        %v632 = vpop.permute.xlu0 %631
        %s634 = scalar_lea.vmem %s205, 176
        %635 = vst.msk [vmem:[%s634] sm:$0xff] %vm284, %v632
        %636 = vrot.lane.b32.xlu0 %v620, 122
        %v637 = vpop.permute.xlu0 %636
        %s639 = scalar_lea.vmem %s205, 184
        %640 = vst.msk [vmem:[%s639] sm:$0xff] %vm284, %v637
        %641 = vrot.lane.b32.xlu0 %v620, 120
        %v642 = vpop.permute.xlu0 %641
        %s644 = scalar_lea.vmem %s205, 304
        %645 = vst.msk [vmem:[%s644] sm:$0xff] %vm284, %v642
        %646 = vrot.lane.b32.xlu0 %v620, 118
        %v647 = vpop.permute.xlu0 %646
        %s649 = scalar_lea.vmem %s205, 312
        %650 = vst.msk [vmem:[%s649] sm:$0xff] %vm284, %v647
        %651 = vrot.lane.b32.xlu0 %v620, 116
        %v652 = vpop.permute.xlu0 %651
        %s654 = scalar_lea.vmem %s205, 432
        %655 = vst.msk [vmem:[%s654] sm:$0xff] %vm284, %v652
        %656 = vrot.lane.b32.xlu0 %v620, 114
        %v657 = vpop.permute.xlu0 %656
        %s659 = scalar_lea.vmem %s205, 440
        %660 = vst.msk [vmem:[%s659] sm:$0xff] %vm284, %v657
        %s661 = scalar_lea.vmem %s167, 32 [#allocation2]
        %v662 = vld [vmem:[%s661] sm:$0xff]
        %v664 = vsel %vm210, %v662, 0
        %666 = vmatprep.subr.mxu0 0.0
        %667 = vmatpush1.msra.mxu0 %v207
        %668 = vmatprep.subr.mxu0 0.0
        %669 = vmatpush1.msra.mxu0 %v208
        %670 = vmatprep.subr.mxu0 0.0
        %671 = vmatpush1.msra.mxu0 0.0
        %672 = vmatprep.subr.mxu0 0.0
        %673 = vmatpush1.msra.mxu0 0.0
        %674 = vmatprep.subr.mxu0 0.0
        %675 = vmatpush1.msra.mxu0 0.0
        %676 = vmatprep.subr.mxu0 0.0
        %677 = vmatpush1.msra.mxu0 0.0
        %678 = vmatprep.subr.mxu0 0.0
        %679 = vmatpush1.msra.mxu0 0.0
        %680 = vmatprep.subr.mxu0 0.0
        %681 = vmatpush1.msra.mxu0 0.0
        %682 = vmatprep.subr.mxu0 0.0
        %683 = vmatpush1.msra.mxu0 0.0
        %684 = vmatprep.subr.mxu0 0.0
        %685 = vmatpush1.msra.mxu0 0.0
        %686 = vmatprep.subr.mxu0 0.0
        %687 = vmatpush1.msra.mxu0 0.0
        %688 = vmatprep.subr.mxu0 0.0
        %689 = vmatpush1.msra.mxu0 0.0
        %690 = vmatprep.subr.mxu0 0.0
        %691 = vmatpush1.msra.mxu0 0.0
        %692 = vmatprep.subr.mxu0 0.0
        %693 = vmatpush1.msra.mxu0 0.0
        %694 = vmatprep.subr.mxu0 0.0
        %695 = vmatpush1.msra.mxu0 0.0
        %696 = vmatprep.subr.mxu0 0.0
        %697 = vmatpush1.msra.mxu0 0.0
        %698 = vmatprep.subr.mxu0 0.0
        %699 = vmatpush1.msra.mxu0 0.0
        %700 = vmatprep.subr.mxu0 0.0
        %701 = vmatpush1.msra.mxu0 0.0
        %702 = vmatprep.subr.mxu0 0.0
        %703 = vmatpush1.msra.mxu0 0.0
        %704 = vmatprep.subr.mxu0 0.0
        %705 = vmatpush1.msra.mxu0 0.0
        %706 = vmatprep.subr.mxu0 0.0
        %707 = vmatpush1.msra.mxu0 0.0
        %708 = vmatprep.subr.mxu0 0.0
        %709 = vmatpush1.msra.mxu0 0.0
        %710 = vmatprep.subr.mxu0 0.0
        %711 = vmatpush1.msra.mxu0 0.0
        %712 = vmatprep.subr.mxu0 0.0
        %713 = vmatpush1.msra.mxu0 0.0
        %714 = vmatprep.subr.mxu0 0.0
        %715 = vmatpush1.msra.mxu0 0.0
        %716 = vmatprep.subr.mxu0 0.0
        %717 = vmatpush1.msra.mxu0 0.0
        %718 = vmatprep.subr.mxu0 0.0
        %719 = vmatpush1.msra.mxu0 0.0
        %720 = vmatprep.subr.mxu0 0.0
        %721 = vmatpush1.msra.mxu0 0.0
        %722 = vmatprep.subr.mxu0 0.0
        %723 = vmatpush1.msra.mxu0 0.0
        %724 = vmatprep.subr.mxu0 0.0
        %725 = vmatpush1.msra.mxu0 0.0
        %726 = vmatprep.subr.mxu0 0.0
        %727 = vmatpush1.msra.mxu0 0.0
        %728 = vmatprep.subr.mxu0 0.0
        %729 = vmatpush1.msra.mxu0 0.0
        %730 = vmatprep.mubr.f32.mxu0 0.0
        %731 = vmatmul.mubr.f32.gmra.mrb[0].mxu0 %v664
        %v732 = vpop.f32.mrb[0].mxu0
        %v733 = vadd.f32 0.0, %v732
        %v734 = vpop.f32.mrb[0].mxu0
        %735 = vdwg.mxu0
        %s736 = scalar_lea.vmem %s205, 64
        %737 = vst.msk [vmem:[%s736] sm:$0xff] %vm284, %v733
        %739 = vrot.lane.b32.xlu0 %v733, 126
        %v740 = vpop.permute.xlu0 %739
        %s742 = scalar_lea.vmem %s205, 72
        %743 = vst.msk [vmem:[%s742] sm:$0xff] %vm284, %v740
        %744 = vrot.lane.b32.xlu0 %v733, 124
        %v745 = vpop.permute.xlu0 %744
        %s747 = scalar_lea.vmem %s205, 192
        %748 = vst.msk [vmem:[%s747] sm:$0xff] %vm284, %v745
        %749 = vrot.lane.b32.xlu0 %v733, 122
        %v750 = vpop.permute.xlu0 %749
        %s752 = scalar_lea.vmem %s205, 200
        %753 = vst.msk [vmem:[%s752] sm:$0xff] %vm284, %v750
        %754 = vrot.lane.b32.xlu0 %v733, 120
        %v755 = vpop.permute.xlu0 %754
        %s757 = scalar_lea.vmem %s205, 320
        %758 = vst.msk [vmem:[%s757] sm:$0xff] %vm284, %v755
        %759 = vrot.lane.b32.xlu0 %v733, 118
        %v760 = vpop.permute.xlu0 %759
        %s762 = scalar_lea.vmem %s205, 328
        %763 = vst.msk [vmem:[%s762] sm:$0xff] %vm284, %v760
        %764 = vrot.lane.b32.xlu0 %v733, 116
        %v765 = vpop.permute.xlu0 %764
        %s767 = scalar_lea.vmem %s205, 448
        %768 = vst.msk [vmem:[%s767] sm:$0xff] %vm284, %v765
        %769 = vrot.lane.b32.xlu0 %v733, 114
        %v770 = vpop.permute.xlu0 %769
        %s772 = scalar_lea.vmem %s205, 456
        %773 = vst.msk [vmem:[%s772] sm:$0xff] %vm284, %v770
        %s774 = scalar_lea.vmem %s167, 40 [#allocation2]
        %v775 = vld [vmem:[%s774] sm:$0xff]
        %v777 = vsel %vm210, %v775, 0
        %779 = vmatprep.subr.mxu0 0.0
        %780 = vmatpush1.msra.mxu0 %v207
        %781 = vmatprep.subr.mxu0 0.0
        %782 = vmatpush1.msra.mxu0 %v208
        %783 = vmatprep.subr.mxu0 0.0
        %784 = vmatpush1.msra.mxu0 0.0
        %785 = vmatprep.subr.mxu0 0.0
        %786 = vmatpush1.msra.mxu0 0.0
        %787 = vmatprep.subr.mxu0 0.0
        %788 = vmatpush1.msra.mxu0 0.0
        %789 = vmatprep.subr.mxu0 0.0
        %790 = vmatpush1.msra.mxu0 0.0
        %791 = vmatprep.subr.mxu0 0.0
        %792 = vmatpush1.msra.mxu0 0.0
        %793 = vmatprep.subr.mxu0 0.0
        %794 = vmatpush1.msra.mxu0 0.0
        %795 = vmatprep.subr.mxu0 0.0
        %796 = vmatpush1.msra.mxu0 0.0
        %797 = vmatprep.subr.mxu0 0.0
        %798 = vmatpush1.msra.mxu0 0.0
        %799 = vmatprep.subr.mxu0 0.0
        %800 = vmatpush1.msra.mxu0 0.0
        %801 = vmatprep.subr.mxu0 0.0
        %802 = vmatpush1.msra.mxu0 0.0
        %803 = vmatprep.subr.mxu0 0.0
        %804 = vmatpush1.msra.mxu0 0.0
        %805 = vmatprep.subr.mxu0 0.0
        %806 = vmatpush1.msra.mxu0 0.0
        %807 = vmatprep.subr.mxu0 0.0
        %808 = vmatpush1.msra.mxu0 0.0
        %809 = vmatprep.subr.mxu0 0.0
        %810 = vmatpush1.msra.mxu0 0.0
        %811 = vmatprep.subr.mxu0 0.0
        %812 = vmatpush1.msra.mxu0 0.0
        %813 = vmatprep.subr.mxu0 0.0
        %814 = vmatpush1.msra.mxu0 0.0
        %815 = vmatprep.subr.mxu0 0.0
        %816 = vmatpush1.msra.mxu0 0.0
        %817 = vmatprep.subr.mxu0 0.0
        %818 = vmatpush1.msra.mxu0 0.0
        %819 = vmatprep.subr.mxu0 0.0
        %820 = vmatpush1.msra.mxu0 0.0
        %821 = vmatprep.subr.mxu0 0.0
        %822 = vmatpush1.msra.mxu0 0.0
        %823 = vmatprep.subr.mxu0 0.0
        %824 = vmatpush1.msra.mxu0 0.0
        %825 = vmatprep.subr.mxu0 0.0
        %826 = vmatpush1.msra.mxu0 0.0
        %827 = vmatprep.subr.mxu0 0.0
        %828 = vmatpush1.msra.mxu0 0.0
        %829 = vmatprep.subr.mxu0 0.0
        %830 = vmatpush1.msra.mxu0 0.0
        %831 = vmatprep.subr.mxu0 0.0
        %832 = vmatpush1.msra.mxu0 0.0
        %833 = vmatprep.subr.mxu0 0.0
        %834 = vmatpush1.msra.mxu0 0.0
        %835 = vmatprep.subr.mxu0 0.0
        %836 = vmatpush1.msra.mxu0 0.0
        %837 = vmatprep.subr.mxu0 0.0
        %838 = vmatpush1.msra.mxu0 0.0
        %839 = vmatprep.subr.mxu0 0.0
        %840 = vmatpush1.msra.mxu0 0.0
        %841 = vmatprep.subr.mxu0 0.0
        %842 = vmatpush1.msra.mxu0 0.0
        %843 = vmatprep.mubr.f32.mxu0 0.0
        %844 = vmatmul.mubr.f32.gmra.mrb[0].mxu0 %v777
        %v845 = vpop.f32.mrb[0].mxu0
        %v846 = vadd.f32 0.0, %v845
        %v847 = vpop.f32.mrb[0].mxu0
        %848 = vdwg.mxu0
        %s849 = scalar_lea.vmem %s205, 80
        %850 = vst.msk [vmem:[%s849] sm:$0xff] %vm284, %v846
        %852 = vrot.lane.b32.xlu0 %v846, 126
        %v853 = vpop.permute.xlu0 %852
        %s855 = scalar_lea.vmem %s205, 88
        %856 = vst.msk [vmem:[%s855] sm:$0xff] %vm284, %v853
        %857 = vrot.lane.b32.xlu0 %v846, 124
        %v858 = vpop.permute.xlu0 %857
        %s860 = scalar_lea.vmem %s205, 208
        %861 = vst.msk [vmem:[%s860] sm:$0xff] %vm284, %v858
        %862 = vrot.lane.b32.xlu0 %v846, 122
        %v863 = vpop.permute.xlu0 %862
        %s865 = scalar_lea.vmem %s205, 216
        %866 = vst.msk [vmem:[%s865] sm:$0xff] %vm284, %v863
        %867 = vrot.lane.b32.xlu0 %v846, 120
        %v868 = vpop.permute.xlu0 %867
        %s870 = scalar_lea.vmem %s205, 336
        %871 = vst.msk [vmem:[%s870] sm:$0xff] %vm284, %v868
        %872 = vrot.lane.b32.xlu0 %v846, 118
        %v873 = vpop.permute.xlu0 %872
        %s875 = scalar_lea.vmem %s205, 344
        %876 = vst.msk [vmem:[%s875] sm:$0xff] %vm284, %v873
        %877 = vrot.lane.b32.xlu0 %v846, 116
        %v878 = vpop.permute.xlu0 %877
        %s880 = scalar_lea.vmem %s205, 464
        %881 = vst.msk [vmem:[%s880] sm:$0xff] %vm284, %v878
        %882 = vrot.lane.b32.xlu0 %v846, 114
        %v883 = vpop.permute.xlu0 %882
        %s885 = scalar_lea.vmem %s205, 472
        %886 = vst.msk [vmem:[%s885] sm:$0xff] %vm284, %v883
        %s887 = scalar_lea.vmem %s167, 48 [#allocation2]
        %v888 = vld [vmem:[%s887] sm:$0xff]
        %v890 = vsel %vm210, %v888, 0
        %892 = vmatprep.subr.mxu0 0.0
        %893 = vmatpush1.msra.mxu0 %v207
        %894 = vmatprep.subr.mxu0 0.0
        %895 = vmatpush1.msra.mxu0 %v208
        %896 = vmatprep.subr.mxu0 0.0
        %897 = vmatpush1.msra.mxu0 0.0
        %898 = vmatprep.subr.mxu0 0.0
        %899 = vmatpush1.msra.mxu0 0.0
        %900 = vmatprep.subr.mxu0 0.0
        %901 = vmatpush1.msra.mxu0 0.0
        %902 = vmatprep.subr.mxu0 0.0
        %903 = vmatpush1.msra.mxu0 0.0
        %904 = vmatprep.subr.mxu0 0.0
        %905 = vmatpush1.msra.mxu0 0.0
        %906 = vmatprep.subr.mxu0 0.0
        %907 = vmatpush1.msra.mxu0 0.0
        %908 = vmatprep.subr.mxu0 0.0
        %909 = vmatpush1.msra.mxu0 0.0
        %910 = vmatprep.subr.mxu0 0.0
        %911 = vmatpush1.msra.mxu0 0.0
        %912 = vmatprep.subr.mxu0 0.0
        %913 = vmatpush1.msra.mxu0 0.0
        %914 = vmatprep.subr.mxu0 0.0
        %915 = vmatpush1.msra.mxu0 0.0
        %916 = vmatprep.subr.mxu0 0.0
        %917 = vmatpush1.msra.mxu0 0.0
        %918 = vmatprep.subr.mxu0 0.0
        %919 = vmatpush1.msra.mxu0 0.0
        %920 = vmatprep.subr.mxu0 0.0
        %921 = vmatpush1.msra.mxu0 0.0
        %922 = vmatprep.subr.mxu0 0.0
        %923 = vmatpush1.msra.mxu0 0.0
        %924 = vmatprep.subr.mxu0 0.0
        %925 = vmatpush1.msra.mxu0 0.0
        %926 = vmatprep.subr.mxu0 0.0
        %927 = vmatpush1.msra.mxu0 0.0
        %928 = vmatprep.subr.mxu0 0.0
        %929 = vmatpush1.msra.mxu0 0.0
        %930 = vmatprep.subr.mxu0 0.0
        %931 = vmatpush1.msra.mxu0 0.0
        %932 = vmatprep.subr.mxu0 0.0
        %933 = vmatpush1.msra.mxu0 0.0
        %934 = vmatprep.subr.mxu0 0.0
        %935 = vmatpush1.msra.mxu0 0.0
        %936 = vmatprep.subr.mxu0 0.0
        %937 = vmatpush1.msra.mxu0 0.0
        %938 = vmatprep.subr.mxu0 0.0
        %939 = vmatpush1.msra.mxu0 0.0
        %940 = vmatprep.subr.mxu0 0.0
        %941 = vmatpush1.msra.mxu0 0.0
        %942 = vmatprep.subr.mxu0 0.0
        %943 = vmatpush1.msra.mxu0 0.0
        %944 = vmatprep.subr.mxu0 0.0
        %945 = vmatpush1.msra.mxu0 0.0
        %946 = vmatprep.subr.mxu0 0.0
        %947 = vmatpush1.msra.mxu0 0.0
        %948 = vmatprep.subr.mxu0 0.0
        %949 = vmatpush1.msra.mxu0 0.0
        %950 = vmatprep.subr.mxu0 0.0
        %951 = vmatpush1.msra.mxu0 0.0
        %952 = vmatprep.subr.mxu0 0.0
        %953 = vmatpush1.msra.mxu0 0.0
        %954 = vmatprep.subr.mxu0 0.0
        %955 = vmatpush1.msra.mxu0 0.0
        %956 = vmatprep.mubr.f32.mxu0 0.0
        %957 = vmatmul.mubr.f32.gmra.mrb[0].mxu0 %v890
        %v958 = vpop.f32.mrb[0].mxu0
        %v959 = vadd.f32 0.0, %v958
        %v960 = vpop.f32.mrb[0].mxu0
        %961 = vdwg.mxu0
        %s962 = scalar_lea.vmem %s205, 96
        %963 = vst.msk [vmem:[%s962] sm:$0xff] %vm284, %v959
        %965 = vrot.lane.b32.xlu0 %v959, 126
        %v966 = vpop.permute.xlu0 %965
        %s968 = scalar_lea.vmem %s205, 104
        %969 = vst.msk [vmem:[%s968] sm:$0xff] %vm284, %v966
        %970 = vrot.lane.b32.xlu0 %v959, 124
        %v971 = vpop.permute.xlu0 %970
        %s973 = scalar_lea.vmem %s205, 224
        %974 = vst.msk [vmem:[%s973] sm:$0xff] %vm284, %v971
        %975 = vrot.lane.b32.xlu0 %v959, 122
        %v976 = vpop.permute.xlu0 %975
        %s978 = scalar_lea.vmem %s205, 232
        %979 = vst.msk [vmem:[%s978] sm:$0xff] %vm284, %v976
        %980 = vrot.lane.b32.xlu0 %v959, 120
        %v981 = vpop.permute.xlu0 %980
        %s983 = scalar_lea.vmem %s205, 352
        %984 = vst.msk [vmem:[%s983] sm:$0xff] %vm284, %v981
        %985 = vrot.lane.b32.xlu0 %v959, 118
        %v986 = vpop.permute.xlu0 %985
        %s988 = scalar_lea.vmem %s205, 360
        %989 = vst.msk [vmem:[%s988] sm:$0xff] %vm284, %v986
        %990 = vrot.lane.b32.xlu0 %v959, 116
        %v991 = vpop.permute.xlu0 %990
        %s993 = scalar_lea.vmem %s205, 480
        %994 = vst.msk [vmem:[%s993] sm:$0xff] %vm284, %v991
        %995 = vrot.lane.b32.xlu0 %v959, 114
        %v996 = vpop.permute.xlu0 %995
        %s998 = scalar_lea.vmem %s205, 488
        %999 = vst.msk [vmem:[%s998] sm:$0xff] %vm284, %v996
        %s1000 = scalar_lea.vmem %s167, 56 [#allocation2]
        %v1001 = vld [vmem:[%s1000] sm:$0xff]
        %v1003 = vsel %vm210, %v1001, 0
        %1005 = vmatprep.subr.mxu0 0.0
        %1006 = vmatpush1.msra.mxu0 %v207
        %1007 = vmatprep.subr.mxu0 0.0
        %1008 = vmatpush1.msra.mxu0 %v208
        %1009 = vmatprep.subr.mxu0 0.0
        %1010 = vmatpush1.msra.mxu0 0.0
        %1011 = vmatprep.subr.mxu0 0.0
        %1012 = vmatpush1.msra.mxu0 0.0
        %1013 = vmatprep.subr.mxu0 0.0
        %1014 = vmatpush1.msra.mxu0 0.0
        %1015 = vmatprep.subr.mxu0 0.0
        %1016 = vmatpush1.msra.mxu0 0.0
        %1017 = vmatprep.subr.mxu0 0.0
        %1018 = vmatpush1.msra.mxu0 0.0
        %1019 = vmatprep.subr.mxu0 0.0
        %1020 = vmatpush1.msra.mxu0 0.0
        %1021 = vmatprep.subr.mxu0 0.0
        %1022 = vmatpush1.msra.mxu0 0.0
        %1023 = vmatprep.subr.mxu0 0.0
        %1024 = vmatpush1.msra.mxu0 0.0
        %1025 = vmatprep.subr.mxu0 0.0
        %1026 = vmatpush1.msra.mxu0 0.0
        %1027 = vmatprep.subr.mxu0 0.0
        %1028 = vmatpush1.msra.mxu0 0.0
        %1029 = vmatprep.subr.mxu0 0.0
        %1030 = vmatpush1.msra.mxu0 0.0
        %1031 = vmatprep.subr.mxu0 0.0
        %1032 = vmatpush1.msra.mxu0 0.0
        %1033 = vmatprep.subr.mxu0 0.0
        %1034 = vmatpush1.msra.mxu0 0.0
        %1035 = vmatprep.subr.mxu0 0.0
        %1036 = vmatpush1.msra.mxu0 0.0
        %1037 = vmatprep.subr.mxu0 0.0
        %1038 = vmatpush1.msra.mxu0 0.0
        %1039 = vmatprep.subr.mxu0 0.0
        %1040 = vmatpush1.msra.mxu0 0.0
        %1041 = vmatprep.subr.mxu0 0.0
        %1042 = vmatpush1.msra.mxu0 0.0
        %1043 = vmatprep.subr.mxu0 0.0
        %1044 = vmatpush1.msra.mxu0 0.0
        %1045 = vmatprep.subr.mxu0 0.0
        %1046 = vmatpush1.msra.mxu0 0.0
        %1047 = vmatprep.subr.mxu0 0.0
        %1048 = vmatpush1.msra.mxu0 0.0
        %1049 = vmatprep.subr.mxu0 0.0
        %1050 = vmatpush1.msra.mxu0 0.0
        %1051 = vmatprep.subr.mxu0 0.0
        %1052 = vmatpush1.msra.mxu0 0.0
        %1053 = vmatprep.subr.mxu0 0.0
        %1054 = vmatpush1.msra.mxu0 0.0
        %1055 = vmatprep.subr.mxu0 0.0
        %1056 = vmatpush1.msra.mxu0 0.0
        %1057 = vmatprep.subr.mxu0 0.0
        %1058 = vmatpush1.msra.mxu0 0.0
        %1059 = vmatprep.subr.mxu0 0.0
        %1060 = vmatpush1.msra.mxu0 0.0
        %1061 = vmatprep.subr.mxu0 0.0
        %1062 = vmatpush1.msra.mxu0 0.0
        %1063 = vmatprep.subr.mxu0 0.0
        %1064 = vmatpush1.msra.mxu0 0.0
        %1065 = vmatprep.subr.mxu0 0.0
        %1066 = vmatpush1.msra.mxu0 0.0
        %1067 = vmatprep.subr.mxu0 0.0
        %1068 = vmatpush1.msra.mxu0 0.0
        %1069 = vmatprep.mubr.f32.mxu0 0.0
        %1070 = vmatmul.mubr.f32.gmra.mrb[0].mxu0 %v1003
        %v1071 = vpop.f32.mrb[0].mxu0
        %v1072 = vadd.f32 0.0, %v1071
        %v1073 = vpop.f32.mrb[0].mxu0
        %1074 = vdwg.mxu0
        %s1075 = scalar_lea.vmem %s205, 112
        %1076 = vst.msk [vmem:[%s1075] sm:$0xff] %vm284, %v1072
        %1078 = vrot.lane.b32.xlu0 %v1072, 126
        %v1079 = vpop.permute.xlu0 %1078
        %s1081 = scalar_lea.vmem %s205, 120
        %1082 = vst.msk [vmem:[%s1081] sm:$0xff] %vm284, %v1079
        %1083 = vrot.lane.b32.xlu0 %v1072, 124
        %v1084 = vpop.permute.xlu0 %1083
        %s1086 = scalar_lea.vmem %s205, 240
        %1087 = vst.msk [vmem:[%s1086] sm:$0xff] %vm284, %v1084
        %1088 = vrot.lane.b32.xlu0 %v1072, 122
        %v1089 = vpop.permute.xlu0 %1088
        %s1091 = scalar_lea.vmem %s205, 248
        %1092 = vst.msk [vmem:[%s1091] sm:$0xff] %vm284, %v1089
        %1093 = vrot.lane.b32.xlu0 %v1072, 120
        %v1094 = vpop.permute.xlu0 %1093
        %s1096 = scalar_lea.vmem %s205, 368
        %1097 = vst.msk [vmem:[%s1096] sm:$0xff] %vm284, %v1094
        %1098 = vrot.lane.b32.xlu0 %v1072, 118
        %v1099 = vpop.permute.xlu0 %1098
        %s1101 = scalar_lea.vmem %s205, 376
        %1102 = vst.msk [vmem:[%s1101] sm:$0xff] %vm284, %v1099
        %1103 = vrot.lane.b32.xlu0 %v1072, 116
        %v1104 = vpop.permute.xlu0 %1103
        %s1106 = scalar_lea.vmem %s205, 496
        %1107 = vst.msk [vmem:[%s1106] sm:$0xff] %vm284, %v1104
        %1108 = vrot.lane.b32.xlu0 %v1072, 114
        %v1109 = vpop.permute.xlu0 %1108
        %s1111 = scalar_lea.vmem %s205, 504
        %1112 = vst.msk [vmem:[%s1111] sm:$0xff] %vm284, %v1109
        %s1113 = smul.u32 16, %s22
        %p1114 = scmp.lt.s32.totalorder %s21, 1
        %s1115 = scalar_select %p1114, %s21, 1
        %p1116 = scmp.lt.s32.totalorder %s1113, 15
        %s1117 = scalar_select %p1116, %s1113, 15
        %s1118 = smul.addr %s1115, 64
        %s1119 = sadd.s32 %s1117, %s1118
        %s1120 = smul.addr %s1119, 8
        %s1121 = scalar_lea.vmem %s2, %s1120
        // Predicated region
        $region37: #{tpu_custom_call.1} parent=27 // pred_check
          %p1122 = pneg %p98
        $region38: #{tpu_custom_call.1} parent=27 // pred_check_branch
          %1124 = sbr.rel (%p1122) target = $region40
        $region39: #{tpu_custom_call.1} parent=27 // pred_region
          %s1125 = smul.u32 16, %s22
        $region40: #{tpu_custom_call.1} parent=27 // pred_fallthru
          _
      $region28: #{tpu_custom_call.1} parent=5 // pred_fallthru
        _
      %p1126 = scmp.le.s32.totalorder 2, %s12
      // Predicated region
      $region41: #{tpu_custom_call.1} parent=5 // pred_check
        %p1127 = pneg %p1126
      $region42: #{tpu_custom_call.1} parent=5 // pred_check_branch
        %1129 = sbr.rel (%p1127) target = $region44
      $region43: #{tpu_custom_call.1} parent=5 // pred_region
        %s1130 = ssub.s32 %s12, 2
        // Predicated region
        $region45: #{tpu_custom_call.1} parent=43 // pred_check
          %p1131 = pneg %p104
        $region46: #{tpu_custom_call.1} parent=43 // pred_check_branch
          %1133 = sbr.rel (%p1131) target = $region48
        $region47: #{tpu_custom_call.1} parent=43 // pred_region
          %s1134 = smul.u32 16, %s24
          %p1135 = scmp.lt.s32.totalorder %s23, 1
          %s1136 = scalar_select %p1135, %s23, 1
          %p1137 = scmp.lt.s32.totalorder %s1134, 15
          %s1138 = scalar_select %p1137, %s1134, 15
          %s1139 = smul.addr %s1136, 64
          %s1140 = sadd.s32 %s1138, %s1139
          %s1141 = smul.addr %s1140, 8
          %s1142 = scalar_lea.vmem %s2, %s1141
        $region48: #{tpu_custom_call.1} parent=43 // pred_fallthru
          _
      $region44: #{tpu_custom_call.1} parent=5 // pred_fallthru
        _
    $region6: #{tpu_custom_call.1} parent=1 // loop_footer
      %s16 = sadd.s32 1, %s12
    $region7: #{tpu_custom_call.1} parent=1 // loop_footer_branch
      %11 = sbr.rel target = $region3
    $region8: #{tpu_custom_call.1} parent=1 // loop_exit
      _
    %1143 = vsyncpa [#allocation3], 1
    %s1144 = scalar_lea.sflag [#allocation3], 1
    %1145 = vsyncpa %s1144, 1
    %1146 = vsyncpa [#allocation5], 1

</llo_original>
